<compile_context>
chip_gen: v7x
topology: tpu7x:2x2x1
jax: 0.10.0
libtpu: 0.0.40
codegen_flags: <defaults>
</compile_context>

<pallas_src>
import functools
import math

import jax
import jax.numpy as jnp
from jax.experimental import pallas as pl
from jax.experimental.pallas import tpu as pltpu

BN_EPS = 1e-5
LN_EPS = 1e-5
CP = 128          # channel / lane padding -> lane-dense layout everywhere
STEM_K = 8        # stem im2col K dim (cin*7 = 7, padded to 8 sublanes)

# bf16 GEMM operands only on a real TPU backend (MXU-native); f32 otherwise
# (the CPU/interpret dot thunk does not implement BF16xBF16=F32).
MXU_DTYPE = jnp.bfloat16 if jax.default_backend() == "tpu" else jnp.float32


# -----------------------------------------------------------------------------
# Small in-kernel helpers
# -----------------------------------------------------------------------------


def _silu(y):
    return y * jax.nn.sigmoid(y)


def _mx(a, w):
    """Weight GEMM: MXU-dtype operands, f32 accumulation."""
    return jnp.dot(a.astype(MXU_DTYPE), w.astype(MXU_DTYPE),
                   preferred_element_type=jnp.float32)


def _gather_rows(sel, x):
    """Exact one-hot row gather as an f32 matmul (sel entries are 0/1)."""
    return jnp.dot(sel, x, preferred_element_type=jnp.float32)


def _mean_rows(x):
    """Mean over the sublane (row) axis -> (1, lanes); XLU, not MXU."""
    return jnp.mean(x, axis=0, keepdims=True)


# -----------------------------------------------------------------------------
# The single fused Pallas kernel (one batch element per grid step)
# -----------------------------------------------------------------------------


def _encoder_kernel(patches_ref, stem_w_ref, stem_vec_ref,
                    w1s_ref, w2_ref, w3_ref, sew1_ref, sew2_ref, bvec_ref,
                    qkv_w_ref, outp_w_ref, attn_vec_ref,
                    head_w_ref, head_vec_ref,
                    o_ref, *, l_conv, l_pool, block_dims, n_heads, head_dim,
                    e_real):
    # ---------------- stem: conv7/s2 (host im2col) + BN + SiLU + maxpool3/s2 --
    sv = stem_vec_ref[...]                                   # (8, CP)
    y = _mx(patches_ref[0], stem_w_ref[...])                 # (l_conv, CP)
    a = _silu(y * sv[0:1, :] + sv[1:2, :])
    r2 = jax.lax.broadcasted_iota(jnp.int32, (l_pool, l_conv), 0)
    c2 = jax.lax.broadcasted_iota(jnp.int32, (l_pool, l_conv), 1)
    r1 = jax.lax.broadcasted_iota(jnp.int32, (l_pool, 1), 0)
    h = None
    for t in range(3):                                       # MaxPool1d(3, 2, pad=1)
        sel = (c2 == 2 * r2 + (t - 1)).astype(jnp.float32)
        g = _gather_rows(sel, a)
        src = 2 * r1 + (t - 1)
        pen = jnp.where((src < 0) | (src >= l_conv), -1e30, 0.0)
        cand = g + pen
        h = cand if h is None else jnp.maximum(h, cand)      # (l_pool, CP)

    # ---------------- residual blocks (statically unrolled) -------------------
    for i, (stride, l_in, l_out) in enumerate(block_dims):
        v = bvec_ref[i]                                      # (16, CP) folded BN rows
        # conv1(1x1) and skip(1x1) share the LHS -> one (l_in, 2*CP) GEMM
        hc = _mx(h, w1s_ref[i])
        h1 = _silu(hc[:, :CP] * v[0:1, :] + v[1:2, :])       # conv1 + BN1 + SiLU
        skip_full = hc[:, CP:]                               # skip conv, full length

        # conv2: k=3, padding=1, stride -> one-hot tap gathers (selectors hoisted)
        r = jax.lax.broadcasted_iota(jnp.int32, (l_out, l_in), 0)
        c = jax.lax.broadcasted_iota(jnp.int32, (l_out, l_in), 1)
        sels = [(c == stride * r + (t - 1)).astype(jnp.float32) for t in range(3)]
        h2 = _mx(_gather_rows(sels[0], h1), w2_ref[i, 0])
        h2 = h2 + _mx(_gather_rows(sels[1], h1), w2_ref[i, 1])
        h2 = h2 + _mx(_gather_rows(sels[2], h1), w2_ref[i, 2])
        h2 = _silu(h2 * v[2:3, :] + v[3:4, :])               # BN2 + SiLU (+ Dropout id)

        # conv3: 1x1 + BN3 (no activation)
        h3 = _mx(h2, w3_ref[i]) * v[4:5, :] + v[5:6, :]      # (l_out, CP)

        # Squeeze-and-Excitation gate
        pooled = _mean_rows(h3)                              # (1, CP)
        s = _silu(_mx(pooled, sew1_ref[i]) + v[6:7, :])
        gate = jax.nn.sigmoid(_mx(s, sew2_ref[i]) + v[7:8, :])

        # residual: strided subsample of the full-length skip conv output
        if stride == 1:
            xs = skip_full
        else:
            sel0 = (c == stride * r).astype(jnp.float32)
            xs = _gather_rows(sel0, skip_full)               # (l_out, CP)
        res = xs * v[8:9, :] + v[9:10, :]                    # skip BN

        h = _silu(h3 * gate + res)                           # (l_out, CP)

    # ---------------- attention + residual + LayerNorm + global avg pool ------
    av = attn_vec_ref[...]                                   # (8, CP)
    qkv = _mx(h, qkv_w_ref[...])                             # (S, 3*CP) fused QKV
    q = qkv[:, :CP] + av[0:1, :]
    k = qkv[:, CP:2 * CP] + av[1:2, :]
    vv = qkv[:, 2 * CP:] + av[2:3, :]
    scale = 1.0 / math.sqrt(head_dim)

    if n_heads == 1:
        # padded lanes of q/k are exactly zero, so the full-lane contraction is exact
        sc = jax.lax.dot_general(q, k, (((1,), (1,)), ((), ())),
                                 preferred_element_type=jnp.float32) * scale
        sc = sc - jnp.max(sc, axis=-1, keepdims=True)
        p = jnp.exp(sc)
        p = p / jnp.sum(p, axis=-1, keepdims=True)
        ctx = jnp.dot(p, vv, preferred_element_type=jnp.float32)
    else:
        # TODO(synk): multi-head path uses full-width lane-masked matmuls
        # ((H-1)/H wasted MXU work); not exercised by this config (heads -> 1).
        lane = jax.lax.broadcasted_iota(jnp.int32, (1, CP), 1)
        ctx = None
        for hh in range(n_heads):
            msk = ((lane >= hh * head_dim) &
                   (lane < (hh + 1) * head_dim)).astype(jnp.float32)
            sc = jax.lax.dot_general(q * msk, k * msk, (((1,), (1,)), ((), ())),
                                     preferred_element_type=jnp.float32) * scale
            sc = sc - jnp.max(sc, axis=-1, keepdims=True)
            p = jnp.exp(sc)
            p = p / jnp.sum(p, axis=-1, keepdims=True)
            part = jnp.dot(p, vv * msk, preferred_element_type=jnp.float32)
            ctx = part if ctx is None else ctx + part

    out = _mx(ctx, outp_w_ref[...]) + av[3:4, :]
    z = h + out                                              # residual
    # LayerNorm over the e_real true channels: two-pass, lane-masked variance
    lane = jax.lax.broadcasted_iota(jnp.int32, (1, CP), 1)
    vmask = (lane < e_real).astype(jnp.float32)
    inv_e = 1.0 / e_real
    mu = jnp.sum(z * vmask, axis=-1, keepdims=True) * inv_e
    d = (z - mu) * vmask
    var = jnp.sum(d * d, axis=-1, keepdims=True) * inv_e
    zn = d * jax.lax.rsqrt(var + LN_EPS) * av[4:5, :] + av[5:6, :]
    pooled = _mean_rows(zn)                                  # (1, CP) global avg pool

    # ---------------- 3-layer MLP head (biases / BN folded) -------------------
    hv = head_vec_ref[...]
    t1 = _silu(_mx(pooled, head_w_ref[0]) * hv[0:1, :] + hv[1:2, :])
    t2 = _silu(_mx(t1, head_w_ref[1]) * hv[2:3, :] + hv[3:4, :])
    o_ref[0] = jax.nn.sigmoid(_mx(t2, head_w_ref[2]) * hv[4:5, :] + hv[5:6, :])


# -----------------------------------------------------------------------------
# Model definition (deterministic synthetic parameters, PyTorch-style shapes)
# -----------------------------------------------------------------------------

CONFIG = dict(
    input_channels=1,
    input_length=256,
    latent_dim=16,
    channels=[8, 16, 16, 32, 32],
    blocks_per_stage=[1, 1, 1, 1, 1],
    strides=[1, 2, 2, 2, 2],
    expansion=4,
    attention_heads=8,
)


class KeyGen:
    def __init__(self, key):
        self.key = key

    def __call__(self):
        self.key, sub = jax.random.split(self.key)
        return sub


def conv_init(kg, cout, cin, k):
    # kaiming_normal_(fan_out, relu): std = sqrt(2 / (cout * k))
    std = math.sqrt(2.0 / (cout * k))
    return jax.random.normal(kg(), (cout, cin, k), jnp.float32) * std


def bn_fold(c):
    # eval-mode BatchNorm1d with gamma=1, beta=0, running_mean=0, running_var=1
    scale = jnp.full((c,), 1.0 / math.sqrt(1.0 + BN_EPS), jnp.float32)
    shift = jnp.zeros((c,), jnp.float32)
    return scale, shift


def init_resblock(kg, in_c, out_c, stride, expansion):
    mid = out_c // expansion if expansion > 1 else in_c
    se_c = max(1, out_c // 16)
    blk = {
        "stride": stride,
        "w1": conv_init(kg, mid, in_c, 1), "bn1": bn_fold(mid),
        "w2": conv_init(kg, mid, mid, 3), "bn2": bn_fold(mid),
        "w3": conv_init(kg, out_c, mid, 1), "bn3": bn_fold(out_c),
        "se_w1": conv_init(kg, se_c, out_c, 1),
        "se_b1": jnp.zeros((se_c,), jnp.float32),
        "se_w2": conv_init(kg, out_c, se_c, 1),
        "se_b2": jnp.zeros((out_c,), jnp.float32),
    }
    if stride != 1 or in_c != out_c:
        blk["skip_w"] = conv_init(kg, out_c, in_c, 1)
        blk["skip_bn"] = bn_fold(out_c)
    return blk


def init_params(key, cfg):
    kg = KeyGen(key)
    chans = cfg["channels"]
    p = {}
    p["stem_w"] = conv_init(kg, chans[0], cfg["input_channels"], 7)
    p["stem_bn"] = bn_fold(chans[0])

    stages = []
    in_c = chans[0]
    for out_c, nblk, stride in zip(
        chans[1:], cfg["blocks_per_stage"][1:], cfg["strides"][1:]
    ):
        blocks = [init_resblock(kg, in_c, out_c, stride, cfg["expansion"])]
        for _ in range(nblk - 1):
            blocks.append(init_resblock(kg, out_c, out_c, 1, cfg["expansion"]))
        stages.append(blocks)
        in_c = out_c
    p["stages"] = stages

    E = chans[-1]
    max_heads = E // 64 if E >= 64 else 1
    heads = min(cfg["attention_heads"], max_heads)
    for h in range(heads, 0, -1):
        if E % h == 0:
            heads = h
            break
    p["attn"] = {
        "heads": heads,
        "in_proj_w": jax.random.normal(kg(), (3 * E, E), jnp.float32) / math.sqrt(E),
        "in_proj_b": jnp.zeros((3 * E,), jnp.float32),
        "out_proj_w": jax.random.normal(kg(), (E, E), jnp.float32) / math.sqrt(E),
        "out_proj_b": jnp.zeros((E,), jnp.float32),
        "ln_g": jnp.ones((E,), jnp.float32),
        "ln_b": jnp.zeros((E,), jnp.float32),
    }

    head_dim = E * 2
    lat = cfg["latent_dim"]
    p["head"] = {
        "w1": jax.random.normal(kg(), (head_dim, E), jnp.float32) * 0.01,
        "b1": jnp.zeros((head_dim,), jnp.float32),
        "bn1": bn_fold(head_dim),
        "w2": jax.random.normal(kg(), (lat * 2, head_dim), jnp.float32) * 0.01,
        "b2": jnp.zeros((lat * 2,), jnp.float32),
        "bn2": bn_fold(lat * 2),
        "w3": jax.random.normal(kg(), (lat, lat * 2), jnp.float32) * 0.01,
        "b3": jnp.zeros((lat,), jnp.float32),
    }
    return p


# -----------------------------------------------------------------------------
# Parameter packing: pad channel dims to 128 lanes, weights -> MXU dtype,
# per-block weights stacked so the fused kernel takes a small fixed arg list.
# -----------------------------------------------------------------------------


def _pad_to(m, rows, cols, dtype):
    out = jnp.zeros((rows, cols), jnp.float32)
    out = out.at[: m.shape[0], : m.shape[1]].set(m)
    return out.astype(dtype)


def _pad_mat(m):
    assert m.shape[0] <= CP and m.shape[1] <= CP
    return _pad_to(m, CP, CP, MXU_DTYPE)


def _pad_vec(x):
    assert x.shape[0] <= CP
    return jnp.zeros((CP,), jnp.float32).at[: x.shape[0]].set(x)


def _vec_rows(rows, nrows):
    out = jnp.zeros((nrows, CP), jnp.float32)
    for i, r in enumerate(rows):
        out = out.at[i].set(_pad_vec(r))
    return out


def pack_block(blk):
    # Every block in this config changes channels or strides -> projection skip.
    assert "skip_w" in blk
    s1, b1 = blk["bn1"]
    s2, b2 = blk["bn2"]
    s3, b3 = blk["bn3"]
    ss, sb = blk["skip_bn"]
    w1 = _pad_mat(blk["w1"][:, :, 0].T)
    sk = _pad_mat(blk["skip_w"][:, :, 0].T)
    return dict(
        stride=blk["stride"],
        w1s=jnp.concatenate([w1, sk], axis=1),                      # (CP, 2*CP)
        w2=jnp.stack([_pad_mat(blk["w2"][:, :, t].T) for t in range(3)]),
        w3=_pad_mat(blk["w3"][:, :, 0].T),
        se_w1=_pad_mat(blk["se_w1"][:, :, 0].T),
        se_w2=_pad_mat(blk["se_w2"][:, :, 0].T),
        vec=_vec_rows([s1, b1, s2, b2, s3, b3,
                       blk["se_b1"], blk["se_b2"], ss, sb], 16),
    )


def pack_params(p, cfg):
    packed = {}
    cout, cin, k = p["stem_w"].shape
    assert cin * k <= STEM_K
    wstem = p["stem_w"].transpose(1, 2, 0).reshape(cin * k, cout)
    packed["stem_w"] = _pad_to(wstem, STEM_K, CP, MXU_DTYPE)
    ss, sb = p["stem_bn"]
    packed["stem_vec"] = _vec_rows([ss, sb], 8)

    blocks = [pack_block(blk) for stage in p["stages"] for blk in stage]
    packed["block_strides"] = [b["stride"] for b in blocks]
    packed["blk_w1s"] = jnp.stack([b["w1s"] for b in blocks])        # (NB, CP, 2CP)
    packed["blk_w2"] = jnp.stack([b["w2"] for b in blocks])          # (NB, 3, CP, CP)
    packed["blk_w3"] = jnp.stack([b["w3"] for b in blocks])
    packed["blk_sew1"] = jnp.stack([b["se_w1"] for b in blocks])
    packed["blk_sew2"] = jnp.stack([b["se_w2"] for b in blocks])
    packed["blk_vec"] = jnp.stack([b["vec"] for b in blocks])        # (NB, 16, CP)

    a = p["attn"]
    E = cfg["channels"][-1]
    packed["attn_heads"] = a["heads"]
    packed["attn_qkv_w"] = jnp.concatenate(
        [_pad_mat(a["in_proj_w"][:E].T),
         _pad_mat(a["in_proj_w"][E:2 * E].T),
         _pad_mat(a["in_proj_w"][2 * E:].T)], axis=1)                # (CP, 3*CP)
    packed["attn_out_w"] = _pad_mat(a["out_proj_w"].T)
    packed["attn_vec"] = _vec_rows(
        [a["in_proj_b"][:E], a["in_proj_b"][E:2 * E], a["in_proj_b"][2 * E:],
         a["out_proj_b"], a["ln_g"], a["ln_b"]], 8)

    hp = p["head"]
    s1, sh1 = hp["bn1"]
    s2, sh2 = hp["bn2"]
    lat = cfg["latent_dim"]
    packed["head_w"] = jnp.stack([_pad_mat(hp["w1"].T), _pad_mat(hp["w2"].T),
                                  _pad_mat(hp["w3"].T)])
    packed["head_vec"] = _vec_rows(
        [s1, hp["b1"] * s1 + sh1, s2, hp["b2"] * s2 + sh2,
         jnp.ones((lat,), jnp.float32), hp["b3"]], 8)
    return packed


# -----------------------------------------------------------------------------
# Forward pass: one pallas_call over grid=(B,)
# -----------------------------------------------------------------------------


def encoder_forward(packed, x, cfg):
    B, cin, L = x.shape
    l_conv = (L + 2 * 3 - 7) // 2 + 1
    l_pool = (l_conv + 2 - 3) // 2 + 1

    # Host-side im2col for the stem conv (k=7, s=2, p=3).  Last dim stays tiny
    # (cin*7 -> 8), no 128-lane inflation.
    xpad = jnp.pad(x, ((0, 0), (0, 0), (3, 3)))
    taps = jnp.stack([xpad[:, :, t: t + 2 * l_conv: 2] for t in range(7)], axis=-1)
    patches = taps.transpose(0, 2, 1, 3).reshape(B, l_conv, cin * 7)
    patches = jnp.pad(
        patches, ((0, 0), (0, 0), (0, STEM_K - cin * 7))).astype(jnp.float32)

    strides = packed["block_strides"]
    nb = len(strides)
    block_dims = []
    l = l_pool
    for s in strides:
        lo = (l + 2 - 3) // s + 1
        block_dims.append((s, l, lo))
        l = lo

    heads = packed["attn_heads"]
    e_real = cfg["channels"][-1]

    kern = functools.partial(
        _encoder_kernel, l_conv=l_conv, l_pool=l_pool,
        block_dims=tuple(block_dims), n_heads=heads,
        head_dim=e_real // heads, e_real=e_real)

    const2 = lambda b: (0, 0)
    const3 = lambda b: (0, 0, 0)
    const4 = lambda b: (0, 0, 0, 0)

    out = pl.pallas_call(
        kern,
        out_shape=jax.ShapeDtypeStruct((B, 1, CP), jnp.float32),
        grid=(B,),
        in_specs=[
            pl.BlockSpec((1, l_conv, STEM_K), lambda b: (b, 0, 0)),   # patches
            pl.BlockSpec((STEM_K, CP), const2),                       # stem_w
            pl.BlockSpec((8, CP), const2),                            # stem_vec
            pl.BlockSpec((nb, CP, 2 * CP), const3),                   # w1|skip
            pl.BlockSpec((nb, 3, CP, CP), const4),                    # w2 taps
            pl.BlockSpec((nb, CP, CP), const3),                       # w3
            pl.BlockSpec((nb, CP, CP), const3),                       # se_w1
            pl.BlockSpec((nb, CP, CP), const3),                       # se_w2
            pl.BlockSpec((nb, 16, CP), const3),                       # block vec
            pl.BlockSpec((CP, 3 * CP), const2),                       # Wq|Wk|Wv
            pl.BlockSpec((CP, CP), const2),                           # out proj
            pl.BlockSpec((8, CP), const2),                            # attn vec
            pl.BlockSpec((3, CP, CP), const3),                        # head w
            pl.BlockSpec((8, CP), const2),                            # head vec
        ],
        out_specs=pl.BlockSpec((1, 1, CP), lambda b: (b, 0, 0)),
        compiler_params=pltpu.CompilerParams(
            dimension_semantics=("parallel",)),
    )(patches, packed["stem_w"], packed["stem_vec"],
      packed["blk_w1s"], packed["blk_w2"], packed["blk_w3"],
      packed["blk_sew1"], packed["blk_sew2"], packed["blk_vec"],
      packed["attn_qkv_w"], packed["attn_out_w"], packed["attn_vec"],
      packed["head_w"], packed["head_vec"])

    return out.reshape(B, CP)[:, : cfg["latent_dim"]]


# -----------------------------------------------------------------------------


if __name__ == "__main__":
    key = jax.random.PRNGKey(0)
    pkey, xkey = jax.random.split(key)
    logical = init_params(pkey, CONFIG)
    params = pack_params(logical, CONFIG)

    x = jax.random.normal(
        xkey, (2, CONFIG["input_channels"], CONFIG["input_length"]), jnp.float32
    )

    fwd = jax.jit(lambda inp: encoder_forward(params, inp, CONFIG))
    out = jax.block_until_ready(fwd(x))

    assert out.shape == (2, CONFIG["latent_dim"]), out.shape
    assert bool(jnp.all(jnp.isfinite(out)))
    assert bool(jnp.all((out >= 0.0) & (out <= 1.0)))  # final Sigmoid
    print("KERNEL_OK")
</pallas_src>

<mosaic_0001>
module attributes {stable_mosaic.version = 11 : i64} {
  func.func @_encoder_kernel(%arg0: i32, %arg1: memref<1x128x8xf32, #tpu.memory_space<vmem>>, %arg2: memref<8x128xf32, #tpu.memory_space<vmem>>, %arg3: memref<8x128xf32, #tpu.memory_space<vmem>>, %arg4: memref<4x128x256xf32, #tpu.memory_space<vmem>>, %arg5: memref<4x3x128x128xf32, #tpu.memory_space<vmem>>, %arg6: memref<4x128x128xf32, #tpu.memory_space<vmem>>, %arg7: memref<4x128x128xf32, #tpu.memory_space<vmem>>, %arg8: memref<4x128x128xf32, #tpu.memory_space<vmem>>, %arg9: memref<4x16x128xf32, #tpu.memory_space<vmem>>, %arg10: memref<128x384xf32, #tpu.memory_space<vmem>>, %arg11: memref<128x128xf32, #tpu.memory_space<vmem>>, %arg12: memref<8x128xf32, #tpu.memory_space<vmem>>, %arg13: memref<3x128x128xf32, #tpu.memory_space<vmem>>, %arg14: memref<8x128xf32, #tpu.memory_space<vmem>>, %arg15: memref<1x1x128xf32, #tpu.memory_space<vmem>>) attributes {dimension_semantics = [#tpu.dimension_semantics<parallel>], iteration_bounds = array<i64: 2>, scalar_prefetch = 0 : i64, scratch_operands = 0 : i64, tpu.core_type = #tpu.core_type<tc>, window_params = [{transform_indices = @transform_0, window_bounds = array<i64: 1, 128, 8>}, {pipeline_mode = #tpu.pipeline_mode<synchronous>, transform_indices = @transform_1, window_bounds = array<i64: 8, 128>}, {pipeline_mode = #tpu.pipeline_mode<synchronous>, transform_indices = @transform_2, window_bounds = array<i64: 8, 128>}, {pipeline_mode = #tpu.pipeline_mode<synchronous>, transform_indices = @transform_3, window_bounds = array<i64: 4, 128, 256>}, {pipeline_mode = #tpu.pipeline_mode<synchronous>, transform_indices = @transform_4, window_bounds = array<i64: 4, 3, 128, 128>}, {pipeline_mode = #tpu.pipeline_mode<synchronous>, transform_indices = @transform_5, window_bounds = array<i64: 4, 128, 128>}, {pipeline_mode = #tpu.pipeline_mode<synchronous>, transform_indices = @transform_6, window_bounds = array<i64: 4, 128, 128>}, {pipeline_mode = #tpu.pipeline_mode<synchronous>, transform_indices = @transform_7, window_bounds = array<i64: 4, 128, 128>}, {pipeline_mode = #tpu.pipeline_mode<synchronous>, transform_indices = @transform_8, window_bounds = array<i64: 4, 16, 128>}, {pipeline_mode = #tpu.pipeline_mode<synchronous>, transform_indices = @transform_9, window_bounds = array<i64: 128, 384>}, {pipeline_mode = #tpu.pipeline_mode<synchronous>, transform_indices = @transform_10, window_bounds = array<i64: 128, 128>}, {pipeline_mode = #tpu.pipeline_mode<synchronous>, transform_indices = @transform_11, window_bounds = array<i64: 8, 128>}, {pipeline_mode = #tpu.pipeline_mode<synchronous>, transform_indices = @transform_12, window_bounds = array<i64: 3, 128, 128>}, {pipeline_mode = #tpu.pipeline_mode<synchronous>, transform_indices = @transform_13, window_bounds = array<i64: 8, 128>}, {transform_indices = @transform_14, window_bounds = array<i64: 1, 1, 128>}]} {
    %c0 = arith.constant 0 : index
    %c0_0 = arith.constant 0 : index
    %0 = vector.load %arg3[%c0, %c0_0] : memref<8x128xf32, #tpu.memory_space<vmem>>, vector<8x128xf32>
    %c0_1 = arith.constant 0 : index
    %c0_2 = arith.constant 0 : index
    %c0_3 = arith.constant 0 : index
    %1 = vector.load %arg1[%c0_1, %c0_2, %c0_3] : memref<1x128x8xf32, #tpu.memory_space<vmem>>, vector<1x128x8xf32>
    %2 = vector.shape_cast %1 : vector<1x128x8xf32> to vector<128x8xf32>
    %c0_4 = arith.constant 0 : index
    %c0_5 = arith.constant 0 : index
    %3 = vector.load %arg2[%c0_4, %c0_5] : memref<8x128xf32, #tpu.memory_space<vmem>>, vector<8x128xf32>
    %cst = arith.constant dense<0.000000e+00> : vector<128x128xf32>
    %4 = tpu.matmul %2, %3, %cst {dimension_numbers = #tpu.dot_dimension_numbers<[1], [0], [0], [1], [0, 0, 1, 1], [], []>} : vector<128x8xf32>, vector<8x128xf32>, vector<128x128xf32> -> vector<128x128xf32>
    %5 = vector.extract_strided_slice %0 {offsets = [0, 0], sizes = [1, 128], strides = [1, 1]} : vector<8x128xf32> to vector<1x128xf32>
    %6 = vector.broadcast %5 : vector<1x128xf32> to vector<128x128xf32>
    %7 = arith.mulf %4, %6 : vector<128x128xf32>
    %8 = vector.extract_strided_slice %0 {offsets = [1, 0], sizes = [1, 128], strides = [1, 1]} : vector<8x128xf32> to vector<1x128xf32>
    %9 = vector.broadcast %8 : vector<1x128xf32> to vector<128x128xf32>
    %10 = arith.addf %7, %9 : vector<128x128xf32>
    %11 = arith.negf %10 : vector<128x128xf32>
    %12 = math.exp %11 : vector<128x128xf32>
    %cst_6 = arith.constant 1.000000e+00 : f32
    %13 = vector.broadcast %cst_6 : f32 to vector<128x128xf32>
    %14 = arith.addf %13, %12 : vector<128x128xf32>
    %15 = arith.divf %13, %14 : vector<128x128xf32>
    %16 = arith.mulf %10, %15 : vector<128x128xf32>
    %17 = tpu.iota {dimensions = array<i32: 0>} : vector<64x128xi32>
    %18 = tpu.iota {dimensions = array<i32: 1>} : vector<64x128xi32>
    %19 = tpu.iota {dimensions = array<i32: 0>} : vector<64x1xi32>
    %c2_i32 = arith.constant 2 : i32
    %20 = vector.broadcast %c2_i32 : i32 to vector<64x128xi32>
    %21 = arith.muli %20, %17 : vector<64x128xi32>
    %c-1_i32 = arith.constant -1 : i32
    %22 = vector.broadcast %c-1_i32 : i32 to vector<64x128xi32>
    %23 = arith.addi %21, %22 : vector<64x128xi32>
    %24 = arith.cmpi eq, %18, %23 : vector<64x128xi32>
    %25 = arith.extui %24 : vector<64x128xi1> to vector<64x128xi32>
    %26 = arith.sitofp %25 : vector<64x128xi32> to vector<64x128xf32>
    %cst_7 = arith.constant dense<0.000000e+00> : vector<64x128xf32>
    %27 = tpu.matmul %26, %16, %cst_7 {dimension_numbers = #tpu.dot_dimension_numbers<[1], [0], [0], [1], [0, 0, 1, 1], [], []>} : vector<64x128xf32>, vector<128x128xf32>, vector<64x128xf32> -> vector<64x128xf32>
    %c2_i32_8 = arith.constant 2 : i32
    %28 = vector.broadcast %c2_i32_8 : i32 to vector<64x1xi32>
    %29 = arith.muli %28, %19 : vector<64x1xi32>
    %c-1_i32_9 = arith.constant -1 : i32
    %30 = vector.broadcast %c-1_i32_9 : i32 to vector<64x1xi32>
    %31 = arith.addi %29, %30 : vector<64x1xi32>
    %c0_i32 = arith.constant 0 : i32
    %32 = vector.broadcast %c0_i32 : i32 to vector<64x1xi32>
    %33 = arith.cmpi slt, %31, %32 : vector<64x1xi32>
    %c128_i32 = arith.constant 128 : i32
    %34 = vector.broadcast %c128_i32 : i32 to vector<64x1xi32>
    %35 = arith.cmpi sge, %31, %34 : vector<64x1xi32>
    %36 = arith.ori %33, %35 : vector<64x1xi1>
    %cst_10 = arith.constant -1.000000e+30 : f32
    %cst_11 = arith.constant 0.000000e+00 : f32
    %37 = vector.broadcast %cst_10 : f32 to vector<64x1xf32>
    %38 = vector.broadcast %cst_11 : f32 to vector<64x1xf32>
    %39 = arith.select %36, %37, %38 : vector<64x1xi1>, vector<64x1xf32>
    %40 = vector.broadcast %39 : vector<64x1xf32> to vector<64x128xf32>
    %41 = arith.addf %27, %40 : vector<64x128xf32>
    %c2_i32_12 = arith.constant 2 : i32
    %42 = vector.broadcast %c2_i32_12 : i32 to vector<64x128xi32>
    %43 = arith.muli %42, %17 : vector<64x128xi32>
    %c0_i32_13 = arith.constant 0 : i32
    %44 = vector.broadcast %c0_i32_13 : i32 to vector<64x128xi32>
    %45 = arith.addi %43, %44 : vector<64x128xi32>
    %46 = arith.cmpi eq, %18, %45 : vector<64x128xi32>
    %47 = arith.extui %46 : vector<64x128xi1> to vector<64x128xi32>
    %48 = arith.sitofp %47 : vector<64x128xi32> to vector<64x128xf32>
    %cst_14 = arith.constant dense<0.000000e+00> : vector<64x128xf32>
    %49 = tpu.matmul %48, %16, %cst_14 {dimension_numbers = #tpu.dot_dimension_numbers<[1], [0], [0], [1], [0, 0, 1, 1], [], []>} : vector<64x128xf32>, vector<128x128xf32>, vector<64x128xf32> -> vector<64x128xf32>
    %c2_i32_15 = arith.constant 2 : i32
    %50 = vector.broadcast %c2_i32_15 : i32 to vector<64x1xi32>
    %51 = arith.muli %50, %19 : vector<64x1xi32>
    %c0_i32_16 = arith.constant 0 : i32
    %52 = vector.broadcast %c0_i32_16 : i32 to vector<64x1xi32>
    %53 = arith.addi %51, %52 : vector<64x1xi32>
    %c0_i32_17 = arith.constant 0 : i32
    %54 = vector.broadcast %c0_i32_17 : i32 to vector<64x1xi32>
    %55 = arith.cmpi slt, %53, %54 : vector<64x1xi32>
    %c128_i32_18 = arith.constant 128 : i32
    %56 = vector.broadcast %c128_i32_18 : i32 to vector<64x1xi32>
    %57 = arith.cmpi sge, %53, %56 : vector<64x1xi32>
    %58 = arith.ori %55, %57 : vector<64x1xi1>
    %cst_19 = arith.constant -1.000000e+30 : f32
    %cst_20 = arith.constant 0.000000e+00 : f32
    %59 = vector.broadcast %cst_19 : f32 to vector<64x1xf32>
    %60 = vector.broadcast %cst_20 : f32 to vector<64x1xf32>
    %61 = arith.select %58, %59, %60 : vector<64x1xi1>, vector<64x1xf32>
    %62 = vector.broadcast %61 : vector<64x1xf32> to vector<64x128xf32>
    %63 = arith.addf %49, %62 : vector<64x128xf32>
    %64 = arith.maximumf %41, %63 : vector<64x128xf32>
    %c2_i32_21 = arith.constant 2 : i32
    %65 = vector.broadcast %c2_i32_21 : i32 to vector<64x128xi32>
    %66 = arith.muli %65, %17 : vector<64x128xi32>
    %c1_i32 = arith.constant 1 : i32
    %67 = vector.broadcast %c1_i32 : i32 to vector<64x128xi32>
    %68 = arith.addi %66, %67 : vector<64x128xi32>
    %69 = arith.cmpi eq, %18, %68 : vector<64x128xi32>
    %70 = arith.extui %69 : vector<64x128xi1> to vector<64x128xi32>
    %71 = arith.sitofp %70 : vector<64x128xi32> to vector<64x128xf32>
    %cst_22 = arith.constant dense<0.000000e+00> : vector<64x128xf32>
    %72 = tpu.matmul %71, %16, %cst_22 {dimension_numbers = #tpu.dot_dimension_numbers<[1], [0], [0], [1], [0, 0, 1, 1], [], []>} : vector<64x128xf32>, vector<128x128xf32>, vector<64x128xf32> -> vector<64x128xf32>
    %c2_i32_23 = arith.constant 2 : i32
    %73 = vector.broadcast %c2_i32_23 : i32 to vector<64x1xi32>
    %74 = arith.muli %73, %19 : vector<64x1xi32>
    %c1_i32_24 = arith.constant 1 : i32
    %75 = vector.broadcast %c1_i32_24 : i32 to vector<64x1xi32>
    %76 = arith.addi %74, %75 : vector<64x1xi32>
    %c0_i32_25 = arith.constant 0 : i32
    %77 = vector.broadcast %c0_i32_25 : i32 to vector<64x1xi32>
    %78 = arith.cmpi slt, %76, %77 : vector<64x1xi32>
    %c128_i32_26 = arith.constant 128 : i32
    %79 = vector.broadcast %c128_i32_26 : i32 to vector<64x1xi32>
    %80 = arith.cmpi sge, %76, %79 : vector<64x1xi32>
    %81 = arith.ori %78, %80 : vector<64x1xi1>
    %cst_27 = arith.constant -1.000000e+30 : f32
    %cst_28 = arith.constant 0.000000e+00 : f32
    %82 = vector.broadcast %cst_27 : f32 to vector<64x1xf32>
    %83 = vector.broadcast %cst_28 : f32 to vector<64x1xf32>
    %84 = arith.select %81, %82, %83 : vector<64x1xi1>, vector<64x1xf32>
    %85 = vector.broadcast %84 : vector<64x1xf32> to vector<64x128xf32>
    %86 = arith.addf %72, %85 : vector<64x128xf32>
    %87 = arith.maximumf %64, %86 : vector<64x128xf32>
    %c0_29 = arith.constant 0 : index
    %c0_30 = arith.constant 0 : index
    %c0_31 = arith.constant 0 : index
    %88 = vector.load %arg9[%c0_29, %c0_30, %c0_31] : memref<4x16x128xf32, #tpu.memory_space<vmem>>, vector<1x16x128xf32>
    %89 = vector.shape_cast %88 : vector<1x16x128xf32> to vector<16x128xf32>
    %c0_32 = arith.constant 0 : index
    %c0_33 = arith.constant 0 : index
    %c0_34 = arith.constant 0 : index
    %90 = vector.load %arg4[%c0_32, %c0_33, %c0_34] : memref<4x128x256xf32, #tpu.memory_space<vmem>>, vector<1x128x256xf32>
    %91 = vector.shape_cast %90 : vector<1x128x256xf32> to vector<128x256xf32>
    %cst_35 = arith.constant dense<0.000000e+00> : vector<64x256xf32>
    %92 = tpu.matmul %87, %91, %cst_35 {dimension_numbers = #tpu.dot_dimension_numbers<[1], [0], [0], [1], [0, 0, 1, 1], [], []>} : vector<64x128xf32>, vector<128x256xf32>, vector<64x256xf32> -> vector<64x256xf32>
    %93 = vector.extract_strided_slice %92 {offsets = [0, 0], sizes = [64, 128], strides = [1, 1]} : vector<64x256xf32> to vector<64x128xf32>
    %94 = vector.extract_strided_slice %89 {offsets = [0, 0], sizes = [1, 128], strides = [1, 1]} : vector<16x128xf32> to vector<1x128xf32>
    %95 = vector.broadcast %94 : vector<1x128xf32> to vector<64x128xf32>
    %96 = arith.mulf %93, %95 : vector<64x128xf32>
    %97 = vector.extract_strided_slice %89 {offsets = [1, 0], sizes = [1, 128], strides = [1, 1]} : vector<16x128xf32> to vector<1x128xf32>
    %98 = vector.broadcast %97 : vector<1x128xf32> to vector<64x128xf32>
    %99 = arith.addf %96, %98 : vector<64x128xf32>
    %100 = arith.negf %99 : vector<64x128xf32>
    %101 = math.exp %100 : vector<64x128xf32>
    %cst_36 = arith.constant 1.000000e+00 : f32
    %102 = vector.broadcast %cst_36 : f32 to vector<64x128xf32>
    %103 = arith.addf %102, %101 : vector<64x128xf32>
    %104 = arith.divf %102, %103 : vector<64x128xf32>
    %105 = arith.mulf %99, %104 : vector<64x128xf32>
    %106 = vector.extract_strided_slice %92 {offsets = [0, 128], sizes = [64, 128], strides = [1, 1]} : vector<64x256xf32> to vector<64x128xf32>
    %107 = tpu.iota {dimensions = array<i32: 0>} : vector<32x64xi32>
    %108 = tpu.iota {dimensions = array<i32: 1>} : vector<32x64xi32>
    %c2_i32_37 = arith.constant 2 : i32
    %109 = vector.broadcast %c2_i32_37 : i32 to vector<32x64xi32>
    %110 = arith.muli %109, %107 : vector<32x64xi32>
    %c-1_i32_38 = arith.constant -1 : i32
    %111 = vector.broadcast %c-1_i32_38 : i32 to vector<32x64xi32>
    %112 = arith.addi %110, %111 : vector<32x64xi32>
    %113 = arith.cmpi eq, %108, %112 : vector<32x64xi32>
    %114 = arith.extui %113 : vector<32x64xi1> to vector<32x64xi32>
    %115 = arith.sitofp %114 : vector<32x64xi32> to vector<32x64xf32>
    %c2_i32_39 = arith.constant 2 : i32
    %116 = vector.broadcast %c2_i32_39 : i32 to vector<32x64xi32>
    %117 = arith.muli %116, %107 : vector<32x64xi32>
    %c0_i32_40 = arith.constant 0 : i32
    %118 = vector.broadcast %c0_i32_40 : i32 to vector<32x64xi32>
    %119 = arith.addi %117, %118 : vector<32x64xi32>
    %120 = arith.cmpi eq, %108, %119 : vector<32x64xi32>
    %121 = arith.extui %120 : vector<32x64xi1> to vector<32x64xi32>
    %122 = arith.sitofp %121 : vector<32x64xi32> to vector<32x64xf32>
    %c2_i32_41 = arith.constant 2 : i32
    %123 = vector.broadcast %c2_i32_41 : i32 to vector<32x64xi32>
    %124 = arith.muli %123, %107 : vector<32x64xi32>
    %c1_i32_42 = arith.constant 1 : i32
    %125 = vector.broadcast %c1_i32_42 : i32 to vector<32x64xi32>
    %126 = arith.addi %124, %125 : vector<32x64xi32>
    %127 = arith.cmpi eq, %108, %126 : vector<32x64xi32>
    %128 = arith.extui %127 : vector<32x64xi1> to vector<32x64xi32>
    %129 = arith.sitofp %128 : vector<32x64xi32> to vector<32x64xf32>
    %cst_43 = arith.constant dense<0.000000e+00> : vector<32x128xf32>
    %130 = tpu.matmul %115, %105, %cst_43 {dimension_numbers = #tpu.dot_dimension_numbers<[1], [0], [0], [1], [0, 0, 1, 1], [], []>} : vector<32x64xf32>, vector<64x128xf32>, vector<32x128xf32> -> vector<32x128xf32>
    %c0_44 = arith.constant 0 : index
    %c0_45 = arith.constant 0 : index
    %c0_46 = arith.constant 0 : index
    %c0_47 = arith.constant 0 : index
    %131 = vector.load %arg5[%c0_44, %c0_45, %c0_46, %c0_47] : memref<4x3x128x128xf32, #tpu.memory_space<vmem>>, vector<1x1x128x128xf32>
    %132 = vector.shape_cast %131 : vector<1x1x128x128xf32> to vector<128x128xf32>
    %cst_48 = arith.constant dense<0.000000e+00> : vector<32x128xf32>
    %133 = tpu.matmul %130, %132, %cst_48 {dimension_numbers = #tpu.dot_dimension_numbers<[1], [0], [0], [1], [0, 0, 1, 1], [], []>} : vector<32x128xf32>, vector<128x128xf32>, vector<32x128xf32> -> vector<32x128xf32>
    %cst_49 = arith.constant dense<0.000000e+00> : vector<32x128xf32>
    %134 = tpu.matmul %122, %105, %cst_49 {dimension_numbers = #tpu.dot_dimension_numbers<[1], [0], [0], [1], [0, 0, 1, 1], [], []>} : vector<32x64xf32>, vector<64x128xf32>, vector<32x128xf32> -> vector<32x128xf32>
    %c0_50 = arith.constant 0 : index
    %c1 = arith.constant 1 : index
    %c0_51 = arith.constant 0 : index
    %c0_52 = arith.constant 0 : index
    %135 = vector.load %arg5[%c0_50, %c1, %c0_51, %c0_52] : memref<4x3x128x128xf32, #tpu.memory_space<vmem>>, vector<1x1x128x128xf32>
    %136 = vector.shape_cast %135 : vector<1x1x128x128xf32> to vector<128x128xf32>
    %cst_53 = arith.constant dense<0.000000e+00> : vector<32x128xf32>
    %137 = tpu.matmul %134, %136, %cst_53 {dimension_numbers = #tpu.dot_dimension_numbers<[1], [0], [0], [1], [0, 0, 1, 1], [], []>} : vector<32x128xf32>, vector<128x128xf32>, vector<32x128xf32> -> vector<32x128xf32>
    %138 = arith.addf %133, %137 : vector<32x128xf32>
    %cst_54 = arith.constant dense<0.000000e+00> : vector<32x128xf32>
    %139 = tpu.matmul %129, %105, %cst_54 {dimension_numbers = #tpu.dot_dimension_numbers<[1], [0], [0], [1], [0, 0, 1, 1], [], []>} : vector<32x64xf32>, vector<64x128xf32>, vector<32x128xf32> -> vector<32x128xf32>
    %c0_55 = arith.constant 0 : index
    %c2 = arith.constant 2 : index
    %c0_56 = arith.constant 0 : index
    %c0_57 = arith.constant 0 : index
    %140 = vector.load %arg5[%c0_55, %c2, %c0_56, %c0_57] : memref<4x3x128x128xf32, #tpu.memory_space<vmem>>, vector<1x1x128x128xf32>
    %141 = vector.shape_cast %140 : vector<1x1x128x128xf32> to vector<128x128xf32>
    %cst_58 = arith.constant dense<0.000000e+00> : vector<32x128xf32>
    %142 = tpu.matmul %139, %141, %cst_58 {dimension_numbers = #tpu.dot_dimension_numbers<[1], [0], [0], [1], [0, 0, 1, 1], [], []>} : vector<32x128xf32>, vector<128x128xf32>, vector<32x128xf32> -> vector<32x128xf32>
    %143 = arith.addf %138, %142 : vector<32x128xf32>
    %144 = vector.extract_strided_slice %89 {offsets = [2, 0], sizes = [1, 128], strides = [1, 1]} : vector<16x128xf32> to vector<1x128xf32>
    %145 = vector.broadcast %144 : vector<1x128xf32> to vector<32x128xf32>
    %146 = arith.mulf %143, %145 : vector<32x128xf32>
    %147 = vector.extract_strided_slice %89 {offsets = [3, 0], sizes = [1, 128], strides = [1, 1]} : vector<16x128xf32> to vector<1x128xf32>
    %148 = vector.broadcast %147 : vector<1x128xf32> to vector<32x128xf32>
    %149 = arith.addf %146, %148 : vector<32x128xf32>
    %150 = arith.negf %149 : vector<32x128xf32>
    %151 = math.exp %150 : vector<32x128xf32>
    %cst_59 = arith.constant 1.000000e+00 : f32
    %152 = vector.broadcast %cst_59 : f32 to vector<32x128xf32>
    %153 = arith.addf %152, %151 : vector<32x128xf32>
    %154 = arith.divf %152, %153 : vector<32x128xf32>
    %155 = arith.mulf %149, %154 : vector<32x128xf32>
    %c0_60 = arith.constant 0 : index
    %c0_61 = arith.constant 0 : index
    %c0_62 = arith.constant 0 : index
    %156 = vector.load %arg6[%c0_60, %c0_61, %c0_62] : memref<4x128x128xf32, #tpu.memory_space<vmem>>, vector<1x128x128xf32>
    %157 = vector.shape_cast %156 : vector<1x128x128xf32> to vector<128x128xf32>
    %cst_63 = arith.constant dense<0.000000e+00> : vector<32x128xf32>
    %158 = tpu.matmul %155, %157, %cst_63 {dimension_numbers = #tpu.dot_dimension_numbers<[1], [0], [0], [1], [0, 0, 1, 1], [], []>} : vector<32x128xf32>, vector<128x128xf32>, vector<32x128xf32> -> vector<32x128xf32>
    %159 = vector.extract_strided_slice %89 {offsets = [4, 0], sizes = [1, 128], strides = [1, 1]} : vector<16x128xf32> to vector<1x128xf32>
    %160 = vector.broadcast %159 : vector<1x128xf32> to vector<32x128xf32>
    %161 = arith.mulf %158, %160 : vector<32x128xf32>
    %162 = vector.extract_strided_slice %89 {offsets = [5, 0], sizes = [1, 128], strides = [1, 1]} : vector<16x128xf32> to vector<1x128xf32>
    %163 = vector.broadcast %162 : vector<1x128xf32> to vector<32x128xf32>
    %164 = arith.addf %161, %163 : vector<32x128xf32>
    %cst_64 = arith.constant dense<0.000000e+00> : vector<128xf32>
    %165 = vector.multi_reduction <add>, %164, %cst_64 [0] : vector<32x128xf32> to vector<128xf32>
    %166 = vector.shape_cast %165 : vector<128xf32> to vector<1x128xf32>
    %cst_65 = arith.constant 3.200000e+01 : f32
    %167 = vector.broadcast %cst_65 : f32 to vector<1x128xf32>
    %168 = arith.divf %166, %167 : vector<1x128xf32>
    %c0_66 = arith.constant 0 : index
    %c0_67 = arith.constant 0 : index
    %c0_68 = arith.constant 0 : index
    %169 = vector.load %arg7[%c0_66, %c0_67, %c0_68] : memref<4x128x128xf32, #tpu.memory_space<vmem>>, vector<1x128x128xf32>
    %170 = vector.shape_cast %169 : vector<1x128x128xf32> to vector<128x128xf32>
    %cst_69 = arith.constant dense<0.000000e+00> : vector<1x128xf32>
    %171 = tpu.matmul %168, %170, %cst_69 {dimension_numbers = #tpu.dot_dimension_numbers<[1], [0], [0], [1], [0, 0, 1, 1], [], []>} : vector<1x128xf32>, vector<128x128xf32>, vector<1x128xf32> -> vector<1x128xf32>
    %172 = vector.extract_strided_slice %89 {offsets = [6, 0], sizes = [1, 128], strides = [1, 1]} : vector<16x128xf32> to vector<1x128xf32>
    %173 = arith.addf %171, %172 : vector<1x128xf32>
    %174 = arith.negf %173 : vector<1x128xf32>
    %175 = math.exp %174 : vector<1x128xf32>
    %cst_70 = arith.constant 1.000000e+00 : f32
    %176 = vector.broadcast %cst_70 : f32 to vector<1x128xf32>
    %177 = arith.addf %176, %175 : vector<1x128xf32>
    %178 = arith.divf %176, %177 : vector<1x128xf32>
    %179 = arith.mulf %173, %178 : vector<1x128xf32>
    %c0_71 = arith.constant 0 : index
    %c0_72 = arith.constant 0 : index
    %c0_73 = arith.constant 0 : index
    %180 = vector.load %arg8[%c0_71, %c0_72, %c0_73] : memref<4x128x128xf32, #tpu.memory_space<vmem>>, vector<1x128x128xf32>
    %181 = vector.shape_cast %180 : vector<1x128x128xf32> to vector<128x128xf32>
    %cst_74 = arith.constant dense<0.000000e+00> : vector<1x128xf32>
    %182 = tpu.matmul %179, %181, %cst_74 {dimension_numbers = #tpu.dot_dimension_numbers<[1], [0], [0], [1], [0, 0, 1, 1], [], []>} : vector<1x128xf32>, vector<128x128xf32>, vector<1x128xf32> -> vector<1x128xf32>
    %183 = vector.extract_strided_slice %89 {offsets = [7, 0], sizes = [1, 128], strides = [1, 1]} : vector<16x128xf32> to vector<1x128xf32>
    %184 = arith.addf %182, %183 : vector<1x128xf32>
    %185 = arith.negf %184 : vector<1x128xf32>
    %186 = math.exp %185 : vector<1x128xf32>
    %cst_75 = arith.constant 1.000000e+00 : f32
    %187 = vector.broadcast %cst_75 : f32 to vector<1x128xf32>
    %188 = arith.addf %187, %186 : vector<1x128xf32>
    %189 = arith.divf %187, %188 : vector<1x128xf32>
    %c2_i32_76 = arith.constant 2 : i32
    %190 = vector.broadcast %c2_i32_76 : i32 to vector<32x64xi32>
    %191 = arith.muli %190, %107 : vector<32x64xi32>
    %192 = arith.cmpi eq, %108, %191 : vector<32x64xi32>
    %193 = arith.extui %192 : vector<32x64xi1> to vector<32x64xi32>
    %194 = arith.sitofp %193 : vector<32x64xi32> to vector<32x64xf32>
    %cst_77 = arith.constant dense<0.000000e+00> : vector<32x128xf32>
    %195 = tpu.matmul %194, %106, %cst_77 {dimension_numbers = #tpu.dot_dimension_numbers<[1], [0], [0], [1], [0, 0, 1, 1], [], []>} : vector<32x64xf32>, vector<64x128xf32>, vector<32x128xf32> -> vector<32x128xf32>
    %196 = vector.extract_strided_slice %89 {offsets = [8, 0], sizes = [1, 128], strides = [1, 1]} : vector<16x128xf32> to vector<1x128xf32>
    %197 = vector.broadcast %196 : vector<1x128xf32> to vector<32x128xf32>
    %198 = arith.mulf %195, %197 : vector<32x128xf32>
    %199 = vector.extract_strided_slice %89 {offsets = [9, 0], sizes = [1, 128], strides = [1, 1]} : vector<16x128xf32> to vector<1x128xf32>
    %200 = vector.broadcast %199 : vector<1x128xf32> to vector<32x128xf32>
    %201 = arith.addf %198, %200 : vector<32x128xf32>
    %202 = vector.broadcast %189 : vector<1x128xf32> to vector<32x128xf32>
    %203 = arith.mulf %164, %202 : vector<32x128xf32>
    %204 = arith.addf %203, %201 : vector<32x128xf32>
    %205 = arith.negf %204 : vector<32x128xf32>
    %206 = math.exp %205 : vector<32x128xf32>
    %cst_78 = arith.constant 1.000000e+00 : f32
    %207 = vector.broadcast %cst_78 : f32 to vector<32x128xf32>
    %208 = arith.addf %207, %206 : vector<32x128xf32>
    %209 = arith.divf %207, %208 : vector<32x128xf32>
    %210 = arith.mulf %204, %209 : vector<32x128xf32>
    %c1_79 = arith.constant 1 : index
    %c0_80 = arith.constant 0 : index
    %c0_81 = arith.constant 0 : index
    %211 = vector.load %arg9[%c1_79, %c0_80, %c0_81] : memref<4x16x128xf32, #tpu.memory_space<vmem>>, vector<1x16x128xf32>
    %212 = vector.shape_cast %211 : vector<1x16x128xf32> to vector<16x128xf32>
    %c1_82 = arith.constant 1 : index
    %c0_83 = arith.constant 0 : index
    %c0_84 = arith.constant 0 : index
    %213 = vector.load %arg4[%c1_82, %c0_83, %c0_84] : memref<4x128x256xf32, #tpu.memory_space<vmem>>, vector<1x128x256xf32>
    %214 = vector.shape_cast %213 : vector<1x128x256xf32> to vector<128x256xf32>
    %cst_85 = arith.constant dense<0.000000e+00> : vector<32x256xf32>
    %215 = tpu.matmul %210, %214, %cst_85 {dimension_numbers = #tpu.dot_dimension_numbers<[1], [0], [0], [1], [0, 0, 1, 1], [], []>} : vector<32x128xf32>, vector<128x256xf32>, vector<32x256xf32> -> vector<32x256xf32>
    %216 = vector.extract_strided_slice %215 {offsets = [0, 0], sizes = [32, 128], strides = [1, 1]} : vector<32x256xf32> to vector<32x128xf32>
    %217 = vector.extract_strided_slice %212 {offsets = [0, 0], sizes = [1, 128], strides = [1, 1]} : vector<16x128xf32> to vector<1x128xf32>
    %218 = vector.broadcast %217 : vector<1x128xf32> to vector<32x128xf32>
    %219 = arith.mulf %216, %218 : vector<32x128xf32>
    %220 = vector.extract_strided_slice %212 {offsets = [1, 0], sizes = [1, 128], strides = [1, 1]} : vector<16x128xf32> to vector<1x128xf32>
    %221 = vector.broadcast %220 : vector<1x128xf32> to vector<32x128xf32>
    %222 = arith.addf %219, %221 : vector<32x128xf32>
    %223 = arith.negf %222 : vector<32x128xf32>
    %224 = math.exp %223 : vector<32x128xf32>
    %cst_86 = arith.constant 1.000000e+00 : f32
    %225 = vector.broadcast %cst_86 : f32 to vector<32x128xf32>
    %226 = arith.addf %225, %224 : vector<32x128xf32>
    %227 = arith.divf %225, %226 : vector<32x128xf32>
    %228 = arith.mulf %222, %227 : vector<32x128xf32>
    %229 = vector.extract_strided_slice %215 {offsets = [0, 128], sizes = [32, 128], strides = [1, 1]} : vector<32x256xf32> to vector<32x128xf32>
    %230 = tpu.iota {dimensions = array<i32: 0>} : vector<16x32xi32>
    %231 = tpu.iota {dimensions = array<i32: 1>} : vector<16x32xi32>
    %c2_i32_87 = arith.constant 2 : i32
    %232 = vector.broadcast %c2_i32_87 : i32 to vector<16x32xi32>
    %233 = arith.muli %232, %230 : vector<16x32xi32>
    %c-1_i32_88 = arith.constant -1 : i32
    %234 = vector.broadcast %c-1_i32_88 : i32 to vector<16x32xi32>
    %235 = arith.addi %233, %234 : vector<16x32xi32>
    %236 = arith.cmpi eq, %231, %235 : vector<16x32xi32>
    %237 = arith.extui %236 : vector<16x32xi1> to vector<16x32xi32>
    %238 = arith.sitofp %237 : vector<16x32xi32> to vector<16x32xf32>
    %c2_i32_89 = arith.constant 2 : i32
    %239 = vector.broadcast %c2_i32_89 : i32 to vector<16x32xi32>
    %240 = arith.muli %239, %230 : vector<16x32xi32>
    %c0_i32_90 = arith.constant 0 : i32
    %241 = vector.broadcast %c0_i32_90 : i32 to vector<16x32xi32>
    %242 = arith.addi %240, %241 : vector<16x32xi32>
    %243 = arith.cmpi eq, %231, %242 : vector<16x32xi32>
    %244 = arith.extui %243 : vector<16x32xi1> to vector<16x32xi32>
    %245 = arith.sitofp %244 : vector<16x32xi32> to vector<16x32xf32>
    %c2_i32_91 = arith.constant 2 : i32
    %246 = vector.broadcast %c2_i32_91 : i32 to vector<16x32xi32>
    %247 = arith.muli %246, %230 : vector<16x32xi32>
    %c1_i32_92 = arith.constant 1 : i32
    %248 = vector.broadcast %c1_i32_92 : i32 to vector<16x32xi32>
    %249 = arith.addi %247, %248 : vector<16x32xi32>
    %250 = arith.cmpi eq, %231, %249 : vector<16x32xi32>
    %251 = arith.extui %250 : vector<16x32xi1> to vector<16x32xi32>
    %252 = arith.sitofp %251 : vector<16x32xi32> to vector<16x32xf32>
    %cst_93 = arith.constant dense<0.000000e+00> : vector<16x128xf32>
    %253 = tpu.matmul %238, %228, %cst_93 {dimension_numbers = #tpu.dot_dimension_numbers<[1], [0], [0], [1], [0, 0, 1, 1], [], []>} : vector<16x32xf32>, vector<32x128xf32>, vector<16x128xf32> -> vector<16x128xf32>
    %c1_94 = arith.constant 1 : index
    %c0_95 = arith.constant 0 : index
    %c0_96 = arith.constant 0 : index
    %c0_97 = arith.constant 0 : index
    %254 = vector.load %arg5[%c1_94, %c0_95, %c0_96, %c0_97] : memref<4x3x128x128xf32, #tpu.memory_space<vmem>>, vector<1x1x128x128xf32>
    %255 = vector.shape_cast %254 : vector<1x1x128x128xf32> to vector<128x128xf32>
    %cst_98 = arith.constant dense<0.000000e+00> : vector<16x128xf32>
    %256 = tpu.matmul %253, %255, %cst_98 {dimension_numbers = #tpu.dot_dimension_numbers<[1], [0], [0], [1], [0, 0, 1, 1], [], []>} : vector<16x128xf32>, vector<128x128xf32>, vector<16x128xf32> -> vector<16x128xf32>
    %cst_99 = arith.constant dense<0.000000e+00> : vector<16x128xf32>
    %257 = tpu.matmul %245, %228, %cst_99 {dimension_numbers = #tpu.dot_dimension_numbers<[1], [0], [0], [1], [0, 0, 1, 1], [], []>} : vector<16x32xf32>, vector<32x128xf32>, vector<16x128xf32> -> vector<16x128xf32>
    %c1_100 = arith.constant 1 : index
    %c1_101 = arith.constant 1 : index
    %c0_102 = arith.constant 0 : index
    %c0_103 = arith.constant 0 : index
    %258 = vector.load %arg5[%c1_100, %c1_101, %c0_102, %c0_103] : memref<4x3x128x128xf32, #tpu.memory_space<vmem>>, vector<1x1x128x128xf32>
    %259 = vector.shape_cast %258 : vector<1x1x128x128xf32> to vector<128x128xf32>
    %cst_104 = arith.constant dense<0.000000e+00> : vector<16x128xf32>
    %260 = tpu.matmul %257, %259, %cst_104 {dimension_numbers = #tpu.dot_dimension_numbers<[1], [0], [0], [1], [0, 0, 1, 1], [], []>} : vector<16x128xf32>, vector<128x128xf32>, vector<16x128xf32> -> vector<16x128xf32>
    %261 = arith.addf %256, %260 : vector<16x128xf32>
    %cst_105 = arith.constant dense<0.000000e+00> : vector<16x128xf32>
    %262 = tpu.matmul %252, %228, %cst_105 {dimension_numbers = #tpu.dot_dimension_numbers<[1], [0], [0], [1], [0, 0, 1, 1], [], []>} : vector<16x32xf32>, vector<32x128xf32>, vector<16x128xf32> -> vector<16x128xf32>
    %c1_106 = arith.constant 1 : index
    %c2_107 = arith.constant 2 : index
    %c0_108 = arith.constant 0 : index
    %c0_109 = arith.constant 0 : index
    %263 = vector.load %arg5[%c1_106, %c2_107, %c0_108, %c0_109] : memref<4x3x128x128xf32, #tpu.memory_space<vmem>>, vector<1x1x128x128xf32>
    %264 = vector.shape_cast %263 : vector<1x1x128x128xf32> to vector<128x128xf32>
    %cst_110 = arith.constant dense<0.000000e+00> : vector<16x128xf32>
    %265 = tpu.matmul %262, %264, %cst_110 {dimension_numbers = #tpu.dot_dimension_numbers<[1], [0], [0], [1], [0, 0, 1, 1], [], []>} : vector<16x128xf32>, vector<128x128xf32>, vector<16x128xf32> -> vector<16x128xf32>
    %266 = arith.addf %261, %265 : vector<16x128xf32>
    %267 = vector.extract_strided_slice %212 {offsets = [2, 0], sizes = [1, 128], strides = [1, 1]} : vector<16x128xf32> to vector<1x128xf32>
    %268 = vector.broadcast %267 : vector<1x128xf32> to vector<16x128xf32>
    %269 = arith.mulf %266, %268 : vector<16x128xf32>
    %270 = vector.extract_strided_slice %212 {offsets = [3, 0], sizes = [1, 128], strides = [1, 1]} : vector<16x128xf32> to vector<1x128xf32>
    %271 = vector.broadcast %270 : vector<1x128xf32> to vector<16x128xf32>
    %272 = arith.addf %269, %271 : vector<16x128xf32>
    %273 = arith.negf %272 : vector<16x128xf32>
    %274 = math.exp %273 : vector<16x128xf32>
    %cst_111 = arith.constant 1.000000e+00 : f32
    %275 = vector.broadcast %cst_111 : f32 to vector<16x128xf32>
    %276 = arith.addf %275, %274 : vector<16x128xf32>
    %277 = arith.divf %275, %276 : vector<16x128xf32>
    %278 = arith.mulf %272, %277 : vector<16x128xf32>
    %c1_112 = arith.constant 1 : index
    %c0_113 = arith.constant 0 : index
    %c0_114 = arith.constant 0 : index
    %279 = vector.load %arg6[%c1_112, %c0_113, %c0_114] : memref<4x128x128xf32, #tpu.memory_space<vmem>>, vector<1x128x128xf32>
    %280 = vector.shape_cast %279 : vector<1x128x128xf32> to vector<128x128xf32>
    %cst_115 = arith.constant dense<0.000000e+00> : vector<16x128xf32>
    %281 = tpu.matmul %278, %280, %cst_115 {dimension_numbers = #tpu.dot_dimension_numbers<[1], [0], [0], [1], [0, 0, 1, 1], [], []>} : vector<16x128xf32>, vector<128x128xf32>, vector<16x128xf32> -> vector<16x128xf32>
    %282 = vector.extract_strided_slice %212 {offsets = [4, 0], sizes = [1, 128], strides = [1, 1]} : vector<16x128xf32> to vector<1x128xf32>
    %283 = vector.broadcast %282 : vector<1x128xf32> to vector<16x128xf32>
    %284 = arith.mulf %281, %283 : vector<16x128xf32>
    %285 = vector.extract_strided_slice %212 {offsets = [5, 0], sizes = [1, 128], strides = [1, 1]} : vector<16x128xf32> to vector<1x128xf32>
    %286 = vector.broadcast %285 : vector<1x128xf32> to vector<16x128xf32>
    %287 = arith.addf %284, %286 : vector<16x128xf32>
    %cst_116 = arith.constant dense<0.000000e+00> : vector<128xf32>
    %288 = vector.multi_reduction <add>, %287, %cst_116 [0] : vector<16x128xf32> to vector<128xf32>
    %289 = vector.shape_cast %288 : vector<128xf32> to vector<1x128xf32>
    %cst_117 = arith.constant 1.600000e+01 : f32
    %290 = vector.broadcast %cst_117 : f32 to vector<1x128xf32>
    %291 = arith.divf %289, %290 : vector<1x128xf32>
    %c1_118 = arith.constant 1 : index
    %c0_119 = arith.constant 0 : index
    %c0_120 = arith.constant 0 : index
    %292 = vector.load %arg7[%c1_118, %c0_119, %c0_120] : memref<4x128x128xf32, #tpu.memory_space<vmem>>, vector<1x128x128xf32>
    %293 = vector.shape_cast %292 : vector<1x128x128xf32> to vector<128x128xf32>
    %cst_121 = arith.constant dense<0.000000e+00> : vector<1x128xf32>
    %294 = tpu.matmul %291, %293, %cst_121 {dimension_numbers = #tpu.dot_dimension_numbers<[1], [0], [0], [1], [0, 0, 1, 1], [], []>} : vector<1x128xf32>, vector<128x128xf32>, vector<1x128xf32> -> vector<1x128xf32>
    %295 = vector.extract_strided_slice %212 {offsets = [6, 0], sizes = [1, 128], strides = [1, 1]} : vector<16x128xf32> to vector<1x128xf32>
    %296 = arith.addf %294, %295 : vector<1x128xf32>
    %297 = arith.negf %296 : vector<1x128xf32>
    %298 = math.exp %297 : vector<1x128xf32>
    %cst_122 = arith.constant 1.000000e+00 : f32
    %299 = vector.broadcast %cst_122 : f32 to vector<1x128xf32>
    %300 = arith.addf %299, %298 : vector<1x128xf32>
    %301 = arith.divf %299, %300 : vector<1x128xf32>
    %302 = arith.mulf %296, %301 : vector<1x128xf32>
    %c1_123 = arith.constant 1 : index
    %c0_124 = arith.constant 0 : index
    %c0_125 = arith.constant 0 : index
    %303 = vector.load %arg8[%c1_123, %c0_124, %c0_125] : memref<4x128x128xf32, #tpu.memory_space<vmem>>, vector<1x128x128xf32>
    %304 = vector.shape_cast %303 : vector<1x128x128xf32> to vector<128x128xf32>
    %cst_126 = arith.constant dense<0.000000e+00> : vector<1x128xf32>
    %305 = tpu.matmul %302, %304, %cst_126 {dimension_numbers = #tpu.dot_dimension_numbers<[1], [0], [0], [1], [0, 0, 1, 1], [], []>} : vector<1x128xf32>, vector<128x128xf32>, vector<1x128xf32> -> vector<1x128xf32>
    %306 = vector.extract_strided_slice %212 {offsets = [7, 0], sizes = [1, 128], strides = [1, 1]} : vector<16x128xf32> to vector<1x128xf32>
    %307 = arith.addf %305, %306 : vector<1x128xf32>
    %308 = arith.negf %307 : vector<1x128xf32>
    %309 = math.exp %308 : vector<1x128xf32>
    %cst_127 = arith.constant 1.000000e+00 : f32
    %310 = vector.broadcast %cst_127 : f32 to vector<1x128xf32>
    %311 = arith.addf %310, %309 : vector<1x128xf32>
    %312 = arith.divf %310, %311 : vector<1x128xf32>
    %c2_i32_128 = arith.constant 2 : i32
    %313 = vector.broadcast %c2_i32_128 : i32 to vector<16x32xi32>
    %314 = arith.muli %313, %230 : vector<16x32xi32>
    %315 = arith.cmpi eq, %231, %314 : vector<16x32xi32>
    %316 = arith.extui %315 : vector<16x32xi1> to vector<16x32xi32>
    %317 = arith.sitofp %316 : vector<16x32xi32> to vector<16x32xf32>
    %cst_129 = arith.constant dense<0.000000e+00> : vector<16x128xf32>
    %318 = tpu.matmul %317, %229, %cst_129 {dimension_numbers = #tpu.dot_dimension_numbers<[1], [0], [0], [1], [0, 0, 1, 1], [], []>} : vector<16x32xf32>, vector<32x128xf32>, vector<16x128xf32> -> vector<16x128xf32>
    %319 = vector.extract_strided_slice %212 {offsets = [8, 0], sizes = [1, 128], strides = [1, 1]} : vector<16x128xf32> to vector<1x128xf32>
    %320 = vector.broadcast %319 : vector<1x128xf32> to vector<16x128xf32>
    %321 = arith.mulf %318, %320 : vector<16x128xf32>
    %322 = vector.extract_strided_slice %212 {offsets = [9, 0], sizes = [1, 128], strides = [1, 1]} : vector<16x128xf32> to vector<1x128xf32>
    %323 = vector.broadcast %322 : vector<1x128xf32> to vector<16x128xf32>
    %324 = arith.addf %321, %323 : vector<16x128xf32>
    %325 = vector.broadcast %312 : vector<1x128xf32> to vector<16x128xf32>
    %326 = arith.mulf %287, %325 : vector<16x128xf32>
    %327 = arith.addf %326, %324 : vector<16x128xf32>
    %328 = arith.negf %327 : vector<16x128xf32>
    %329 = math.exp %328 : vector<16x128xf32>
    %cst_130 = arith.constant 1.000000e+00 : f32
    %330 = vector.broadcast %cst_130 : f32 to vector<16x128xf32>
    %331 = arith.addf %330, %329 : vector<16x128xf32>
    %332 = arith.divf %330, %331 : vector<16x128xf32>
    %333 = arith.mulf %327, %332 : vector<16x128xf32>
    %c2_131 = arith.constant 2 : index
    %c0_132 = arith.constant 0 : index
    %c0_133 = arith.constant 0 : index
    %334 = vector.load %arg9[%c2_131, %c0_132, %c0_133] : memref<4x16x128xf32, #tpu.memory_space<vmem>>, vector<1x16x128xf32>
    %335 = vector.shape_cast %334 : vector<1x16x128xf32> to vector<16x128xf32>
    %c2_134 = arith.constant 2 : index
    %c0_135 = arith.constant 0 : index
    %c0_136 = arith.constant 0 : index
    %336 = vector.load %arg4[%c2_134, %c0_135, %c0_136] : memref<4x128x256xf32, #tpu.memory_space<vmem>>, vector<1x128x256xf32>
    %337 = vector.shape_cast %336 : vector<1x128x256xf32> to vector<128x256xf32>
    %cst_137 = arith.constant dense<0.000000e+00> : vector<16x256xf32>
    %338 = tpu.matmul %333, %337, %cst_137 {dimension_numbers = #tpu.dot_dimension_numbers<[1], [0], [0], [1], [0, 0, 1, 1], [], []>} : vector<16x128xf32>, vector<128x256xf32>, vector<16x256xf32> -> vector<16x256xf32>
    %339 = vector.extract_strided_slice %338 {offsets = [0, 0], sizes = [16, 128], strides = [1, 1]} : vector<16x256xf32> to vector<16x128xf32>
    %340 = vector.extract_strided_slice %335 {offsets = [0, 0], sizes = [1, 128], strides = [1, 1]} : vector<16x128xf32> to vector<1x128xf32>
    %341 = vector.broadcast %340 : vector<1x128xf32> to vector<16x128xf32>
    %342 = arith.mulf %339, %341 : vector<16x128xf32>
    %343 = vector.extract_strided_slice %335 {offsets = [1, 0], sizes = [1, 128], strides = [1, 1]} : vector<16x128xf32> to vector<1x128xf32>
    %344 = vector.broadcast %343 : vector<1x128xf32> to vector<16x128xf32>
    %345 = arith.addf %342, %344 : vector<16x128xf32>
    %346 = arith.negf %345 : vector<16x128xf32>
    %347 = math.exp %346 : vector<16x128xf32>
    %cst_138 = arith.constant 1.000000e+00 : f32
    %348 = vector.broadcast %cst_138 : f32 to vector<16x128xf32>
    %349 = arith.addf %348, %347 : vector<16x128xf32>
    %350 = arith.divf %348, %349 : vector<16x128xf32>
    %351 = arith.mulf %345, %350 : vector<16x128xf32>
    %352 = vector.extract_strided_slice %338 {offsets = [0, 128], sizes = [16, 128], strides = [1, 1]} : vector<16x256xf32> to vector<16x128xf32>
    %353 = tpu.iota {dimensions = array<i32: 0>} : vector<8x16xi32>
    %354 = tpu.iota {dimensions = array<i32: 1>} : vector<8x16xi32>
    %c2_i32_139 = arith.constant 2 : i32
    %355 = vector.broadcast %c2_i32_139 : i32 to vector<8x16xi32>
    %356 = arith.muli %355, %353 : vector<8x16xi32>
    %c-1_i32_140 = arith.constant -1 : i32
    %357 = vector.broadcast %c-1_i32_140 : i32 to vector<8x16xi32>
    %358 = arith.addi %356, %357 : vector<8x16xi32>
    %359 = arith.cmpi eq, %354, %358 : vector<8x16xi32>
    %360 = arith.extui %359 : vector<8x16xi1> to vector<8x16xi32>
    %361 = arith.sitofp %360 : vector<8x16xi32> to vector<8x16xf32>
    %c2_i32_141 = arith.constant 2 : i32
    %362 = vector.broadcast %c2_i32_141 : i32 to vector<8x16xi32>
    %363 = arith.muli %362, %353 : vector<8x16xi32>
    %c0_i32_142 = arith.constant 0 : i32
    %364 = vector.broadcast %c0_i32_142 : i32 to vector<8x16xi32>
    %365 = arith.addi %363, %364 : vector<8x16xi32>
    %366 = arith.cmpi eq, %354, %365 : vector<8x16xi32>
    %367 = arith.extui %366 : vector<8x16xi1> to vector<8x16xi32>
    %368 = arith.sitofp %367 : vector<8x16xi32> to vector<8x16xf32>
    %c2_i32_143 = arith.constant 2 : i32
    %369 = vector.broadcast %c2_i32_143 : i32 to vector<8x16xi32>
    %370 = arith.muli %369, %353 : vector<8x16xi32>
    %c1_i32_144 = arith.constant 1 : i32
    %371 = vector.broadcast %c1_i32_144 : i32 to vector<8x16xi32>
    %372 = arith.addi %370, %371 : vector<8x16xi32>
    %373 = arith.cmpi eq, %354, %372 : vector<8x16xi32>
    %374 = arith.extui %373 : vector<8x16xi1> to vector<8x16xi32>
    %375 = arith.sitofp %374 : vector<8x16xi32> to vector<8x16xf32>
    %cst_145 = arith.constant dense<0.000000e+00> : vector<8x128xf32>
    %376 = tpu.matmul %361, %351, %cst_145 {dimension_numbers = #tpu.dot_dimension_numbers<[1], [0], [0], [1], [0, 0, 1, 1], [], []>} : vector<8x16xf32>, vector<16x128xf32>, vector<8x128xf32> -> vector<8x128xf32>
    %c2_146 = arith.constant 2 : index
    %c0_147 = arith.constant 0 : index
    %c0_148 = arith.constant 0 : index
    %c0_149 = arith.constant 0 : index
    %377 = vector.load %arg5[%c2_146, %c0_147, %c0_148, %c0_149] : memref<4x3x128x128xf32, #tpu.memory_space<vmem>>, vector<1x1x128x128xf32>
    %378 = vector.shape_cast %377 : vector<1x1x128x128xf32> to vector<128x128xf32>
    %cst_150 = arith.constant dense<0.000000e+00> : vector<8x128xf32>
    %379 = tpu.matmul %376, %378, %cst_150 {dimension_numbers = #tpu.dot_dimension_numbers<[1], [0], [0], [1], [0, 0, 1, 1], [], []>} : vector<8x128xf32>, vector<128x128xf32>, vector<8x128xf32> -> vector<8x128xf32>
    %cst_151 = arith.constant dense<0.000000e+00> : vector<8x128xf32>
    %380 = tpu.matmul %368, %351, %cst_151 {dimension_numbers = #tpu.dot_dimension_numbers<[1], [0], [0], [1], [0, 0, 1, 1], [], []>} : vector<8x16xf32>, vector<16x128xf32>, vector<8x128xf32> -> vector<8x128xf32>
    %c2_152 = arith.constant 2 : index
    %c1_153 = arith.constant 1 : index
    %c0_154 = arith.constant 0 : index
    %c0_155 = arith.constant 0 : index
    %381 = vector.load %arg5[%c2_152, %c1_153, %c0_154, %c0_155] : memref<4x3x128x128xf32, #tpu.memory_space<vmem>>, vector<1x1x128x128xf32>
    %382 = vector.shape_cast %381 : vector<1x1x128x128xf32> to vector<128x128xf32>
    %cst_156 = arith.constant dense<0.000000e+00> : vector<8x128xf32>
    %383 = tpu.matmul %380, %382, %cst_156 {dimension_numbers = #tpu.dot_dimension_numbers<[1], [0], [0], [1], [0, 0, 1, 1], [], []>} : vector<8x128xf32>, vector<128x128xf32>, vector<8x128xf32> -> vector<8x128xf32>
    %384 = arith.addf %379, %383 : vector<8x128xf32>
    %cst_157 = arith.constant dense<0.000000e+00> : vector<8x128xf32>
    %385 = tpu.matmul %375, %351, %cst_157 {dimension_numbers = #tpu.dot_dimension_numbers<[1], [0], [0], [1], [0, 0, 1, 1], [], []>} : vector<8x16xf32>, vector<16x128xf32>, vector<8x128xf32> -> vector<8x128xf32>
    %c2_158 = arith.constant 2 : index
    %c2_159 = arith.constant 2 : index
    %c0_160 = arith.constant 0 : index
    %c0_161 = arith.constant 0 : index
    %386 = vector.load %arg5[%c2_158, %c2_159, %c0_160, %c0_161] : memref<4x3x128x128xf32, #tpu.memory_space<vmem>>, vector<1x1x128x128xf32>
    %387 = vector.shape_cast %386 : vector<1x1x128x128xf32> to vector<128x128xf32>
    %cst_162 = arith.constant dense<0.000000e+00> : vector<8x128xf32>
    %388 = tpu.matmul %385, %387, %cst_162 {dimension_numbers = #tpu.dot_dimension_numbers<[1], [0], [0], [1], [0, 0, 1, 1], [], []>} : vector<8x128xf32>, vector<128x128xf32>, vector<8x128xf32> -> vector<8x128xf32>
    %389 = arith.addf %384, %388 : vector<8x128xf32>
    %390 = vector.extract_strided_slice %335 {offsets = [2, 0], sizes = [1, 128], strides = [1, 1]} : vector<16x128xf32> to vector<1x128xf32>
    %391 = vector.broadcast %390 : vector<1x128xf32> to vector<8x128xf32>
    %392 = arith.mulf %389, %391 : vector<8x128xf32>
    %393 = vector.extract_strided_slice %335 {offsets = [3, 0], sizes = [1, 128], strides = [1, 1]} : vector<16x128xf32> to vector<1x128xf32>
    %394 = vector.broadcast %393 : vector<1x128xf32> to vector<8x128xf32>
    %395 = arith.addf %392, %394 : vector<8x128xf32>
    %396 = arith.negf %395 : vector<8x128xf32>
    %397 = math.exp %396 : vector<8x128xf32>
    %cst_163 = arith.constant 1.000000e+00 : f32
    %398 = vector.broadcast %cst_163 : f32 to vector<8x128xf32>
    %399 = arith.addf %398, %397 : vector<8x128xf32>
    %400 = arith.divf %398, %399 : vector<8x128xf32>
    %401 = arith.mulf %395, %400 : vector<8x128xf32>
    %c2_164 = arith.constant 2 : index
    %c0_165 = arith.constant 0 : index
    %c0_166 = arith.constant 0 : index
    %402 = vector.load %arg6[%c2_164, %c0_165, %c0_166] : memref<4x128x128xf32, #tpu.memory_space<vmem>>, vector<1x128x128xf32>
    %403 = vector.shape_cast %402 : vector<1x128x128xf32> to vector<128x128xf32>
    %cst_167 = arith.constant dense<0.000000e+00> : vector<8x128xf32>
    %404 = tpu.matmul %401, %403, %cst_167 {dimension_numbers = #tpu.dot_dimension_numbers<[1], [0], [0], [1], [0, 0, 1, 1], [], []>} : vector<8x128xf32>, vector<128x128xf32>, vector<8x128xf32> -> vector<8x128xf32>
    %405 = vector.extract_strided_slice %335 {offsets = [4, 0], sizes = [1, 128], strides = [1, 1]} : vector<16x128xf32> to vector<1x128xf32>
    %406 = vector.broadcast %405 : vector<1x128xf32> to vector<8x128xf32>
    %407 = arith.mulf %404, %406 : vector<8x128xf32>
    %408 = vector.extract_strided_slice %335 {offsets = [5, 0], sizes = [1, 128], strides = [1, 1]} : vector<16x128xf32> to vector<1x128xf32>
    %409 = vector.broadcast %408 : vector<1x128xf32> to vector<8x128xf32>
    %410 = arith.addf %407, %409 : vector<8x128xf32>
    %cst_168 = arith.constant dense<0.000000e+00> : vector<128xf32>
    %411 = vector.multi_reduction <add>, %410, %cst_168 [0] : vector<8x128xf32> to vector<128xf32>
    %412 = vector.shape_cast %411 : vector<128xf32> to vector<1x128xf32>
    %cst_169 = arith.constant 8.000000e+00 : f32
    %413 = vector.broadcast %cst_169 : f32 to vector<1x128xf32>
    %414 = arith.divf %412, %413 : vector<1x128xf32>
    %c2_170 = arith.constant 2 : index
    %c0_171 = arith.constant 0 : index
    %c0_172 = arith.constant 0 : index
    %415 = vector.load %arg7[%c2_170, %c0_171, %c0_172] : memref<4x128x128xf32, #tpu.memory_space<vmem>>, vector<1x128x128xf32>
    %416 = vector.shape_cast %415 : vector<1x128x128xf32> to vector<128x128xf32>
    %cst_173 = arith.constant dense<0.000000e+00> : vector<1x128xf32>
    %417 = tpu.matmul %414, %416, %cst_173 {dimension_numbers = #tpu.dot_dimension_numbers<[1], [0], [0], [1], [0, 0, 1, 1], [], []>} : vector<1x128xf32>, vector<128x128xf32>, vector<1x128xf32> -> vector<1x128xf32>
    %418 = vector.extract_strided_slice %335 {offsets = [6, 0], sizes = [1, 128], strides = [1, 1]} : vector<16x128xf32> to vector<1x128xf32>
    %419 = arith.addf %417, %418 : vector<1x128xf32>
    %420 = arith.negf %419 : vector<1x128xf32>
    %421 = math.exp %420 : vector<1x128xf32>
    %cst_174 = arith.constant 1.000000e+00 : f32
    %422 = vector.broadcast %cst_174 : f32 to vector<1x128xf32>
    %423 = arith.addf %422, %421 : vector<1x128xf32>
    %424 = arith.divf %422, %423 : vector<1x128xf32>
    %425 = arith.mulf %419, %424 : vector<1x128xf32>
    %c2_175 = arith.constant 2 : index
    %c0_176 = arith.constant 0 : index
    %c0_177 = arith.constant 0 : index
    %426 = vector.load %arg8[%c2_175, %c0_176, %c0_177] : memref<4x128x128xf32, #tpu.memory_space<vmem>>, vector<1x128x128xf32>
    %427 = vector.shape_cast %426 : vector<1x128x128xf32> to vector<128x128xf32>
    %cst_178 = arith.constant dense<0.000000e+00> : vector<1x128xf32>
    %428 = tpu.matmul %425, %427, %cst_178 {dimension_numbers = #tpu.dot_dimension_numbers<[1], [0], [0], [1], [0, 0, 1, 1], [], []>} : vector<1x128xf32>, vector<128x128xf32>, vector<1x128xf32> -> vector<1x128xf32>
    %429 = vector.extract_strided_slice %335 {offsets = [7, 0], sizes = [1, 128], strides = [1, 1]} : vector<16x128xf32> to vector<1x128xf32>
    %430 = arith.addf %428, %429 : vector<1x128xf32>
    %431 = arith.negf %430 : vector<1x128xf32>
    %432 = math.exp %431 : vector<1x128xf32>
    %cst_179 = arith.constant 1.000000e+00 : f32
    %433 = vector.broadcast %cst_179 : f32 to vector<1x128xf32>
    %434 = arith.addf %433, %432 : vector<1x128xf32>
    %435 = arith.divf %433, %434 : vector<1x128xf32>
    %c2_i32_180 = arith.constant 2 : i32
    %436 = vector.broadcast %c2_i32_180 : i32 to vector<8x16xi32>
    %437 = arith.muli %436, %353 : vector<8x16xi32>
    %438 = arith.cmpi eq, %354, %437 : vector<8x16xi32>
    %439 = arith.extui %438 : vector<8x16xi1> to vector<8x16xi32>
    %440 = arith.sitofp %439 : vector<8x16xi32> to vector<8x16xf32>
    %cst_181 = arith.constant dense<0.000000e+00> : vector<8x128xf32>
    %441 = tpu.matmul %440, %352, %cst_181 {dimension_numbers = #tpu.dot_dimension_numbers<[1], [0], [0], [1], [0, 0, 1, 1], [], []>} : vector<8x16xf32>, vector<16x128xf32>, vector<8x128xf32> -> vector<8x128xf32>
    %442 = vector.extract_strided_slice %335 {offsets = [8, 0], sizes = [1, 128], strides = [1, 1]} : vector<16x128xf32> to vector<1x128xf32>
    %443 = vector.broadcast %442 : vector<1x128xf32> to vector<8x128xf32>
    %444 = arith.mulf %441, %443 : vector<8x128xf32>
    %445 = vector.extract_strided_slice %335 {offsets = [9, 0], sizes = [1, 128], strides = [1, 1]} : vector<16x128xf32> to vector<1x128xf32>
    %446 = vector.broadcast %445 : vector<1x128xf32> to vector<8x128xf32>
    %447 = arith.addf %444, %446 : vector<8x128xf32>
    %448 = vector.broadcast %435 : vector<1x128xf32> to vector<8x128xf32>
    %449 = arith.mulf %410, %448 : vector<8x128xf32>
    %450 = arith.addf %449, %447 : vector<8x128xf32>
    %451 = arith.negf %450 : vector<8x128xf32>
    %452 = math.exp %451 : vector<8x128xf32>
    %cst_182 = arith.constant 1.000000e+00 : f32
    %453 = vector.broadcast %cst_182 : f32 to vector<8x128xf32>
    %454 = arith.addf %453, %452 : vector<8x128xf32>
    %455 = arith.divf %453, %454 : vector<8x128xf32>
    %456 = arith.mulf %450, %455 : vector<8x128xf32>
    %c3 = arith.constant 3 : index
    %c0_183 = arith.constant 0 : index
    %c0_184 = arith.constant 0 : index
    %457 = vector.load %arg9[%c3, %c0_183, %c0_184] : memref<4x16x128xf32, #tpu.memory_space<vmem>>, vector<1x16x128xf32>
    %458 = vector.shape_cast %457 : vector<1x16x128xf32> to vector<16x128xf32>
    %c3_185 = arith.constant 3 : index
    %c0_186 = arith.constant 0 : index
    %c0_187 = arith.constant 0 : index
    %459 = vector.load %arg4[%c3_185, %c0_186, %c0_187] : memref<4x128x256xf32, #tpu.memory_space<vmem>>, vector<1x128x256xf32>
    %460 = vector.shape_cast %459 : vector<1x128x256xf32> to vector<128x256xf32>
    %cst_188 = arith.constant dense<0.000000e+00> : vector<8x256xf32>
    %461 = tpu.matmul %456, %460, %cst_188 {dimension_numbers = #tpu.dot_dimension_numbers<[1], [0], [0], [1], [0, 0, 1, 1], [], []>} : vector<8x128xf32>, vector<128x256xf32>, vector<8x256xf32> -> vector<8x256xf32>
    %462 = vector.extract_strided_slice %461 {offsets = [0, 0], sizes = [8, 128], strides = [1, 1]} : vector<8x256xf32> to vector<8x128xf32>
    %463 = vector.extract_strided_slice %458 {offsets = [0, 0], sizes = [1, 128], strides = [1, 1]} : vector<16x128xf32> to vector<1x128xf32>
    %464 = vector.broadcast %463 : vector<1x128xf32> to vector<8x128xf32>
    %465 = arith.mulf %462, %464 : vector<8x128xf32>
    %466 = vector.extract_strided_slice %458 {offsets = [1, 0], sizes = [1, 128], strides = [1, 1]} : vector<16x128xf32> to vector<1x128xf32>
    %467 = vector.broadcast %466 : vector<1x128xf32> to vector<8x128xf32>
    %468 = arith.addf %465, %467 : vector<8x128xf32>
    %469 = arith.negf %468 : vector<8x128xf32>
    %470 = math.exp %469 : vector<8x128xf32>
    %cst_189 = arith.constant 1.000000e+00 : f32
    %471 = vector.broadcast %cst_189 : f32 to vector<8x128xf32>
    %472 = arith.addf %471, %470 : vector<8x128xf32>
    %473 = arith.divf %471, %472 : vector<8x128xf32>
    %474 = arith.mulf %468, %473 : vector<8x128xf32>
    %475 = vector.extract_strided_slice %461 {offsets = [0, 128], sizes = [8, 128], strides = [1, 1]} : vector<8x256xf32> to vector<8x128xf32>
    %476 = tpu.iota {dimensions = array<i32: 0>} : vector<4x8xi32>
    %477 = tpu.iota {dimensions = array<i32: 1>} : vector<4x8xi32>
    %c2_i32_190 = arith.constant 2 : i32
    %478 = vector.broadcast %c2_i32_190 : i32 to vector<4x8xi32>
    %479 = arith.muli %478, %476 : vector<4x8xi32>
    %c-1_i32_191 = arith.constant -1 : i32
    %480 = vector.broadcast %c-1_i32_191 : i32 to vector<4x8xi32>
    %481 = arith.addi %479, %480 : vector<4x8xi32>
    %482 = arith.cmpi eq, %477, %481 : vector<4x8xi32>
    %483 = arith.extui %482 : vector<4x8xi1> to vector<4x8xi32>
    %484 = arith.sitofp %483 : vector<4x8xi32> to vector<4x8xf32>
    %c2_i32_192 = arith.constant 2 : i32
    %485 = vector.broadcast %c2_i32_192 : i32 to vector<4x8xi32>
    %486 = arith.muli %485, %476 : vector<4x8xi32>
    %c0_i32_193 = arith.constant 0 : i32
    %487 = vector.broadcast %c0_i32_193 : i32 to vector<4x8xi32>
    %488 = arith.addi %486, %487 : vector<4x8xi32>
    %489 = arith.cmpi eq, %477, %488 : vector<4x8xi32>
    %490 = arith.extui %489 : vector<4x8xi1> to vector<4x8xi32>
    %491 = arith.sitofp %490 : vector<4x8xi32> to vector<4x8xf32>
    %c2_i32_194 = arith.constant 2 : i32
    %492 = vector.broadcast %c2_i32_194 : i32 to vector<4x8xi32>
    %493 = arith.muli %492, %476 : vector<4x8xi32>
    %c1_i32_195 = arith.constant 1 : i32
    %494 = vector.broadcast %c1_i32_195 : i32 to vector<4x8xi32>
    %495 = arith.addi %493, %494 : vector<4x8xi32>
    %496 = arith.cmpi eq, %477, %495 : vector<4x8xi32>
    %497 = arith.extui %496 : vector<4x8xi1> to vector<4x8xi32>
    %498 = arith.sitofp %497 : vector<4x8xi32> to vector<4x8xf32>
    %cst_196 = arith.constant dense<0.000000e+00> : vector<4x128xf32>
    %499 = tpu.matmul %484, %474, %cst_196 {dimension_numbers = #tpu.dot_dimension_numbers<[1], [0], [0], [1], [0, 0, 1, 1], [], []>} : vector<4x8xf32>, vector<8x128xf32>, vector<4x128xf32> -> vector<4x128xf32>
    %c3_197 = arith.constant 3 : index
    %c0_198 = arith.constant 0 : index
    %c0_199 = arith.constant 0 : index
    %c0_200 = arith.constant 0 : index
    %500 = vector.load %arg5[%c3_197, %c0_198, %c0_199, %c0_200] : memref<4x3x128x128xf32, #tpu.memory_space<vmem>>, vector<1x1x128x128xf32>
    %501 = vector.shape_cast %500 : vector<1x1x128x128xf32> to vector<128x128xf32>
    %cst_201 = arith.constant dense<0.000000e+00> : vector<4x128xf32>
    %502 = tpu.matmul %499, %501, %cst_201 {dimension_numbers = #tpu.dot_dimension_numbers<[1], [0], [0], [1], [0, 0, 1, 1], [], []>} : vector<4x128xf32>, vector<128x128xf32>, vector<4x128xf32> -> vector<4x128xf32>
    %cst_202 = arith.constant dense<0.000000e+00> : vector<4x128xf32>
    %503 = tpu.matmul %491, %474, %cst_202 {dimension_numbers = #tpu.dot_dimension_numbers<[1], [0], [0], [1], [0, 0, 1, 1], [], []>} : vector<4x8xf32>, vector<8x128xf32>, vector<4x128xf32> -> vector<4x128xf32>
    %c3_203 = arith.constant 3 : index
    %c1_204 = arith.constant 1 : index
    %c0_205 = arith.constant 0 : index
    %c0_206 = arith.constant 0 : index
    %504 = vector.load %arg5[%c3_203, %c1_204, %c0_205, %c0_206] : memref<4x3x128x128xf32, #tpu.memory_space<vmem>>, vector<1x1x128x128xf32>
    %505 = vector.shape_cast %504 : vector<1x1x128x128xf32> to vector<128x128xf32>
    %cst_207 = arith.constant dense<0.000000e+00> : vector<4x128xf32>
    %506 = tpu.matmul %503, %505, %cst_207 {dimension_numbers = #tpu.dot_dimension_numbers<[1], [0], [0], [1], [0, 0, 1, 1], [], []>} : vector<4x128xf32>, vector<128x128xf32>, vector<4x128xf32> -> vector<4x128xf32>
    %507 = arith.addf %502, %506 : vector<4x128xf32>
    %cst_208 = arith.constant dense<0.000000e+00> : vector<4x128xf32>
    %508 = tpu.matmul %498, %474, %cst_208 {dimension_numbers = #tpu.dot_dimension_numbers<[1], [0], [0], [1], [0, 0, 1, 1], [], []>} : vector<4x8xf32>, vector<8x128xf32>, vector<4x128xf32> -> vector<4x128xf32>
    %c3_209 = arith.constant 3 : index
    %c2_210 = arith.constant 2 : index
    %c0_211 = arith.constant 0 : index
    %c0_212 = arith.constant 0 : index
    %509 = vector.load %arg5[%c3_209, %c2_210, %c0_211, %c0_212] : memref<4x3x128x128xf32, #tpu.memory_space<vmem>>, vector<1x1x128x128xf32>
    %510 = vector.shape_cast %509 : vector<1x1x128x128xf32> to vector<128x128xf32>
    %cst_213 = arith.constant dense<0.000000e+00> : vector<4x128xf32>
    %511 = tpu.matmul %508, %510, %cst_213 {dimension_numbers = #tpu.dot_dimension_numbers<[1], [0], [0], [1], [0, 0, 1, 1], [], []>} : vector<4x128xf32>, vector<128x128xf32>, vector<4x128xf32> -> vector<4x128xf32>
    %512 = arith.addf %507, %511 : vector<4x128xf32>
    %513 = vector.extract_strided_slice %458 {offsets = [2, 0], sizes = [1, 128], strides = [1, 1]} : vector<16x128xf32> to vector<1x128xf32>
    %514 = vector.broadcast %513 : vector<1x128xf32> to vector<4x128xf32>
    %515 = arith.mulf %512, %514 : vector<4x128xf32>
    %516 = vector.extract_strided_slice %458 {offsets = [3, 0], sizes = [1, 128], strides = [1, 1]} : vector<16x128xf32> to vector<1x128xf32>
    %517 = vector.broadcast %516 : vector<1x128xf32> to vector<4x128xf32>
    %518 = arith.addf %515, %517 : vector<4x128xf32>
    %519 = arith.negf %518 : vector<4x128xf32>
    %520 = math.exp %519 : vector<4x128xf32>
    %cst_214 = arith.constant 1.000000e+00 : f32
    %521 = vector.broadcast %cst_214 : f32 to vector<4x128xf32>
    %522 = arith.addf %521, %520 : vector<4x128xf32>
    %523 = arith.divf %521, %522 : vector<4x128xf32>
    %524 = arith.mulf %518, %523 : vector<4x128xf32>
    %c3_215 = arith.constant 3 : index
    %c0_216 = arith.constant 0 : index
    %c0_217 = arith.constant 0 : index
    %525 = vector.load %arg6[%c3_215, %c0_216, %c0_217] : memref<4x128x128xf32, #tpu.memory_space<vmem>>, vector<1x128x128xf32>
    %526 = vector.shape_cast %525 : vector<1x128x128xf32> to vector<128x128xf32>
    %cst_218 = arith.constant dense<0.000000e+00> : vector<4x128xf32>
    %527 = tpu.matmul %524, %526, %cst_218 {dimension_numbers = #tpu.dot_dimension_numbers<[1], [0], [0], [1], [0, 0, 1, 1], [], []>} : vector<4x128xf32>, vector<128x128xf32>, vector<4x128xf32> -> vector<4x128xf32>
    %528 = vector.extract_strided_slice %458 {offsets = [4, 0], sizes = [1, 128], strides = [1, 1]} : vector<16x128xf32> to vector<1x128xf32>
    %529 = vector.broadcast %528 : vector<1x128xf32> to vector<4x128xf32>
    %530 = arith.mulf %527, %529 : vector<4x128xf32>
    %531 = vector.extract_strided_slice %458 {offsets = [5, 0], sizes = [1, 128], strides = [1, 1]} : vector<16x128xf32> to vector<1x128xf32>
    %532 = vector.broadcast %531 : vector<1x128xf32> to vector<4x128xf32>
    %533 = arith.addf %530, %532 : vector<4x128xf32>
    %cst_219 = arith.constant dense<0.000000e+00> : vector<128xf32>
    %534 = vector.multi_reduction <add>, %533, %cst_219 [0] : vector<4x128xf32> to vector<128xf32>
    %535 = vector.shape_cast %534 : vector<128xf32> to vector<1x128xf32>
    %cst_220 = arith.constant 4.000000e+00 : f32
    %536 = vector.broadcast %cst_220 : f32 to vector<1x128xf32>
    %537 = arith.divf %535, %536 : vector<1x128xf32>
    %c3_221 = arith.constant 3 : index
    %c0_222 = arith.constant 0 : index
    %c0_223 = arith.constant 0 : index
    %538 = vector.load %arg7[%c3_221, %c0_222, %c0_223] : memref<4x128x128xf32, #tpu.memory_space<vmem>>, vector<1x128x128xf32>
    %539 = vector.shape_cast %538 : vector<1x128x128xf32> to vector<128x128xf32>
    %cst_224 = arith.constant dense<0.000000e+00> : vector<1x128xf32>
    %540 = tpu.matmul %537, %539, %cst_224 {dimension_numbers = #tpu.dot_dimension_numbers<[1], [0], [0], [1], [0, 0, 1, 1], [], []>} : vector<1x128xf32>, vector<128x128xf32>, vector<1x128xf32> -> vector<1x128xf32>
    %541 = vector.extract_strided_slice %458 {offsets = [6, 0], sizes = [1, 128], strides = [1, 1]} : vector<16x128xf32> to vector<1x128xf32>
    %542 = arith.addf %540, %541 : vector<1x128xf32>
    %543 = arith.negf %542 : vector<1x128xf32>
    %544 = math.exp %543 : vector<1x128xf32>
    %cst_225 = arith.constant 1.000000e+00 : f32
    %545 = vector.broadcast %cst_225 : f32 to vector<1x128xf32>
    %546 = arith.addf %545, %544 : vector<1x128xf32>
    %547 = arith.divf %545, %546 : vector<1x128xf32>
    %548 = arith.mulf %542, %547 : vector<1x128xf32>
    %c3_226 = arith.constant 3 : index
    %c0_227 = arith.constant 0 : index
    %c0_228 = arith.constant 0 : index
    %549 = vector.load %arg8[%c3_226, %c0_227, %c0_228] : memref<4x128x128xf32, #tpu.memory_space<vmem>>, vector<1x128x128xf32>
    %550 = vector.shape_cast %549 : vector<1x128x128xf32> to vector<128x128xf32>
    %cst_229 = arith.constant dense<0.000000e+00> : vector<1x128xf32>
    %551 = tpu.matmul %548, %550, %cst_229 {dimension_numbers = #tpu.dot_dimension_numbers<[1], [0], [0], [1], [0, 0, 1, 1], [], []>} : vector<1x128xf32>, vector<128x128xf32>, vector<1x128xf32> -> vector<1x128xf32>
    %552 = vector.extract_strided_slice %458 {offsets = [7, 0], sizes = [1, 128], strides = [1, 1]} : vector<16x128xf32> to vector<1x128xf32>
    %553 = arith.addf %551, %552 : vector<1x128xf32>
    %554 = arith.negf %553 : vector<1x128xf32>
    %555 = math.exp %554 : vector<1x128xf32>
    %cst_230 = arith.constant 1.000000e+00 : f32
    %556 = vector.broadcast %cst_230 : f32 to vector<1x128xf32>
    %557 = arith.addf %556, %555 : vector<1x128xf32>
    %558 = arith.divf %556, %557 : vector<1x128xf32>
    %c2_i32_231 = arith.constant 2 : i32
    %559 = vector.broadcast %c2_i32_231 : i32 to vector<4x8xi32>
    %560 = arith.muli %559, %476 : vector<4x8xi32>
    %561 = arith.cmpi eq, %477, %560 : vector<4x8xi32>
    %562 = arith.extui %561 : vector<4x8xi1> to vector<4x8xi32>
    %563 = arith.sitofp %562 : vector<4x8xi32> to vector<4x8xf32>
    %cst_232 = arith.constant dense<0.000000e+00> : vector<4x128xf32>
    %564 = tpu.matmul %563, %475, %cst_232 {dimension_numbers = #tpu.dot_dimension_numbers<[1], [0], [0], [1], [0, 0, 1, 1], [], []>} : vector<4x8xf32>, vector<8x128xf32>, vector<4x128xf32> -> vector<4x128xf32>
    %565 = vector.extract_strided_slice %458 {offsets = [8, 0], sizes = [1, 128], strides = [1, 1]} : vector<16x128xf32> to vector<1x128xf32>
    %566 = vector.broadcast %565 : vector<1x128xf32> to vector<4x128xf32>
    %567 = arith.mulf %564, %566 : vector<4x128xf32>
    %568 = vector.extract_strided_slice %458 {offsets = [9, 0], sizes = [1, 128], strides = [1, 1]} : vector<16x128xf32> to vector<1x128xf32>
    %569 = vector.broadcast %568 : vector<1x128xf32> to vector<4x128xf32>
    %570 = arith.addf %567, %569 : vector<4x128xf32>
    %571 = vector.broadcast %558 : vector<1x128xf32> to vector<4x128xf32>
    %572 = arith.mulf %533, %571 : vector<4x128xf32>
    %573 = arith.addf %572, %570 : vector<4x128xf32>
    %574 = arith.negf %573 : vector<4x128xf32>
    %575 = math.exp %574 : vector<4x128xf32>
    %cst_233 = arith.constant 1.000000e+00 : f32
    %576 = vector.broadcast %cst_233 : f32 to vector<4x128xf32>
    %577 = arith.addf %576, %575 : vector<4x128xf32>
    %578 = arith.divf %576, %577 : vector<4x128xf32>
    %579 = arith.mulf %573, %578 : vector<4x128xf32>
    %c0_234 = arith.constant 0 : index
    %c0_235 = arith.constant 0 : index
    %580 = vector.load %arg12[%c0_234, %c0_235] : memref<8x128xf32, #tpu.memory_space<vmem>>, vector<8x128xf32>
    %c0_236 = arith.constant 0 : index
    %c0_237 = arith.constant 0 : index
    %581 = vector.load %arg10[%c0_236, %c0_237] : memref<128x384xf32, #tpu.memory_space<vmem>>, vector<128x384xf32>
    %cst_238 = arith.constant dense<0.000000e+00> : vector<4x384xf32>
    %582 = tpu.matmul %579, %581, %cst_238 {dimension_numbers = #tpu.dot_dimension_numbers<[1], [0], [0], [1], [0, 0, 1, 1], [], []>} : vector<4x128xf32>, vector<128x384xf32>, vector<4x384xf32> -> vector<4x384xf32>
    %583 = vector.extract_strided_slice %582 {offsets = [0, 0], sizes = [4, 128], strides = [1, 1]} : vector<4x384xf32> to vector<4x128xf32>
    %584 = vector.extract_strided_slice %580 {offsets = [0, 0], sizes = [1, 128], strides = [1, 1]} : vector<8x128xf32> to vector<1x128xf32>
    %585 = vector.broadcast %584 : vector<1x128xf32> to vector<4x128xf32>
    %586 = arith.addf %583, %585 : vector<4x128xf32>
    %587 = vector.extract_strided_slice %582 {offsets = [0, 128], sizes = [4, 128], strides = [1, 1]} : vector<4x384xf32> to vector<4x128xf32>
    %588 = vector.extract_strided_slice %580 {offsets = [1, 0], sizes = [1, 128], strides = [1, 1]} : vector<8x128xf32> to vector<1x128xf32>
    %589 = vector.broadcast %588 : vector<1x128xf32> to vector<4x128xf32>
    %590 = arith.addf %587, %589 : vector<4x128xf32>
    %591 = vector.extract_strided_slice %582 {offsets = [0, 256], sizes = [4, 128], strides = [1, 1]} : vector<4x384xf32> to vector<4x128xf32>
    %592 = vector.extract_strided_slice %580 {offsets = [2, 0], sizes = [1, 128], strides = [1, 1]} : vector<8x128xf32> to vector<1x128xf32>
    %593 = vector.broadcast %592 : vector<1x128xf32> to vector<4x128xf32>
    %594 = arith.addf %591, %593 : vector<4x128xf32>
    %cst_239 = arith.constant dense<0.000000e+00> : vector<4x4xf32>
    %595 = tpu.matmul %586, %590, %cst_239 {dimension_numbers = #tpu.dot_dimension_numbers<[1], [1], [0], [0], [0, 0, 1, 0], [], []>} : vector<4x128xf32>, vector<4x128xf32>, vector<4x4xf32> -> vector<4x4xf32>
    %cst_240 = arith.constant 0.176776692 : f32
    %596 = vector.broadcast %cst_240 : f32 to vector<4x4xf32>
    %597 = arith.mulf %595, %596 : vector<4x4xf32>
    %cst_241 = arith.constant dense<0xFF800000> : vector<4xf32>
    %598 = vector.multi_reduction <maximumf>, %597, %cst_241 [1] : vector<4x4xf32> to vector<4xf32>
    %599 = vector.shape_cast %598 : vector<4xf32> to vector<4x1xf32>
    %600 = vector.broadcast %599 : vector<4x1xf32> to vector<4x4xf32>
    %601 = arith.subf %597, %600 : vector<4x4xf32>
    %602 = math.exp %601 : vector<4x4xf32>
    %cst_242 = arith.constant dense<0.000000e+00> : vector<4xf32>
    %603 = vector.multi_reduction <add>, %602, %cst_242 [1] : vector<4x4xf32> to vector<4xf32>
    %604 = vector.shape_cast %603 : vector<4xf32> to vector<4x1xf32>
    %605 = vector.broadcast %604 : vector<4x1xf32> to vector<4x4xf32>
    %606 = arith.divf %602, %605 : vector<4x4xf32>
    %cst_243 = arith.constant dense<0.000000e+00> : vector<4x128xf32>
    %607 = tpu.matmul %606, %594, %cst_243 {dimension_numbers = #tpu.dot_dimension_numbers<[1], [0], [0], [1], [0, 0, 1, 1], [], []>} : vector<4x4xf32>, vector<4x128xf32>, vector<4x128xf32> -> vector<4x128xf32>
    %c0_244 = arith.constant 0 : index
    %c0_245 = arith.constant 0 : index
    %608 = vector.load %arg11[%c0_244, %c0_245] : memref<128x128xf32, #tpu.memory_space<vmem>>, vector<128x128xf32>
    %cst_246 = arith.constant dense<0.000000e+00> : vector<4x128xf32>
    %609 = tpu.matmul %607, %608, %cst_246 {dimension_numbers = #tpu.dot_dimension_numbers<[1], [0], [0], [1], [0, 0, 1, 1], [], []>} : vector<4x128xf32>, vector<128x128xf32>, vector<4x128xf32> -> vector<4x128xf32>
    %610 = vector.extract_strided_slice %580 {offsets = [3, 0], sizes = [1, 128], strides = [1, 1]} : vector<8x128xf32> to vector<1x128xf32>
    %611 = vector.broadcast %610 : vector<1x128xf32> to vector<4x128xf32>
    %612 = arith.addf %609, %611 : vector<4x128xf32>
    %613 = arith.addf %579, %612 : vector<4x128xf32>
    %614 = tpu.iota {dimensions = array<i32: 1>} : vector<1x128xi32>
    %c32_i32 = arith.constant 32 : i32
    %615 = vector.broadcast %c32_i32 : i32 to vector<1x128xi32>
    %616 = arith.cmpi slt, %614, %615 : vector<1x128xi32>
    %617 = arith.extui %616 : vector<1x128xi1> to vector<1x128xi32>
    %618 = arith.sitofp %617 : vector<1x128xi32> to vector<1x128xf32>
    %619 = vector.broadcast %618 : vector<1x128xf32> to vector<4x128xf32>
    %620 = arith.mulf %613, %619 : vector<4x128xf32>
    %cst_247 = arith.constant dense<0.000000e+00> : vector<4xf32>
    %621 = vector.multi_reduction <add>, %620, %cst_247 [1] : vector<4x128xf32> to vector<4xf32>
    %622 = vector.shape_cast %621 : vector<4xf32> to vector<4x1xf32>
    %cst_248 = arith.constant 3.125000e-02 : f32
    %623 = vector.broadcast %cst_248 : f32 to vector<4x1xf32>
    %624 = arith.mulf %622, %623 : vector<4x1xf32>
    %625 = vector.broadcast %624 : vector<4x1xf32> to vector<4x128xf32>
    %626 = arith.subf %613, %625 : vector<4x128xf32>
    %627 = vector.broadcast %618 : vector<1x128xf32> to vector<4x128xf32>
    %628 = arith.mulf %626, %627 : vector<4x128xf32>
    %629 = arith.mulf %628, %628 : vector<4x128xf32>
    %cst_249 = arith.constant dense<0.000000e+00> : vector<4xf32>
    %630 = vector.multi_reduction <add>, %629, %cst_249 [1] : vector<4x128xf32> to vector<4xf32>
    %631 = vector.shape_cast %630 : vector<4xf32> to vector<4x1xf32>
    %cst_250 = arith.constant 3.125000e-02 : f32
    %632 = vector.broadcast %cst_250 : f32 to vector<4x1xf32>
    %633 = arith.mulf %631, %632 : vector<4x1xf32>
    %cst_251 = arith.constant 9.99999974E-6 : f32
    %634 = vector.broadcast %cst_251 : f32 to vector<4x1xf32>
    %635 = arith.addf %633, %634 : vector<4x1xf32>
    %636 = math.rsqrt %635 : vector<4x1xf32>
    %637 = vector.broadcast %636 : vector<4x1xf32> to vector<4x128xf32>
    %638 = arith.mulf %628, %637 : vector<4x128xf32>
    %639 = vector.extract_strided_slice %580 {offsets = [4, 0], sizes = [1, 128], strides = [1, 1]} : vector<8x128xf32> to vector<1x128xf32>
    %640 = vector.broadcast %639 : vector<1x128xf32> to vector<4x128xf32>
    %641 = arith.mulf %638, %640 : vector<4x128xf32>
    %642 = vector.extract_strided_slice %580 {offsets = [5, 0], sizes = [1, 128], strides = [1, 1]} : vector<8x128xf32> to vector<1x128xf32>
    %643 = vector.broadcast %642 : vector<1x128xf32> to vector<4x128xf32>
    %644 = arith.addf %641, %643 : vector<4x128xf32>
    %cst_252 = arith.constant dense<0.000000e+00> : vector<128xf32>
    %645 = vector.multi_reduction <add>, %644, %cst_252 [0] : vector<4x128xf32> to vector<128xf32>
    %646 = vector.shape_cast %645 : vector<128xf32> to vector<1x128xf32>
    %cst_253 = arith.constant 4.000000e+00 : f32
    %647 = vector.broadcast %cst_253 : f32 to vector<1x128xf32>
    %648 = arith.divf %646, %647 : vector<1x128xf32>
    %c0_254 = arith.constant 0 : index
    %c0_255 = arith.constant 0 : index
    %649 = vector.load %arg14[%c0_254, %c0_255] : memref<8x128xf32, #tpu.memory_space<vmem>>, vector<8x128xf32>
    %c0_256 = arith.constant 0 : index
    %c0_257 = arith.constant 0 : index
    %c0_258 = arith.constant 0 : index
    %650 = vector.load %arg13[%c0_256, %c0_257, %c0_258] : memref<3x128x128xf32, #tpu.memory_space<vmem>>, vector<1x128x128xf32>
    %651 = vector.shape_cast %650 : vector<1x128x128xf32> to vector<128x128xf32>
    %cst_259 = arith.constant dense<0.000000e+00> : vector<1x128xf32>
    %652 = tpu.matmul %648, %651, %cst_259 {dimension_numbers = #tpu.dot_dimension_numbers<[1], [0], [0], [1], [0, 0, 1, 1], [], []>} : vector<1x128xf32>, vector<128x128xf32>, vector<1x128xf32> -> vector<1x128xf32>
    %653 = vector.extract_strided_slice %649 {offsets = [0, 0], sizes = [1, 128], strides = [1, 1]} : vector<8x128xf32> to vector<1x128xf32>
    %654 = arith.mulf %652, %653 : vector<1x128xf32>
    %655 = vector.extract_strided_slice %649 {offsets = [1, 0], sizes = [1, 128], strides = [1, 1]} : vector<8x128xf32> to vector<1x128xf32>
    %656 = arith.addf %654, %655 : vector<1x128xf32>
    %657 = arith.negf %656 : vector<1x128xf32>
    %658 = math.exp %657 : vector<1x128xf32>
    %cst_260 = arith.constant 1.000000e+00 : f32
    %659 = vector.broadcast %cst_260 : f32 to vector<1x128xf32>
    %660 = arith.addf %659, %658 : vector<1x128xf32>
    %661 = arith.divf %659, %660 : vector<1x128xf32>
    %662 = arith.mulf %656, %661 : vector<1x128xf32>
    %c1_261 = arith.constant 1 : index
    %c0_262 = arith.constant 0 : index
    %c0_263 = arith.constant 0 : index
    %663 = vector.load %arg13[%c1_261, %c0_262, %c0_263] : memref<3x128x128xf32, #tpu.memory_space<vmem>>, vector<1x128x128xf32>
    %664 = vector.shape_cast %663 : vector<1x128x128xf32> to vector<128x128xf32>
    %cst_264 = arith.constant dense<0.000000e+00> : vector<1x128xf32>
    %665 = tpu.matmul %662, %664, %cst_264 {dimension_numbers = #tpu.dot_dimension_numbers<[1], [0], [0], [1], [0, 0, 1, 1], [], []>} : vector<1x128xf32>, vector<128x128xf32>, vector<1x128xf32> -> vector<1x128xf32>
    %666 = vector.extract_strided_slice %649 {offsets = [2, 0], sizes = [1, 128], strides = [1, 1]} : vector<8x128xf32> to vector<1x128xf32>
    %667 = arith.mulf %665, %666 : vector<1x128xf32>
    %668 = vector.extract_strided_slice %649 {offsets = [3, 0], sizes = [1, 128], strides = [1, 1]} : vector<8x128xf32> to vector<1x128xf32>
    %669 = arith.addf %667, %668 : vector<1x128xf32>
    %670 = arith.negf %669 : vector<1x128xf32>
    %671 = math.exp %670 : vector<1x128xf32>
    %cst_265 = arith.constant 1.000000e+00 : f32
    %672 = vector.broadcast %cst_265 : f32 to vector<1x128xf32>
    %673 = arith.addf %672, %671 : vector<1x128xf32>
    %674 = arith.divf %672, %673 : vector<1x128xf32>
    %675 = arith.mulf %669, %674 : vector<1x128xf32>
    %c2_266 = arith.constant 2 : index
    %c0_267 = arith.constant 0 : index
    %c0_268 = arith.constant 0 : index
    %676 = vector.load %arg13[%c2_266, %c0_267, %c0_268] : memref<3x128x128xf32, #tpu.memory_space<vmem>>, vector<1x128x128xf32>
    %677 = vector.shape_cast %676 : vector<1x128x128xf32> to vector<128x128xf32>
    %cst_269 = arith.constant dense<0.000000e+00> : vector<1x128xf32>
    %678 = tpu.matmul %675, %677, %cst_269 {dimension_numbers = #tpu.dot_dimension_numbers<[1], [0], [0], [1], [0, 0, 1, 1], [], []>} : vector<1x128xf32>, vector<128x128xf32>, vector<1x128xf32> -> vector<1x128xf32>
    %679 = vector.extract_strided_slice %649 {offsets = [4, 0], sizes = [1, 128], strides = [1, 1]} : vector<8x128xf32> to vector<1x128xf32>
    %680 = arith.mulf %678, %679 : vector<1x128xf32>
    %681 = vector.extract_strided_slice %649 {offsets = [5, 0], sizes = [1, 128], strides = [1, 1]} : vector<8x128xf32> to vector<1x128xf32>
    %682 = arith.addf %680, %681 : vector<1x128xf32>
    %683 = arith.negf %682 : vector<1x128xf32>
    %684 = math.exp %683 : vector<1x128xf32>
    %cst_270 = arith.constant 1.000000e+00 : f32
    %685 = vector.broadcast %cst_270 : f32 to vector<1x128xf32>
    %686 = arith.addf %685, %684 : vector<1x128xf32>
    %687 = arith.divf %685, %686 : vector<1x128xf32>
    %c0_271 = arith.constant 0 : index
    %c0_272 = arith.constant 0 : index
    %c0_273 = arith.constant 0 : index
    %688 = vector.load %arg15[%c0_271, %c0_272, %c0_273] : memref<1x1x128xf32, #tpu.memory_space<vmem>>, vector<1x1x128xf32>
    %689 = vector.shape_cast %688 : vector<1x1x128xf32> to vector<1x128xf32>
    %690 = vector.shape_cast %687 : vector<1x128xf32> to vector<1x1x128xf32>
    tpu.vector_store %arg15[%c0_271, %c0_272, %c0_273], %690 {strides = array<i32>} : memref<1x1x128xf32, #tpu.memory_space<vmem>>, vector<1x1x128xf32>,
    return
  }
  func.func @transform_0(%arg0: i32) -> (i32, i32, i32) {
    %c0_i32 = arith.constant 0 : i32
    %c0_i32_0 = arith.constant 0 : i32
    %c0_i32_1 = arith.constant 0 : i32
    return %arg0, %c0_i32, %c0_i32_0 : i32, i32, i32
  }
  func.func @transform_1(%arg0: i32) -> (i32, i32) {
    %c0_i32 = arith.constant 0 : i32
    %c0_i32_0 = arith.constant 0 : i32
    %c0_i32_1 = arith.constant 0 : i32
    return %c0_i32, %c0_i32_0 : i32, i32
  }
  func.func @transform_2(%arg0: i32) -> (i32, i32) {
    %c0_i32 = arith.constant 0 : i32
    %c0_i32_0 = arith.constant 0 : i32
    %c0_i32_1 = arith.constant 0 : i32
    return %c0_i32, %c0_i32_0 : i32, i32
  }
  func.func @transform_3(%arg0: i32) -> (i32, i32, i32) {
    %c0_i32 = arith.constant 0 : i32
    %c0_i32_0 = arith.constant 0 : i32
    %c0_i32_1 = arith.constant 0 : i32
    %c0_i32_2 = arith.constant 0 : i32
    return %c0_i32, %c0_i32_0, %c0_i32_1 : i32, i32, i32
  }
  func.func @transform_4(%arg0: i32) -> (i32, i32, i32, i32) {
    %c0_i32 = arith.constant 0 : i32
    %c0_i32_0 = arith.constant 0 : i32
    %c0_i32_1 = arith.constant 0 : i32
    %c0_i32_2 = arith.constant 0 : i32
    %c0_i32_3 = arith.constant 0 : i32
    return %c0_i32, %c0_i32_0, %c0_i32_1, %c0_i32_2 : i32, i32, i32, i32
  }
  func.func @transform_5(%arg0: i32) -> (i32, i32, i32) {
    %c0_i32 = arith.constant 0 : i32
    %c0_i32_0 = arith.constant 0 : i32
    %c0_i32_1 = arith.constant 0 : i32
    %c0_i32_2 = arith.constant 0 : i32
    return %c0_i32, %c0_i32_0, %c0_i32_1 : i32, i32, i32
  }
  func.func @transform_6(%arg0: i32) -> (i32, i32, i32) {
    %c0_i32 = arith.constant 0 : i32
    %c0_i32_0 = arith.constant 0 : i32
    %c0_i32_1 = arith.constant 0 : i32
    %c0_i32_2 = arith.constant 0 : i32
    return %c0_i32, %c0_i32_0, %c0_i32_1 : i32, i32, i32
  }
  func.func @transform_7(%arg0: i32) -> (i32, i32, i32) {
    %c0_i32 = arith.constant 0 : i32
    %c0_i32_0 = arith.constant 0 : i32
    %c0_i32_1 = arith.constant 0 : i32
    %c0_i32_2 = arith.constant 0 : i32
    return %c0_i32, %c0_i32_0, %c0_i32_1 : i32, i32, i32
  }
  func.func @transform_8(%arg0: i32) -> (i32, i32, i32) {
    %c0_i32 = arith.constant 0 : i32
    %c0_i32_0 = arith.constant 0 : i32
    %c0_i32_1 = arith.constant 0 : i32
    %c0_i32_2 = arith.constant 0 : i32
    return %c0_i32, %c0_i32_0, %c0_i32_1 : i32, i32, i32
  }
  func.func @transform_9(%arg0: i32) -> (i32, i32) {
    %c0_i32 = arith.constant 0 : i32
    %c0_i32_0 = arith.constant 0 : i32
    %c0_i32_1 = arith.constant 0 : i32
    return %c0_i32, %c0_i32_0 : i32, i32
  }
  func.func @transform_10(%arg0: i32) -> (i32, i32) {
    %c0_i32 = arith.constant 0 : i32
    %c0_i32_0 = arith.constant 0 : i32
    %c0_i32_1 = arith.constant 0 : i32
    return %c0_i32, %c0_i32_0 : i32, i32
  }
  func.func @transform_11(%arg0: i32) -> (i32, i32) {
    %c0_i32 = arith.constant 0 : i32
    %c0_i32_0 = arith.constant 0 : i32
    %c0_i32_1 = arith.constant 0 : i32
    return %c0_i32, %c0_i32_0 : i32, i32
  }
  func.func @transform_12(%arg0: i32) -> (i32, i32, i32) {
    %c0_i32 = arith.constant 0 : i32
    %c0_i32_0 = arith.constant 0 : i32
    %c0_i32_1 = arith.constant 0 : i32
    %c0_i32_2 = arith.constant 0 : i32
    return %c0_i32, %c0_i32_0, %c0_i32_1 : i32, i32, i32
  }
  func.func @transform_13(%arg0: i32) -> (i32, i32) {
    %c0_i32 = arith.constant 0 : i32
    %c0_i32_0 = arith.constant 0 : i32
    %c0_i32_1 = arith.constant 0 : i32
    return %c0_i32, %c0_i32_0 : i32, i32
  }
  func.func @transform_14(%arg0: i32) -> (i32, i32, i32) {
    %c0_i32 = arith.constant 0 : i32
    %c0_i32_0 = arith.constant 0 : i32
    %c0_i32_1 = arith.constant 0 : i32
    return %arg0, %c0_i32, %c0_i32_0 : i32, i32, i32
  }
}

</mosaic_0001>

<llo_original>
// kernel: _lambda_.1
$region0: #{_lambda_.1}
  #allocation0 [shape = 'u32[]', space=smem, size = 0x4, offset = 0x4, fixed_abs, tag = 'smem constant byte address 0x4 - core index']
  #allocation1 [shape = 'u32[144,128]{1,0:T(1,128)}', space=vmem, size = 0x12000, scoped, tag = 'internal scratch']
  %s0 = inlined_call_operand.vmem [shape: f32[2,128,8], index: 0, kind: input, shape index: {}]
  %s1 = inlined_call_operand.hbm [shape: f32[8,128], index: 1, kind: input, shape index: {}]
  %s2 = inlined_call_operand.hbm [shape: f32[8,128], index: 2, kind: input, shape index: {}]
  %s3 = inlined_call_operand.hbm [shape: f32[4,128,256], index: 3, kind: input, shape index: {}]
  %s4 = inlined_call_operand.hbm [shape: f32[4,3,128,128], index: 4, kind: input, shape index: {}]
  %s5 = inlined_call_operand.hbm [shape: f32[4,128,128], index: 5, kind: input, shape index: {}]
  %s6 = inlined_call_operand.hbm [shape: f32[4,128,128], index: 6, kind: input, shape index: {}]
  %s7 = inlined_call_operand.vmem [shape: f32[4,128,128], index: 7, kind: input, shape index: {}]
  %s8 = inlined_call_operand.hbm [shape: f32[4,16,128], index: 8, kind: input, shape index: {}]
  %s9 = inlined_call_operand.hbm [shape: f32[128,384], index: 9, kind: input, shape index: {}]
  %s10 = inlined_call_operand.hbm [shape: f32[128,128], index: 10, kind: input, shape index: {}]
  %s11 = inlined_call_operand.vmem [shape: f32[8,128], index: 11, kind: input, shape index: {}]
  %s12 = inlined_call_operand.vmem [shape: f32[3,128,128], index: 12, kind: input, shape index: {}]
  %s13 = inlined_call_operand.vmem [shape: f32[8,128], index: 13, kind: input, shape index: {}]
  %s14 = inlined_call_operand.hbm [shape: f32[2,1,128], index: 14, kind: output, shape index: {}]
  %s15 = sld [smem:[#allocation0]]
  $region125: #{_lambda_.1} parent=0
    _
  %s17 = ssub.s32 1, %s15
  %s18 = scalar_select 0, %s17, %s15
  $region1: #{_lambda_.1} parent=0
    #allocation2 [shape = 'u8[4096]{0}', space=vmem, size = 0x1000, scoped, tag = 'input window, operand 1, single buffered']
    #allocation3 [shape = 's32[2]{0}', space=sflag, size = 0x8, scoped, tag = 'scoped memory for _lambda_.1']
    #allocation4 [shape = 's32[2]{0}', space=sflag, size = 0x8, scoped, tag = 'scoped memory for _lambda_.1']
    #allocation5 [shape = 'u8[4096]{0}', space=vmem, size = 0x1000, scoped, tag = 'input window, operand 2, single buffered']
    #allocation6 [shape = 's32[1]{0}', space=sflag, size = 0x4, scoped, tag = 'scoped memory for _lambda_.1']
    #allocation7 [shape = 'u8[524288]{0}', space=vmem, size = 0x80000, scoped, tag = 'input window, operand 3, single buffered']
    #allocation8 [shape = 'u8[786432]{0}', space=vmem, size = 0xc0000, scoped, tag = 'input window, operand 4, single buffered']
    #allocation9 [shape = 's32[1]{0}', space=sflag, size = 0x4, scoped, tag = 'scoped memory for _lambda_.1']
    #allocation10 [shape = 'u8[262144]{0}', space=vmem, size = 0x40000, scoped, tag = 'input window, operand 5, single buffered']
    #allocation11 [shape = 'u8[262144]{0}', space=vmem, size = 0x40000, scoped, tag = 'input window, operand 6, single buffered']
    #allocation12 [shape = 's32[1]{0}', space=sflag, size = 0x4, scoped, tag = 'scoped memory for _lambda_.1']
    #allocation13 [shape = 'u8[32768]{0}', space=vmem, size = 0x8000, scoped, tag = 'input window, operand 8, single buffered']
    #allocation14 [shape = 'u8[196608]{0}', space=vmem, size = 0x30000, scoped, tag = 'input window, operand 9, single buffered']
    #allocation15 [shape = 's32[1]{0}', space=sflag, size = 0x4, scoped, tag = 'scoped memory for _lambda_.1']
    #allocation16 [shape = 'u8[65536]{0}', space=vmem, size = 0x10000, scoped, tag = 'input window, operand 10, single buffered']
    #allocation17 [shape = 'u8[1024]{0}', space=vmem, size = 0x400, scoped, tag = 'output window, operand 0']
    %19 = vsyncpa [#allocation3], 0
    %20 = vsyncpa [#allocation6], 0
    %21 = vsyncpa [#allocation9], 0
    %22 = vsyncpa [#allocation12], 0
    %23 = vsyncpa [#allocation15], 0
    %24 = vsyncpa [#allocation4], 0
    %s25 = scalar_lea.sflag [#allocation4], 1
    %26 = vsyncpa %s25, 0
    loop: start=0, step=1, limit=4
    $region2: #{_lambda_.1} parent=1 // loop_pre_header
      _
    $region3: #{_lambda_.1} parent=1 // loop_header
      %s28 = sphi 0, %s32
      %p29 = scmp.ge.s32.totalorder %s28, 4
      %s38 = sphi 0, %s40
      %s41 = sphi 0, %s38
      %s42 = sphi 0, %s41
      %s58 = sphi 0, %s42
      %s62 = sphi 0, %s62
      %s64 = sphi 0, %s62
      %s65 = sphi 0, %s64
      %s79 = sphi 0, %s65
      %s83 = sphi 0, %s83
      %s85 = sphi 0, %s83
      %s86 = sphi 0, %s85
      %s100 = sphi 0, %s86
      %s104 = sphi 0, %s104
      %s106 = sphi 0, %s104
      %s107 = sphi 0, %s106
      %s121 = sphi 0, %s107
      %s125 = sphi 0, %s125
      %s127 = sphi 0, %s125
      %s128 = sphi 0, %s127
      %s142 = sphi 0, %s128
      %s146 = sphi 0, %s146
      %s148 = sphi 0, %s146
      %s149 = sphi 0, %s148
      %s163 = sphi 0, %s149
      %s167 = sphi 0, %s167
      %s169 = sphi 0, %s167
      %s170 = sphi 0, %s169
      %s184 = sphi 0, %s170
      %s188 = sphi 0, %s188
      %s190 = sphi 0, %s188
      %s191 = sphi 0, %s190
      %s205 = sphi 0, %s191
      %s209 = sphi 0, %s209
      %s211 = sphi 0, %s209
      %s212 = sphi 0, %s211
      %s226 = sphi 0, %s212
      %s230 = sphi 0, %s230
      %s232 = sphi 0, %s230
      %s233 = sphi 0, %s232
      %s247 = sphi 0, %s233
      %s251 = sphi 0, %s251
      %s253 = sphi 0, %s251
      %s254 = sphi 0, %s253
      %s268 = sphi 0, %s254
      %s272 = sphi 0, %s272
      %s274 = sphi 0, %s272
      %s275 = sphi 0, %s274
      %s289 = sphi 0, %s275
      %s293 = sphi 0, %s293
      %s295 = sphi 0, %s293
      %s296 = sphi 0, %s295
      %s310 = sphi 0, %s296
      %s314 = sphi 0, %s314
      %s316 = sphi 0, %s314
      %s317 = sphi 0, %s316
      %s331 = sphi 0, %s317
      %s337 = sphi 0, %s339
      %s340 = sphi 0, %s337
      %s341 = sphi 0, %s340
      %s357 = sphi 0, %s341
    $region4: #{_lambda_.1} parent=1 // loop_header_branch
      %31 = sbr.rel (%p29) target = $region8
    $region5: #{_lambda_.1} parent=1 // loop_body
      %s33 = ssub.s32 %s28, 1
      %s34 = ssub.s32 %s28, 2
      %s35 = sadd.s32 %s28, 1
      %s36 = ssub.s32 %s28, %s35
      %p37 = scmp.eq.s32.totalorder %s36, 0
      %s39 = sadd.s32 %s38, 1
      %s40 = scalar_select %p37, %s38, %s39
      %p43 = pneg %p37
      %p44 = scmp.eq.s32.totalorder %s28, 1
      %p45 = por %p43, %p44
      %p46 = scmp.ne.s32.totalorder %s38, %s41
      %p47 = scmp.eq.s32.totalorder %s28, 0
      %p48 = por %p46, %p47
      %p49 = scmp.ne.s32.totalorder %s38, %s41
      %p50 = scmp.eq.s32.totalorder %s33, 1
      %p51 = por %p49, %p50
      %p52 = scmp.ne.s32.totalorder %s41, %s42
      %p53 = scmp.eq.s32.totalorder %s33, 0
      %p54 = por %p52, %p53
      %p55 = scmp.ne.s32.totalorder %s41, %s42
      %p56 = scmp.eq.s32.totalorder %s34, 1
      %p57 = por %p55, %p56
      %p59 = scmp.ne.s32.totalorder %s42, %s58
      %p60 = scmp.eq.s32.totalorder %s34, 0
      %p61 = por %p59, %p60
      %s63 = sadd.s32 %s62, 1
      %p66 = scmp.eq.s32.totalorder %s28, 1
      %p67 = scmp.ne.s32.totalorder %s62, %s64
      %p68 = scmp.eq.s32.totalorder %s28, 0
      %p69 = por %p67, %p68
      %p70 = scmp.ne.s32.totalorder %s62, %s64
      %p71 = scmp.eq.s32.totalorder %s33, 1
      %p72 = por %p70, %p71
      %p73 = scmp.ne.s32.totalorder %s64, %s65
      %p74 = scmp.eq.s32.totalorder %s33, 0
      %p75 = por %p73, %p74
      %p76 = scmp.ne.s32.totalorder %s64, %s65
      %p77 = scmp.eq.s32.totalorder %s34, 1
      %p78 = por %p76, %p77
      %p80 = scmp.ne.s32.totalorder %s65, %s79
      %p81 = scmp.eq.s32.totalorder %s34, 0
      %p82 = por %p80, %p81
      %s84 = sadd.s32 %s83, 1
      %p87 = scmp.eq.s32.totalorder %s28, 1
      %p88 = scmp.ne.s32.totalorder %s83, %s85
      %p89 = scmp.eq.s32.totalorder %s28, 0
      %p90 = por %p88, %p89
      %p91 = scmp.ne.s32.totalorder %s83, %s85
      %p92 = scmp.eq.s32.totalorder %s33, 1
      %p93 = por %p91, %p92
      %p94 = scmp.ne.s32.totalorder %s85, %s86
      %p95 = scmp.eq.s32.totalorder %s33, 0
      %p96 = por %p94, %p95
      %p97 = scmp.ne.s32.totalorder %s85, %s86
      %p98 = scmp.eq.s32.totalorder %s34, 1
      %p99 = por %p97, %p98
      %p101 = scmp.ne.s32.totalorder %s86, %s100
      %p102 = scmp.eq.s32.totalorder %s34, 0
      %p103 = por %p101, %p102
      %s105 = sadd.s32 %s104, 1
      %p108 = scmp.eq.s32.totalorder %s28, 1
      %p109 = scmp.ne.s32.totalorder %s104, %s106
      %p110 = scmp.eq.s32.totalorder %s28, 0
      %p111 = por %p109, %p110
      %p112 = scmp.ne.s32.totalorder %s104, %s106
      %p113 = scmp.eq.s32.totalorder %s33, 1
      %p114 = por %p112, %p113
      %p115 = scmp.ne.s32.totalorder %s106, %s107
      %p116 = scmp.eq.s32.totalorder %s33, 0
      %p117 = por %p115, %p116
      %p118 = scmp.ne.s32.totalorder %s106, %s107
      %p119 = scmp.eq.s32.totalorder %s34, 1
      %p120 = por %p118, %p119
      %p122 = scmp.ne.s32.totalorder %s107, %s121
      %p123 = scmp.eq.s32.totalorder %s34, 0
      %p124 = por %p122, %p123
      %s126 = sadd.s32 %s125, 1
      %p129 = scmp.eq.s32.totalorder %s28, 1
      %p130 = scmp.ne.s32.totalorder %s125, %s127
      %p131 = scmp.eq.s32.totalorder %s28, 0
      %p132 = por %p130, %p131
      %p133 = scmp.ne.s32.totalorder %s125, %s127
      %p134 = scmp.eq.s32.totalorder %s33, 1
      %p135 = por %p133, %p134
      %p136 = scmp.ne.s32.totalorder %s127, %s128
      %p137 = scmp.eq.s32.totalorder %s33, 0
      %p138 = por %p136, %p137
      %p139 = scmp.ne.s32.totalorder %s127, %s128
      %p140 = scmp.eq.s32.totalorder %s34, 1
      %p141 = por %p139, %p140
      %p143 = scmp.ne.s32.totalorder %s128, %s142
      %p144 = scmp.eq.s32.totalorder %s34, 0
      %p145 = por %p143, %p144
      %s147 = sadd.s32 %s146, 1
      %p150 = scmp.eq.s32.totalorder %s28, 1
      %p151 = scmp.ne.s32.totalorder %s146, %s148
      %p152 = scmp.eq.s32.totalorder %s28, 0
      %p153 = por %p151, %p152
      %p154 = scmp.ne.s32.totalorder %s146, %s148
      %p155 = scmp.eq.s32.totalorder %s33, 1
      %p156 = por %p154, %p155
      %p157 = scmp.ne.s32.totalorder %s148, %s149
      %p158 = scmp.eq.s32.totalorder %s33, 0
      %p159 = por %p157, %p158
      %p160 = scmp.ne.s32.totalorder %s148, %s149
      %p161 = scmp.eq.s32.totalorder %s34, 1
      %p162 = por %p160, %p161
      %p164 = scmp.ne.s32.totalorder %s149, %s163
      %p165 = scmp.eq.s32.totalorder %s34, 0
      %p166 = por %p164, %p165
      %s168 = sadd.s32 %s167, 1
      %p171 = scmp.eq.s32.totalorder %s28, 1
      %p172 = scmp.ne.s32.totalorder %s167, %s169
      %p173 = scmp.eq.s32.totalorder %s28, 0
      %p174 = por %p172, %p173
      %p175 = scmp.ne.s32.totalorder %s167, %s169
      %p176 = scmp.eq.s32.totalorder %s33, 1
      %p177 = por %p175, %p176
      %p178 = scmp.ne.s32.totalorder %s169, %s170
      %p179 = scmp.eq.s32.totalorder %s33, 0
      %p180 = por %p178, %p179
      %p181 = scmp.ne.s32.totalorder %s169, %s170
      %p182 = scmp.eq.s32.totalorder %s34, 1
      %p183 = por %p181, %p182
      %p185 = scmp.ne.s32.totalorder %s170, %s184
      %p186 = scmp.eq.s32.totalorder %s34, 0
      %p187 = por %p185, %p186
      %s189 = sadd.s32 %s188, 1
      %p192 = scmp.eq.s32.totalorder %s28, 1
      %p193 = scmp.ne.s32.totalorder %s188, %s190
      %p194 = scmp.eq.s32.totalorder %s28, 0
      %p195 = por %p193, %p194
      %p196 = scmp.ne.s32.totalorder %s188, %s190
      %p197 = scmp.eq.s32.totalorder %s33, 1
      %p198 = por %p196, %p197
      %p199 = scmp.ne.s32.totalorder %s190, %s191
      %p200 = scmp.eq.s32.totalorder %s33, 0
      %p201 = por %p199, %p200
      %p202 = scmp.ne.s32.totalorder %s190, %s191
      %p203 = scmp.eq.s32.totalorder %s34, 1
      %p204 = por %p202, %p203
      %p206 = scmp.ne.s32.totalorder %s191, %s205
      %p207 = scmp.eq.s32.totalorder %s34, 0
      %p208 = por %p206, %p207
      %s210 = sadd.s32 %s209, 1
      %p213 = scmp.eq.s32.totalorder %s28, 1
      %p214 = scmp.ne.s32.totalorder %s209, %s211
      %p215 = scmp.eq.s32.totalorder %s28, 0
      %p216 = por %p214, %p215
      %p217 = scmp.ne.s32.totalorder %s209, %s211
      %p218 = scmp.eq.s32.totalorder %s33, 1
      %p219 = por %p217, %p218
      %p220 = scmp.ne.s32.totalorder %s211, %s212
      %p221 = scmp.eq.s32.totalorder %s33, 0
      %p222 = por %p220, %p221
      %p223 = scmp.ne.s32.totalorder %s211, %s212
      %p224 = scmp.eq.s32.totalorder %s34, 1
      %p225 = por %p223, %p224
      %p227 = scmp.ne.s32.totalorder %s212, %s226
      %p228 = scmp.eq.s32.totalorder %s34, 0
      %p229 = por %p227, %p228
      %s231 = sadd.s32 %s230, 1
      %p234 = scmp.eq.s32.totalorder %s28, 1
      %p235 = scmp.ne.s32.totalorder %s230, %s232
      %p236 = scmp.eq.s32.totalorder %s28, 0
      %p237 = por %p235, %p236
      %p238 = scmp.ne.s32.totalorder %s230, %s232
      %p239 = scmp.eq.s32.totalorder %s33, 1
      %p240 = por %p238, %p239
      %p241 = scmp.ne.s32.totalorder %s232, %s233
      %p242 = scmp.eq.s32.totalorder %s33, 0
      %p243 = por %p241, %p242
      %p244 = scmp.ne.s32.totalorder %s232, %s233
      %p245 = scmp.eq.s32.totalorder %s34, 1
      %p246 = por %p244, %p245
      %p248 = scmp.ne.s32.totalorder %s233, %s247
      %p249 = scmp.eq.s32.totalorder %s34, 0
      %p250 = por %p248, %p249
      %s252 = sadd.s32 %s251, 1
      %p255 = scmp.eq.s32.totalorder %s28, 1
      %p256 = scmp.ne.s32.totalorder %s251, %s253
      %p257 = scmp.eq.s32.totalorder %s28, 0
      %p258 = por %p256, %p257
      %p259 = scmp.ne.s32.totalorder %s251, %s253
      %p260 = scmp.eq.s32.totalorder %s33, 1
      %p261 = por %p259, %p260
      %p262 = scmp.ne.s32.totalorder %s253, %s254
      %p263 = scmp.eq.s32.totalorder %s33, 0
      %p264 = por %p262, %p263
      %p265 = scmp.ne.s32.totalorder %s253, %s254
      %p266 = scmp.eq.s32.totalorder %s34, 1
      %p267 = por %p265, %p266
      %p269 = scmp.ne.s32.totalorder %s254, %s268
      %p270 = scmp.eq.s32.totalorder %s34, 0
      %p271 = por %p269, %p270
      %s273 = sadd.s32 %s272, 1
      %p276 = scmp.eq.s32.totalorder %s28, 1
      %p277 = scmp.ne.s32.totalorder %s272, %s274
      %p278 = scmp.eq.s32.totalorder %s28, 0
      %p279 = por %p277, %p278
      %p280 = scmp.ne.s32.totalorder %s272, %s274
      %p281 = scmp.eq.s32.totalorder %s33, 1
      %p282 = por %p280, %p281
      %p283 = scmp.ne.s32.totalorder %s274, %s275
      %p284 = scmp.eq.s32.totalorder %s33, 0
      %p285 = por %p283, %p284
      %p286 = scmp.ne.s32.totalorder %s274, %s275
      %p287 = scmp.eq.s32.totalorder %s34, 1
      %p288 = por %p286, %p287
      %p290 = scmp.ne.s32.totalorder %s275, %s289
      %p291 = scmp.eq.s32.totalorder %s34, 0
      %p292 = por %p290, %p291
      %s294 = sadd.s32 %s293, 1
      %p297 = scmp.eq.s32.totalorder %s28, 1
      %p298 = scmp.ne.s32.totalorder %s293, %s295
      %p299 = scmp.eq.s32.totalorder %s28, 0
      %p300 = por %p298, %p299
      %p301 = scmp.ne.s32.totalorder %s293, %s295
      %p302 = scmp.eq.s32.totalorder %s33, 1
      %p303 = por %p301, %p302
      %p304 = scmp.ne.s32.totalorder %s295, %s296
      %p305 = scmp.eq.s32.totalorder %s33, 0
      %p306 = por %p304, %p305
      %p307 = scmp.ne.s32.totalorder %s295, %s296
      %p308 = scmp.eq.s32.totalorder %s34, 1
      %p309 = por %p307, %p308
      %p311 = scmp.ne.s32.totalorder %s296, %s310
      %p312 = scmp.eq.s32.totalorder %s34, 0
      %p313 = por %p311, %p312
      %s315 = sadd.s32 %s314, 1
      %p318 = scmp.eq.s32.totalorder %s28, 1
      %p319 = scmp.ne.s32.totalorder %s314, %s316
      %p320 = scmp.eq.s32.totalorder %s28, 0
      %p321 = por %p319, %p320
      %p322 = scmp.ne.s32.totalorder %s314, %s316
      %p323 = scmp.eq.s32.totalorder %s33, 1
      %p324 = por %p322, %p323
      %p325 = scmp.ne.s32.totalorder %s316, %s317
      %p326 = scmp.eq.s32.totalorder %s33, 0
      %p327 = por %p325, %p326
      %p328 = scmp.ne.s32.totalorder %s316, %s317
      %p329 = scmp.eq.s32.totalorder %s34, 1
      %p330 = por %p328, %p329
      %p332 = scmp.ne.s32.totalorder %s317, %s331
      %p333 = scmp.eq.s32.totalorder %s34, 0
      %p334 = por %p332, %p333
      %s335 = ssub.s32 %s28, %s35
      %p336 = scmp.eq.s32.totalorder %s335, 0
      %s338 = sadd.s32 %s337, 1
      %s339 = scalar_select %p336, %s337, %s338
      %p342 = pneg %p336
      %p343 = scmp.eq.s32.totalorder %s28, 1
      %p344 = por %p342, %p343
      %p345 = scmp.ne.s32.totalorder %s337, %s340
      %p346 = scmp.eq.s32.totalorder %s28, 0
      %p347 = por %p345, %p346
      %p348 = scmp.ne.s32.totalorder %s337, %s340
      %p349 = scmp.eq.s32.totalorder %s33, 1
      %p350 = por %p348, %p349
      %p351 = scmp.ne.s32.totalorder %s340, %s341
      %p352 = scmp.eq.s32.totalorder %s33, 0
      %p353 = por %p351, %p352
      %p354 = scmp.ne.s32.totalorder %s340, %s341
      %p355 = scmp.eq.s32.totalorder %s34, 1
      %p356 = por %p354, %p355
      %p358 = scmp.ne.s32.totalorder %s341, %s357
      %p359 = scmp.eq.s32.totalorder %s34, 0
      %p360 = por %p358, %p359
      %p361 = scmp.le.s32.totalorder 1, %s28
      %p362 = scmp.lt.s32.totalorder %s28, 3
      %p363 = pnand %p361, %p362
      %p364 = pneg %p363
      // Predicated region
      $region9: #{_lambda_.1} parent=5 // pred_check
        _
      $region10: #{_lambda_.1} parent=5 // pred_check_branch
        %366 = sbr.rel (%p363) target = $region12
      $region11: #{_lambda_.1} parent=5 // pred_region
        %s367 = ssub.s32 %s28, 1
        // Predicated region
        $region13: #{_lambda_.1} parent=11 // pred_check
          %p368 = pneg %p75
        $region14: #{_lambda_.1} parent=11 // pred_check_branch
          %370 = sbr.rel (%p368) target = $region16
        $region15: #{_lambda_.1} parent=11 // pred_region
          %s372 = ssub.s32 128, 128
          %373 = vsyncadd [#allocation3], %s372
          %s375 = sshll.u32 [#allocation2], 4
          %s376 = int_to_ptr.vmem [resolvable:$true] %s375
          %378 = dma.hbm_to_vmem [thread:$0]  %s1, 128, %s376, [#allocation3]
        $region16: #{_lambda_.1} parent=11 // pred_fallthru
          _
        // Predicated region
        $region17: #{_lambda_.1} parent=11 // pred_check
          %p379 = pneg %p96
        $region18: #{_lambda_.1} parent=11 // pred_check_branch
          %381 = sbr.rel (%p379) target = $region20
        $region19: #{_lambda_.1} parent=11 // pred_region
          %s383 = ssub.s32 128, 128
          %384 = vsyncadd [#allocation6], %s383
          %s386 = sshll.u32 [#allocation5], 4
          %s387 = int_to_ptr.vmem [resolvable:$true] %s386
          %389 = dma.hbm_to_vmem [thread:$0]  %s2, 128, %s387, [#allocation6]
        $region20: #{_lambda_.1} parent=11 // pred_fallthru
          _
        // Predicated region
        $region21: #{_lambda_.1} parent=11 // pred_check
          %p390 = pneg %p117
        $region22: #{_lambda_.1} parent=11 // pred_check_branch
          %392 = sbr.rel (%p390) target = $region24
        $region23: #{_lambda_.1} parent=11 // pred_region
          %s394 = ssub.s32 16384, 16384
          %395 = vsyncadd [#allocation6], %s394
          %s396 = sshll.u32 [#allocation7], 4
          %s397 = int_to_ptr.vmem [resolvable:$true] %s396
          %402 = dma.hbm_to_vmem [thread:$0]  %s3, 16384, %s397, [#allocation6], 256, 256, 16
        $region24: #{_lambda_.1} parent=11 // pred_fallthru
          _
        // Predicated region
        $region25: #{_lambda_.1} parent=11 // pred_check
          %p403 = pneg %p138
        $region26: #{_lambda_.1} parent=11 // pred_check_branch
          %405 = sbr.rel (%p403) target = $region28
        $region27: #{_lambda_.1} parent=11 // pred_region
          %s407 = ssub.s32 24576, 24576
          %408 = vsyncadd [#allocation9], %s407
          %s409 = sshll.u32 [#allocation8], 4
          %s410 = int_to_ptr.vmem [resolvable:$true] %s409
          %415 = dma.hbm_to_vmem [thread:$0]  %s4, 24576, %s410, [#allocation9], 128, 128, 8
        $region28: #{_lambda_.1} parent=11 // pred_fallthru
          _
        // Predicated region
        $region29: #{_lambda_.1} parent=11 // pred_check
          %p416 = pneg %p159
        $region30: #{_lambda_.1} parent=11 // pred_check_branch
          %418 = sbr.rel (%p416) target = $region32
        $region31: #{_lambda_.1} parent=11 // pred_region
          %s420 = ssub.s32 8192, 8192
          %421 = vsyncadd [#allocation9], %s420
          %s422 = sshll.u32 [#allocation10], 4
          %s423 = int_to_ptr.vmem [resolvable:$true] %s422
          %428 = dma.hbm_to_vmem [thread:$0]  %s5, 8192, %s423, [#allocation9], 128, 128, 8
        $region32: #{_lambda_.1} parent=11 // pred_fallthru
          _
        // Predicated region
        $region33: #{_lambda_.1} parent=11 // pred_check
          %p429 = pneg %p180
        $region34: #{_lambda_.1} parent=11 // pred_check_branch
          %431 = sbr.rel (%p429) target = $region36
        $region35: #{_lambda_.1} parent=11 // pred_region
          %s433 = ssub.s32 8192, 8192
          %434 = vsyncadd [#allocation12], %s433
          %s435 = sshll.u32 [#allocation11], 4
          %s436 = int_to_ptr.vmem [resolvable:$true] %s435
          %441 = dma.hbm_to_vmem [thread:$0]  %s6, 8192, %s436, [#allocation12], 128, 128, 8
        $region36: #{_lambda_.1} parent=11 // pred_fallthru
          _
        // Predicated region
        $region37: #{_lambda_.1} parent=11 // pred_check
          %p442 = pneg %p201
        $region38: #{_lambda_.1} parent=11 // pred_check_branch
          %444 = sbr.rel (%p442) target = $region40
        $region39: #{_lambda_.1} parent=11 // pred_region
          _
        $region40: #{_lambda_.1} parent=11 // pred_fallthru
          _
        // Predicated region
        $region41: #{_lambda_.1} parent=11 // pred_check
          %p445 = pneg %p222
        $region42: #{_lambda_.1} parent=11 // pred_check_branch
          %447 = sbr.rel (%p445) target = $region44
        $region43: #{_lambda_.1} parent=11 // pred_region
          %s449 = ssub.s32 1024, 1024
          %450 = vsyncadd [#allocation12], %s449
          %s451 = sshll.u32 [#allocation13], 4
          %s452 = int_to_ptr.vmem [resolvable:$true] %s451
          %457 = dma.hbm_to_vmem [thread:$0]  %s8, 1024, %s452, [#allocation12], 128, 128, 8
        $region44: #{_lambda_.1} parent=11 // pred_fallthru
          _
        // Predicated region
        $region45: #{_lambda_.1} parent=11 // pred_check
          %p458 = pneg %p243
        $region46: #{_lambda_.1} parent=11 // pred_check_branch
          %460 = sbr.rel (%p458) target = $region48
        $region47: #{_lambda_.1} parent=11 // pred_region
          %s462 = ssub.s32 6144, 6144
          %463 = vsyncadd [#allocation15], %s462
          %s464 = sshll.u32 [#allocation14], 4
          %s465 = int_to_ptr.vmem [resolvable:$true] %s464
          %470 = dma.hbm_to_vmem [thread:$0]  %s9, 6144, %s465, [#allocation15], 384, 384, 24
        $region48: #{_lambda_.1} parent=11 // pred_fallthru
          _
        // Predicated region
        $region49: #{_lambda_.1} parent=11 // pred_check
          %p471 = pneg %p264
        $region50: #{_lambda_.1} parent=11 // pred_check_branch
          %473 = sbr.rel (%p471) target = $region52
        $region51: #{_lambda_.1} parent=11 // pred_region
          %s475 = ssub.s32 2048, 2048
          %476 = vsyncadd [#allocation15], %s475
          %s477 = sshll.u32 [#allocation16], 4
          %s478 = int_to_ptr.vmem [resolvable:$true] %s477
          %483 = dma.hbm_to_vmem [thread:$0]  %s10, 2048, %s478, [#allocation15], 128, 128, 8
        $region52: #{_lambda_.1} parent=11 // pred_fallthru
          _
        // Predicated region
        $region53: #{_lambda_.1} parent=11 // pred_check
          %p484 = pneg %p285
        $region54: #{_lambda_.1} parent=11 // pred_check_branch
          %486 = sbr.rel (%p484) target = $region56
        $region55: #{_lambda_.1} parent=11 // pred_region
          _
        $region56: #{_lambda_.1} parent=11 // pred_fallthru
          _
        // Predicated region
        $region57: #{_lambda_.1} parent=11 // pred_check
          %p487 = pneg %p306
        $region58: #{_lambda_.1} parent=11 // pred_check_branch
          %489 = sbr.rel (%p487) target = $region60
        $region59: #{_lambda_.1} parent=11 // pred_region
          _
        $region60: #{_lambda_.1} parent=11 // pred_fallthru
          _
        // Predicated region
        $region61: #{_lambda_.1} parent=11 // pred_check
          %p490 = pneg %p327
        $region62: #{_lambda_.1} parent=11 // pred_check_branch
          %492 = sbr.rel (%p490) target = $region64
        $region63: #{_lambda_.1} parent=11 // pred_region
          _
        $region64: #{_lambda_.1} parent=11 // pred_fallthru
          _
      $region12: #{_lambda_.1} parent=5 // pred_fallthru
        _
      %p493 = scmp.lt.s32.totalorder %s28, 2
      // Predicated region
      $region65: #{_lambda_.1} parent=5 // pred_check
        %p494 = pneg %p493
      $region66: #{_lambda_.1} parent=5 // pred_check_branch
        %496 = sbr.rel (%p494) target = $region68
      $region67: #{_lambda_.1} parent=5 // pred_region
        // Predicated region
        $region69: #{_lambda_.1} parent=67 // pred_check
          %p497 = pneg %p48
        $region70: #{_lambda_.1} parent=67 // pred_check_branch
          %499 = sbr.rel (%p497) target = $region72
        $region71: #{_lambda_.1} parent=67 // pred_region
          %p500 = scmp.lt.s32.totalorder %s28, 1
          %s501 = scalar_select %p500, %s28, 1
          %s502 = smul.addr %s501, 16
          %s503 = smul.addr %s502, 8
          %s504 = scalar_lea.vmem %s0, %s503
        $region72: #{_lambda_.1} parent=67 // pred_fallthru
          _
      $region68: #{_lambda_.1} parent=5 // pred_fallthru
        _
      %p505 = scmp.le.s32.totalorder 1, %s28
      %p506 = scmp.lt.s32.totalorder %s28, 3
      %p507 = pnand %p505, %p506
      %p508 = pneg %p507
      // Predicated region
      $region73: #{_lambda_.1} parent=5 // pred_check
        _
      $region74: #{_lambda_.1} parent=5 // pred_check_branch
        %510 = sbr.rel (%p507) target = $region76
      $region75: #{_lambda_.1} parent=5 // pred_region
        %s511 = ssub.s32 %s28, 1
        // Predicated region
        $region77: #{_lambda_.1} parent=75 // pred_check
          %p512 = pneg %p75
        $region78: #{_lambda_.1} parent=75 // pred_check_branch
          %514 = sbr.rel (%p512) target = $region80
        $region79: #{_lambda_.1} parent=75 // pred_region
          %515 = dma.done [#allocation3], 128
        $region80: #{_lambda_.1} parent=75 // pred_fallthru
          _
        // Predicated region
        $region81: #{_lambda_.1} parent=75 // pred_check
          %p516 = pneg %p96
        $region82: #{_lambda_.1} parent=75 // pred_check_branch
          %518 = sbr.rel (%p516) target = $region84
        $region83: #{_lambda_.1} parent=75 // pred_region
          %519 = dma.done [#allocation6], 128
        $region84: #{_lambda_.1} parent=75 // pred_fallthru
          _
        // Predicated region
        $region85: #{_lambda_.1} parent=75 // pred_check
          %p520 = pneg %p117
        $region86: #{_lambda_.1} parent=75 // pred_check_branch
          %522 = sbr.rel (%p520) target = $region88
        $region87: #{_lambda_.1} parent=75 // pred_region
          %523 = dma.done [#allocation6], 16384
        $region88: #{_lambda_.1} parent=75 // pred_fallthru
          _
        // Predicated region
        $region89: #{_lambda_.1} parent=75 // pred_check
          %p524 = pneg %p138
        $region90: #{_lambda_.1} parent=75 // pred_check_branch
          %526 = sbr.rel (%p524) target = $region92
        $region91: #{_lambda_.1} parent=75 // pred_region
          %527 = dma.done [#allocation9], 24576
        $region92: #{_lambda_.1} parent=75 // pred_fallthru
          _
        // Predicated region
        $region93: #{_lambda_.1} parent=75 // pred_check
          %p528 = pneg %p159
        $region94: #{_lambda_.1} parent=75 // pred_check_branch
          %530 = sbr.rel (%p528) target = $region96
        $region95: #{_lambda_.1} parent=75 // pred_region
          %531 = dma.done [#allocation9], 8192
        $region96: #{_lambda_.1} parent=75 // pred_fallthru
          _
        // Predicated region
        $region97: #{_lambda_.1} parent=75 // pred_check
          %p532 = pneg %p180
        $region98: #{_lambda_.1} parent=75 // pred_check_branch
          %534 = sbr.rel (%p532) target = $region100
        $region99: #{_lambda_.1} parent=75 // pred_region
          %535 = dma.done [#allocation12], 8192
        $region100: #{_lambda_.1} parent=75 // pred_fallthru
          _
        // Predicated region
        $region101: #{_lambda_.1} parent=75 // pred_check
          %p536 = pneg %p222
        $region102: #{_lambda_.1} parent=75 // pred_check_branch
          %538 = sbr.rel (%p536) target = $region104
        $region103: #{_lambda_.1} parent=75 // pred_region
          %539 = dma.done [#allocation12], 1024
        $region104: #{_lambda_.1} parent=75 // pred_fallthru
          _
        // Predicated region
        $region105: #{_lambda_.1} parent=75 // pred_check
          %p540 = pneg %p243
        $region106: #{_lambda_.1} parent=75 // pred_check_branch
          %542 = sbr.rel (%p540) target = $region108
        $region107: #{_lambda_.1} parent=75 // pred_region
          %543 = dma.done [#allocation15], 6144
        $region108: #{_lambda_.1} parent=75 // pred_fallthru
          _
        // Predicated region
        $region109: #{_lambda_.1} parent=75 // pred_check
          %p544 = pneg %p264
        $region110: #{_lambda_.1} parent=75 // pred_check_branch
          %546 = sbr.rel (%p544) target = $region112
        $region111: #{_lambda_.1} parent=75 // pred_region
          %547 = dma.done [#allocation15], 2048
        $region112: #{_lambda_.1} parent=75 // pred_fallthru
          _
        %p548 = scmp.lt.s32.totalorder %s33, 1
        %s549 = scalar_select %p548, %s33, 1
        %s550 = smul.addr %s549, 16
        %s551 = smul.addr %s550, 8
        %s552 = scalar_lea.vmem %s0, %s551
        %p553 = pneg %p54
        %p554 = pneg %p51
        %p555 = pneg %p75
        %p556 = pneg %p72
        %p557 = pneg %p96
        %p558 = pneg %p93
        %p559 = pneg %p117
        %p560 = pneg %p114
        %p561 = pneg %p138
        %p562 = pneg %p135
        %p563 = pneg %p159
        %p564 = pneg %p156
        %p565 = pneg %p180
        %p566 = pneg %p177
        %p567 = pneg %p201
        %p568 = pneg %p198
        %p569 = pneg %p222
        %p570 = pneg %p219
        %p571 = pneg %p243
        %p572 = pneg %p240
        %p573 = pneg %p264
        %p574 = pneg %p261
        %p575 = pneg %p285
        %p576 = pneg %p282
        %p577 = pneg %p306
        %p578 = pneg %p303
        %p579 = pneg %p327
        %p580 = pneg %p324
        %p581 = pneg %p353
        %p582 = pneg %p350
        %s583 = sand.u32 %s340, 1
        %s584 = scalar_lea.sflag [#allocation4], %s583
        %s585 = sand.u32 %s340, 1
        %s586 = scalar_lea.vmem [#allocation17], %s585
        %p587 = scmp.lt.s32.totalorder %s33, 1
        %s588 = scalar_select %p587, %s33, 1
        %s589 = smul.addr %s588, 16
        %s590 = smul.addr %s589, 8
        %s591 = scalar_lea.vmem %s0, %s590
        %v592 = vld [vmem:[#allocation5] sm:$0xff]
        %v593 = vld [vmem:[%s591] sm:$0xff]
        %v594 = vld [vmem:[%s591 + $0x8] sm:$0xff]
        %v595 = vld [vmem:[%s591 + $0x10] sm:$0xff]
        %v596 = vld [vmem:[%s591 + $0x18] sm:$0xff]
        %v597 = vld [vmem:[%s591 + $0x20] sm:$0xff]
        %v598 = vld [vmem:[%s591 + $0x28] sm:$0xff]
        %v599 = vld [vmem:[%s591 + $0x30] sm:$0xff]
        %v600 = vld [vmem:[%s591 + $0x38] sm:$0xff]
        %v601 = vld [vmem:[%s591 + $0x40] sm:$0xff]
        %v602 = vld [vmem:[%s591 + $0x48] sm:$0xff]
        %v603 = vld [vmem:[%s591 + $0x50] sm:$0xff]
        %v604 = vld [vmem:[%s591 + $0x58] sm:$0xff]
        %v605 = vld [vmem:[%s591 + $0x60] sm:$0xff]
        %v606 = vld [vmem:[%s591 + $0x68] sm:$0xff]
        %v607 = vld [vmem:[%s591 + $0x70] sm:$0xff]
        %v608 = vld [vmem:[%s591 + $0x78] sm:$0xff]
        %v609 = vld [vmem:[#allocation2] sm:$0xff]
        %vm610 = vcmask 64512
        %v612 = vsel %vm610, %v593, 0
        %v615 = vsel %vm610, %v594, 0
        %v618 = vsel %vm610, %v595, 0
        %v621 = vsel %vm610, %v596, 0
        %v624 = vsel %vm610, %v597, 0
        %v627 = vsel %vm610, %v598, 0
        %v630 = vsel %vm610, %v599, 0
        %v633 = vsel %vm610, %v600, 0
        %v636 = vsel %vm610, %v601, 0
        %v639 = vsel %vm610, %v602, 0
        %v642 = vsel %vm610, %v603, 0
        %v645 = vsel %vm610, %v604, 0
        %v648 = vsel %vm610, %v605, 0
        %v651 = vsel %vm610, %v606, 0
        %v654 = vsel %vm610, %v607, 0
        %v657 = vsel %vm610, %v608, 0
        %659 = vmatprep.subr.mxu0 0.0
        %660 = vmatpush1.msra.mxu0 %v609
        %661 = vmatprep.subr.mxu0 0.0
        %662 = vmatpush1.msra.mxu0 0.0
        %663 = vmatprep.subr.mxu0 0.0
        %664 = vmatpush1.msra.mxu0 0.0
        %665 = vmatprep.subr.mxu0 0.0
        %666 = vmatpush1.msra.mxu0 0.0
        %667 = vmatprep.subr.mxu0 0.0
        %668 = vmatpush1.msra.mxu0 0.0
        %669 = vmatprep.subr.mxu0 0.0
        %670 = vmatpush1.msra.mxu0 0.0
        %671 = vmatprep.subr.mxu0 0.0
        %672 = vmatpush1.msra.mxu0 0.0
        %673 = vmatprep.subr.mxu0 0.0
        %674 = vmatpush1.msra.mxu0 0.0
        %675 = vmatprep.subr.mxu0 0.0
        %676 = vmatpush1.msra.mxu0 0.0
        %677 = vmatprep.subr.mxu0 0.0
        %678 = vmatpush1.msra.mxu0 0.0
        %679 = vmatprep.subr.mxu0 0.0
        %680 = vmatpush1.msra.mxu0 0.0
        %681 = vmatprep.subr.mxu0 0.0
        %682 = vmatpush1.msra.mxu0 0.0
        %683 = vmatprep.subr.mxu0 0.0
        %684 = vmatpush1.msra.mxu0 0.0
        %685 = vmatprep.subr.mxu0 0.0
        %686 = vmatpush1.msra.mxu0 0.0
        %687 = vmatprep.subr.mxu0 0.0
        %688 = vmatpush1.msra.mxu0 0.0
        %689 = vmatprep.subr.mxu0 0.0
        %690 = vmatpush1.msra.mxu0 0.0
        %691 = vmatprep.subr.mxu0 0.0
        %692 = vmatpush1.msra.mxu0 0.0
        %693 = vmatprep.subr.mxu0 0.0
        %694 = vmatpush1.msra.mxu0 0.0
        %695 = vmatprep.subr.mxu0 0.0
        %696 = vmatpush1.msra.mxu0 0.0
        %697 = vmatprep.subr.mxu0 0.0
        %698 = vmatpush1.msra.mxu0 0.0
        %699 = vmatprep.subr.mxu0 0.0
        %700 = vmatpush1.msra.mxu0 0.0
        %701 = vmatprep.subr.mxu0 0.0
        %702 = vmatpush1.msra.mxu0 0.0
        %703 = vmatprep.subr.mxu0 0.0
        %704 = vmatpush1.msra.mxu0 0.0
        %705 = vmatprep.subr.mxu0 0.0
        %706 = vmatpush1.msra.mxu0 0.0
        %707 = vmatprep.subr.mxu0 0.0
        %708 = vmatpush1.msra.mxu0 0.0
        %709 = vmatprep.subr.mxu0 0.0
        %710 = vmatpush1.msra.mxu0 0.0
        %711 = vmatprep.subr.mxu0 0.0
        %712 = vmatpush1.msra.mxu0 0.0
        %713 = vmatprep.subr.mxu0 0.0
        %714 = vmatpush1.msra.mxu0 0.0
        %715 = vmatprep.subr.mxu0 0.0
        %716 = vmatpush1.msra.mxu0 0.0
        %717 = vmatprep.subr.mxu0 0.0
        %718 = vmatpush1.msra.mxu0 0.0
        %719 = vmatprep.subr.mxu0 0.0
        %720 = vmatpush1.msra.mxu0 0.0
        %721 = vmatprep.subr.mxu0 0.0
        %722 = vmatpush1.msra.mxu0 0.0
        %723 = vmatprep.mubr.f32.mxu0 0.0
        %724 = vmatmul.mubr.f32.gmra.mrb[0].mxu0 %v612
        %v725 = vpop.f32.mrb[0].mxu0
        %v726 = vadd.f32 0.0, %v725
        %v727 = vpop.f32.mrb[0].mxu0
        %728 = vmatprep.mubr.f32.mxu0 0.0
        %729 = vmatmul.mubr.f32.gmra.mrb[0].mxu0 %v615
        %v730 = vpop.f32.mrb[0].mxu0
        %v731 = vadd.f32 0.0, %v730
        %v732 = vpop.f32.mrb[0].mxu0
        %733 = vmatprep.mubr.f32.mxu0 0.0
        %734 = vmatmul.mubr.f32.gmra.mrb[0].mxu0 %v618
        %v735 = vpop.f32.mrb[0].mxu0
        %v736 = vadd.f32 0.0, %v735
        %v737 = vpop.f32.mrb[0].mxu0
        %738 = vmatprep.mubr.f32.mxu0 0.0
        %739 = vmatmul.mubr.f32.gmra.mrb[0].mxu0 %v621
        %v740 = vpop.f32.mrb[0].mxu0
        %v741 = vadd.f32 0.0, %v740
        %v742 = vpop.f32.mrb[0].mxu0
        %743 = vmatprep.mubr.f32.mxu0 0.0
        %744 = vmatmul.mubr.f32.gmra.mrb[0].mxu0 %v624
        %v745 = vpop.f32.mrb[0].mxu0
        %v746 = vadd.f32 0.0, %v745
        %v747 = vpop.f32.mrb[0].mxu0
        %748 = vmatprep.mubr.f32.mxu0 0.0
        %749 = vmatmul.mubr.f32.gmra.mrb[0].mxu0 %v627
        %v750 = vpop.f32.mrb[0].mxu0
        %v751 = vadd.f32 0.0, %v750
        %v752 = vpop.f32.mrb[0].mxu0
        %753 = vmatprep.mubr.f32.mxu0 0.0
        %754 = vmatmul.mubr.f32.gmra.mrb[0].mxu0 %v630
        %v755 = vpop.f32.mrb[0].mxu0
        %v756 = vadd.f32 0.0, %v755
        %v757 = vpop.f32.mrb[0].mxu0
        %758 = vmatprep.mubr.f32.mxu0 0.0
        %759 = vmatmul.mubr.f32.gmra.mrb[0].mxu0 %v633
        %v760 = vpop.f32.mrb[0].mxu0
        %v761 = vadd.f32 0.0, %v760
        %v762 = vpop.f32.mrb[0].mxu0
        %763 = vmatprep.mubr.f32.mxu0 0.0
        %764 = vmatmul.mubr.f32.gmra.mrb[0].mxu0 %v636
        %v765 = vpop.f32.mrb[0].mxu0
        %v766 = vadd.f32 0.0, %v765
        %v767 = vpop.f32.mrb[0].mxu0
        %768 = vmatprep.mubr.f32.mxu0 0.0
        %769 = vmatmul.mubr.f32.gmra.mrb[0].mxu0 %v639
        %v770 = vpop.f32.mrb[0].mxu0
        %v771 = vadd.f32 0.0, %v770
        %v772 = vpop.f32.mrb[0].mxu0
        %773 = vmatprep.mubr.f32.mxu0 0.0
        %774 = vmatmul.mubr.f32.gmra.mrb[0].mxu0 %v642
        %v775 = vpop.f32.mrb[0].mxu0
        %v776 = vadd.f32 0.0, %v775
        %v777 = vpop.f32.mrb[0].mxu0
        %778 = vmatprep.mubr.f32.mxu0 0.0
        %779 = vmatmul.mubr.f32.gmra.mrb[0].mxu0 %v645
        %v780 = vpop.f32.mrb[0].mxu0
        %v781 = vadd.f32 0.0, %v780
        %v782 = vpop.f32.mrb[0].mxu0
        %783 = vmatprep.mubr.f32.mxu0 0.0
        %784 = vmatmul.mubr.f32.gmra.mrb[0].mxu0 %v648
        %v785 = vpop.f32.mrb[0].mxu0
        %v786 = vadd.f32 0.0, %v785
        %v787 = vpop.f32.mrb[0].mxu0
        %788 = vmatprep.mubr.f32.mxu0 0.0
        %789 = vmatmul.mubr.f32.gmra.mrb[0].mxu0 %v651
        %v790 = vpop.f32.mrb[0].mxu0
        %v791 = vadd.f32 0.0, %v790
        %v792 = vpop.f32.mrb[0].mxu0
        %793 = vmatprep.mubr.f32.mxu0 0.0
        %794 = vmatmul.mubr.f32.gmra.mrb[0].mxu0 %v654
        %v795 = vpop.f32.mrb[0].mxu0
        %v796 = vadd.f32 0.0, %v795
        %v797 = vpop.f32.mrb[0].mxu0
        %798 = vmatprep.mubr.f32.mxu0 0.0
        %799 = vmatmul.mubr.f32.gmra.mrb[0].mxu0 %v657
        %v800 = vpop.f32.mrb[0].mxu0
        %v801 = vadd.f32 0.0, %v800
        %v802 = vpop.f32.mrb[0].mxu0
        %803 = vdwg.mxu0
        %v804 = vlaneseq
        %v805 = vshrl.u32 %v804, 7
        %v806 = vsub.s32 0, %v805
        %v807 = vrot.slane %v592, %v806
        %v808 = vmul.f32 %v726, %v807
        %v809 = vmul.f32 %v731, %v807
        %v810 = vmul.f32 %v736, %v807
        %v811 = vmul.f32 %v741, %v807
        %v812 = vmul.f32 %v746, %v807
        %v813 = vmul.f32 %v751, %v807
        %v814 = vmul.f32 %v756, %v807
        %v815 = vmul.f32 %v761, %v807
        %v816 = vmul.f32 %v766, %v807
        %v817 = vmul.f32 %v771, %v807
        %v818 = vmul.f32 %v776, %v807
        %v819 = vmul.f32 %v781, %v807
        %v820 = vmul.f32 %v786, %v807
        %v821 = vmul.f32 %v791, %v807
        %v822 = vmul.f32 %v796, %v807
        %v823 = vmul.f32 %v801, %v807
        %v824 = vlaneseq
        %v825 = vshrl.u32 %v824, 7
        %v826 = vsub.s32 1, %v825
        %v827 = vrot.slane %v592, %v826
        %v828 = vadd.f32 %v808, %v827
        %v829 = vadd.f32 %v809, %v827
        %v830 = vadd.f32 %v810, %v827
        %v831 = vadd.f32 %v811, %v827
        %v832 = vadd.f32 %v812, %v827
        %v833 = vadd.f32 %v813, %v827
        %v834 = vadd.f32 %v814, %v827
        %v835 = vadd.f32 %v815, %v827
        %v836 = vadd.f32 %v816, %v827
        %v837 = vadd.f32 %v817, %v827
        %v838 = vadd.f32 %v818, %v827
        %v839 = vadd.f32 %v819, %v827
        %v840 = vadd.f32 %v820, %v827
        %v841 = vadd.f32 %v821, %v827
        %v842 = vadd.f32 %v822, %v827
        %v843 = vadd.f32 %v823, %v827
        %v844 = vxor.u32 %v828, 2147483648
        %v845 = vxor.u32 %v829, 2147483648
        %v846 = vxor.u32 %v830, 2147483648
        %v847 = vxor.u32 %v831, 2147483648
        %v848 = vxor.u32 %v832, 2147483648
        %v849 = vxor.u32 %v833, 2147483648
        %v850 = vxor.u32 %v834, 2147483648
        %v851 = vxor.u32 %v835, 2147483648
        %v852 = vxor.u32 %v836, 2147483648
        %v853 = vxor.u32 %v837, 2147483648
        %v854 = vxor.u32 %v838, 2147483648
        %v855 = vxor.u32 %v839, 2147483648
        %v856 = vxor.u32 %v840, 2147483648
        %v857 = vxor.u32 %v841, 2147483648
        %v858 = vxor.u32 %v842, 2147483648
        %v859 = vxor.u32 %v843, 2147483648
        %v860 = vmul.f32 %v844, 1.442695
        %v861 = vpow.pop %v860
        %v862 = vmul.f32 %v845, 1.442695
        %v863 = vpow.pop %v862
        %v864 = vmul.f32 %v846, 1.442695
        %v865 = vpow.pop %v864
        %v866 = vmul.f32 %v847, 1.442695
        %v867 = vpow.pop %v866
        %v868 = vmul.f32 %v848, 1.442695
        %v869 = vpow.pop %v868
        %v870 = vmul.f32 %v849, 1.442695
        %v871 = vpow.pop %v870
        %v872 = vmul.f32 %v850, 1.442695
        %v873 = vpow.pop %v872
        %v874 = vmul.f32 %v851, 1.442695
        %v875 = vpow.pop %v874
        %v876 = vmul.f32 %v852, 1.442695
        %v877 = vpow.pop %v876
        %v878 = vmul.f32 %v853, 1.442695
        %v879 = vpow.pop %v878
        %v880 = vmul.f32 %v854, 1.442695
        %v881 = vpow.pop %v880
        %v882 = vmul.f32 %v855, 1.442695
        %v883 = vpow.pop %v882
        %v884 = vmul.f32 %v856, 1.442695
        %v885 = vpow.pop %v884
        %v886 = vmul.f32 %v857, 1.442695
        %v887 = vpow.pop %v886
        %v888 = vmul.f32 %v858, 1.442695
        %v889 = vpow.pop %v888
        %v890 = vmul.f32 %v859, 1.442695
        %v891 = vpow.pop %v890
        %v892 = vadd.f32 %v861, 1.0
        %v893 = vadd.f32 %v863, 1.0
        %v894 = vadd.f32 %v865, 1.0
        %v895 = vadd.f32 %v867, 1.0
        %v896 = vadd.f32 %v869, 1.0
        %v897 = vadd.f32 %v871, 1.0
        %v898 = vadd.f32 %v873, 1.0
        %v899 = vadd.f32 %v875, 1.0
        %v900 = vadd.f32 %v877, 1.0
        %v901 = vadd.f32 %v879, 1.0
        %v902 = vadd.f32 %v881, 1.0
        %v903 = vadd.f32 %v883, 1.0
        %v904 = vadd.f32 %v885, 1.0
        %v905 = vadd.f32 %v887, 1.0
        %v906 = vadd.f32 %v889, 1.0
        %v907 = vadd.f32 %v891, 1.0
        %v908 = vrcp.pop %v892
        %v909 = vmul.f32 1.0, %v908
        %v910 = vrcp.pop %v893
        %v911 = vmul.f32 1.0, %v910
        %v912 = vrcp.pop %v894
        %v913 = vmul.f32 1.0, %v912
        %v914 = vrcp.pop %v895
        %v915 = vmul.f32 1.0, %v914
        %v916 = vrcp.pop %v896
        %v917 = vmul.f32 1.0, %v916
        %v918 = vrcp.pop %v897
        %v919 = vmul.f32 1.0, %v918
        %v920 = vrcp.pop %v898
        %v921 = vmul.f32 1.0, %v920
        %v922 = vrcp.pop %v899
        %v923 = vmul.f32 1.0, %v922
        %v924 = vrcp.pop %v900
        %v925 = vmul.f32 1.0, %v924
        %v926 = vrcp.pop %v901
        %v927 = vmul.f32 1.0, %v926
        %v928 = vrcp.pop %v902
        %v929 = vmul.f32 1.0, %v928
        %v930 = vrcp.pop %v903
        %v931 = vmul.f32 1.0, %v930
        %v932 = vrcp.pop %v904
        %v933 = vmul.f32 1.0, %v932
        %v934 = vrcp.pop %v905
        %v935 = vmul.f32 1.0, %v934
        %v936 = vrcp.pop %v906
        %v937 = vmul.f32 1.0, %v936
        %v938 = vrcp.pop %v907
        %v939 = vmul.f32 1.0, %v938
        %v940 = vmul.f32 %v828, %v909
        %v941 = vmul.f32 %v829, %v911
        %v942 = vmul.f32 %v830, %v913
        %v943 = vmul.f32 %v831, %v915
        %v944 = vmul.f32 %v832, %v917
        %v945 = vmul.f32 %v833, %v919
        %v946 = vmul.f32 %v834, %v921
        %v947 = vmul.f32 %v835, %v923
        %v948 = vmul.f32 %v836, %v925
        %v949 = vmul.f32 %v837, %v927
        %v950 = vmul.f32 %v838, %v929
        %v951 = vmul.f32 %v839, %v931
        %v952 = vmul.f32 %v840, %v933
        %v953 = vmul.f32 %v841, %v935
        %v954 = vmul.f32 %v842, %v937
        %v955 = vmul.f32 %v843, %v939
        %v956 = vlaneseq
        %v957 = vshrl.u32 %v956, 7
        %v958 = vadd.s32 %v957, 8
        %v959 = vadd.s32 %v957, 16
        %v960 = vadd.s32 %v957, 24
        %v961 = vadd.s32 %v957, 32
        %v962 = vadd.s32 %v957, 40
        %v963 = vadd.s32 %v957, 48
        %v964 = vadd.s32 %v957, 56
        %v965 = vlaneseq
        %v966 = vand.u32 %v965, 127
        %v967 = vmul.u32 %v957, 2
        %v968 = vmul.u32 %v958, 2
        %v969 = vmul.u32 %v959, 2
        %v970 = vmul.u32 %v960, 2
        %v971 = vmul.u32 %v961, 2
        %v972 = vmul.u32 %v962, 2
        %v973 = vmul.u32 %v963, 2
        %v974 = vmul.u32 %v964, 2
        %v975 = vadd.s32 %v967, 4294967295
        %v976 = vadd.s32 %v968, 4294967295
        %v977 = vadd.s32 %v969, 4294967295
        %v978 = vadd.s32 %v970, 4294967295
        %v979 = vadd.s32 %v971, 4294967295
        %v980 = vadd.s32 %v972, 4294967295
        %v981 = vadd.s32 %v973, 4294967295
        %v982 = vadd.s32 %v974, 4294967295
        %vm983 = vcmp.eq.s32.totalorder %v966, %v975
        %vm984 = vcmp.eq.s32.totalorder %v966, %v976
        %vm985 = vcmp.eq.s32.totalorder %v966, %v977
        %vm986 = vcmp.eq.s32.totalorder %v966, %v978
        %vm987 = vcmp.eq.s32.totalorder %v966, %v979
        %vm988 = vcmp.eq.s32.totalorder %v966, %v980
        %vm989 = vcmp.eq.s32.totalorder %v966, %v981
        %vm990 = vcmp.eq.s32.totalorder %v966, %v982
        %v991 = vsel %vm983, 1, 0
        %v992 = vsel %vm984, 1, 0
        %v993 = vsel %vm985, 1, 0
        %v994 = vsel %vm986, 1, 0
        %v995 = vsel %vm987, 1, 0
        %v996 = vsel %vm988, 1, 0
        %v997 = vsel %vm989, 1, 0
        %v998 = vsel %vm990, 1, 0
        %v999 = vcvt.s32.f32 %v991
        %v1000 = vcvt.s32.f32 %v992
        %v1001 = vcvt.s32.f32 %v993
        %v1002 = vcvt.s32.f32 %v994
        %v1003 = vcvt.s32.f32 %v995
        %v1004 = vcvt.s32.f32 %v996
        %v1005 = vcvt.s32.f32 %v997
        %v1006 = vcvt.s32.f32 %v998
        %vm1007 = vcmp.lt.s32.totalorder %v975, 0
        %vm1008 = vcmp.lt.s32.totalorder %v976, 0
        %vm1009 = vcmp.lt.s32.totalorder %v977, 0
        %vm1010 = vcmp.lt.s32.totalorder %v978, 0
        %vm1011 = vcmp.lt.s32.totalorder %v979, 0
        %vm1012 = vcmp.lt.s32.totalorder %v980, 0
        %vm1013 = vcmp.lt.s32.totalorder %v981, 0
        %vm1014 = vcmp.lt.s32.totalorder %v982, 0
        %vm1015 = vcmp.ge.s32.totalorder %v975, 128
        %vm1016 = vcmp.ge.s32.totalorder %v976, 128
        %vm1017 = vcmp.ge.s32.totalorder %v977, 128
        %vm1018 = vcmp.ge.s32.totalorder %v978, 128
        %vm1019 = vcmp.ge.s32.totalorder %v979, 128
        %vm1020 = vcmp.ge.s32.totalorder %v980, 128
        %vm1021 = vcmp.ge.s32.totalorder %v981, 128
        %vm1022 = vcmp.ge.s32.totalorder %v982, 128
        %vm1023 = vmor %vm1007, %vm1015
        %vm1024 = vmor %vm1008, %vm1016
        %vm1025 = vmor %vm1009, %vm1017
        %vm1026 = vmor %vm1010, %vm1018
        %vm1027 = vmor %vm1011, %vm1019
        %vm1028 = vmor %vm1012, %vm1020
        %vm1029 = vmor %vm1013, %vm1021
        %vm1030 = vmor %vm1014, %vm1022
        %v1031 = vsel %vm1023, -1e+30, 0.0
        %v1032 = vsel %vm1024, -1e+30, 0.0
        %v1033 = vsel %vm1025, -1e+30, 0.0
        %v1034 = vsel %vm1026, -1e+30, 0.0
        %v1035 = vsel %vm1027, -1e+30, 0.0
        %v1036 = vsel %vm1028, -1e+30, 0.0
        %v1037 = vsel %vm1029, -1e+30, 0.0
        %v1038 = vsel %vm1030, -1e+30, 0.0
        %1039 = vmatprep.subr.mxu0 0.0
        %1040 = vmatpush1.msra.mxu0 %v940
        %1041 = vmatprep.subr.mxu0 0.0
        %1042 = vmatpush1.msra.mxu0 %v941
        %1043 = vmatprep.subr.mxu0 0.0
        %1044 = vmatpush1.msra.mxu0 %v942
        %1045 = vmatprep.subr.mxu0 0.0
        %1046 = vmatpush1.msra.mxu0 %v943
        %1047 = vmatprep.subr.mxu0 0.0
        %1048 = vmatpush1.msra.mxu0 %v944
        %1049 = vmatprep.subr.mxu0 0.0
        %1050 = vmatpush1.msra.mxu0 %v945
        %1051 = vmatprep.subr.mxu0 0.0
        %1052 = vmatpush1.msra.mxu0 %v946
        %1053 = vmatprep.subr.mxu0 0.0
        %1054 = vmatpush1.msra.mxu0 %v947
        %1055 = vmatprep.subr.mxu0 0.0
        %1056 = vmatpush1.msra.mxu0 %v948
        %1057 = vmatprep.subr.mxu0 0.0
        %1058 = vmatpush1.msra.mxu0 %v949
        %1059 = vmatprep.subr.mxu0 0.0
        %1060 = vmatpush1.msra.mxu0 %v950
        %1061 = vmatprep.subr.mxu0 0.0
        %1062 = vmatpush1.msra.mxu0 %v951
        %1063 = vmatprep.subr.mxu0 0.0
        %1064 = vmatpush1.msra.mxu0 %v952
        %1065 = vmatprep.subr.mxu0 0.0
        %1066 = vmatpush1.msra.mxu0 %v953
        %1067 = vmatprep.subr.mxu0 0.0
        %1068 = vmatpush1.msra.mxu0 %v954
        %1069 = vmatprep.subr.mxu0 0.0
        %1070 = vmatpush1.msra.mxu0 %v955
        %1071 = vmatprep.subr.mxu0 0.0
        %1072 = vmatpush1.msra.mxu0 0.0
        %1073 = vmatprep.subr.mxu0 0.0
        %1074 = vmatpush1.msra.mxu0 0.0
        %1075 = vmatprep.subr.mxu0 0.0
        %1076 = vmatpush1.msra.mxu0 0.0
        %1077 = vmatprep.subr.mxu0 0.0
        %1078 = vmatpush1.msra.mxu0 0.0
        %1079 = vmatprep.subr.mxu0 0.0
        %1080 = vmatpush1.msra.mxu0 0.0
        %1081 = vmatprep.subr.mxu0 0.0
        %1082 = vmatpush1.msra.mxu0 0.0
        %1083 = vmatprep.subr.mxu0 0.0
        %1084 = vmatpush1.msra.mxu0 0.0
        %1085 = vmatprep.subr.mxu0 0.0
        %1086 = vmatpush1.msra.mxu0 0.0
        %1087 = vmatprep.subr.mxu0 0.0
        %1088 = vmatpush1.msra.mxu0 0.0
        %1089 = vmatprep.subr.mxu0 0.0
        %1090 = vmatpush1.msra.mxu0 0.0
        %1091 = vmatprep.subr.mxu0 0.0
        %1092 = vmatpush1.msra.mxu0 0.0
        %1093 = vmatprep.subr.mxu0 0.0
        %1094 = vmatpush1.msra.mxu0 0.0
        %1095 = vmatprep.subr.mxu0 0.0
        %1096 = vmatpush1.msra.mxu0 0.0
        %1097 = vmatprep.subr.mxu0 0.0
        %1098 = vmatpush1.msra.mxu0 0.0
        %1099 = vmatprep.subr.mxu0 0.0
        %1100 = vmatpush1.msra.mxu0 0.0
        %1101 = vmatprep.subr.mxu0 0.0
        %1102 = vmatpush1.msra.mxu0 0.0
        %1103 = vmatprep.mubr.f32.mxu0 0.0
        %1104 = vmatmul.mubr.f32.gmra.mrb[0].mxu0 %v999
        %v1105 = vpop.f32.mrb[0].mxu0
        %v1106 = vadd.f32 %v1031, %v1105
        %v1107 = vpop.f32.mrb[0].mxu0
        %1108 = vmatprep.mubr.f32.mxu0 0.0
        %1109 = vmatmul.mubr.f32.gmra.mrb[0].mxu0 %v1000
        %v1110 = vpop.f32.mrb[0].mxu0
        %v1111 = vadd.f32 %v1032, %v1110
        %v1112 = vpop.f32.mrb[0].mxu0
        %1113 = vmatprep.mubr.f32.mxu0 0.0
        %1114 = vmatmul.mubr.f32.gmra.mrb[0].mxu0 %v1001
        %v1115 = vpop.f32.mrb[0].mxu0
        %v1116 = vadd.f32 %v1033, %v1115
        %v1117 = vpop.f32.mrb[0].mxu0
        %1118 = vmatprep.mubr.f32.mxu0 0.0
        %1119 = vmatmul.mubr.f32.gmra.mrb[0].mxu0 %v1002
        %v1120 = vpop.f32.mrb[0].mxu0
        %v1121 = vadd.f32 %v1034, %v1120
        %v1122 = vpop.f32.mrb[0].mxu0
        %1123 = vmatprep.mubr.f32.mxu0 0.0
        %1124 = vmatmul.mubr.f32.gmra.mrb[0].mxu0 %v1003
        %v1125 = vpop.f32.mrb[0].mxu0
        %v1126 = vadd.f32 %v1035, %v1125
        %v1127 = vpop.f32.mrb[0].mxu0
        %1128 = vmatprep.mubr.f32.mxu0 0.0
        %1129 = vmatmul.mubr.f32.gmra.mrb[0].mxu0 %v1004
        %v1130 = vpop.f32.mrb[0].mxu0
        %v1131 = vadd.f32 %v1036, %v1130
        %v1132 = vpop.f32.mrb[0].mxu0
        %1133 = vmatprep.mubr.f32.mxu0 0.0
        %1134 = vmatmul.mubr.f32.gmra.mrb[0].mxu0 %v1005
        %v1135 = vpop.f32.mrb[0].mxu0
        %v1136 = vadd.f32 %v1037, %v1135
        %v1137 = vpop.f32.mrb[0].mxu0
        %1138 = vmatprep.mubr.f32.mxu0 0.0
        %1139 = vmatmul.mubr.f32.gmra.mrb[0].mxu0 %v1006
        %v1140 = vpop.f32.mrb[0].mxu0
        %v1141 = vadd.f32 %v1038, %v1140
        %v1142 = vpop.f32.mrb[0].mxu0
        %1143 = vdwg.mxu0
        %vm1144 = vcmp.eq.s32.totalorder %v966, %v967
        %vm1145 = vcmp.eq.s32.totalorder %v966, %v968
        %vm1146 = vcmp.eq.s32.totalorder %v966, %v969
        %vm1147 = vcmp.eq.s32.totalorder %v966, %v970
        %vm1148 = vcmp.eq.s32.totalorder %v966, %v971
        %vm1149 = vcmp.eq.s32.totalorder %v966, %v972
        %vm1150 = vcmp.eq.s32.totalorder %v966, %v973
        %vm1151 = vcmp.eq.s32.totalorder %v966, %v974
        %v1152 = vsel %vm1144, 1, 0
        %v1153 = vsel %vm1145, 1, 0
        %v1154 = vsel %vm1146, 1, 0
        %v1155 = vsel %vm1147, 1, 0
        %v1156 = vsel %vm1148, 1, 0
        %v1157 = vsel %vm1149, 1, 0
        %v1158 = vsel %vm1150, 1, 0
        %v1159 = vsel %vm1151, 1, 0
        %v1160 = vcvt.s32.f32 %v1152
        %v1161 = vcvt.s32.f32 %v1153
        %v1162 = vcvt.s32.f32 %v1154
        %v1163 = vcvt.s32.f32 %v1155
        %v1164 = vcvt.s32.f32 %v1156
        %v1165 = vcvt.s32.f32 %v1157
        %v1166 = vcvt.s32.f32 %v1158
        %v1167 = vcvt.s32.f32 %v1159
        %vm1168 = vcmp.lt.s32.totalorder %v967, 0
        %vm1169 = vcmp.lt.s32.totalorder %v968, 0
        %vm1170 = vcmp.lt.s32.totalorder %v969, 0
        %vm1171 = vcmp.lt.s32.totalorder %v970, 0
        %vm1172 = vcmp.lt.s32.totalorder %v971, 0
        %vm1173 = vcmp.lt.s32.totalorder %v972, 0
        %vm1174 = vcmp.lt.s32.totalorder %v973, 0
        %vm1175 = vcmp.lt.s32.totalorder %v974, 0
        %vm1176 = vcmp.ge.s32.totalorder %v967, 128
        %vm1177 = vcmp.ge.s32.totalorder %v968, 128
        %vm1178 = vcmp.ge.s32.totalorder %v969, 128
        %vm1179 = vcmp.ge.s32.totalorder %v970, 128
        %vm1180 = vcmp.ge.s32.totalorder %v971, 128
        %vm1181 = vcmp.ge.s32.totalorder %v972, 128
        %vm1182 = vcmp.ge.s32.totalorder %v973, 128
        %vm1183 = vcmp.ge.s32.totalorder %v974, 128
        %vm1184 = vmor %vm1168, %vm1176
        %vm1185 = vmor %vm1169, %vm1177
        %vm1186 = vmor %vm1170, %vm1178
        %vm1187 = vmor %vm1171, %vm1179
        %vm1188 = vmor %vm1172, %vm1180
        %vm1189 = vmor %vm1173, %vm1181
        %vm1190 = vmor %vm1174, %vm1182
        %vm1191 = vmor %vm1175, %vm1183
        %v1192 = vsel %vm1184, -1e+30, 0.0
        %v1193 = vsel %vm1185, -1e+30, 0.0
        %v1194 = vsel %vm1186, -1e+30, 0.0
        %v1195 = vsel %vm1187, -1e+30, 0.0
        %v1196 = vsel %vm1188, -1e+30, 0.0
        %v1197 = vsel %vm1189, -1e+30, 0.0
        %v1198 = vsel %vm1190, -1e+30, 0.0
        %v1199 = vsel %vm1191, -1e+30, 0.0
        %1200 = vmatprep.subr.mxu0 0.0
        %1201 = vmatpush1.msra.mxu0 %v940
        %1202 = vmatprep.subr.mxu0 0.0
        %1203 = vmatpush1.msra.mxu0 %v941
        %1204 = vmatprep.subr.mxu0 0.0
        %1205 = vmatpush1.msra.mxu0 %v942
        %1206 = vmatprep.subr.mxu0 0.0
        %1207 = vmatpush1.msra.mxu0 %v943
        %1208 = vmatprep.subr.mxu0 0.0
        %1209 = vmatpush1.msra.mxu0 %v944
        %1210 = vmatprep.subr.mxu0 0.0
        %1211 = vmatpush1.msra.mxu0 %v945
        %1212 = vmatprep.subr.mxu0 0.0
        %1213 = vmatpush1.msra.mxu0 %v946
        %1214 = vmatprep.subr.mxu0 0.0
        %1215 = vmatpush1.msra.mxu0 %v947
        %1216 = vmatprep.subr.mxu0 0.0
        %1217 = vmatpush1.msra.mxu0 %v948
        %1218 = vmatprep.subr.mxu0 0.0
        %1219 = vmatpush1.msra.mxu0 %v949
        %1220 = vmatprep.subr.mxu0 0.0
        %1221 = vmatpush1.msra.mxu0 %v950
        %1222 = vmatprep.subr.mxu0 0.0
        %1223 = vmatpush1.msra.mxu0 %v951
        %1224 = vmatprep.subr.mxu0 0.0
        %1225 = vmatpush1.msra.mxu0 %v952
        %1226 = vmatprep.subr.mxu0 0.0
        %1227 = vmatpush1.msra.mxu0 %v953
        %1228 = vmatprep.subr.mxu0 0.0
        %1229 = vmatpush1.msra.mxu0 %v954
        %1230 = vmatprep.subr.mxu0 0.0
        %1231 = vmatpush1.msra.mxu0 %v955
        %1232 = vmatprep.subr.mxu0 0.0
        %1233 = vmatpush1.msra.mxu0 0.0
        %1234 = vmatprep.subr.mxu0 0.0
        %1235 = vmatpush1.msra.mxu0 0.0
        %1236 = vmatprep.subr.mxu0 0.0
        %1237 = vmatpush1.msra.mxu0 0.0
        %1238 = vmatprep.subr.mxu0 0.0
        %1239 = vmatpush1.msra.mxu0 0.0
        %1240 = vmatprep.subr.mxu0 0.0
        %1241 = vmatpush1.msra.mxu0 0.0
        %1242 = vmatprep.subr.mxu0 0.0
        %1243 = vmatpush1.msra.mxu0 0.0
        %1244 = vmatprep.subr.mxu0 0.0
        %1245 = vmatpush1.msra.mxu0 0.0
        %1246 = vmatprep.subr.mxu0 0.0
        %1247 = vmatpush1.msra.mxu0 0.0
        %1248 = vmatprep.subr.mxu0 0.0
        %1249 = vmatpush1.msra.mxu0 0.0
        %1250 = vmatprep.subr.mxu0 0.0
        %1251 = vmatpush1.msra.mxu0 0.0
        %1252 = vmatprep.subr.mxu0 0.0
        %1253 = vmatpush1.msra.mxu0 0.0
        %1254 = vmatprep.subr.mxu0 0.0
        %1255 = vmatpush1.msra.mxu0 0.0
        %1256 = vmatprep.subr.mxu0 0.0
        %1257 = vmatpush1.msra.mxu0 0.0
        %1258 = vmatprep.subr.mxu0 0.0
        %1259 = vmatpush1.msra.mxu0 0.0
        %1260 = vmatprep.subr.mxu0 0.0
        %1261 = vmatpush1.msra.mxu0 0.0
        %1262 = vmatprep.subr.mxu0 0.0
        %1263 = vmatpush1.msra.mxu0 0.0
        %1264 = vmatprep.mubr.f32.mxu0 0.0
        %1265 = vmatmul.mubr.f32.gmra.mrb[0].mxu0 %v1160
        %v1266 = vpop.f32.mrb[0].mxu0
        %v1267 = vadd.f32 %v1192, %v1266
        %v1268 = vpop.f32.mrb[0].mxu0
        %1269 = vmatprep.mubr.f32.mxu0 0.0
        %1270 = vmatmul.mubr.f32.gmra.mrb[0].mxu0 %v1161
        %v1271 = vpop.f32.mrb[0].mxu0
        %v1272 = vadd.f32 %v1193, %v1271
        %v1273 = vpop.f32.mrb[0].mxu0
        %1274 = vmatprep.mubr.f32.mxu0 0.0
        %1275 = vmatmul.mubr.f32.gmra.mrb[0].mxu0 %v1162
        %v1276 = vpop.f32.mrb[0].mxu0
        %v1277 = vadd.f32 %v1194, %v1276
        %v1278 = vpop.f32.mrb[0].mxu0
        %1279 = vmatprep.mubr.f32.mxu0 0.0
        %1280 = vmatmul.mubr.f32.gmra.mrb[0].mxu0 %v1163
        %v1281 = vpop.f32.mrb[0].mxu0
        %v1282 = vadd.f32 %v1195, %v1281
        %v1283 = vpop.f32.mrb[0].mxu0
        %1284 = vmatprep.mubr.f32.mxu0 0.0
        %1285 = vmatmul.mubr.f32.gmra.mrb[0].mxu0 %v1164
        %v1286 = vpop.f32.mrb[0].mxu0
        %v1287 = vadd.f32 %v1196, %v1286
        %v1288 = vpop.f32.mrb[0].mxu0
        %1289 = vmatprep.mubr.f32.mxu0 0.0
        %1290 = vmatmul.mubr.f32.gmra.mrb[0].mxu0 %v1165
        %v1291 = vpop.f32.mrb[0].mxu0
        %v1292 = vadd.f32 %v1197, %v1291
        %v1293 = vpop.f32.mrb[0].mxu0
        %1294 = vmatprep.mubr.f32.mxu0 0.0
        %1295 = vmatmul.mubr.f32.gmra.mrb[0].mxu0 %v1166
        %v1296 = vpop.f32.mrb[0].mxu0
        %v1297 = vadd.f32 %v1198, %v1296
        %v1298 = vpop.f32.mrb[0].mxu0
        %1299 = vmatprep.mubr.f32.mxu0 0.0
        %1300 = vmatmul.mubr.f32.gmra.mrb[0].mxu0 %v1167
        %v1301 = vpop.f32.mrb[0].mxu0
        %v1302 = vadd.f32 %v1199, %v1301
        %v1303 = vpop.f32.mrb[0].mxu0
        %1304 = vdwg.mxu0
        %v1305 = vmax.f32 %v1106, %v1267
        %v1306 = vmax.f32 %v1111, %v1272
        %v1307 = vmax.f32 %v1116, %v1277
        %v1308 = vmax.f32 %v1121, %v1282
        %v1309 = vmax.f32 %v1126, %v1287
        %v1310 = vmax.f32 %v1131, %v1292
        %v1311 = vmax.f32 %v1136, %v1297
        %v1312 = vmax.f32 %v1141, %v1302
        %v1313 = vadd.s32 %v967, 1
        %v1314 = vadd.s32 %v968, 1
        %v1315 = vadd.s32 %v969, 1
        %v1316 = vadd.s32 %v970, 1
        %v1317 = vadd.s32 %v971, 1
        %v1318 = vadd.s32 %v972, 1
        %v1319 = vadd.s32 %v973, 1
        %v1320 = vadd.s32 %v974, 1
        %vm1321 = vcmp.eq.s32.totalorder %v966, %v1313
        %vm1322 = vcmp.eq.s32.totalorder %v966, %v1314
        %vm1323 = vcmp.eq.s32.totalorder %v966, %v1315
        %vm1324 = vcmp.eq.s32.totalorder %v966, %v1316
        %vm1325 = vcmp.eq.s32.totalorder %v966, %v1317
        %vm1326 = vcmp.eq.s32.totalorder %v966, %v1318
        %vm1327 = vcmp.eq.s32.totalorder %v966, %v1319
        %vm1328 = vcmp.eq.s32.totalorder %v966, %v1320
        %v1329 = vsel %vm1321, 1, 0
        %v1330 = vsel %vm1322, 1, 0
        %v1331 = vsel %vm1323, 1, 0
        %v1332 = vsel %vm1324, 1, 0
        %v1333 = vsel %vm1325, 1, 0
        %v1334 = vsel %vm1326, 1, 0
        %v1335 = vsel %vm1327, 1, 0
        %v1336 = vsel %vm1328, 1, 0
        %v1337 = vcvt.s32.f32 %v1329
        %v1338 = vcvt.s32.f32 %v1330
        %v1339 = vcvt.s32.f32 %v1331
        %v1340 = vcvt.s32.f32 %v1332
        %v1341 = vcvt.s32.f32 %v1333
        %v1342 = vcvt.s32.f32 %v1334
        %v1343 = vcvt.s32.f32 %v1335
        %v1344 = vcvt.s32.f32 %v1336
        %vm1345 = vcmp.lt.s32.totalorder %v1313, 0
        %vm1346 = vcmp.lt.s32.totalorder %v1314, 0
        %vm1347 = vcmp.lt.s32.totalorder %v1315, 0
        %vm1348 = vcmp.lt.s32.totalorder %v1316, 0
        %vm1349 = vcmp.lt.s32.totalorder %v1317, 0
        %vm1350 = vcmp.lt.s32.totalorder %v1318, 0
        %vm1351 = vcmp.lt.s32.totalorder %v1319, 0
        %vm1352 = vcmp.lt.s32.totalorder %v1320, 0
        %vm1353 = vcmp.ge.s32.totalorder %v1313, 128
        %vm1354 = vcmp.ge.s32.totalorder %v1314, 128
        %vm1355 = vcmp.ge.s32.totalorder %v1315, 128
        %vm1356 = vcmp.ge.s32.totalorder %v1316, 128
        %vm1357 = vcmp.ge.s32.totalorder %v1317, 128
        %vm1358 = vcmp.ge.s32.totalorder %v1318, 128
        %vm1359 = vcmp.ge.s32.totalorder %v1319, 128
        %vm1360 = vcmp.ge.s32.totalorder %v1320, 128
        %vm1361 = vmor %vm1345, %vm1353
        %vm1362 = vmor %vm1346, %vm1354
        %vm1363 = vmor %vm1347, %vm1355
        %vm1364 = vmor %vm1348, %vm1356
        %vm1365 = vmor %vm1349, %vm1357
        %vm1366 = vmor %vm1350, %vm1358
        %vm1367 = vmor %vm1351, %vm1359
        %vm1368 = vmor %vm1352, %vm1360
        %v1369 = vsel %vm1361, -1e+30, 0.0
        %v1370 = vsel %vm1362, -1e+30, 0.0
        %v1371 = vsel %vm1363, -1e+30, 0.0
        %v1372 = vsel %vm1364, -1e+30, 0.0
        %v1373 = vsel %vm1365, -1e+30, 0.0
        %v1374 = vsel %vm1366, -1e+30, 0.0
        %v1375 = vsel %vm1367, -1e+30, 0.0
        %v1376 = vsel %vm1368, -1e+30, 0.0
        %1377 = vmatprep.subr.mxu0 0.0
        %1378 = vmatpush1.msra.mxu0 %v940
        %1379 = vmatprep.subr.mxu0 0.0
        %1380 = vmatpush1.msra.mxu0 %v941
        %1381 = vmatprep.subr.mxu0 0.0
        %1382 = vmatpush1.msra.mxu0 %v942
        %1383 = vmatprep.subr.mxu0 0.0
        %1384 = vmatpush1.msra.mxu0 %v943
        %1385 = vmatprep.subr.mxu0 0.0
        %1386 = vmatpush1.msra.mxu0 %v944
        %1387 = vmatprep.subr.mxu0 0.0
        %1388 = vmatpush1.msra.mxu0 %v945
        %1389 = vmatprep.subr.mxu0 0.0
        %1390 = vmatpush1.msra.mxu0 %v946
        %1391 = vmatprep.subr.mxu0 0.0
        %1392 = vmatpush1.msra.mxu0 %v947
        %1393 = vmatprep.subr.mxu0 0.0
        %1394 = vmatpush1.msra.mxu0 %v948
        %1395 = vmatprep.subr.mxu0 0.0
        %1396 = vmatpush1.msra.mxu0 %v949
        %1397 = vmatprep.subr.mxu0 0.0
        %1398 = vmatpush1.msra.mxu0 %v950
        %1399 = vmatprep.subr.mxu0 0.0
        %1400 = vmatpush1.msra.mxu0 %v951
        %1401 = vmatprep.subr.mxu0 0.0
        %1402 = vmatpush1.msra.mxu0 %v952
        %1403 = vmatprep.subr.mxu0 0.0
        %1404 = vmatpush1.msra.mxu0 %v953
        %1405 = vmatprep.subr.mxu0 0.0
        %1406 = vmatpush1.msra.mxu0 %v954
        %1407 = vmatprep.subr.mxu0 0.0
        %1408 = vmatpush1.msra.mxu0 %v955
        %1409 = vmatprep.subr.mxu0 0.0
        %1410 = vmatpush1.msra.mxu0 0.0
        %1411 = vmatprep.subr.mxu0 0.0
        %1412 = vmatpush1.msra.mxu0 0.0
        %1413 = vmatprep.subr.mxu0 0.0
        %1414 = vmatpush1.msra.mxu0 0.0
        %1415 = vmatprep.subr.mxu0 0.0
        %1416 = vmatpush1.msra.mxu0 0.0
        %1417 = vmatprep.subr.mxu0 0.0
        %1418 = vmatpush1.msra.mxu0 0.0
        %1419 = vmatprep.subr.mxu0 0.0
        %1420 = vmatpush1.msra.mxu0 0.0
        %1421 = vmatprep.subr.mxu0 0.0
        %1422 = vmatpush1.msra.mxu0 0.0
        %1423 = vmatprep.subr.mxu0 0.0
        %1424 = vmatpush1.msra.mxu0 0.0
        %1425 = vmatprep.subr.mxu0 0.0
        %1426 = vmatpush1.msra.mxu0 0.0
        %1427 = vmatprep.subr.mxu0 0.0
        %1428 = vmatpush1.msra.mxu0 0.0
        %1429 = vmatprep.subr.mxu0 0.0
        %1430 = vmatpush1.msra.mxu0 0.0
        %1431 = vmatprep.subr.mxu0 0.0
        %1432 = vmatpush1.msra.mxu0 0.0
        %1433 = vmatprep.subr.mxu0 0.0
        %1434 = vmatpush1.msra.mxu0 0.0
        %1435 = vmatprep.subr.mxu0 0.0
        %1436 = vmatpush1.msra.mxu0 0.0
        %1437 = vmatprep.subr.mxu0 0.0
        %1438 = vmatpush1.msra.mxu0 0.0
        %1439 = vmatprep.subr.mxu0 0.0
        %1440 = vmatpush1.msra.mxu0 0.0
        %1441 = vmatprep.mubr.f32.mxu0 0.0
        %1442 = vmatmul.mubr.f32.gmra.mrb[0].mxu0 %v1337
        %v1443 = vpop.f32.mrb[0].mxu0
        %v1444 = vadd.f32 %v1369, %v1443
        %v1445 = vpop.f32.mrb[0].mxu0
        %1446 = vmatprep.mubr.f32.mxu0 0.0
        %1447 = vmatmul.mubr.f32.gmra.mrb[0].mxu0 %v1338
        %v1448 = vpop.f32.mrb[0].mxu0
        %v1449 = vadd.f32 %v1370, %v1448
        %v1450 = vpop.f32.mrb[0].mxu0
        %1451 = vmatprep.mubr.f32.mxu0 0.0
        %1452 = vmatmul.mubr.f32.gmra.mrb[0].mxu0 %v1339
        %v1453 = vpop.f32.mrb[0].mxu0
        %v1454 = vadd.f32 %v1371, %v1453
        %v1455 = vpop.f32.mrb[0].mxu0
        %1456 = vmatprep.mubr.f32.mxu0 0.0
        %1457 = vmatmul.mubr.f32.gmra.mrb[0].mxu0 %v1340
        %v1458 = vpop.f32.mrb[0].mxu0
        %v1459 = vadd.f32 %v1372, %v1458
        %v1460 = vpop.f32.mrb[0].mxu0
        %1461 = vmatprep.mubr.f32.mxu0 0.0
        %1462 = vmatmul.mubr.f32.gmra.mrb[0].mxu0 %v1341
        %v1463 = vpop.f32.mrb[0].mxu0
        %v1464 = vadd.f32 %v1373, %v1463
        %v1465 = vpop.f32.mrb[0].mxu0
        %1466 = vmatprep.mubr.f32.mxu0 0.0
        %1467 = vmatmul.mubr.f32.gmra.mrb[0].mxu0 %v1342
        %v1468 = vpop.f32.mrb[0].mxu0
        %v1469 = vadd.f32 %v1374, %v1468
        %v1470 = vpop.f32.mrb[0].mxu0
        %1471 = vmatprep.mubr.f32.mxu0 0.0
        %1472 = vmatmul.mubr.f32.gmra.mrb[0].mxu0 %v1343
        %v1473 = vpop.f32.mrb[0].mxu0
        %v1474 = vadd.f32 %v1375, %v1473
        %v1475 = vpop.f32.mrb[0].mxu0
        %1476 = vmatprep.mubr.f32.mxu0 0.0
        %1477 = vmatmul.mubr.f32.gmra.mrb[0].mxu0 %v1344
        %v1478 = vpop.f32.mrb[0].mxu0
        %v1479 = vadd.f32 %v1376, %v1478
        %v1480 = vpop.f32.mrb[0].mxu0
        %1481 = vdwg.mxu0
        %v1482 = vmax.f32 %v1305, %v1444
        %v1483 = vmax.f32 %v1306, %v1449
        %v1484 = vmax.f32 %v1307, %v1454
        %v1485 = vmax.f32 %v1308, %v1459
        %v1486 = vmax.f32 %v1309, %v1464
        %v1487 = vmax.f32 %v1310, %v1469
        %v1488 = vmax.f32 %v1311, %v1474
        %v1489 = vmax.f32 %v1312, %v1479
        %v1490 = vld [vmem:[#allocation13] sm:$0xff]
        %v1491 = vld [vmem:[#allocation13 + $0x8] sm:$0xff]
        %v1492 = vld [vmem:[#allocation7] sm:$0xff]
        %v1493 = vld [vmem:[#allocation7 + $0x8] sm:$0xff]
        %v1494 = vld [vmem:[#allocation7 + $0x10] sm:$0xff]
        %v1495 = vld [vmem:[#allocation7 + $0x18] sm:$0xff]
        %v1496 = vld [vmem:[#allocation7 + $0x20] sm:$0xff]
        %v1497 = vld [vmem:[#allocation7 + $0x28] sm:$0xff]
        %v1498 = vld [vmem:[#allocation7 + $0x30] sm:$0xff]
        %v1499 = vld [vmem:[#allocation7 + $0x38] sm:$0xff]
        %v1500 = vld [vmem:[#allocation7 + $0x40] sm:$0xff]
        %v1501 = vld [vmem:[#allocation7 + $0x48] sm:$0xff]
        %v1502 = vld [vmem:[#allocation7 + $0x50] sm:$0xff]
        %v1503 = vld [vmem:[#allocation7 + $0x58] sm:$0xff]
        %v1504 = vld [vmem:[#allocation7 + $0x60] sm:$0xff]
        %v1505 = vld [vmem:[#allocation7 + $0x68] sm:$0xff]
        %v1506 = vld [vmem:[#allocation7 + $0x70] sm:$0xff]
        %v1507 = vld [vmem:[#allocation7 + $0x78] sm:$0xff]
        %v1508 = vld [vmem:[#allocation7 + $0x80] sm:$0xff]
        %v1509 = vld [vmem:[#allocation7 + $0x88] sm:$0xff]
        %v1510 = vld [vmem:[#allocation7 + $0x90] sm:$0xff]
        %v1511 = vld [vmem:[#allocation7 + $0x98] sm:$0xff]
        %v1512 = vld [vmem:[#allocation7 + $0xa0] sm:$0xff]
        %v1513 = vld [vmem:[#allocation7 + $0xa8] sm:$0xff]
        %v1514 = vld [vmem:[#allocation7 + $0xb0] sm:$0xff]
        %v1515 = vld [vmem:[#allocation7 + $0xb8] sm:$0xff]
        %v1516 = vld [vmem:[#allocation7 + $0xc0] sm:$0xff]
        %v1517 = vld [vmem:[#allocation7 + $0xc8] sm:$0xff]
        %v1518 = vld [vmem:[#allocation7 + $0xd0] sm:$0xff]
        %v1519 = vld [vmem:[#allocation7 + $0xd8] sm:$0xff]
        %v1520 = vld [vmem:[#allocation7 + $0xe0] sm:$0xff]
        %v1521 = vld [vmem:[#allocation7 + $0xe8] sm:$0xff]
        %v1522 = vld [vmem:[#allocation7 + $0xf0] sm:$0xff]
        %v1523 = vld [vmem:[#allocation7 + $0xf8] sm:$0xff]
        %1524 = vmatprep.subr.mxu0 %v1493
        %1525 = vmatpush1.msra.mxu0 %v1492
        %1526 = vmatprep.subr.mxu0 %v1495
        %1527 = vmatpush1.msra.mxu0 %v1494
        %1528 = vmatprep.subr.mxu0 %v1497
        %1529 = vmatpush1.msra.mxu0 %v1496
        %1530 = vmatprep.subr.mxu0 %v1499
        %1531 = vmatpush1.msra.mxu0 %v1498
        %1532 = vmatprep.subr.mxu0 %v1501
        %1533 = vmatpush1.msra.mxu0 %v1500
        %1534 = vmatprep.subr.mxu0 %v1503
        %1535 = vmatpush1.msra.mxu0 %v1502
        %1536 = vmatprep.subr.mxu0 %v1505
        %1537 = vmatpush1.msra.mxu0 %v1504
        %1538 = vmatprep.subr.mxu0 %v1507
        %1539 = vmatpush1.msra.mxu0 %v1506
        %1540 = vmatprep.subr.mxu0 %v1509
        %1541 = vmatpush1.msra.mxu0 %v1508
        %1542 = vmatprep.subr.mxu0 %v1511
        %1543 = vmatpush1.msra.mxu0 %v1510
        %1544 = vmatprep.subr.mxu0 %v1513
        %1545 = vmatpush1.msra.mxu0 %v1512
        %1546 = vmatprep.subr.mxu0 %v1515
        %1547 = vmatpush1.msra.mxu0 %v1514
        %1548 = vmatprep.subr.mxu0 %v1517
        %1549 = vmatpush1.msra.mxu0 %v1516
        %1550 = vmatprep.subr.mxu0 %v1519
        %1551 = vmatpush1.msra.mxu0 %v1518
        %1552 = vmatprep.subr.mxu0 %v1521
        %1553 = vmatpush1.msra.mxu0 %v1520
        %1554 = vmatprep.subr.mxu0 %v1523
        %1555 = vmatpush1.msra.mxu0 %v1522
        %1556 = vmatprep.subr.mxu0 0.0
        %1557 = vmatpush1.msra.mxu0 0.0
        %1558 = vmatprep.subr.mxu0 0.0
        %1559 = vmatpush1.msra.mxu0 0.0
        %1560 = vmatprep.subr.mxu0 0.0
        %1561 = vmatpush1.msra.mxu0 0.0
        %1562 = vmatprep.subr.mxu0 0.0
        %1563 = vmatpush1.msra.mxu0 0.0
        %1564 = vmatprep.subr.mxu0 0.0
        %1565 = vmatpush1.msra.mxu0 0.0
        %1566 = vmatprep.subr.mxu0 0.0
        %1567 = vmatpush1.msra.mxu0 0.0
        %1568 = vmatprep.subr.mxu0 0.0
        %1569 = vmatpush1.msra.mxu0 0.0
        %1570 = vmatprep.subr.mxu0 0.0
        %1571 = vmatpush1.msra.mxu0 0.0
        %1572 = vmatprep.subr.mxu0 0.0
        %1573 = vmatpush1.msra.mxu0 0.0
        %1574 = vmatprep.subr.mxu0 0.0
        %1575 = vmatpush1.msra.mxu0 0.0
        %1576 = vmatprep.subr.mxu0 0.0
        %1577 = vmatpush1.msra.mxu0 0.0
        %1578 = vmatprep.subr.mxu0 0.0
        %1579 = vmatpush1.msra.mxu0 0.0
        %1580 = vmatprep.subr.mxu0 0.0
        %1581 = vmatpush1.msra.mxu0 0.0
        %1582 = vmatprep.subr.mxu0 0.0
        %1583 = vmatpush1.msra.mxu0 0.0
        %1584 = vmatprep.subr.mxu0 0.0
        %1585 = vmatpush1.msra.mxu0 0.0
        %1586 = vmatprep.subr.mxu0 0.0
        %1587 = vmatpush1.msra.mxu0 0.0
        %1588 = vmatprep.mubr.f32.mxu0 0.0
        %1589 = vmatmul.mubr.f32.gmra.mrb[0].mxu0 %v1482
        %v1590 = vpop.f32.mrb[0].mxu0
        %v1591 = vadd.f32 0.0, %v1590
        %v1592 = vpop.f32.mrb[0].mxu0
        %v1593 = vadd.f32 0.0, %v1592
        %1594 = vmatprep.mubr.f32.mxu0 0.0
        %1595 = vmatmul.mubr.f32.gmra.mrb[0].mxu0 %v1483
        %v1596 = vpop.f32.mrb[0].mxu0
        %v1597 = vadd.f32 0.0, %v1596
        %v1598 = vpop.f32.mrb[0].mxu0
        %v1599 = vadd.f32 0.0, %v1598
        %1600 = vmatprep.mubr.f32.mxu0 0.0
        %1601 = vmatmul.mubr.f32.gmra.mrb[0].mxu0 %v1484
        %v1602 = vpop.f32.mrb[0].mxu0
        %v1603 = vadd.f32 0.0, %v1602
        %v1604 = vpop.f32.mrb[0].mxu0
        %v1605 = vadd.f32 0.0, %v1604
        %1606 = vmatprep.mubr.f32.mxu0 0.0
        %1607 = vmatmul.mubr.f32.gmra.mrb[0].mxu0 %v1485
        %v1608 = vpop.f32.mrb[0].mxu0
        %v1609 = vadd.f32 0.0, %v1608
        %v1610 = vpop.f32.mrb[0].mxu0
        %v1611 = vadd.f32 0.0, %v1610
        %1612 = vmatprep.mubr.f32.mxu0 0.0
        %1613 = vmatmul.mubr.f32.gmra.mrb[0].mxu0 %v1486
        %v1614 = vpop.f32.mrb[0].mxu0
        %v1615 = vadd.f32 0.0, %v1614
        %v1616 = vpop.f32.mrb[0].mxu0
        %v1617 = vadd.f32 0.0, %v1616
        %1618 = vmatprep.mubr.f32.mxu0 0.0
        %1619 = vmatmul.mubr.f32.gmra.mrb[0].mxu0 %v1487
        %v1620 = vpop.f32.mrb[0].mxu0
        %v1621 = vadd.f32 0.0, %v1620
        %v1622 = vpop.f32.mrb[0].mxu0
        %v1623 = vadd.f32 0.0, %v1622
        %1624 = vmatprep.mubr.f32.mxu0 0.0
        %1625 = vmatmul.mubr.f32.gmra.mrb[0].mxu0 %v1488
        %v1626 = vpop.f32.mrb[0].mxu0
        %v1627 = vadd.f32 0.0, %v1626
        %v1628 = vpop.f32.mrb[0].mxu0
        %v1629 = vadd.f32 0.0, %v1628
        %1630 = vmatprep.mubr.f32.mxu0 0.0
        %1631 = vmatmul.mubr.f32.gmra.mrb[0].mxu0 %v1489
        %v1632 = vpop.f32.mrb[0].mxu0
        %v1633 = vadd.f32 0.0, %v1632
        %v1634 = vpop.f32.mrb[0].mxu0
        %v1635 = vadd.f32 0.0, %v1634
        %1636 = vdwg.mxu0
        %v1637 = vlaneseq
        %v1638 = vshrl.u32 %v1637, 7
        %v1639 = vsub.s32 0, %v1638
        %v1640 = vrot.slane %v1490, %v1639
        %v1641 = vmul.f32 %v1591, %v1640
        %v1642 = vmul.f32 %v1597, %v1640
        %v1643 = vmul.f32 %v1603, %v1640
        %v1644 = vmul.f32 %v1609, %v1640
        %v1645 = vmul.f32 %v1615, %v1640
        %v1646 = vmul.f32 %v1621, %v1640
        %v1647 = vmul.f32 %v1627, %v1640
        %v1648 = vmul.f32 %v1633, %v1640
        %v1649 = vlaneseq
        %v1650 = vshrl.u32 %v1649, 7
        %v1651 = vsub.s32 1, %v1650
        %v1652 = vrot.slane %v1490, %v1651
        %v1653 = vadd.f32 %v1641, %v1652
        %v1654 = vadd.f32 %v1642, %v1652
        %v1655 = vadd.f32 %v1643, %v1652
        %v1656 = vadd.f32 %v1644, %v1652
        %v1657 = vadd.f32 %v1645, %v1652
        %v1658 = vadd.f32 %v1646, %v1652
        %v1659 = vadd.f32 %v1647, %v1652
        %v1660 = vadd.f32 %v1648, %v1652
        %v1661 = vxor.u32 %v1653, 2147483648
        %v1662 = vxor.u32 %v1654, 2147483648
        %v1663 = vxor.u32 %v1655, 2147483648
        %v1664 = vxor.u32 %v1656, 2147483648
        %v1665 = vxor.u32 %v1657, 2147483648
        %v1666 = vxor.u32 %v1658, 2147483648
        %v1667 = vxor.u32 %v1659, 2147483648
        %v1668 = vxor.u32 %v1660, 2147483648
        %v1669 = vmul.f32 %v1661, 1.442695
        %v1670 = vpow.pop %v1669
        %v1671 = vmul.f32 %v1662, 1.442695
        %v1672 = vpow.pop %v1671
        %v1673 = vmul.f32 %v1663, 1.442695
        %v1674 = vpow.pop %v1673
        %v1675 = vmul.f32 %v1664, 1.442695
        %v1676 = vpow.pop %v1675
        %v1677 = vmul.f32 %v1665, 1.442695
        %v1678 = vpow.pop %v1677
        %v1679 = vmul.f32 %v1666, 1.442695
        %v1680 = vpow.pop %v1679
        %v1681 = vmul.f32 %v1667, 1.442695
        %v1682 = vpow.pop %v1681
        %v1683 = vmul.f32 %v1668, 1.442695
        %v1684 = vpow.pop %v1683
        %v1685 = vadd.f32 %v1670, 1.0
        %v1686 = vadd.f32 %v1672, 1.0
        %v1687 = vadd.f32 %v1674, 1.0
        %v1688 = vadd.f32 %v1676, 1.0
        %v1689 = vadd.f32 %v1678, 1.0
        %v1690 = vadd.f32 %v1680, 1.0
        %v1691 = vadd.f32 %v1682, 1.0
        %v1692 = vadd.f32 %v1684, 1.0
        %v1693 = vrcp.pop %v1685
        %v1694 = vmul.f32 1.0, %v1693
        %v1695 = vrcp.pop %v1686
        %v1696 = vmul.f32 1.0, %v1695
        %v1697 = vrcp.pop %v1687
        %v1698 = vmul.f32 1.0, %v1697
        %v1699 = vrcp.pop %v1688
        %v1700 = vmul.f32 1.0, %v1699
        %v1701 = vrcp.pop %v1689
        %v1702 = vmul.f32 1.0, %v1701
        %v1703 = vrcp.pop %v1690
        %v1704 = vmul.f32 1.0, %v1703
        %v1705 = vrcp.pop %v1691
        %v1706 = vmul.f32 1.0, %v1705
        %v1707 = vrcp.pop %v1692
        %v1708 = vmul.f32 1.0, %v1707
        %v1709 = vmul.f32 %v1653, %v1694
        %v1710 = vmul.f32 %v1654, %v1696
        %v1711 = vmul.f32 %v1655, %v1698
        %v1712 = vmul.f32 %v1656, %v1700
        %v1713 = vmul.f32 %v1657, %v1702
        %v1714 = vmul.f32 %v1658, %v1704
        %v1715 = vmul.f32 %v1659, %v1706
        %v1716 = vmul.f32 %v1660, %v1708
        %vm1717 = vcmask 523264
        %v1719 = vsel %vm1717, %v999, 0
        %v1722 = vsel %vm1717, %v1000, 0
        %v1725 = vsel %vm1717, %v1001, 0
        %v1728 = vsel %vm1717, %v1002, 0
        %1730 = vmatprep.subr.mxu0 0.0
        %1731 = vmatpush1.msra.mxu0 %v1709
        %1732 = vmatprep.subr.mxu0 0.0
        %1733 = vmatpush1.msra.mxu0 %v1710
        %1734 = vmatprep.subr.mxu0 0.0
        %1735 = vmatpush1.msra.mxu0 %v1711
        %1736 = vmatprep.subr.mxu0 0.0
        %1737 = vmatpush1.msra.mxu0 %v1712
        %1738 = vmatprep.subr.mxu0 0.0
        %1739 = vmatpush1.msra.mxu0 %v1713
        %1740 = vmatprep.subr.mxu0 0.0
        %1741 = vmatpush1.msra.mxu0 %v1714
        %1742 = vmatprep.subr.mxu0 0.0
        %1743 = vmatpush1.msra.mxu0 %v1715
        %1744 = vmatprep.subr.mxu0 0.0
        %1745 = vmatpush1.msra.mxu0 %v1716
        %1746 = vmatprep.subr.mxu0 0.0
        %1747 = vmatpush1.msra.mxu0 0.0
        %1748 = vmatprep.subr.mxu0 0.0
        %1749 = vmatpush1.msra.mxu0 0.0
        %1750 = vmatprep.subr.mxu0 0.0
        %1751 = vmatpush1.msra.mxu0 0.0
        %1752 = vmatprep.subr.mxu0 0.0
        %1753 = vmatpush1.msra.mxu0 0.0
        %1754 = vmatprep.subr.mxu0 0.0
        %1755 = vmatpush1.msra.mxu0 0.0
        %1756 = vmatprep.subr.mxu0 0.0
        %1757 = vmatpush1.msra.mxu0 0.0
        %1758 = vmatprep.subr.mxu0 0.0
        %1759 = vmatpush1.msra.mxu0 0.0
        %1760 = vmatprep.subr.mxu0 0.0
        %1761 = vmatpush1.msra.mxu0 0.0
        %1762 = vmatprep.subr.mxu0 0.0
        %1763 = vmatpush1.msra.mxu0 0.0
        %1764 = vmatprep.subr.mxu0 0.0
        %1765 = vmatpush1.msra.mxu0 0.0
        %1766 = vmatprep.subr.mxu0 0.0
        %1767 = vmatpush1.msra.mxu0 0.0
        %1768 = vmatprep.subr.mxu0 0.0
        %1769 = vmatpush1.msra.mxu0 0.0
        %1770 = vmatprep.subr.mxu0 0.0
        %1771 = vmatpush1.msra.mxu0 0.0
        %1772 = vmatprep.subr.mxu0 0.0
        %1773 = vmatpush1.msra.mxu0 0.0
        %1774 = vmatprep.subr.mxu0 0.0
        %1775 = vmatpush1.msra.mxu0 0.0
        %1776 = vmatprep.subr.mxu0 0.0
        %1777 = vmatpush1.msra.mxu0 0.0
        %1778 = vmatprep.subr.mxu0 0.0
        %1779 = vmatpush1.msra.mxu0 0.0
        %1780 = vmatprep.subr.mxu0 0.0
        %1781 = vmatpush1.msra.mxu0 0.0
        %1782 = vmatprep.subr.mxu0 0.0
        %1783 = vmatpush1.msra.mxu0 0.0
        %1784 = vmatprep.subr.mxu0 0.0
        %1785 = vmatpush1.msra.mxu0 0.0
        %1786 = vmatprep.subr.mxu0 0.0
        %1787 = vmatpush1.msra.mxu0 0.0
        %1788 = vmatprep.subr.mxu0 0.0
        %1789 = vmatpush1.msra.mxu0 0.0
        %1790 = vmatprep.subr.mxu0 0.0
        %1791 = vmatpush1.msra.mxu0 0.0
        %1792 = vmatprep.subr.mxu0 0.0
        %1793 = vmatpush1.msra.mxu0 0.0
        %1794 = vmatprep.mubr.f32.mxu0 0.0
        %1795 = vmatmul.mubr.f32.gmra.mrb[0].mxu0 %v1719
        %v1796 = vpop.f32.mrb[0].mxu0
        %v1797 = vadd.f32 0.0, %v1796
        %v1798 = vpop.f32.mrb[0].mxu0
        %1799 = vmatprep.mubr.f32.mxu0 0.0
        %1800 = vmatmul.mubr.f32.gmra.mrb[0].mxu0 %v1722
        %v1801 = vpop.f32.mrb[0].mxu0
        %v1802 = vadd.f32 0.0, %v1801
        %v1803 = vpop.f32.mrb[0].mxu0
        %1804 = vmatprep.mubr.f32.mxu0 0.0
        %1805 = vmatmul.mubr.f32.gmra.mrb[0].mxu0 %v1725
        %v1806 = vpop.f32.mrb[0].mxu0
        %v1807 = vadd.f32 0.0, %v1806
        %v1808 = vpop.f32.mrb[0].mxu0
        %1809 = vmatprep.mubr.f32.mxu0 0.0
        %1810 = vmatmul.mubr.f32.gmra.mrb[0].mxu0 %v1728
        %v1811 = vpop.f32.mrb[0].mxu0
        %v1812 = vadd.f32 0.0, %v1811
        %v1813 = vpop.f32.mrb[0].mxu0
        %1814 = vdwg.mxu0
        %v1815 = vld [vmem:[#allocation8] sm:$0xff]
        %v1816 = vld [vmem:[#allocation8 + $0x8] sm:$0xff]
        %v1817 = vld [vmem:[#allocation8 + $0x10] sm:$0xff]
        %v1818 = vld [vmem:[#allocation8 + $0x18] sm:$0xff]
        %v1819 = vld [vmem:[#allocation8 + $0x20] sm:$0xff]
        %v1820 = vld [vmem:[#allocation8 + $0x28] sm:$0xff]
        %v1821 = vld [vmem:[#allocation8 + $0x30] sm:$0xff]
        %v1822 = vld [vmem:[#allocation8 + $0x38] sm:$0xff]
        %v1823 = vld [vmem:[#allocation8 + $0x40] sm:$0xff]
        %v1824 = vld [vmem:[#allocation8 + $0x48] sm:$0xff]
        %v1825 = vld [vmem:[#allocation8 + $0x50] sm:$0xff]
        %v1826 = vld [vmem:[#allocation8 + $0x58] sm:$0xff]
        %v1827 = vld [vmem:[#allocation8 + $0x60] sm:$0xff]
        %v1828 = vld [vmem:[#allocation8 + $0x68] sm:$0xff]
        %v1829 = vld [vmem:[#allocation8 + $0x70] sm:$0xff]
        %v1830 = vld [vmem:[#allocation8 + $0x78] sm:$0xff]
        %v1832 = vsel %vm1717, %v1160, 0
        %v1835 = vsel %vm1717, %v1161, 0
        %v1838 = vsel %vm1717, %v1162, 0
        %v1841 = vsel %vm1717, %v1163, 0
        %1843 = vmatprep.subr.mxu0 0.0
        %1844 = vmatpush1.msra.mxu0 %v1709
        %1845 = vmatprep.subr.mxu0 0.0
        %1846 = vmatpush1.msra.mxu0 %v1710
        %1847 = vmatprep.subr.mxu0 0.0
        %1848 = vmatpush1.msra.mxu0 %v1711
        %1849 = vmatprep.subr.mxu0 0.0
        %1850 = vmatpush1.msra.mxu0 %v1712
        %1851 = vmatprep.subr.mxu0 0.0
        %1852 = vmatpush1.msra.mxu0 %v1713
        %1853 = vmatprep.subr.mxu0 0.0
        %1854 = vmatpush1.msra.mxu0 %v1714
        %1855 = vmatprep.subr.mxu0 0.0
        %1856 = vmatpush1.msra.mxu0 %v1715
        %1857 = vmatprep.subr.mxu0 0.0
        %1858 = vmatpush1.msra.mxu0 %v1716
        %1859 = vmatprep.subr.mxu0 0.0
        %1860 = vmatpush1.msra.mxu0 0.0
        %1861 = vmatprep.subr.mxu0 0.0
        %1862 = vmatpush1.msra.mxu0 0.0
        %1863 = vmatprep.subr.mxu0 0.0
        %1864 = vmatpush1.msra.mxu0 0.0
        %1865 = vmatprep.subr.mxu0 0.0
        %1866 = vmatpush1.msra.mxu0 0.0
        %1867 = vmatprep.subr.mxu0 0.0
        %1868 = vmatpush1.msra.mxu0 0.0
        %1869 = vmatprep.subr.mxu0 0.0
        %1870 = vmatpush1.msra.mxu0 0.0
        %1871 = vmatprep.subr.mxu0 0.0
        %1872 = vmatpush1.msra.mxu0 0.0
        %1873 = vmatprep.subr.mxu0 0.0
        %1874 = vmatpush1.msra.mxu0 0.0
        %1875 = vmatprep.subr.mxu0 0.0
        %1876 = vmatpush1.msra.mxu0 0.0
        %1877 = vmatprep.subr.mxu0 0.0
        %1878 = vmatpush1.msra.mxu0 0.0
        %1879 = vmatprep.subr.mxu0 0.0
        %1880 = vmatpush1.msra.mxu0 0.0
        %1881 = vmatprep.subr.mxu0 0.0
        %1882 = vmatpush1.msra.mxu0 0.0
        %1883 = vmatprep.subr.mxu0 0.0
        %1884 = vmatpush1.msra.mxu0 0.0
        %1885 = vmatprep.subr.mxu0 0.0
        %1886 = vmatpush1.msra.mxu0 0.0
        %1887 = vmatprep.subr.mxu0 0.0
        %1888 = vmatpush1.msra.mxu0 0.0
        %1889 = vmatprep.subr.mxu0 0.0
        %1890 = vmatpush1.msra.mxu0 0.0
        %1891 = vmatprep.subr.mxu0 0.0
        %1892 = vmatpush1.msra.mxu0 0.0
        %1893 = vmatprep.subr.mxu0 0.0
        %1894 = vmatpush1.msra.mxu0 0.0
        %1895 = vmatprep.subr.mxu0 0.0
        %1896 = vmatpush1.msra.mxu0 0.0
        %1897 = vmatprep.subr.mxu0 0.0
        %1898 = vmatpush1.msra.mxu0 0.0
        %1899 = vmatprep.subr.mxu0 0.0
        %1900 = vmatpush1.msra.mxu0 0.0
        %1901 = vmatprep.subr.mxu0 0.0
        %1902 = vmatpush1.msra.mxu0 0.0
        %1903 = vmatprep.subr.mxu0 0.0
        %1904 = vmatpush1.msra.mxu0 0.0
        %1905 = vmatprep.subr.mxu0 0.0
        %1906 = vmatpush1.msra.mxu0 0.0
        %1907 = vmatprep.mubr.f32.mxu0 0.0
        %1908 = vmatmul.mubr.f32.gmra.mrb[0].mxu0 %v1832
        %v1909 = vpop.f32.mrb[0].mxu0
        %v1910 = vadd.f32 0.0, %v1909
        %v1911 = vpop.f32.mrb[0].mxu0
        %1912 = vmatprep.mubr.f32.mxu0 0.0
        %1913 = vmatmul.mubr.f32.gmra.mrb[0].mxu0 %v1835
        %v1914 = vpop.f32.mrb[0].mxu0
        %v1915 = vadd.f32 0.0, %v1914
        %v1916 = vpop.f32.mrb[0].mxu0
        %1917 = vmatprep.mubr.f32.mxu0 0.0
        %1918 = vmatmul.mubr.f32.gmra.mrb[0].mxu0 %v1838
        %v1919 = vpop.f32.mrb[0].mxu0
        %v1920 = vadd.f32 0.0, %v1919
        %v1921 = vpop.f32.mrb[0].mxu0
        %1922 = vmatprep.mubr.f32.mxu0 0.0
        %1923 = vmatmul.mubr.f32.gmra.mrb[0].mxu0 %v1841
        %v1924 = vpop.f32.mrb[0].mxu0
        %v1925 = vadd.f32 0.0, %v1924
        %v1926 = vpop.f32.mrb[0].mxu0
        %1927 = vdwg.mxu0
        %s1928 = scalar_lea.vmem [#allocation8], 128
        %v1929 = vld [vmem:[%s1928] sm:$0xff]
        %v1930 = vld [vmem:[%s1928 + $0x8] sm:$0xff]
        %v1931 = vld [vmem:[%s1928 + $0x10] sm:$0xff]
        %v1932 = vld [vmem:[%s1928 + $0x18] sm:$0xff]
        %v1933 = vld [vmem:[%s1928 + $0x20] sm:$0xff]
        %v1934 = vld [vmem:[%s1928 + $0x28] sm:$0xff]
        %v1935 = vld [vmem:[%s1928 + $0x30] sm:$0xff]
        %v1936 = vld [vmem:[%s1928 + $0x38] sm:$0xff]
        %v1937 = vld [vmem:[%s1928 + $0x40] sm:$0xff]
        %v1938 = vld [vmem:[%s1928 + $0x48] sm:$0xff]
        %v1939 = vld [vmem:[%s1928 + $0x50] sm:$0xff]
        %v1940 = vld [vmem:[%s1928 + $0x58] sm:$0xff]
        %v1941 = vld [vmem:[%s1928 + $0x60] sm:$0xff]
        %v1942 = vld [vmem:[%s1928 + $0x68] sm:$0xff]
        %v1943 = vld [vmem:[%s1928 + $0x70] sm:$0xff]
        %v1944 = vld [vmem:[%s1928 + $0x78] sm:$0xff]
        %1945 = vmatprep.subr.mxu0 0.0
        %1946 = vmatpush1.msra.mxu0 %v1929
        %1947 = vmatprep.subr.mxu0 0.0
        %1948 = vmatpush1.msra.mxu0 %v1930
        %1949 = vmatprep.subr.mxu0 0.0
        %1950 = vmatpush1.msra.mxu0 %v1931
        %1951 = vmatprep.subr.mxu0 0.0
        %1952 = vmatpush1.msra.mxu0 %v1932
        %1953 = vmatprep.subr.mxu0 0.0
        %1954 = vmatpush1.msra.mxu0 %v1933
        %1955 = vmatprep.subr.mxu0 0.0
        %1956 = vmatpush1.msra.mxu0 %v1934
        %1957 = vmatprep.subr.mxu0 0.0
        %1958 = vmatpush1.msra.mxu0 %v1935
        %1959 = vmatprep.subr.mxu0 0.0
        %1960 = vmatpush1.msra.mxu0 %v1936
        %1961 = vmatprep.subr.mxu0 0.0
        %1962 = vmatpush1.msra.mxu0 %v1937
        %1963 = vmatprep.subr.mxu0 0.0
        %1964 = vmatpush1.msra.mxu0 %v1938
        %1965 = vmatprep.subr.mxu0 0.0
        %1966 = vmatpush1.msra.mxu0 %v1939
        %1967 = vmatprep.subr.mxu0 0.0
        %1968 = vmatpush1.msra.mxu0 %v1940
        %1969 = vmatprep.subr.mxu0 0.0
        %1970 = vmatpush1.msra.mxu0 %v1941
        %1971 = vmatprep.subr.mxu0 0.0
        %1972 = vmatpush1.msra.mxu0 %v1942
        %1973 = vmatprep.subr.mxu0 0.0
        %1974 = vmatpush1.msra.mxu0 %v1943
        %1975 = vmatprep.subr.mxu0 0.0
        %1976 = vmatpush1.msra.mxu0 %v1944
        %1977 = vmatprep.subr.mxu0 0.0
        %1978 = vmatpush1.msra.mxu0 0.0
        %1979 = vmatprep.subr.mxu0 0.0
        %1980 = vmatpush1.msra.mxu0 0.0
        %1981 = vmatprep.subr.mxu0 0.0
        %1982 = vmatpush1.msra.mxu0 0.0
        %1983 = vmatprep.subr.mxu0 0.0
        %1984 = vmatpush1.msra.mxu0 0.0
        %1985 = vmatprep.subr.mxu0 0.0
        %1986 = vmatpush1.msra.mxu0 0.0
        %1987 = vmatprep.subr.mxu0 0.0
        %1988 = vmatpush1.msra.mxu0 0.0
        %1989 = vmatprep.subr.mxu0 0.0
        %1990 = vmatpush1.msra.mxu0 0.0
        %1991 = vmatprep.subr.mxu0 0.0
        %1992 = vmatpush1.msra.mxu0 0.0
        %1993 = vmatprep.subr.mxu0 0.0
        %1994 = vmatpush1.msra.mxu0 0.0
        %1995 = vmatprep.subr.mxu0 0.0
        %1996 = vmatpush1.msra.mxu0 0.0
        %1997 = vmatprep.subr.mxu0 0.0
        %1998 = vmatpush1.msra.mxu0 0.0
        %1999 = vmatprep.subr.mxu0 0.0
        %2000 = vmatpush1.msra.mxu0 0.0
        %2001 = vmatprep.subr.mxu0 0.0
        %2002 = vmatpush1.msra.mxu0 0.0
        %2003 = vmatprep.subr.mxu0 0.0
        %2004 = vmatpush1.msra.mxu0 0.0
        %2005 = vmatprep.subr.mxu0 0.0
        %2006 = vmatpush1.msra.mxu0 0.0
        %2007 = vmatprep.subr.mxu0 0.0
        %2008 = vmatpush1.msra.mxu0 0.0
        %2009 = vmatprep.mubr.f32.mxu0 0.0
        %2010 = vmatmul.mubr.f32.gmra.mrb[0].mxu0 %v1910
        %v2011 = vpop.f32.mrb[0].mxu0
        %v2012 = vadd.f32 0.0, %v2011
        %v2013 = vpop.f32.mrb[0].mxu0
        %2014 = vmatprep.mubr.f32.mxu0 0.0
        %2015 = vmatmul.mubr.f32.gmra.mrb[0].mxu0 %v1915
        %v2016 = vpop.f32.mrb[0].mxu0
        %v2017 = vadd.f32 0.0, %v2016
        %v2018 = vpop.f32.mrb[0].mxu0
        %2019 = vmatprep.mubr.f32.mxu0 0.0
        %2020 = vmatmul.mubr.f32.gmra.mrb[0].mxu0 %v1920
        %v2021 = vpop.f32.mrb[0].mxu0
        %v2022 = vadd.f32 0.0, %v2021
        %v2023 = vpop.f32.mrb[0].mxu0
        %2024 = vmatprep.mubr.f32.mxu0 0.0
        %2025 = vmatmul.mubr.f32.gmra.mrb[0].mxu0 %v1925
        %v2026 = vpop.f32.mrb[0].mxu0
        %v2027 = vadd.f32 0.0, %v2026
        %v2028 = vpop.f32.mrb[0].mxu0
        %2029 = vdwg.mxu0
        %2030 = vmatprep.subr.mxu0 0.0
        %2031 = vmatpush1.msra.mxu0 %v1815
        %2032 = vmatprep.subr.mxu0 0.0
        %2033 = vmatpush1.msra.mxu0 %v1816
        %2034 = vmatprep.subr.mxu0 0.0
        %2035 = vmatpush1.msra.mxu0 %v1817
        %2036 = vmatprep.subr.mxu0 0.0
        %2037 = vmatpush1.msra.mxu0 %v1818
        %2038 = vmatprep.subr.mxu0 0.0
        %2039 = vmatpush1.msra.mxu0 %v1819
        %2040 = vmatprep.subr.mxu0 0.0
        %2041 = vmatpush1.msra.mxu0 %v1820
        %2042 = vmatprep.subr.mxu0 0.0
        %2043 = vmatpush1.msra.mxu0 %v1821
        %2044 = vmatprep.subr.mxu0 0.0
        %2045 = vmatpush1.msra.mxu0 %v1822
        %2046 = vmatprep.subr.mxu0 0.0
        %2047 = vmatpush1.msra.mxu0 %v1823
        %2048 = vmatprep.subr.mxu0 0.0
        %2049 = vmatpush1.msra.mxu0 %v1824
        %2050 = vmatprep.subr.mxu0 0.0
        %2051 = vmatpush1.msra.mxu0 %v1825
        %2052 = vmatprep.subr.mxu0 0.0
        %2053 = vmatpush1.msra.mxu0 %v1826
        %2054 = vmatprep.subr.mxu0 0.0
        %2055 = vmatpush1.msra.mxu0 %v1827
        %2056 = vmatprep.subr.mxu0 0.0
        %2057 = vmatpush1.msra.mxu0 %v1828
        %2058 = vmatprep.subr.mxu0 0.0
        %2059 = vmatpush1.msra.mxu0 %v1829
        %2060 = vmatprep.subr.mxu0 0.0
        %2061 = vmatpush1.msra.mxu0 %v1830
        %2062 = vmatprep.subr.mxu0 0.0
        %2063 = vmatpush1.msra.mxu0 0.0
        %2064 = vmatprep.subr.mxu0 0.0
        %2065 = vmatpush1.msra.mxu0 0.0
        %2066 = vmatprep.subr.mxu0 0.0
        %2067 = vmatpush1.msra.mxu0 0.0
        %2068 = vmatprep.subr.mxu0 0.0
        %2069 = vmatpush1.msra.mxu0 0.0
        %2070 = vmatprep.subr.mxu0 0.0
        %2071 = vmatpush1.msra.mxu0 0.0
        %2072 = vmatprep.subr.mxu0 0.0
        %2073 = vmatpush1.msra.mxu0 0.0
        %2074 = vmatprep.subr.mxu0 0.0
        %2075 = vmatpush1.msra.mxu0 0.0
        %2076 = vmatprep.subr.mxu0 0.0
        %2077 = vmatpush1.msra.mxu0 0.0
        %2078 = vmatprep.subr.mxu0 0.0
        %2079 = vmatpush1.msra.mxu0 0.0
        %2080 = vmatprep.subr.mxu0 0.0
        %2081 = vmatpush1.msra.mxu0 0.0
        %2082 = vmatprep.subr.mxu0 0.0
        %2083 = vmatpush1.msra.mxu0 0.0
        %2084 = vmatprep.subr.mxu0 0.0
        %2085 = vmatpush1.msra.mxu0 0.0
        %2086 = vmatprep.subr.mxu0 0.0
        %2087 = vmatpush1.msra.mxu0 0.0
        %2088 = vmatprep.subr.mxu0 0.0
        %2089 = vmatpush1.msra.mxu0 0.0
        %2090 = vmatprep.subr.mxu0 0.0
        %2091 = vmatpush1.msra.mxu0 0.0
        %2092 = vmatprep.subr.mxu0 0.0
        %2093 = vmatpush1.msra.mxu0 0.0
        %2094 = vmatprep.mubr.f32.mxu0 0.0
        %2095 = vmatmul.mubr.f32.gmra.mrb[0].mxu0 %v1797
        %v2096 = vpop.f32.mrb[0].mxu0
        %v2097 = vadd.f32 %v2012, %v2096
        %v2098 = vpop.f32.mrb[0].mxu0
        %2099 = vmatprep.mubr.f32.mxu0 0.0
        %2100 = vmatmul.mubr.f32.gmra.mrb[0].mxu0 %v1802
        %v2101 = vpop.f32.mrb[0].mxu0
        %v2102 = vadd.f32 %v2017, %v2101
        %v2103 = vpop.f32.mrb[0].mxu0
        %2104 = vmatprep.mubr.f32.mxu0 0.0
        %2105 = vmatmul.mubr.f32.gmra.mrb[0].mxu0 %v1807
        %v2106 = vpop.f32.mrb[0].mxu0
        %v2107 = vadd.f32 %v2022, %v2106
        %v2108 = vpop.f32.mrb[0].mxu0
        %2109 = vmatprep.mubr.f32.mxu0 0.0
        %2110 = vmatmul.mubr.f32.gmra.mrb[0].mxu0 %v1812
        %v2111 = vpop.f32.mrb[0].mxu0
        %v2112 = vadd.f32 %v2027, %v2111
        %v2113 = vpop.f32.mrb[0].mxu0
        %2114 = vdwg.mxu0
        %v2116 = vsel %vm1717, %v1337, 0
        %v2119 = vsel %vm1717, %v1338, 0
        %v2122 = vsel %vm1717, %v1339, 0
        %v2125 = vsel %vm1717, %v1340, 0
        %2127 = vmatprep.subr.mxu0 0.0
        %2128 = vmatpush1.msra.mxu0 %v1709
        %2129 = vmatprep.subr.mxu0 0.0
        %2130 = vmatpush1.msra.mxu0 %v1710
        %2131 = vmatprep.subr.mxu0 0.0
        %2132 = vmatpush1.msra.mxu0 %v1711
        %2133 = vmatprep.subr.mxu0 0.0
        %2134 = vmatpush1.msra.mxu0 %v1712
        %2135 = vmatprep.subr.mxu0 0.0
        %2136 = vmatpush1.msra.mxu0 %v1713
        %2137 = vmatprep.subr.mxu0 0.0
        %2138 = vmatpush1.msra.mxu0 %v1714
        %2139 = vmatprep.subr.mxu0 0.0
        %2140 = vmatpush1.msra.mxu0 %v1715
        %2141 = vmatprep.subr.mxu0 0.0
        %2142 = vmatpush1.msra.mxu0 %v1716
        %2143 = vmatprep.subr.mxu0 0.0
        %2144 = vmatpush1.msra.mxu0 0.0
        %2145 = vmatprep.subr.mxu0 0.0
        %2146 = vmatpush1.msra.mxu0 0.0
        %2147 = vmatprep.subr.mxu0 0.0
        %2148 = vmatpush1.msra.mxu0 0.0
        %2149 = vmatprep.subr.mxu0 0.0
        %2150 = vmatpush1.msra.mxu0 0.0
        %2151 = vmatprep.subr.mxu0 0.0
        %2152 = vmatpush1.msra.mxu0 0.0
        %2153 = vmatprep.subr.mxu0 0.0
        %2154 = vmatpush1.msra.mxu0 0.0
        %2155 = vmatprep.subr.mxu0 0.0
        %2156 = vmatpush1.msra.mxu0 0.0
        %2157 = vmatprep.subr.mxu0 0.0
        %2158 = vmatpush1.msra.mxu0 0.0
        %2159 = vmatprep.subr.mxu0 0.0
        %2160 = vmatpush1.msra.mxu0 0.0
        %2161 = vmatprep.subr.mxu0 0.0
        %2162 = vmatpush1.msra.mxu0 0.0
        %2163 = vmatprep.subr.mxu0 0.0
        %2164 = vmatpush1.msra.mxu0 0.0
        %2165 = vmatprep.subr.mxu0 0.0
        %2166 = vmatpush1.msra.mxu0 0.0
        %2167 = vmatprep.subr.mxu0 0.0
        %2168 = vmatpush1.msra.mxu0 0.0
        %2169 = vmatprep.subr.mxu0 0.0
        %2170 = vmatpush1.msra.mxu0 0.0
        %2171 = vmatprep.subr.mxu0 0.0
        %2172 = vmatpush1.msra.mxu0 0.0
        %2173 = vmatprep.subr.mxu0 0.0
        %2174 = vmatpush1.msra.mxu0 0.0
        %2175 = vmatprep.subr.mxu0 0.0
        %2176 = vmatpush1.msra.mxu0 0.0
        %2177 = vmatprep.subr.mxu0 0.0
        %2178 = vmatpush1.msra.mxu0 0.0
        %2179 = vmatprep.subr.mxu0 0.0
        %2180 = vmatpush1.msra.mxu0 0.0
        %2181 = vmatprep.subr.mxu0 0.0
        %2182 = vmatpush1.msra.mxu0 0.0
        %2183 = vmatprep.subr.mxu0 0.0
        %2184 = vmatpush1.msra.mxu0 0.0
        %2185 = vmatprep.subr.mxu0 0.0
        %2186 = vmatpush1.msra.mxu0 0.0
        %2187 = vmatprep.subr.mxu0 0.0
        %2188 = vmatpush1.msra.mxu0 0.0
        %2189 = vmatprep.subr.mxu0 0.0
        %2190 = vmatpush1.msra.mxu0 0.0
        %2191 = vmatprep.mubr.f32.mxu0 0.0
        %2192 = vmatmul.mubr.f32.gmra.mrb[0].mxu0 %v2116
        %v2193 = vpop.f32.mrb[0].mxu0
        %v2194 = vadd.f32 0.0, %v2193
        %v2195 = vpop.f32.mrb[0].mxu0
        %2196 = vmatprep.mubr.f32.mxu0 0.0
        %2197 = vmatmul.mubr.f32.gmra.mrb[0].mxu0 %v2119
        %v2198 = vpop.f32.mrb[0].mxu0
        %v2199 = vadd.f32 0.0, %v2198
        %v2200 = vpop.f32.mrb[0].mxu0
        %2201 = vmatprep.mubr.f32.mxu0 0.0
        %2202 = vmatmul.mubr.f32.gmra.mrb[0].mxu0 %v2122
        %v2203 = vpop.f32.mrb[0].mxu0
        %v2204 = vadd.f32 0.0, %v2203
        %v2205 = vpop.f32.mrb[0].mxu0
        %2206 = vmatprep.mubr.f32.mxu0 0.0
        %2207 = vmatmul.mubr.f32.gmra.mrb[0].mxu0 %v2125
        %v2208 = vpop.f32.mrb[0].mxu0
        %v2209 = vadd.f32 0.0, %v2208
        %v2210 = vpop.f32.mrb[0].mxu0
        %2211 = vdwg.mxu0
        %s2212 = scalar_lea.vmem [#allocation8], 256
        %v2213 = vld [vmem:[%s2212] sm:$0xff]
        %v2214 = vld [vmem:[%s2212 + $0x8] sm:$0xff]
        %v2215 = vld [vmem:[%s2212 + $0x10] sm:$0xff]
        %v2216 = vld [vmem:[%s2212 + $0x18] sm:$0xff]
        %v2217 = vld [vmem:[%s2212 + $0x20] sm:$0xff]
        %v2218 = vld [vmem:[%s2212 + $0x28] sm:$0xff]
        %v2219 = vld [vmem:[%s2212 + $0x30] sm:$0xff]
        %v2220 = vld [vmem:[%s2212 + $0x38] sm:$0xff]
        %v2221 = vld [vmem:[%s2212 + $0x40] sm:$0xff]
        %v2222 = vld [vmem:[%s2212 + $0x48] sm:$0xff]
        %v2223 = vld [vmem:[%s2212 + $0x50] sm:$0xff]
        %v2224 = vld [vmem:[%s2212 + $0x58] sm:$0xff]
        %v2225 = vld [vmem:[%s2212 + $0x60] sm:$0xff]
        %v2226 = vld [vmem:[%s2212 + $0x68] sm:$0xff]
        %v2227 = vld [vmem:[%s2212 + $0x70] sm:$0xff]
        %v2228 = vld [vmem:[%s2212 + $0x78] sm:$0xff]
        %2229 = vmatprep.subr.mxu0 0.0
        %2230 = vmatpush1.msra.mxu0 %v2213
        %2231 = vmatprep.subr.mxu0 0.0
        %2232 = vmatpush1.msra.mxu0 %v2214
        %2233 = vmatprep.subr.mxu0 0.0
        %2234 = vmatpush1.msra.mxu0 %v2215
        %2235 = vmatprep.subr.mxu0 0.0
        %2236 = vmatpush1.msra.mxu0 %v2216
        %2237 = vmatprep.subr.mxu0 0.0
        %2238 = vmatpush1.msra.mxu0 %v2217
        %2239 = vmatprep.subr.mxu0 0.0
        %2240 = vmatpush1.msra.mxu0 %v2218
        %2241 = vmatprep.subr.mxu0 0.0
        %2242 = vmatpush1.msra.mxu0 %v2219
        %2243 = vmatprep.subr.mxu0 0.0
        %2244 = vmatpush1.msra.mxu0 %v2220
        %2245 = vmatprep.subr.mxu0 0.0
        %2246 = vmatpush1.msra.mxu0 %v2221
        %2247 = vmatprep.subr.mxu0 0.0
        %2248 = vmatpush1.msra.mxu0 %v2222
        %2249 = vmatprep.subr.mxu0 0.0
        %2250 = vmatpush1.msra.mxu0 %v2223
        %2251 = vmatprep.subr.mxu0 0.0
        %2252 = vmatpush1.msra.mxu0 %v2224
        %2253 = vmatprep.subr.mxu0 0.0
        %2254 = vmatpush1.msra.mxu0 %v2225
        %2255 = vmatprep.subr.mxu0 0.0
        %2256 = vmatpush1.msra.mxu0 %v2226
        %2257 = vmatprep.subr.mxu0 0.0
        %2258 = vmatpush1.msra.mxu0 %v2227
        %2259 = vmatprep.subr.mxu0 0.0
        %2260 = vmatpush1.msra.mxu0 %v2228
        %2261 = vmatprep.subr.mxu0 0.0
        %2262 = vmatpush1.msra.mxu0 0.0
        %2263 = vmatprep.subr.mxu0 0.0
        %2264 = vmatpush1.msra.mxu0 0.0
        %2265 = vmatprep.subr.mxu0 0.0
        %2266 = vmatpush1.msra.mxu0 0.0
        %2267 = vmatprep.subr.mxu0 0.0
        %2268 = vmatpush1.msra.mxu0 0.0
        %2269 = vmatprep.subr.mxu0 0.0
        %2270 = vmatpush1.msra.mxu0 0.0
        %2271 = vmatprep.subr.mxu0 0.0
        %2272 = vmatpush1.msra.mxu0 0.0
        %2273 = vmatprep.subr.mxu0 0.0
        %2274 = vmatpush1.msra.mxu0 0.0
        %2275 = vmatprep.subr.mxu0 0.0
        %2276 = vmatpush1.msra.mxu0 0.0
        %2277 = vmatprep.subr.mxu0 0.0
        %2278 = vmatpush1.msra.mxu0 0.0
        %2279 = vmatprep.subr.mxu0 0.0
        %2280 = vmatpush1.msra.mxu0 0.0
        %2281 = vmatprep.subr.mxu0 0.0
        %2282 = vmatpush1.msra.mxu0 0.0
        %2283 = vmatprep.subr.mxu0 0.0
        %2284 = vmatpush1.msra.mxu0 0.0
        %2285 = vmatprep.subr.mxu0 0.0
        %2286 = vmatpush1.msra.mxu0 0.0
        %2287 = vmatprep.subr.mxu0 0.0
        %2288 = vmatpush1.msra.mxu0 0.0
        %2289 = vmatprep.subr.mxu0 0.0
        %2290 = vmatpush1.msra.mxu0 0.0
        %2291 = vmatprep.subr.mxu0 0.0
        %2292 = vmatpush1.msra.mxu0 0.0
        %2293 = vmatprep.mubr.f32.mxu0 0.0
        %2294 = vmatmul.mubr.f32.gmra.mrb[0].mxu0 %v2194
        %v2295 = vpop.f32.mrb[0].mxu0
        %v2296 = vadd.f32 0.0, %v2295
        %v2297 = vpop.f32.mrb[0].mxu0
        %2298 = vmatprep.mubr.f32.mxu0 0.0
        %2299 = vmatmul.mubr.f32.gmra.mrb[0].mxu0 %v2199
        %v2300 = vpop.f32.mrb[0].mxu0
        %v2301 = vadd.f32 0.0, %v2300
        %v2302 = vpop.f32.mrb[0].mxu0
        %2303 = vmatprep.mubr.f32.mxu0 0.0
        %2304 = vmatmul.mubr.f32.gmra.mrb[0].mxu0 %v2204
        %v2305 = vpop.f32.mrb[0].mxu0
        %v2306 = vadd.f32 0.0, %v2305
        %v2307 = vpop.f32.mrb[0].mxu0
        %2308 = vmatprep.mubr.f32.mxu0 0.0
        %2309 = vmatmul.mubr.f32.gmra.mrb[0].mxu0 %v2209
        %v2310 = vpop.f32.mrb[0].mxu0
        %v2311 = vadd.f32 0.0, %v2310
        %v2312 = vpop.f32.mrb[0].mxu0
        %2313 = vdwg.mxu0
        %v2314 = vadd.f32 %v2097, %v2296
        %v2315 = vadd.f32 %v2102, %v2301
        %v2316 = vadd.f32 %v2107, %v2306
        %v2317 = vadd.f32 %v2112, %v2311
        %v2318 = vlaneseq
        %v2319 = vshrl.u32 %v2318, 7
        %v2320 = vsub.s32 2, %v2319
        %v2321 = vrot.slane %v1490, %v2320
        %v2322 = vmul.f32 %v2314, %v2321
        %v2323 = vmul.f32 %v2315, %v2321
        %v2324 = vmul.f32 %v2316, %v2321
        %v2325 = vmul.f32 %v2317, %v2321
        %v2326 = vlaneseq
        %v2327 = vshrl.u32 %v2326, 7
        %v2328 = vsub.s32 3, %v2327
        %v2329 = vrot.slane %v1490, %v2328
        %v2330 = vadd.f32 %v2322, %v2329
        %v2331 = vadd.f32 %v2323, %v2329
        %v2332 = vadd.f32 %v2324, %v2329
        %v2333 = vadd.f32 %v2325, %v2329
        %v2334 = vxor.u32 %v2330, 2147483648
        %v2335 = vxor.u32 %v2331, 2147483648
        %v2336 = vxor.u32 %v2332, 2147483648
        %v2337 = vxor.u32 %v2333, 2147483648
        %v2338 = vmul.f32 %v2334, 1.442695
        %v2339 = vpow.pop %v2338
        %v2340 = vmul.f32 %v2335, 1.442695
        %v2341 = vpow.pop %v2340
        %v2342 = vmul.f32 %v2336, 1.442695
        %v2343 = vpow.pop %v2342
        %v2344 = vmul.f32 %v2337, 1.442695
        %v2345 = vpow.pop %v2344
        %v2346 = vadd.f32 %v2339, 1.0
        %v2347 = vadd.f32 %v2341, 1.0
        %v2348 = vadd.f32 %v2343, 1.0
        %v2349 = vadd.f32 %v2345, 1.0
        %v2350 = vrcp.pop %v2346
        %v2351 = vmul.f32 1.0, %v2350
        %v2352 = vrcp.pop %v2347
        %v2353 = vmul.f32 1.0, %v2352
        %v2354 = vrcp.pop %v2348
        %v2355 = vmul.f32 1.0, %v2354
        %v2356 = vrcp.pop %v2349
        %v2357 = vmul.f32 1.0, %v2356
        %v2358 = vmul.f32 %v2330, %v2351
        %v2359 = vmul.f32 %v2331, %v2353
        %v2360 = vmul.f32 %v2332, %v2355
        %v2361 = vmul.f32 %v2333, %v2357
        %v2362 = vld [vmem:[#allocation10] sm:$0xff]
        %v2363 = vld [vmem:[#allocation10 + $0x8] sm:$0xff]
        %v2364 = vld [vmem:[#allocation10 + $0x10] sm:$0xff]
        %v2365 = vld [vmem:[#allocation10 + $0x18] sm:$0xff]
        %v2366 = vld [vmem:[#allocation10 + $0x20] sm:$0xff]
        %v2367 = vld [vmem:[#allocation10 + $0x28] sm:$0xff]
        %v2368 = vld [vmem:[#allocation10 + $0x30] sm:$0xff]
        %v2369 = vld [vmem:[#allocation10 + $0x38] sm:$0xff]
        %v2370 = vld [vmem:[#allocation10 + $0x40] sm:$0xff]
        %v2371 = vld [vmem:[#allocation10 + $0x48] sm:$0xff]
        %v2372 = vld [vmem:[#allocation10 + $0x50] sm:$0xff]
        %v2373 = vld [vmem:[#allocation10 + $0x58] sm:$0xff]
        %v2374 = vld [vmem:[#allocation10 + $0x60] sm:$0xff]
        %v2375 = vld [vmem:[#allocation10 + $0x68] sm:$0xff]
        %v2376 = vld [vmem:[#allocation10 + $0x70] sm:$0xff]
        %v2377 = vld [vmem:[#allocation10 + $0x78] sm:$0xff]
        %2378 = vmatprep.subr.mxu0 0.0
        %2379 = vmatpush1.msra.mxu0 %v2362
        %2380 = vmatprep.subr.mxu0 0.0
        %2381 = vmatpush1.msra.mxu0 %v2363
        %2382 = vmatprep.subr.mxu0 0.0
        %2383 = vmatpush1.msra.mxu0 %v2364
        %2384 = vmatprep.subr.mxu0 0.0
        %2385 = vmatpush1.msra.mxu0 %v2365
        %2386 = vmatprep.subr.mxu0 0.0
        %2387 = vmatpush1.msra.mxu0 %v2366
        %2388 = vmatprep.subr.mxu0 0.0
        %2389 = vmatpush1.msra.mxu0 %v2367
        %2390 = vmatprep.subr.mxu0 0.0
        %2391 = vmatpush1.msra.mxu0 %v2368
        %2392 = vmatprep.subr.mxu0 0.0
        %2393 = vmatpush1.msra.mxu0 %v2369
        %2394 = vmatprep.subr.mxu0 0.0
        %2395 = vmatpush1.msra.mxu0 %v2370
        %2396 = vmatprep.subr.mxu0 0.0
        %2397 = vmatpush1.msra.mxu0 %v2371
        %2398 = vmatprep.subr.mxu0 0.0
        %2399 = vmatpush1.msra.mxu0 %v2372
        %2400 = vmatprep.subr.mxu0 0.0
        %2401 = vmatpush1.msra.mxu0 %v2373
        %2402 = vmatprep.subr.mxu0 0.0
        %2403 = vmatpush1.msra.mxu0 %v2374
        %2404 = vmatprep.subr.mxu0 0.0
        %2405 = vmatpush1.msra.mxu0 %v2375
        %2406 = vmatprep.subr.mxu0 0.0
        %2407 = vmatpush1.msra.mxu0 %v2376
        %2408 = vmatprep.subr.mxu0 0.0
        %2409 = vmatpush1.msra.mxu0 %v2377
        %2410 = vmatprep.subr.mxu0 0.0
        %2411 = vmatpush1.msra.mxu0 0.0
        %2412 = vmatprep.subr.mxu0 0.0
        %2413 = vmatpush1.msra.mxu0 0.0
        %2414 = vmatprep.subr.mxu0 0.0
        %2415 = vmatpush1.msra.mxu0 0.0
        %2416 = vmatprep.subr.mxu0 0.0
        %2417 = vmatpush1.msra.mxu0 0.0
        %2418 = vmatprep.subr.mxu0 0.0
        %2419 = vmatpush1.msra.mxu0 0.0
        %2420 = vmatprep.subr.mxu0 0.0
        %2421 = vmatpush1.msra.mxu0 0.0
        %2422 = vmatprep.subr.mxu0 0.0
        %2423 = vmatpush1.msra.mxu0 0.0
        %2424 = vmatprep.subr.mxu0 0.0
        %2425 = vmatpush1.msra.mxu0 0.0
        %2426 = vmatprep.subr.mxu0 0.0
        %2427 = vmatpush1.msra.mxu0 0.0
        %2428 = vmatprep.subr.mxu0 0.0
        %2429 = vmatpush1.msra.mxu0 0.0
        %2430 = vmatprep.subr.mxu0 0.0
        %2431 = vmatpush1.msra.mxu0 0.0
        %2432 = vmatprep.subr.mxu0 0.0
        %2433 = vmatpush1.msra.mxu0 0.0
        %2434 = vmatprep.subr.mxu0 0.0
        %2435 = vmatpush1.msra.mxu0 0.0
        %2436 = vmatprep.subr.mxu0 0.0
        %2437 = vmatpush1.msra.mxu0 0.0
        %2438 = vmatprep.subr.mxu0 0.0
        %2439 = vmatpush1.msra.mxu0 0.0
        %2440 = vmatprep.subr.mxu0 0.0
        %2441 = vmatpush1.msra.mxu0 0.0
        %2442 = vmatprep.mubr.f32.mxu0 0.0
        %2443 = vmatmul.mubr.f32.gmra.mrb[0].mxu0 %v2358
        %v2444 = vpop.f32.mrb[0].mxu0
        %v2445 = vadd.f32 0.0, %v2444
        %v2446 = vpop.f32.mrb[0].mxu0
        %2447 = vmatprep.mubr.f32.mxu0 0.0
        %2448 = vmatmul.mubr.f32.gmra.mrb[0].mxu0 %v2359
        %v2449 = vpop.f32.mrb[0].mxu0
        %v2450 = vadd.f32 0.0, %v2449
        %v2451 = vpop.f32.mrb[0].mxu0
        %2452 = vmatprep.mubr.f32.mxu0 0.0
        %2453 = vmatmul.mubr.f32.gmra.mrb[0].mxu0 %v2360
        %v2454 = vpop.f32.mrb[0].mxu0
        %v2455 = vadd.f32 0.0, %v2454
        %v2456 = vpop.f32.mrb[0].mxu0
        %2457 = vmatprep.mubr.f32.mxu0 0.0
        %2458 = vmatmul.mubr.f32.gmra.mrb[0].mxu0 %v2361
        %v2459 = vpop.f32.mrb[0].mxu0
        %v2460 = vadd.f32 0.0, %v2459
        %v2461 = vpop.f32.mrb[0].mxu0
        %2462 = vdwg.mxu0
        %v2463 = vlaneseq
        %v2464 = vshrl.u32 %v2463, 7
        %v2465 = vsub.s32 4, %v2464
        %v2466 = vrot.slane %v1490, %v2465
        %v2467 = vmul.f32 %v2445, %v2466
        %v2468 = vmul.f32 %v2450, %v2466
        %v2469 = vmul.f32 %v2455, %v2466
        %v2470 = vmul.f32 %v2460, %v2466
        %v2471 = vlaneseq
        %v2472 = vshrl.u32 %v2471, 7
        %v2473 = vsub.s32 5, %v2472
        %v2474 = vrot.slane %v1490, %v2473
        %v2475 = vadd.f32 %v2467, %v2474
        %v2476 = vadd.f32 %v2468, %v2474
        %v2477 = vadd.f32 %v2469, %v2474
        %v2478 = vadd.f32 %v2470, %v2474
        %v2479 = vadd.f32 %v2475, %v2476
        %v2480 = vadd.f32 %v2479, %v2477
        %v2481 = vadd.f32 %v2480, %v2478
        %v2482 = vrot.slane %v2481, 4
        %v2483 = vadd.f32 %v2481, %v2482
        %v2484 = vrot.slane %v2483, 2
        %v2485 = vadd.f32 %v2483, %v2484
        %v2486 = vrot.slane %v2485, 1
        %v2487 = vadd.f32 %v2485, %v2486
        %v2488 = vrcp.pop 32.0
        %v2489 = vmul.f32 %v2487, %v2488
        %v2490 = vld [vmem:[#allocation11] sm:$0xff]
        %v2491 = vld [vmem:[#allocation11 + $0x8] sm:$0xff]
        %v2492 = vld [vmem:[#allocation11 + $0x10] sm:$0xff]
        %v2493 = vld [vmem:[#allocation11 + $0x18] sm:$0xff]
        %v2494 = vld [vmem:[#allocation11 + $0x20] sm:$0xff]
        %v2495 = vld [vmem:[#allocation11 + $0x28] sm:$0xff]
        %v2496 = vld [vmem:[#allocation11 + $0x30] sm:$0xff]
        %v2497 = vld [vmem:[#allocation11 + $0x38] sm:$0xff]
        %v2498 = vld [vmem:[#allocation11 + $0x40] sm:$0xff]
        %v2499 = vld [vmem:[#allocation11 + $0x48] sm:$0xff]
        %v2500 = vld [vmem:[#allocation11 + $0x50] sm:$0xff]
        %v2501 = vld [vmem:[#allocation11 + $0x58] sm:$0xff]
        %v2502 = vld [vmem:[#allocation11 + $0x60] sm:$0xff]
        %v2503 = vld [vmem:[#allocation11 + $0x68] sm:$0xff]
        %v2504 = vld [vmem:[#allocation11 + $0x70] sm:$0xff]
        %v2505 = vld [vmem:[#allocation11 + $0x78] sm:$0xff]
        %v2507 = vrot.slane %v1490, 6
        %2509 = vmatprep.subr.mxu0 0.0
        %2510 = vmatpush1.msra.mxu0 %v2490
        %2511 = vmatprep.subr.mxu0 0.0
        %2512 = vmatpush1.msra.mxu0 %v2491
        %2513 = vmatprep.subr.mxu0 0.0
        %2514 = vmatpush1.msra.mxu0 %v2492
        %2515 = vmatprep.subr.mxu0 0.0
        %2516 = vmatpush1.msra.mxu0 %v2493
        %2517 = vmatprep.subr.mxu0 0.0
        %2518 = vmatpush1.msra.mxu0 %v2494
        %2519 = vmatprep.subr.mxu0 0.0
        %2520 = vmatpush1.msra.mxu0 %v2495
        %2521 = vmatprep.subr.mxu0 0.0
        %2522 = vmatpush1.msra.mxu0 %v2496
        %2523 = vmatprep.subr.mxu0 0.0
        %2524 = vmatpush1.msra.mxu0 %v2497
        %2525 = vmatprep.subr.mxu0 0.0
        %2526 = vmatpush1.msra.mxu0 %v2498
        %2527 = vmatprep.subr.mxu0 0.0
        %2528 = vmatpush1.msra.mxu0 %v2499
        %2529 = vmatprep.subr.mxu0 0.0
        %2530 = vmatpush1.msra.mxu0 %v2500
        %2531 = vmatprep.subr.mxu0 0.0
        %2532 = vmatpush1.msra.mxu0 %v2501
        %2533 = vmatprep.subr.mxu0 0.0
        %2534 = vmatpush1.msra.mxu0 %v2502
        %2535 = vmatprep.subr.mxu0 0.0
        %2536 = vmatpush1.msra.mxu0 %v2503
        %2537 = vmatprep.subr.mxu0 0.0
        %2538 = vmatpush1.msra.mxu0 %v2504
        %2539 = vmatprep.subr.mxu0 0.0
        %2540 = vmatpush1.msra.mxu0 %v2505
        %2541 = vmatprep.subr.mxu0 0.0
        %2542 = vmatpush1.msra.mxu0 0.0
        %2543 = vmatprep.subr.mxu0 0.0
        %2544 = vmatpush1.msra.mxu0 0.0
        %2545 = vmatprep.subr.mxu0 0.0
        %2546 = vmatpush1.msra.mxu0 0.0
        %2547 = vmatprep.subr.mxu0 0.0
        %2548 = vmatpush1.msra.mxu0 0.0
        %2549 = vmatprep.subr.mxu0 0.0
        %2550 = vmatpush1.msra.mxu0 0.0
        %2551 = vmatprep.subr.mxu0 0.0
        %2552 = vmatpush1.msra.mxu0 0.0
        %2553 = vmatprep.subr.mxu0 0.0
        %2554 = vmatpush1.msra.mxu0 0.0
        %2555 = vmatprep.subr.mxu0 0.0
        %2556 = vmatpush1.msra.mxu0 0.0
        %2557 = vmatprep.subr.mxu0 0.0
        %2558 = vmatpush1.msra.mxu0 0.0
        %2559 = vmatprep.subr.mxu0 0.0
        %2560 = vmatpush1.msra.mxu0 0.0
        %2561 = vmatprep.subr.mxu0 0.0
        %2562 = vmatpush1.msra.mxu0 0.0
        %2563 = vmatprep.subr.mxu0 0.0
        %2564 = vmatpush1.msra.mxu0 0.0
        %2565 = vmatprep.subr.mxu0 0.0
        %2566 = vmatpush1.msra.mxu0 0.0
        %2567 = vmatprep.subr.mxu0 0.0
        %2568 = vmatpush1.msra.mxu0 0.0
        %2569 = vmatprep.subr.mxu0 0.0
        %2570 = vmatpush1.msra.mxu0 0.0
        %2571 = vmatprep.subr.mxu0 0.0
        %2572 = vmatpush1.msra.mxu0 0.0
        %2573 = vmatprep.mubr.f32.mxu0 0.0
        %2574 = vmatmul.mubr.f32.gmra.mrb[0].mxu0 %v2489
        %v2575 = vpop.f32.mrb[0].mxu0
        %v2576 = vadd.f32 %v2507, %v2575
        %v2577 = vpop.f32.mrb[0].mxu0
        %2578 = vdwg.mxu0
        %v2579 = vxor.u32 %v2576, 2147483648
        %v2580 = vmul.f32 %v2579, 1.442695
        %v2581 = vpow.pop %v2580
        %v2582 = vadd.f32 %v2581, 1.0
        %v2583 = vrcp.pop %v2582
        %v2584 = vmul.f32 1.0, %v2583
        %v2585 = vmul.f32 %v2576, %v2584
        %v2586 = vld [vmem:[%s7] sm:$0xff]
        %v2587 = vld [vmem:[%s7 + $0x8] sm:$0xff]
        %v2588 = vld [vmem:[%s7 + $0x10] sm:$0xff]
        %v2589 = vld [vmem:[%s7 + $0x18] sm:$0xff]
        %v2590 = vld [vmem:[%s7 + $0x20] sm:$0xff]
        %v2591 = vld [vmem:[%s7 + $0x28] sm:$0xff]
        %v2592 = vld [vmem:[%s7 + $0x30] sm:$0xff]
        %v2593 = vld [vmem:[%s7 + $0x38] sm:$0xff]
        %v2594 = vld [vmem:[%s7 + $0x40] sm:$0xff]
        %v2595 = vld [vmem:[%s7 + $0x48] sm:$0xff]
        %v2596 = vld [vmem:[%s7 + $0x50] sm:$0xff]
        %v2597 = vld [vmem:[%s7 + $0x58] sm:$0xff]
        %v2598 = vld [vmem:[%s7 + $0x60] sm:$0xff]
        %v2599 = vld [vmem:[%s7 + $0x68] sm:$0xff]
        %v2600 = vld [vmem:[%s7 + $0x70] sm:$0xff]
        %v2601 = vld [vmem:[%s7 + $0x78] sm:$0xff]
        %v2602 = vrot.slane %v1490, 7
        %2604 = vmatprep.subr.mxu0 0.0
        %2605 = vmatpush1.msra.mxu0 %v2586
        %2606 = vmatprep.subr.mxu0 0.0
        %2607 = vmatpush1.msra.mxu0 %v2587
        %2608 = vmatprep.subr.mxu0 0.0
        %2609 = vmatpush1.msra.mxu0 %v2588
        %2610 = vmatprep.subr.mxu0 0.0
        %2611 = vmatpush1.msra.mxu0 %v2589
        %2612 = vmatprep.subr.mxu0 0.0
        %2613 = vmatpush1.msra.mxu0 %v2590
        %2614 = vmatprep.subr.mxu0 0.0
        %2615 = vmatpush1.msra.mxu0 %v2591
        %2616 = vmatprep.subr.mxu0 0.0
        %2617 = vmatpush1.msra.mxu0 %v2592
        %2618 = vmatprep.subr.mxu0 0.0
        %2619 = vmatpush1.msra.mxu0 %v2593
        %2620 = vmatprep.subr.mxu0 0.0
        %2621 = vmatpush1.msra.mxu0 %v2594
        %2622 = vmatprep.subr.mxu0 0.0
        %2623 = vmatpush1.msra.mxu0 %v2595
        %2624 = vmatprep.subr.mxu0 0.0
        %2625 = vmatpush1.msra.mxu0 %v2596
        %2626 = vmatprep.subr.mxu0 0.0
        %2627 = vmatpush1.msra.mxu0 %v2597
        %2628 = vmatprep.subr.mxu0 0.0
        %2629 = vmatpush1.msra.mxu0 %v2598
        %2630 = vmatprep.subr.mxu0 0.0
        %2631 = vmatpush1.msra.mxu0 %v2599
        %2632 = vmatprep.subr.mxu0 0.0
        %2633 = vmatpush1.msra.mxu0 %v2600
        %2634 = vmatprep.subr.mxu0 0.0
        %2635 = vmatpush1.msra.mxu0 %v2601
        %2636 = vmatprep.subr.mxu0 0.0
        %2637 = vmatpush1.msra.mxu0 0.0
        %2638 = vmatprep.subr.mxu0 0.0
        %2639 = vmatpush1.msra.mxu0 0.0
        %2640 = vmatprep.subr.mxu0 0.0
        %2641 = vmatpush1.msra.mxu0 0.0
        %2642 = vmatprep.subr.mxu0 0.0
        %2643 = vmatpush1.msra.mxu0 0.0
        %2644 = vmatprep.subr.mxu0 0.0
        %2645 = vmatpush1.msra.mxu0 0.0
        %2646 = vmatprep.subr.mxu0 0.0
        %2647 = vmatpush1.msra.mxu0 0.0
        %2648 = vmatprep.subr.mxu0 0.0
        %2649 = vmatpush1.msra.mxu0 0.0
        %2650 = vmatprep.subr.mxu0 0.0
        %2651 = vmatpush1.msra.mxu0 0.0
        %2652 = vmatprep.subr.mxu0 0.0
        %2653 = vmatpush1.msra.mxu0 0.0
        %2654 = vmatprep.subr.mxu0 0.0
        %2655 = vmatpush1.msra.mxu0 0.0
        %2656 = vmatprep.subr.mxu0 0.0
        %2657 = vmatpush1.msra.mxu0 0.0
        %2658 = vmatprep.subr.mxu0 0.0
        %2659 = vmatpush1.msra.mxu0 0.0
        %2660 = vmatprep.subr.mxu0 0.0
        %2661 = vmatpush1.msra.mxu0 0.0
        %2662 = vmatprep.subr.mxu0 0.0
        %2663 = vmatpush1.msra.mxu0 0.0
        %2664 = vmatprep.subr.mxu0 0.0
        %2665 = vmatpush1.msra.mxu0 0.0
        %2666 = vmatprep.subr.mxu0 0.0
        %2667 = vmatpush1.msra.mxu0 0.0
        %2668 = vmatprep.mubr.f32.mxu0 0.0
        %2669 = vmatmul.mubr.f32.gmra.mrb[0].mxu0 %v2585
        %v2670 = vpop.f32.mrb[0].mxu0
        %v2671 = vadd.f32 %v2602, %v2670
        %v2672 = vpop.f32.mrb[0].mxu0
        %2673 = vdwg.mxu0
        %v2674 = vxor.u32 %v2671, 2147483648
        %v2675 = vmul.f32 %v2674, 1.442695
        %v2676 = vpow.pop %v2675
        %v2677 = vadd.f32 %v2676, 1.0
        %v2678 = vrcp.pop %v2677
        %v2679 = vmul.f32 1.0, %v2678
        %2680 = vmatprep.subr.mxu0 0.0
        %2681 = vmatpush1.msra.mxu0 %v1593
        %2682 = vmatprep.subr.mxu0 0.0
        %2683 = vmatpush1.msra.mxu0 %v1599
        %2684 = vmatprep.subr.mxu0 0.0
        %2685 = vmatpush1.msra.mxu0 %v1605
        %2686 = vmatprep.subr.mxu0 0.0
        %2687 = vmatpush1.msra.mxu0 %v1611
        %2688 = vmatprep.subr.mxu0 0.0
        %2689 = vmatpush1.msra.mxu0 %v1617
        %2690 = vmatprep.subr.mxu0 0.0
        %2691 = vmatpush1.msra.mxu0 %v1623
        %2692 = vmatprep.subr.mxu0 0.0
        %2693 = vmatpush1.msra.mxu0 %v1629
        %2694 = vmatprep.subr.mxu0 0.0
        %2695 = vmatpush1.msra.mxu0 %v1635
        %2696 = vmatprep.subr.mxu0 0.0
        %2697 = vmatpush1.msra.mxu0 0.0
        %2698 = vmatprep.subr.mxu0 0.0
        %2699 = vmatpush1.msra.mxu0 0.0
        %2700 = vmatprep.subr.mxu0 0.0
        %2701 = vmatpush1.msra.mxu0 0.0
        %2702 = vmatprep.subr.mxu0 0.0
        %2703 = vmatpush1.msra.mxu0 0.0
        %2704 = vmatprep.subr.mxu0 0.0
        %2705 = vmatpush1.msra.mxu0 0.0
        %2706 = vmatprep.subr.mxu0 0.0
        %2707 = vmatpush1.msra.mxu0 0.0
        %2708 = vmatprep.subr.mxu0 0.0
        %2709 = vmatpush1.msra.mxu0 0.0
        %2710 = vmatprep.subr.mxu0 0.0
        %2711 = vmatpush1.msra.mxu0 0.0
        %2712 = vmatprep.subr.mxu0 0.0
        %2713 = vmatpush1.msra.mxu0 0.0
        %2714 = vmatprep.subr.mxu0 0.0
        %2715 = vmatpush1.msra.mxu0 0.0
        %2716 = vmatprep.subr.mxu0 0.0
        %2717 = vmatpush1.msra.mxu0 0.0
        %2718 = vmatprep.subr.mxu0 0.0
        %2719 = vmatpush1.msra.mxu0 0.0
        %2720 = vmatprep.subr.mxu0 0.0
        %2721 = vmatpush1.msra.mxu0 0.0
        %2722 = vmatprep.subr.mxu0 0.0
        %2723 = vmatpush1.msra.mxu0 0.0
        %2724 = vmatprep.subr.mxu0 0.0
        %2725 = vmatpush1.msra.mxu0 0.0
        %2726 = vmatprep.subr.mxu0 0.0
        %2727 = vmatpush1.msra.mxu0 0.0
        %2728 = vmatprep.subr.mxu0 0.0
        %2729 = vmatpush1.msra.mxu0 0.0
        %2730 = vmatprep.subr.mxu0 0.0
        %2731 = vmatpush1.msra.mxu0 0.0
        %2732 = vmatprep.subr.mxu0 0.0
        %2733 = vmatpush1.msra.mxu0 0.0
        %2734 = vmatprep.subr.mxu0 0.0
        %2735 = vmatpush1.msra.mxu0 0.0
        %2736 = vmatprep.subr.mxu0 0.0
        %2737 = vmatpush1.msra.mxu0 0.0
        %2738 = vmatprep.subr.mxu0 0.0
        %2739 = vmatpush1.msra.mxu0 0.0
        %2740 = vmatprep.subr.mxu0 0.0
        %2741 = vmatpush1.msra.mxu0 0.0
        %2742 = vmatprep.subr.mxu0 0.0
        %2743 = vmatpush1.msra.mxu0 0.0
        %2744 = vmatprep.mubr.f32.mxu0 0.0
        %2745 = vmatmul.mubr.f32.gmra.mrb[0].mxu0 %v1832
        %v2746 = vpop.f32.mrb[0].mxu0
        %v2747 = vadd.f32 0.0, %v2746
        %v2748 = vpop.f32.mrb[0].mxu0
        %2749 = vmatprep.mubr.f32.mxu0 0.0
        %2750 = vmatmul.mubr.f32.gmra.mrb[0].mxu0 %v1835
        %v2751 = vpop.f32.mrb[0].mxu0
        %v2752 = vadd.f32 0.0, %v2751
        %v2753 = vpop.f32.mrb[0].mxu0
        %2754 = vmatprep.mubr.f32.mxu0 0.0
        %2755 = vmatmul.mubr.f32.gmra.mrb[0].mxu0 %v1838
        %v2756 = vpop.f32.mrb[0].mxu0
        %v2757 = vadd.f32 0.0, %v2756
        %v2758 = vpop.f32.mrb[0].mxu0
        %2759 = vmatprep.mubr.f32.mxu0 0.0
        %2760 = vmatmul.mubr.f32.gmra.mrb[0].mxu0 %v1841
        %v2761 = vpop.f32.mrb[0].mxu0
        %v2762 = vadd.f32 0.0, %v2761
        %v2763 = vpop.f32.mrb[0].mxu0
        %2764 = vdwg.mxu0
        %v2765 = vlaneseq
        %v2766 = vshrl.u32 %v2765, 7
        %v2767 = vsub.s32 0, %v2766
        %v2768 = vrot.slane %v1491, %v2767
        %v2769 = vmul.f32 %v2747, %v2768
        %v2770 = vmul.f32 %v2752, %v2768
        %v2771 = vmul.f32 %v2757, %v2768
        %v2772 = vmul.f32 %v2762, %v2768
        %v2773 = vlaneseq
        %v2774 = vshrl.u32 %v2773, 7
        %v2775 = vsub.s32 1, %v2774
        %v2776 = vrot.slane %v1491, %v2775
        %v2777 = vadd.f32 %v2769, %v2776
        %v2778 = vadd.f32 %v2770, %v2776
        %v2779 = vadd.f32 %v2771, %v2776
        %v2780 = vadd.f32 %v2772, %v2776
        %v2781 = vlaneseq
        %v2782 = vshrl.u32 %v2781, 7
        %v2783 = vsub.s32 0, %v2782
        %v2784 = vrot.slane %v2679, %v2783
        %v2785 = vmul.f32 %v2475, %v2784
        %v2786 = vmul.f32 %v2476, %v2784
        %v2787 = vmul.f32 %v2477, %v2784
        %v2788 = vmul.f32 %v2478, %v2784
        %v2789 = vadd.f32 %v2785, %v2777
        %v2790 = vadd.f32 %v2786, %v2778
        %v2791 = vadd.f32 %v2787, %v2779
        %v2792 = vadd.f32 %v2788, %v2780
        %v2793 = vxor.u32 %v2789, 2147483648
        %v2794 = vxor.u32 %v2790, 2147483648
        %v2795 = vxor.u32 %v2791, 2147483648
        %v2796 = vxor.u32 %v2792, 2147483648
        %v2797 = vmul.f32 %v2793, 1.442695
        %v2798 = vpow.pop %v2797
        %v2799 = vmul.f32 %v2794, 1.442695
        %v2800 = vpow.pop %v2799
        %v2801 = vmul.f32 %v2795, 1.442695
        %v2802 = vpow.pop %v2801
        %v2803 = vmul.f32 %v2796, 1.442695
        %v2804 = vpow.pop %v2803
        %v2805 = vadd.f32 %v2798, 1.0
        %v2806 = vadd.f32 %v2800, 1.0
        %v2807 = vadd.f32 %v2802, 1.0
        %v2808 = vadd.f32 %v2804, 1.0
        %v2809 = vrcp.pop %v2805
        %v2810 = vmul.f32 1.0, %v2809
        %v2811 = vrcp.pop %v2806
        %v2812 = vmul.f32 1.0, %v2811
        %v2813 = vrcp.pop %v2807
        %v2814 = vmul.f32 1.0, %v2813
        %v2815 = vrcp.pop %v2808
        %v2816 = vmul.f32 1.0, %v2815
        %v2817 = vmul.f32 %v2789, %v2810
        %v2818 = vmul.f32 %v2790, %v2812
        %v2819 = vmul.f32 %v2791, %v2814
        %v2820 = vmul.f32 %v2792, %v2816
        %s2821 = scalar_lea.vmem [#allocation13], 16
        %v2822 = vld [vmem:[%s2821] sm:$0xff]
        %v2823 = vld [vmem:[%s2821 + $0x8] sm:$0xff]
        %s2824 = scalar_lea.vmem [#allocation7], 256
        %v2825 = vld [vmem:[%s2824] sm:$0xff]
        %v2826 = vld [vmem:[%s2824 + $0x8] sm:$0xff]
        %v2827 = vld [vmem:[%s2824 + $0x10] sm:$0xff]
        %v2828 = vld [vmem:[%s2824 + $0x18] sm:$0xff]
        %v2829 = vld [vmem:[%s2824 + $0x20] sm:$0xff]
        %v2830 = vld [vmem:[%s2824 + $0x28] sm:$0xff]
        %v2831 = vld [vmem:[%s2824 + $0x30] sm:$0xff]
        %v2832 = vld [vmem:[%s2824 + $0x38] sm:$0xff]
        %v2833 = vld [vmem:[%s2824 + $0x40] sm:$0xff]
        %v2834 = vld [vmem:[%s2824 + $0x48] sm:$0xff]
        %v2835 = vld [vmem:[%s2824 + $0x50] sm:$0xff]
        %v2836 = vld [vmem:[%s2824 + $0x58] sm:$0xff]
        %v2837 = vld [vmem:[%s2824 + $0x60] sm:$0xff]
        %v2838 = vld [vmem:[%s2824 + $0x68] sm:$0xff]
        %v2839 = vld [vmem:[%s2824 + $0x70] sm:$0xff]
        %v2840 = vld [vmem:[%s2824 + $0x78] sm:$0xff]
        %v2841 = vld [vmem:[%s2824 + $0x80] sm:$0xff]
        %v2842 = vld [vmem:[%s2824 + $0x88] sm:$0xff]
        %v2843 = vld [vmem:[%s2824 + $0x90] sm:$0xff]
        %v2844 = vld [vmem:[%s2824 + $0x98] sm:$0xff]
        %v2845 = vld [vmem:[%s2824 + $0xa0] sm:$0xff]
        %v2846 = vld [vmem:[%s2824 + $0xa8] sm:$0xff]
        %v2847 = vld [vmem:[%s2824 + $0xb0] sm:$0xff]
        %v2848 = vld [vmem:[%s2824 + $0xb8] sm:$0xff]
        %v2849 = vld [vmem:[%s2824 + $0xc0] sm:$0xff]
        %v2850 = vld [vmem:[%s2824 + $0xc8] sm:$0xff]
        %v2851 = vld [vmem:[%s2824 + $0xd0] sm:$0xff]
        %v2852 = vld [vmem:[%s2824 + $0xd8] sm:$0xff]
        %v2853 = vld [vmem:[%s2824 + $0xe0] sm:$0xff]
        %v2854 = vld [vmem:[%s2824 + $0xe8] sm:$0xff]
        %v2855 = vld [vmem:[%s2824 + $0xf0] sm:$0xff]
        %v2856 = vld [vmem:[%s2824 + $0xf8] sm:$0xff]
        %2857 = vmatprep.subr.mxu0 %v2826
        %2858 = vmatpush1.msra.mxu0 %v2825
        %2859 = vmatprep.subr.mxu0 %v2828
        %2860 = vmatpush1.msra.mxu0 %v2827
        %2861 = vmatprep.subr.mxu0 %v2830
        %2862 = vmatpush1.msra.mxu0 %v2829
        %2863 = vmatprep.subr.mxu0 %v2832
        %2864 = vmatpush1.msra.mxu0 %v2831
        %2865 = vmatprep.subr.mxu0 %v2834
        %2866 = vmatpush1.msra.mxu0 %v2833
        %2867 = vmatprep.subr.mxu0 %v2836
        %2868 = vmatpush1.msra.mxu0 %v2835
        %2869 = vmatprep.subr.mxu0 %v2838
        %2870 = vmatpush1.msra.mxu0 %v2837
        %2871 = vmatprep.subr.mxu0 %v2840
        %2872 = vmatpush1.msra.mxu0 %v2839
        %2873 = vmatprep.subr.mxu0 %v2842
        %2874 = vmatpush1.msra.mxu0 %v2841
        %2875 = vmatprep.subr.mxu0 %v2844
        %2876 = vmatpush1.msra.mxu0 %v2843
        %2877 = vmatprep.subr.mxu0 %v2846
        %2878 = vmatpush1.msra.mxu0 %v2845
        %2879 = vmatprep.subr.mxu0 %v2848
        %2880 = vmatpush1.msra.mxu0 %v2847
        %2881 = vmatprep.subr.mxu0 %v2850
        %2882 = vmatpush1.msra.mxu0 %v2849
        %2883 = vmatprep.subr.mxu0 %v2852
        %2884 = vmatpush1.msra.mxu0 %v2851
        %2885 = vmatprep.subr.mxu0 %v2854
        %2886 = vmatpush1.msra.mxu0 %v2853
        %2887 = vmatprep.subr.mxu0 %v2856
        %2888 = vmatpush1.msra.mxu0 %v2855
        %2889 = vmatprep.subr.mxu0 0.0
        %2890 = vmatpush1.msra.mxu0 0.0
        %2891 = vmatprep.subr.mxu0 0.0
        %2892 = vmatpush1.msra.mxu0 0.0
        %2893 = vmatprep.subr.mxu0 0.0
        %2894 = vmatpush1.msra.mxu0 0.0
        %2895 = vmatprep.subr.mxu0 0.0
        %2896 = vmatpush1.msra.mxu0 0.0
        %2897 = vmatprep.subr.mxu0 0.0
        %2898 = vmatpush1.msra.mxu0 0.0
        %2899 = vmatprep.subr.mxu0 0.0
        %2900 = vmatpush1.msra.mxu0 0.0
        %2901 = vmatprep.subr.mxu0 0.0
        %2902 = vmatpush1.msra.mxu0 0.0
        %2903 = vmatprep.subr.mxu0 0.0
        %2904 = vmatpush1.msra.mxu0 0.0
        %2905 = vmatprep.subr.mxu0 0.0
        %2906 = vmatpush1.msra.mxu0 0.0
        %2907 = vmatprep.subr.mxu0 0.0
        %2908 = vmatpush1.msra.mxu0 0.0
        %2909 = vmatprep.subr.mxu0 0.0
        %2910 = vmatpush1.msra.mxu0 0.0
        %2911 = vmatprep.subr.mxu0 0.0
        %2912 = vmatpush1.msra.mxu0 0.0
        %2913 = vmatprep.subr.mxu0 0.0
        %2914 = vmatpush1.msra.mxu0 0.0
        %2915 = vmatprep.subr.mxu0 0.0
        %2916 = vmatpush1.msra.mxu0 0.0
        %2917 = vmatprep.subr.mxu0 0.0
        %2918 = vmatpush1.msra.mxu0 0.0
        %2919 = vmatprep.subr.mxu0 0.0
        %2920 = vmatpush1.msra.mxu0 0.0
        %2921 = vmatprep.mubr.f32.mxu0 0.0
        %2922 = vmatmul.mubr.f32.gmra.mrb[0].mxu0 %v2817
        %v2923 = vpop.f32.mrb[0].mxu0
        %v2924 = vadd.f32 0.0, %v2923
        %v2925 = vpop.f32.mrb[0].mxu0
        %v2926 = vadd.f32 0.0, %v2925
        %2927 = vmatprep.mubr.f32.mxu0 0.0
        %2928 = vmatmul.mubr.f32.gmra.mrb[0].mxu0 %v2818
        %v2929 = vpop.f32.mrb[0].mxu0
        %v2930 = vadd.f32 0.0, %v2929
        %v2931 = vpop.f32.mrb[0].mxu0
        %v2932 = vadd.f32 0.0, %v2931
        %2933 = vmatprep.mubr.f32.mxu0 0.0
        %2934 = vmatmul.mubr.f32.gmra.mrb[0].mxu0 %v2819
        %v2935 = vpop.f32.mrb[0].mxu0
        %v2936 = vadd.f32 0.0, %v2935
        %v2937 = vpop.f32.mrb[0].mxu0
        %v2938 = vadd.f32 0.0, %v2937
        %2939 = vmatprep.mubr.f32.mxu0 0.0
        %2940 = vmatmul.mubr.f32.gmra.mrb[0].mxu0 %v2820
        %v2941 = vpop.f32.mrb[0].mxu0
        %v2942 = vadd.f32 0.0, %v2941
        %v2943 = vpop.f32.mrb[0].mxu0
        %v2944 = vadd.f32 0.0, %v2943
        %2945 = vdwg.mxu0
        %v2946 = vlaneseq
        %v2947 = vshrl.u32 %v2946, 7
        %v2948 = vsub.s32 0, %v2947
        %v2949 = vrot.slane %v2822, %v2948
        %v2950 = vmul.f32 %v2924, %v2949
        %v2951 = vmul.f32 %v2930, %v2949
        %v2952 = vmul.f32 %v2936, %v2949
        %v2953 = vmul.f32 %v2942, %v2949
        %v2954 = vlaneseq
        %v2955 = vshrl.u32 %v2954, 7
        %v2956 = vsub.s32 1, %v2955
        %v2957 = vrot.slane %v2822, %v2956
        %v2958 = vadd.f32 %v2950, %v2957
        %v2959 = vadd.f32 %v2951, %v2957
        %v2960 = vadd.f32 %v2952, %v2957
        %v2961 = vadd.f32 %v2953, %v2957
        %v2962 = vxor.u32 %v2958, 2147483648
        %v2963 = vxor.u32 %v2959, 2147483648
        %v2964 = vxor.u32 %v2960, 2147483648
        %v2965 = vxor.u32 %v2961, 2147483648
        %v2966 = vmul.f32 %v2962, 1.442695
        %v2967 = vpow.pop %v2966
        %v2968 = vmul.f32 %v2963, 1.442695
        %v2969 = vpow.pop %v2968
        %v2970 = vmul.f32 %v2964, 1.442695
        %v2971 = vpow.pop %v2970
        %v2972 = vmul.f32 %v2965, 1.442695
        %v2973 = vpow.pop %v2972
        %v2974 = vadd.f32 %v2967, 1.0
        %v2975 = vadd.f32 %v2969, 1.0
        %v2976 = vadd.f32 %v2971, 1.0
        %v2977 = vadd.f32 %v2973, 1.0
        %v2978 = vrcp.pop %v2974
        %v2979 = vmul.f32 1.0, %v2978
        %v2980 = vrcp.pop %v2975
        %v2981 = vmul.f32 1.0, %v2980
        %v2982 = vrcp.pop %v2976
        %v2983 = vmul.f32 1.0, %v2982
        %v2984 = vrcp.pop %v2977
        %v2985 = vmul.f32 1.0, %v2984
        %v2986 = vmul.f32 %v2958, %v2979
        %v2987 = vmul.f32 %v2959, %v2981
        %v2988 = vmul.f32 %v2960, %v2983
        %v2989 = vmul.f32 %v2961, %v2985
        %vm2990 = vcmask 261120
        %v2991 = vsel %vm2990, %v999, 0
        %v2993 = vsel %vm2990, %v1000, 0
        %2995 = vmatprep.subr.mxu0 0.0
        %2996 = vmatpush1.msra.mxu0 %v2986
        %2997 = vmatprep.subr.mxu0 0.0
        %2998 = vmatpush1.msra.mxu0 %v2987
        %2999 = vmatprep.subr.mxu0 0.0
        %3000 = vmatpush1.msra.mxu0 %v2988
        %3001 = vmatprep.subr.mxu0 0.0
        %3002 = vmatpush1.msra.mxu0 %v2989
        %3003 = vmatprep.subr.mxu0 0.0
        %3004 = vmatpush1.msra.mxu0 0.0
        %3005 = vmatprep.subr.mxu0 0.0
        %3006 = vmatpush1.msra.mxu0 0.0
        %3007 = vmatprep.subr.mxu0 0.0
        %3008 = vmatpush1.msra.mxu0 0.0
        %3009 = vmatprep.subr.mxu0 0.0
        %3010 = vmatpush1.msra.mxu0 0.0
        %3011 = vmatprep.subr.mxu0 0.0
        %3012 = vmatpush1.msra.mxu0 0.0
        %3013 = vmatprep.subr.mxu0 0.0
        %3014 = vmatpush1.msra.mxu0 0.0
        %3015 = vmatprep.subr.mxu0 0.0
        %3016 = vmatpush1.msra.mxu0 0.0
        %3017 = vmatprep.subr.mxu0 0.0
        %3018 = vmatpush1.msra.mxu0 0.0
        %3019 = vmatprep.subr.mxu0 0.0
        %3020 = vmatpush1.msra.mxu0 0.0
        %3021 = vmatprep.subr.mxu0 0.0
        %3022 = vmatpush1.msra.mxu0 0.0
        %3023 = vmatprep.subr.mxu0 0.0
        %3024 = vmatpush1.msra.mxu0 0.0
        %3025 = vmatprep.subr.mxu0 0.0
        %3026 = vmatpush1.msra.mxu0 0.0
        %3027 = vmatprep.subr.mxu0 0.0
        %3028 = vmatpush1.msra.mxu0 0.0
        %3029 = vmatprep.subr.mxu0 0.0
        %3030 = vmatpush1.msra.mxu0 0.0
        %3031 = vmatprep.subr.mxu0 0.0
        %3032 = vmatpush1.msra.mxu0 0.0
        %3033 = vmatprep.subr.mxu0 0.0
        %3034 = vmatpush1.msra.mxu0 0.0
        %3035 = vmatprep.subr.mxu0 0.0
        %3036 = vmatpush1.msra.mxu0 0.0
        %3037 = vmatprep.subr.mxu0 0.0
        %3038 = vmatpush1.msra.mxu0 0.0
        %3039 = vmatprep.subr.mxu0 0.0
        %3040 = vmatpush1.msra.mxu0 0.0
        %3041 = vmatprep.subr.mxu0 0.0
        %3042 = vmatpush1.msra.mxu0 0.0
        %3043 = vmatprep.subr.mxu0 0.0
        %3044 = vmatpush1.msra.mxu0 0.0
        %3045 = vmatprep.subr.mxu0 0.0
        %3046 = vmatpush1.msra.mxu0 0.0
        %3047 = vmatprep.subr.mxu0 0.0
        %3048 = vmatpush1.msra.mxu0 0.0
        %3049 = vmatprep.subr.mxu0 0.0
        %3050 = vmatpush1.msra.mxu0 0.0
        %3051 = vmatprep.subr.mxu0 0.0
        %3052 = vmatpush1.msra.mxu0 0.0
        %3053 = vmatprep.subr.mxu0 0.0
        %3054 = vmatpush1.msra.mxu0 0.0
        %3055 = vmatprep.subr.mxu0 0.0
        %3056 = vmatpush1.msra.mxu0 0.0
        %3057 = vmatprep.subr.mxu0 0.0
        %3058 = vmatpush1.msra.mxu0 0.0
        %3059 = vmatprep.mubr.f32.mxu0 0.0
        %3060 = vmatmul.mubr.f32.gmra.mrb[0].mxu0 %v2991
        %v3061 = vpop.f32.mrb[0].mxu0
        %v3062 = vadd.f32 0.0, %v3061
        %v3063 = vpop.f32.mrb[0].mxu0
        %3064 = vmatprep.mubr.f32.mxu0 0.0
        %3065 = vmatmul.mubr.f32.gmra.mrb[0].mxu0 %v2993
        %v3066 = vpop.f32.mrb[0].mxu0
        %v3067 = vadd.f32 0.0, %v3066
        %v3068 = vpop.f32.mrb[0].mxu0
        %3069 = vdwg.mxu0
        %s3070 = scalar_lea.vmem [#allocation8], 384
        %v3071 = vld [vmem:[%s3070] sm:$0xff]
        %v3072 = vld [vmem:[%s3070 + $0x8] sm:$0xff]
        %v3073 = vld [vmem:[%s3070 + $0x10] sm:$0xff]
        %v3074 = vld [vmem:[%s3070 + $0x18] sm:$0xff]
        %v3075 = vld [vmem:[%s3070 + $0x20] sm:$0xff]
        %v3076 = vld [vmem:[%s3070 + $0x28] sm:$0xff]
        %v3077 = vld [vmem:[%s3070 + $0x30] sm:$0xff]
        %v3078 = vld [vmem:[%s3070 + $0x38] sm:$0xff]
        %v3079 = vld [vmem:[%s3070 + $0x40] sm:$0xff]
        %v3080 = vld [vmem:[%s3070 + $0x48] sm:$0xff]
        %v3081 = vld [vmem:[%s3070 + $0x50] sm:$0xff]
        %v3082 = vld [vmem:[%s3070 + $0x58] sm:$0xff]
        %v3083 = vld [vmem:[%s3070 + $0x60] sm:$0xff]
        %v3084 = vld [vmem:[%s3070 + $0x68] sm:$0xff]
        %v3085 = vld [vmem:[%s3070 + $0x70] sm:$0xff]
        %v3086 = vld [vmem:[%s3070 + $0x78] sm:$0xff]
        %v3087 = vsel %vm2990, %v1160, 0
        %v3089 = vsel %vm2990, %v1161, 0
        %3091 = vmatprep.subr.mxu0 0.0
        %3092 = vmatpush1.msra.mxu0 %v2986
        %3093 = vmatprep.subr.mxu0 0.0
        %3094 = vmatpush1.msra.mxu0 %v2987
        %3095 = vmatprep.subr.mxu0 0.0
        %3096 = vmatpush1.msra.mxu0 %v2988
        %3097 = vmatprep.subr.mxu0 0.0
        %3098 = vmatpush1.msra.mxu0 %v2989
        %3099 = vmatprep.subr.mxu0 0.0
        %3100 = vmatpush1.msra.mxu0 0.0
        %3101 = vmatprep.subr.mxu0 0.0
        %3102 = vmatpush1.msra.mxu0 0.0
        %3103 = vmatprep.subr.mxu0 0.0
        %3104 = vmatpush1.msra.mxu0 0.0
        %3105 = vmatprep.subr.mxu0 0.0
        %3106 = vmatpush1.msra.mxu0 0.0
        %3107 = vmatprep.subr.mxu0 0.0
        %3108 = vmatpush1.msra.mxu0 0.0
        %3109 = vmatprep.subr.mxu0 0.0
        %3110 = vmatpush1.msra.mxu0 0.0
        %3111 = vmatprep.subr.mxu0 0.0
        %3112 = vmatpush1.msra.mxu0 0.0
        %3113 = vmatprep.subr.mxu0 0.0
        %3114 = vmatpush1.msra.mxu0 0.0
        %3115 = vmatprep.subr.mxu0 0.0
        %3116 = vmatpush1.msra.mxu0 0.0
        %3117 = vmatprep.subr.mxu0 0.0
        %3118 = vmatpush1.msra.mxu0 0.0
        %3119 = vmatprep.subr.mxu0 0.0
        %3120 = vmatpush1.msra.mxu0 0.0
        %3121 = vmatprep.subr.mxu0 0.0
        %3122 = vmatpush1.msra.mxu0 0.0
        %3123 = vmatprep.subr.mxu0 0.0
        %3124 = vmatpush1.msra.mxu0 0.0
        %3125 = vmatprep.subr.mxu0 0.0
        %3126 = vmatpush1.msra.mxu0 0.0
        %3127 = vmatprep.subr.mxu0 0.0
        %3128 = vmatpush1.msra.mxu0 0.0
        %3129 = vmatprep.subr.mxu0 0.0
        %3130 = vmatpush1.msra.mxu0 0.0
        %3131 = vmatprep.subr.mxu0 0.0
        %3132 = vmatpush1.msra.mxu0 0.0
        %3133 = vmatprep.subr.mxu0 0.0
        %3134 = vmatpush1.msra.mxu0 0.0
        %3135 = vmatprep.subr.mxu0 0.0
        %3136 = vmatpush1.msra.mxu0 0.0
        %3137 = vmatprep.subr.mxu0 0.0
        %3138 = vmatpush1.msra.mxu0 0.0
        %3139 = vmatprep.subr.mxu0 0.0
        %3140 = vmatpush1.msra.mxu0 0.0
        %3141 = vmatprep.subr.mxu0 0.0
        %3142 = vmatpush1.msra.mxu0 0.0
        %3143 = vmatprep.subr.mxu0 0.0
        %3144 = vmatpush1.msra.mxu0 0.0
        %3145 = vmatprep.subr.mxu0 0.0
        %3146 = vmatpush1.msra.mxu0 0.0
        %3147 = vmatprep.subr.mxu0 0.0
        %3148 = vmatpush1.msra.mxu0 0.0
        %3149 = vmatprep.subr.mxu0 0.0
        %3150 = vmatpush1.msra.mxu0 0.0
        %3151 = vmatprep.subr.mxu0 0.0
        %3152 = vmatpush1.msra.mxu0 0.0
        %3153 = vmatprep.subr.mxu0 0.0
        %3154 = vmatpush1.msra.mxu0 0.0
        %3155 = vmatprep.mubr.f32.mxu0 0.0
        %3156 = vmatmul.mubr.f32.gmra.mrb[0].mxu0 %v3087
        %v3157 = vpop.f32.mrb[0].mxu0
        %v3158 = vadd.f32 0.0, %v3157
        %v3159 = vpop.f32.mrb[0].mxu0
        %3160 = vmatprep.mubr.f32.mxu0 0.0
        %3161 = vmatmul.mubr.f32.gmra.mrb[0].mxu0 %v3089
        %v3162 = vpop.f32.mrb[0].mxu0
        %v3163 = vadd.f32 0.0, %v3162
        %v3164 = vpop.f32.mrb[0].mxu0
        %3165 = vdwg.mxu0
        %s3166 = scalar_lea.vmem [#allocation8], 512
        %v3167 = vld [vmem:[%s3166] sm:$0xff]
        %v3168 = vld [vmem:[%s3166 + $0x8] sm:$0xff]
        %v3169 = vld [vmem:[%s3166 + $0x10] sm:$0xff]
        %v3170 = vld [vmem:[%s3166 + $0x18] sm:$0xff]
        %v3171 = vld [vmem:[%s3166 + $0x20] sm:$0xff]
        %v3172 = vld [vmem:[%s3166 + $0x28] sm:$0xff]
        %v3173 = vld [vmem:[%s3166 + $0x30] sm:$0xff]
        %v3174 = vld [vmem:[%s3166 + $0x38] sm:$0xff]
        %v3175 = vld [vmem:[%s3166 + $0x40] sm:$0xff]
        %v3176 = vld [vmem:[%s3166 + $0x48] sm:$0xff]
        %v3177 = vld [vmem:[%s3166 + $0x50] sm:$0xff]
        %v3178 = vld [vmem:[%s3166 + $0x58] sm:$0xff]
        %v3179 = vld [vmem:[%s3166 + $0x60] sm:$0xff]
        %v3180 = vld [vmem:[%s3166 + $0x68] sm:$0xff]
        %v3181 = vld [vmem:[%s3166 + $0x70] sm:$0xff]
        %v3182 = vld [vmem:[%s3166 + $0x78] sm:$0xff]
        %3183 = vmatprep.subr.mxu0 0.0
        %3184 = vmatpush1.msra.mxu0 %v3167
        %3185 = vmatprep.subr.mxu0 0.0
        %3186 = vmatpush1.msra.mxu0 %v3168
        %3187 = vmatprep.subr.mxu0 0.0
        %3188 = vmatpush1.msra.mxu0 %v3169
        %3189 = vmatprep.subr.mxu0 0.0
        %3190 = vmatpush1.msra.mxu0 %v3170
        %3191 = vmatprep.subr.mxu0 0.0
        %3192 = vmatpush1.msra.mxu0 %v3171
        %3193 = vmatprep.subr.mxu0 0.0
        %3194 = vmatpush1.msra.mxu0 %v3172
        %3195 = vmatprep.subr.mxu0 0.0
        %3196 = vmatpush1.msra.mxu0 %v3173
        %3197 = vmatprep.subr.mxu0 0.0
        %3198 = vmatpush1.msra.mxu0 %v3174
        %3199 = vmatprep.subr.mxu0 0.0
        %3200 = vmatpush1.msra.mxu0 %v3175
        %3201 = vmatprep.subr.mxu0 0.0
        %3202 = vmatpush1.msra.mxu0 %v3176
        %3203 = vmatprep.subr.mxu0 0.0
        %3204 = vmatpush1.msra.mxu0 %v3177
        %3205 = vmatprep.subr.mxu0 0.0
        %3206 = vmatpush1.msra.mxu0 %v3178
        %3207 = vmatprep.subr.mxu0 0.0
        %3208 = vmatpush1.msra.mxu0 %v3179
        %3209 = vmatprep.subr.mxu0 0.0
        %3210 = vmatpush1.msra.mxu0 %v3180
        %3211 = vmatprep.subr.mxu0 0.0
        %3212 = vmatpush1.msra.mxu0 %v3181
        %3213 = vmatprep.subr.mxu0 0.0
        %3214 = vmatpush1.msra.mxu0 %v3182
        %3215 = vmatprep.subr.mxu0 0.0
        %3216 = vmatpush1.msra.mxu0 0.0
        %3217 = vmatprep.subr.mxu0 0.0
        %3218 = vmatpush1.msra.mxu0 0.0
        %3219 = vmatprep.subr.mxu0 0.0
        %3220 = vmatpush1.msra.mxu0 0.0
        %3221 = vmatprep.subr.mxu0 0.0
        %3222 = vmatpush1.msra.mxu0 0.0
        %3223 = vmatprep.subr.mxu0 0.0
        %3224 = vmatpush1.msra.mxu0 0.0
        %3225 = vmatprep.subr.mxu0 0.0
        %3226 = vmatpush1.msra.mxu0 0.0
        %3227 = vmatprep.subr.mxu0 0.0
        %3228 = vmatpush1.msra.mxu0 0.0
        %3229 = vmatprep.subr.mxu0 0.0
        %3230 = vmatpush1.msra.mxu0 0.0
        %3231 = vmatprep.subr.mxu0 0.0
        %3232 = vmatpush1.msra.mxu0 0.0
        %3233 = vmatprep.subr.mxu0 0.0
        %3234 = vmatpush1.msra.mxu0 0.0
        %3235 = vmatprep.subr.mxu0 0.0
        %3236 = vmatpush1.msra.mxu0 0.0
        %3237 = vmatprep.subr.mxu0 0.0
        %3238 = vmatpush1.msra.mxu0 0.0
        %3239 = vmatprep.subr.mxu0 0.0
        %3240 = vmatpush1.msra.mxu0 0.0
        %3241 = vmatprep.subr.mxu0 0.0
        %3242 = vmatpush1.msra.mxu0 0.0
        %3243 = vmatprep.subr.mxu0 0.0
        %3244 = vmatpush1.msra.mxu0 0.0
        %3245 = vmatprep.subr.mxu0 0.0
        %3246 = vmatpush1.msra.mxu0 0.0
        %3247 = vmatprep.mubr.f32.mxu0 0.0
        %3248 = vmatmul.mubr.f32.gmra.mrb[0].mxu0 %v3158
        %v3249 = vpop.f32.mrb[0].mxu0
        %v3250 = vadd.f32 0.0, %v3249
        %v3251 = vpop.f32.mrb[0].mxu0
        %3252 = vmatprep.mubr.f32.mxu0 0.0
        %3253 = vmatmul.mubr.f32.gmra.mrb[0].mxu0 %v3163
        %v3254 = vpop.f32.mrb[0].mxu0
        %v3255 = vadd.f32 0.0, %v3254
        %v3256 = vpop.f32.mrb[0].mxu0
        %3257 = vdwg.mxu0
        %3258 = vmatprep.subr.mxu0 0.0
        %3259 = vmatpush1.msra.mxu0 %v3071
        %3260 = vmatprep.subr.mxu0 0.0
        %3261 = vmatpush1.msra.mxu0 %v3072
        %3262 = vmatprep.subr.mxu0 0.0
        %3263 = vmatpush1.msra.mxu0 %v3073
        %3264 = vmatprep.subr.mxu0 0.0
        %3265 = vmatpush1.msra.mxu0 %v3074
        %3266 = vmatprep.subr.mxu0 0.0
        %3267 = vmatpush1.msra.mxu0 %v3075
        %3268 = vmatprep.subr.mxu0 0.0
        %3269 = vmatpush1.msra.mxu0 %v3076
        %3270 = vmatprep.subr.mxu0 0.0
        %3271 = vmatpush1.msra.mxu0 %v3077
        %3272 = vmatprep.subr.mxu0 0.0
        %3273 = vmatpush1.msra.mxu0 %v3078
        %3274 = vmatprep.subr.mxu0 0.0
        %3275 = vmatpush1.msra.mxu0 %v3079
        %3276 = vmatprep.subr.mxu0 0.0
        %3277 = vmatpush1.msra.mxu0 %v3080
        %3278 = vmatprep.subr.mxu0 0.0
        %3279 = vmatpush1.msra.mxu0 %v3081
        %3280 = vmatprep.subr.mxu0 0.0
        %3281 = vmatpush1.msra.mxu0 %v3082
        %3282 = vmatprep.subr.mxu0 0.0
        %3283 = vmatpush1.msra.mxu0 %v3083
        %3284 = vmatprep.subr.mxu0 0.0
        %3285 = vmatpush1.msra.mxu0 %v3084
        %3286 = vmatprep.subr.mxu0 0.0
        %3287 = vmatpush1.msra.mxu0 %v3085
        %3288 = vmatprep.subr.mxu0 0.0
        %3289 = vmatpush1.msra.mxu0 %v3086
        %3290 = vmatprep.subr.mxu0 0.0
        %3291 = vmatpush1.msra.mxu0 0.0
        %3292 = vmatprep.subr.mxu0 0.0
        %3293 = vmatpush1.msra.mxu0 0.0
        %3294 = vmatprep.subr.mxu0 0.0
        %3295 = vmatpush1.msra.mxu0 0.0
        %3296 = vmatprep.subr.mxu0 0.0
        %3297 = vmatpush1.msra.mxu0 0.0
        %3298 = vmatprep.subr.mxu0 0.0
        %3299 = vmatpush1.msra.mxu0 0.0
        %3300 = vmatprep.subr.mxu0 0.0
        %3301 = vmatpush1.msra.mxu0 0.0
        %3302 = vmatprep.subr.mxu0 0.0
        %3303 = vmatpush1.msra.mxu0 0.0
        %3304 = vmatprep.subr.mxu0 0.0
        %3305 = vmatpush1.msra.mxu0 0.0
        %3306 = vmatprep.subr.mxu0 0.0
        %3307 = vmatpush1.msra.mxu0 0.0
        %3308 = vmatprep.subr.mxu0 0.0
        %3309 = vmatpush1.msra.mxu0 0.0
        %3310 = vmatprep.subr.mxu0 0.0
        %3311 = vmatpush1.msra.mxu0 0.0
        %3312 = vmatprep.subr.mxu0 0.0
        %3313 = vmatpush1.msra.mxu0 0.0
        %3314 = vmatprep.subr.mxu0 0.0
        %3315 = vmatpush1.msra.mxu0 0.0
        %3316 = vmatprep.subr.mxu0 0.0
        %3317 = vmatpush1.msra.mxu0 0.0
        %3318 = vmatprep.subr.mxu0 0.0
        %3319 = vmatpush1.msra.mxu0 0.0
        %3320 = vmatprep.subr.mxu0 0.0
        %3321 = vmatpush1.msra.mxu0 0.0
        %3322 = vmatprep.mubr.f32.mxu0 0.0
        %3323 = vmatmul.mubr.f32.gmra.mrb[0].mxu0 %v3062
        %v3324 = vpop.f32.mrb[0].mxu0
        %v3325 = vadd.f32 %v3250, %v3324
        %v3326 = vpop.f32.mrb[0].mxu0
        %3327 = vmatprep.mubr.f32.mxu0 0.0
        %3328 = vmatmul.mubr.f32.gmra.mrb[0].mxu0 %v3067
        %v3329 = vpop.f32.mrb[0].mxu0
        %v3330 = vadd.f32 %v3255, %v3329
        %v3331 = vpop.f32.mrb[0].mxu0
        %3332 = vdwg.mxu0
        %v3333 = vsel %vm2990, %v1337, 0
        %v3335 = vsel %vm2990, %v1338, 0
        %3337 = vmatprep.subr.mxu0 0.0
        %3338 = vmatpush1.msra.mxu0 %v2986
        %3339 = vmatprep.subr.mxu0 0.0
        %3340 = vmatpush1.msra.mxu0 %v2987
        %3341 = vmatprep.subr.mxu0 0.0
        %3342 = vmatpush1.msra.mxu0 %v2988
        %3343 = vmatprep.subr.mxu0 0.0
        %3344 = vmatpush1.msra.mxu0 %v2989
        %3345 = vmatprep.subr.mxu0 0.0
        %3346 = vmatpush1.msra.mxu0 0.0
        %3347 = vmatprep.subr.mxu0 0.0
        %3348 = vmatpush1.msra.mxu0 0.0
        %3349 = vmatprep.subr.mxu0 0.0
        %3350 = vmatpush1.msra.mxu0 0.0
        %3351 = vmatprep.subr.mxu0 0.0
        %3352 = vmatpush1.msra.mxu0 0.0
        %3353 = vmatprep.subr.mxu0 0.0
        %3354 = vmatpush1.msra.mxu0 0.0
        %3355 = vmatprep.subr.mxu0 0.0
        %3356 = vmatpush1.msra.mxu0 0.0
        %3357 = vmatprep.subr.mxu0 0.0
        %3358 = vmatpush1.msra.mxu0 0.0
        %3359 = vmatprep.subr.mxu0 0.0
        %3360 = vmatpush1.msra.mxu0 0.0
        %3361 = vmatprep.subr.mxu0 0.0
        %3362 = vmatpush1.msra.mxu0 0.0
        %3363 = vmatprep.subr.mxu0 0.0
        %3364 = vmatpush1.msra.mxu0 0.0
        %3365 = vmatprep.subr.mxu0 0.0
        %3366 = vmatpush1.msra.mxu0 0.0
        %3367 = vmatprep.subr.mxu0 0.0
        %3368 = vmatpush1.msra.mxu0 0.0
        %3369 = vmatprep.subr.mxu0 0.0
        %3370 = vmatpush1.msra.mxu0 0.0
        %3371 = vmatprep.subr.mxu0 0.0
        %3372 = vmatpush1.msra.mxu0 0.0
        %3373 = vmatprep.subr.mxu0 0.0
        %3374 = vmatpush1.msra.mxu0 0.0
        %3375 = vmatprep.subr.mxu0 0.0
        %3376 = vmatpush1.msra.mxu0 0.0
        %3377 = vmatprep.subr.mxu0 0.0
        %3378 = vmatpush1.msra.mxu0 0.0
        %3379 = vmatprep.subr.mxu0 0.0
        %3380 = vmatpush1.msra.mxu0 0.0
        %3381 = vmatprep.subr.mxu0 0.0
        %3382 = vmatpush1.msra.mxu0 0.0
        %3383 = vmatprep.subr.mxu0 0.0
        %3384 = vmatpush1.msra.mxu0 0.0
        %3385 = vmatprep.subr.mxu0 0.0
        %3386 = vmatpush1.msra.mxu0 0.0
        %3387 = vmatprep.subr.mxu0 0.0
        %3388 = vmatpush1.msra.mxu0 0.0
        %3389 = vmatprep.subr.mxu0 0.0
        %3390 = vmatpush1.msra.mxu0 0.0
        %3391 = vmatprep.subr.mxu0 0.0
        %3392 = vmatpush1.msra.mxu0 0.0
        %3393 = vmatprep.subr.mxu0 0.0
        %3394 = vmatpush1.msra.mxu0 0.0
        %3395 = vmatprep.subr.mxu0 0.0
        %3396 = vmatpush1.msra.mxu0 0.0
        %3397 = vmatprep.subr.mxu0 0.0
        %3398 = vmatpush1.msra.mxu0 0.0
        %3399 = vmatprep.subr.mxu0 0.0
        %3400 = vmatpush1.msra.mxu0 0.0
        %3401 = vmatprep.mubr.f32.mxu0 0.0
        %3402 = vmatmul.mubr.f32.gmra.mrb[0].mxu0 %v3333
        %v3403 = vpop.f32.mrb[0].mxu0
        %v3404 = vadd.f32 0.0, %v3403
        %v3405 = vpop.f32.mrb[0].mxu0
        %3406 = vmatprep.mubr.f32.mxu0 0.0
        %3407 = vmatmul.mubr.f32.gmra.mrb[0].mxu0 %v3335
        %v3408 = vpop.f32.mrb[0].mxu0
        %v3409 = vadd.f32 0.0, %v3408
        %v3410 = vpop.f32.mrb[0].mxu0
        %3411 = vdwg.mxu0
        %s3412 = scalar_lea.vmem [#allocation8], 640
        %v3413 = vld [vmem:[%s3412] sm:$0xff]
        %v3414 = vld [vmem:[%s3412 + $0x8] sm:$0xff]
        %v3415 = vld [vmem:[%s3412 + $0x10] sm:$0xff]
        %v3416 = vld [vmem:[%s3412 + $0x18] sm:$0xff]
        %v3417 = vld [vmem:[%s3412 + $0x20] sm:$0xff]
        %v3418 = vld [vmem:[%s3412 + $0x28] sm:$0xff]
        %v3419 = vld [vmem:[%s3412 + $0x30] sm:$0xff]
        %v3420 = vld [vmem:[%s3412 + $0x38] sm:$0xff]
        %v3421 = vld [vmem:[%s3412 + $0x40] sm:$0xff]
        %v3422 = vld [vmem:[%s3412 + $0x48] sm:$0xff]
        %v3423 = vld [vmem:[%s3412 + $0x50] sm:$0xff]
        %v3424 = vld [vmem:[%s3412 + $0x58] sm:$0xff]
        %v3425 = vld [vmem:[%s3412 + $0x60] sm:$0xff]
        %v3426 = vld [vmem:[%s3412 + $0x68] sm:$0xff]
        %v3427 = vld [vmem:[%s3412 + $0x70] sm:$0xff]
        %v3428 = vld [vmem:[%s3412 + $0x78] sm:$0xff]
        %3429 = vmatprep.subr.mxu0 0.0
        %3430 = vmatpush1.msra.mxu0 %v3413
        %3431 = vmatprep.subr.mxu0 0.0
        %3432 = vmatpush1.msra.mxu0 %v3414
        %3433 = vmatprep.subr.mxu0 0.0
        %3434 = vmatpush1.msra.mxu0 %v3415
        %3435 = vmatprep.subr.mxu0 0.0
        %3436 = vmatpush1.msra.mxu0 %v3416
        %3437 = vmatprep.subr.mxu0 0.0
        %3438 = vmatpush1.msra.mxu0 %v3417
        %3439 = vmatprep.subr.mxu0 0.0
        %3440 = vmatpush1.msra.mxu0 %v3418
        %3441 = vmatprep.subr.mxu0 0.0
        %3442 = vmatpush1.msra.mxu0 %v3419
        %3443 = vmatprep.subr.mxu0 0.0
        %3444 = vmatpush1.msra.mxu0 %v3420
        %3445 = vmatprep.subr.mxu0 0.0
        %3446 = vmatpush1.msra.mxu0 %v3421
        %3447 = vmatprep.subr.mxu0 0.0
        %3448 = vmatpush1.msra.mxu0 %v3422
        %3449 = vmatprep.subr.mxu0 0.0
        %3450 = vmatpush1.msra.mxu0 %v3423
        %3451 = vmatprep.subr.mxu0 0.0
        %3452 = vmatpush1.msra.mxu0 %v3424
        %3453 = vmatprep.subr.mxu0 0.0
        %3454 = vmatpush1.msra.mxu0 %v3425
        %3455 = vmatprep.subr.mxu0 0.0
        %3456 = vmatpush1.msra.mxu0 %v3426
        %3457 = vmatprep.subr.mxu0 0.0
        %3458 = vmatpush1.msra.mxu0 %v3427
        %3459 = vmatprep.subr.mxu0 0.0
        %3460 = vmatpush1.msra.mxu0 %v3428
        %3461 = vmatprep.subr.mxu0 0.0
        %3462 = vmatpush1.msra.mxu0 0.0
        %3463 = vmatprep.subr.mxu0 0.0
        %3464 = vmatpush1.msra.mxu0 0.0
        %3465 = vmatprep.subr.mxu0 0.0
        %3466 = vmatpush1.msra.mxu0 0.0
        %3467 = vmatprep.subr.mxu0 0.0
        %3468 = vmatpush1.msra.mxu0 0.0
        %3469 = vmatprep.subr.mxu0 0.0
        %3470 = vmatpush1.msra.mxu0 0.0
        %3471 = vmatprep.subr.mxu0 0.0
        %3472 = vmatpush1.msra.mxu0 0.0
        %3473 = vmatprep.subr.mxu0 0.0
        %3474 = vmatpush1.msra.mxu0 0.0
        %3475 = vmatprep.subr.mxu0 0.0
        %3476 = vmatpush1.msra.mxu0 0.0
        %3477 = vmatprep.subr.mxu0 0.0
        %3478 = vmatpush1.msra.mxu0 0.0
        %3479 = vmatprep.subr.mxu0 0.0
        %3480 = vmatpush1.msra.mxu0 0.0
        %3481 = vmatprep.subr.mxu0 0.0
        %3482 = vmatpush1.msra.mxu0 0.0
        %3483 = vmatprep.subr.mxu0 0.0
        %3484 = vmatpush1.msra.mxu0 0.0
        %3485 = vmatprep.subr.mxu0 0.0
        %3486 = vmatpush1.msra.mxu0 0.0
        %3487 = vmatprep.subr.mxu0 0.0
        %3488 = vmatpush1.msra.mxu0 0.0
        %3489 = vmatprep.subr.mxu0 0.0
        %3490 = vmatpush1.msra.mxu0 0.0
        %3491 = vmatprep.subr.mxu0 0.0
        %3492 = vmatpush1.msra.mxu0 0.0
        %3493 = vmatprep.mubr.f32.mxu0 0.0
        %3494 = vmatmul.mubr.f32.gmra.mrb[0].mxu0 %v3404
        %v3495 = vpop.f32.mrb[0].mxu0
        %v3496 = vadd.f32 0.0, %v3495
        %v3497 = vpop.f32.mrb[0].mxu0
        %3498 = vmatprep.mubr.f32.mxu0 0.0
        %3499 = vmatmul.mubr.f32.gmra.mrb[0].mxu0 %v3409
        %v3500 = vpop.f32.mrb[0].mxu0
        %v3501 = vadd.f32 0.0, %v3500
        %v3502 = vpop.f32.mrb[0].mxu0
        %3503 = vdwg.mxu0
        %v3504 = vadd.f32 %v3325, %v3496
        %v3505 = vadd.f32 %v3330, %v3501
        %v3506 = vlaneseq
        %v3507 = vshrl.u32 %v3506, 7
        %v3508 = vsub.s32 2, %v3507
        %v3509 = vrot.slane %v2822, %v3508
        %v3510 = vmul.f32 %v3504, %v3509
        %v3511 = vmul.f32 %v3505, %v3509
        %v3512 = vlaneseq
        %v3513 = vshrl.u32 %v3512, 7
        %v3514 = vsub.s32 3, %v3513
        %v3515 = vrot.slane %v2822, %v3514
        %v3516 = vadd.f32 %v3510, %v3515
        %v3517 = vadd.f32 %v3511, %v3515
        %v3518 = vxor.u32 %v3516, 2147483648
        %v3519 = vxor.u32 %v3517, 2147483648
        %v3520 = vmul.f32 %v3518, 1.442695
        %v3521 = vpow.pop %v3520
        %v3522 = vmul.f32 %v3519, 1.442695
        %v3523 = vpow.pop %v3522
        %v3524 = vadd.f32 %v3521, 1.0
        %v3525 = vadd.f32 %v3523, 1.0
        %v3526 = vrcp.pop %v3524
        %v3527 = vmul.f32 1.0, %v3526
        %v3528 = vrcp.pop %v3525
        %v3529 = vmul.f32 1.0, %v3528
        %v3530 = vmul.f32 %v3516, %v3527
        %v3531 = vmul.f32 %v3517, %v3529
        %s3532 = scalar_lea.vmem [#allocation10], 128
        %v3533 = vld [vmem:[%s3532] sm:$0xff]
        %v3534 = vld [vmem:[%s3532 + $0x8] sm:$0xff]
        %v3535 = vld [vmem:[%s3532 + $0x10] sm:$0xff]
        %v3536 = vld [vmem:[%s3532 + $0x18] sm:$0xff]
        %v3537 = vld [vmem:[%s3532 + $0x20] sm:$0xff]
        %v3538 = vld [vmem:[%s3532 + $0x28] sm:$0xff]
        %v3539 = vld [vmem:[%s3532 + $0x30] sm:$0xff]
        %v3540 = vld [vmem:[%s3532 + $0x38] sm:$0xff]
        %v3541 = vld [vmem:[%s3532 + $0x40] sm:$0xff]
        %v3542 = vld [vmem:[%s3532 + $0x48] sm:$0xff]
        %v3543 = vld [vmem:[%s3532 + $0x50] sm:$0xff]
        %v3544 = vld [vmem:[%s3532 + $0x58] sm:$0xff]
        %v3545 = vld [vmem:[%s3532 + $0x60] sm:$0xff]
        %v3546 = vld [vmem:[%s3532 + $0x68] sm:$0xff]
        %v3547 = vld [vmem:[%s3532 + $0x70] sm:$0xff]
        %v3548 = vld [vmem:[%s3532 + $0x78] sm:$0xff]
        %3549 = vmatprep.subr.mxu0 0.0
        %3550 = vmatpush1.msra.mxu0 %v3533
        %3551 = vmatprep.subr.mxu0 0.0
        %3552 = vmatpush1.msra.mxu0 %v3534
        %3553 = vmatprep.subr.mxu0 0.0
        %3554 = vmatpush1.msra.mxu0 %v3535
        %3555 = vmatprep.subr.mxu0 0.0
        %3556 = vmatpush1.msra.mxu0 %v3536
        %3557 = vmatprep.subr.mxu0 0.0
        %3558 = vmatpush1.msra.mxu0 %v3537
        %3559 = vmatprep.subr.mxu0 0.0
        %3560 = vmatpush1.msra.mxu0 %v3538
        %3561 = vmatprep.subr.mxu0 0.0
        %3562 = vmatpush1.msra.mxu0 %v3539
        %3563 = vmatprep.subr.mxu0 0.0
        %3564 = vmatpush1.msra.mxu0 %v3540
        %3565 = vmatprep.subr.mxu0 0.0
        %3566 = vmatpush1.msra.mxu0 %v3541
        %3567 = vmatprep.subr.mxu0 0.0
        %3568 = vmatpush1.msra.mxu0 %v3542
        %3569 = vmatprep.subr.mxu0 0.0
        %3570 = vmatpush1.msra.mxu0 %v3543
        %3571 = vmatprep.subr.mxu0 0.0
        %3572 = vmatpush1.msra.mxu0 %v3544
        %3573 = vmatprep.subr.mxu0 0.0
        %3574 = vmatpush1.msra.mxu0 %v3545
        %3575 = vmatprep.subr.mxu0 0.0
        %3576 = vmatpush1.msra.mxu0 %v3546
        %3577 = vmatprep.subr.mxu0 0.0
        %3578 = vmatpush1.msra.mxu0 %v3547
        %3579 = vmatprep.subr.mxu0 0.0
        %3580 = vmatpush1.msra.mxu0 %v3548
        %3581 = vmatprep.subr.mxu0 0.0
        %3582 = vmatpush1.msra.mxu0 0.0
        %3583 = vmatprep.subr.mxu0 0.0
        %3584 = vmatpush1.msra.mxu0 0.0
        %3585 = vmatprep.subr.mxu0 0.0
        %3586 = vmatpush1.msra.mxu0 0.0
        %3587 = vmatprep.subr.mxu0 0.0
        %3588 = vmatpush1.msra.mxu0 0.0
        %3589 = vmatprep.subr.mxu0 0.0
        %3590 = vmatpush1.msra.mxu0 0.0
        %3591 = vmatprep.subr.mxu0 0.0
        %3592 = vmatpush1.msra.mxu0 0.0
        %3593 = vmatprep.subr.mxu0 0.0
        %3594 = vmatpush1.msra.mxu0 0.0
        %3595 = vmatprep.subr.mxu0 0.0
        %3596 = vmatpush1.msra.mxu0 0.0
        %3597 = vmatprep.subr.mxu0 0.0
        %3598 = vmatpush1.msra.mxu0 0.0
        %3599 = vmatprep.subr.mxu0 0.0
        %3600 = vmatpush1.msra.mxu0 0.0
        %3601 = vmatprep.subr.mxu0 0.0
        %3602 = vmatpush1.msra.mxu0 0.0
        %3603 = vmatprep.subr.mxu0 0.0
        %3604 = vmatpush1.msra.mxu0 0.0
        %3605 = vmatprep.subr.mxu0 0.0
        %3606 = vmatpush1.msra.mxu0 0.0
        %3607 = vmatprep.subr.mxu0 0.0
        %3608 = vmatpush1.msra.mxu0 0.0
        %3609 = vmatprep.subr.mxu0 0.0
        %3610 = vmatpush1.msra.mxu0 0.0
        %3611 = vmatprep.subr.mxu0 0.0
        %3612 = vmatpush1.msra.mxu0 0.0
        %3613 = vmatprep.mubr.f32.mxu0 0.0
        %3614 = vmatmul.mubr.f32.gmra.mrb[0].mxu0 %v3530
        %v3615 = vpop.f32.mrb[0].mxu0
        %v3616 = vadd.f32 0.0, %v3615
        %v3617 = vpop.f32.mrb[0].mxu0
        %3618 = vmatprep.mubr.f32.mxu0 0.0
        %3619 = vmatmul.mubr.f32.gmra.mrb[0].mxu0 %v3531
        %v3620 = vpop.f32.mrb[0].mxu0
        %v3621 = vadd.f32 0.0, %v3620
        %v3622 = vpop.f32.mrb[0].mxu0
        %3623 = vdwg.mxu0
        %v3624 = vlaneseq
        %v3625 = vshrl.u32 %v3624, 7
        %v3626 = vsub.s32 4, %v3625
        %v3627 = vrot.slane %v2822, %v3626
        %v3628 = vmul.f32 %v3616, %v3627
        %v3629 = vmul.f32 %v3621, %v3627
        %v3630 = vlaneseq
        %v3631 = vshrl.u32 %v3630, 7
        %v3632 = vsub.s32 5, %v3631
        %v3633 = vrot.slane %v2822, %v3632
        %v3634 = vadd.f32 %v3628, %v3633
        %v3635 = vadd.f32 %v3629, %v3633
        %v3636 = vadd.f32 %v3634, %v3635
        %v3637 = vrot.slane %v3636, 4
        %v3638 = vadd.f32 %v3636, %v3637
        %v3639 = vrot.slane %v3638, 2
        %v3640 = vadd.f32 %v3638, %v3639
        %v3641 = vrot.slane %v3640, 1
        %v3642 = vadd.f32 %v3640, %v3641
        %v3643 = vrcp.pop 16.0
        %v3644 = vmul.f32 %v3642, %v3643
        %s3645 = scalar_lea.vmem [#allocation11], 128
        %v3646 = vld [vmem:[%s3645] sm:$0xff]
        %v3647 = vld [vmem:[%s3645 + $0x8] sm:$0xff]
        %v3648 = vld [vmem:[%s3645 + $0x10] sm:$0xff]
        %v3649 = vld [vmem:[%s3645 + $0x18] sm:$0xff]
        %v3650 = vld [vmem:[%s3645 + $0x20] sm:$0xff]
        %v3651 = vld [vmem:[%s3645 + $0x28] sm:$0xff]
        %v3652 = vld [vmem:[%s3645 + $0x30] sm:$0xff]
        %v3653 = vld [vmem:[%s3645 + $0x38] sm:$0xff]
        %v3654 = vld [vmem:[%s3645 + $0x40] sm:$0xff]
        %v3655 = vld [vmem:[%s3645 + $0x48] sm:$0xff]
        %v3656 = vld [vmem:[%s3645 + $0x50] sm:$0xff]
        %v3657 = vld [vmem:[%s3645 + $0x58] sm:$0xff]
        %v3658 = vld [vmem:[%s3645 + $0x60] sm:$0xff]
        %v3659 = vld [vmem:[%s3645 + $0x68] sm:$0xff]
        %v3660 = vld [vmem:[%s3645 + $0x70] sm:$0xff]
        %v3661 = vld [vmem:[%s3645 + $0x78] sm:$0xff]
        %v3663 = vrot.slane %v2822, 6
        %3665 = vmatprep.subr.mxu0 0.0
        %3666 = vmatpush1.msra.mxu0 %v3646
        %3667 = vmatprep.subr.mxu0 0.0
        %3668 = vmatpush1.msra.mxu0 %v3647
        %3669 = vmatprep.subr.mxu0 0.0
        %3670 = vmatpush1.msra.mxu0 %v3648
        %3671 = vmatprep.subr.mxu0 0.0
        %3672 = vmatpush1.msra.mxu0 %v3649
        %3673 = vmatprep.subr.mxu0 0.0
        %3674 = vmatpush1.msra.mxu0 %v3650
        %3675 = vmatprep.subr.mxu0 0.0
        %3676 = vmatpush1.msra.mxu0 %v3651
        %3677 = vmatprep.subr.mxu0 0.0
        %3678 = vmatpush1.msra.mxu0 %v3652
        %3679 = vmatprep.subr.mxu0 0.0
        %3680 = vmatpush1.msra.mxu0 %v3653
        %3681 = vmatprep.subr.mxu0 0.0
        %3682 = vmatpush1.msra.mxu0 %v3654
        %3683 = vmatprep.subr.mxu0 0.0
        %3684 = vmatpush1.msra.mxu0 %v3655
        %3685 = vmatprep.subr.mxu0 0.0
        %3686 = vmatpush1.msra.mxu0 %v3656
        %3687 = vmatprep.subr.mxu0 0.0
        %3688 = vmatpush1.msra.mxu0 %v3657
        %3689 = vmatprep.subr.mxu0 0.0
        %3690 = vmatpush1.msra.mxu0 %v3658
        %3691 = vmatprep.subr.mxu0 0.0
        %3692 = vmatpush1.msra.mxu0 %v3659
        %3693 = vmatprep.subr.mxu0 0.0
        %3694 = vmatpush1.msra.mxu0 %v3660
        %3695 = vmatprep.subr.mxu0 0.0
        %3696 = vmatpush1.msra.mxu0 %v3661
        %3697 = vmatprep.subr.mxu0 0.0
        %3698 = vmatpush1.msra.mxu0 0.0
        %3699 = vmatprep.subr.mxu0 0.0
        %3700 = vmatpush1.msra.mxu0 0.0
        %3701 = vmatprep.subr.mxu0 0.0
        %3702 = vmatpush1.msra.mxu0 0.0
        %3703 = vmatprep.subr.mxu0 0.0
        %3704 = vmatpush1.msra.mxu0 0.0
        %3705 = vmatprep.subr.mxu0 0.0
        %3706 = vmatpush1.msra.mxu0 0.0
        %3707 = vmatprep.subr.mxu0 0.0
        %3708 = vmatpush1.msra.mxu0 0.0
        %3709 = vmatprep.subr.mxu0 0.0
        %3710 = vmatpush1.msra.mxu0 0.0
        %3711 = vmatprep.subr.mxu0 0.0
        %3712 = vmatpush1.msra.mxu0 0.0
        %3713 = vmatprep.subr.mxu0 0.0
        %3714 = vmatpush1.msra.mxu0 0.0
        %3715 = vmatprep.subr.mxu0 0.0
        %3716 = vmatpush1.msra.mxu0 0.0
        %3717 = vmatprep.subr.mxu0 0.0
        %3718 = vmatpush1.msra.mxu0 0.0
        %3719 = vmatprep.subr.mxu0 0.0
        %3720 = vmatpush1.msra.mxu0 0.0
        %3721 = vmatprep.subr.mxu0 0.0
        %3722 = vmatpush1.msra.mxu0 0.0
        %3723 = vmatprep.subr.mxu0 0.0
        %3724 = vmatpush1.msra.mxu0 0.0
        %3725 = vmatprep.subr.mxu0 0.0
        %3726 = vmatpush1.msra.mxu0 0.0
        %3727 = vmatprep.subr.mxu0 0.0
        %3728 = vmatpush1.msra.mxu0 0.0
        %3729 = vmatprep.mubr.f32.mxu0 0.0
        %3730 = vmatmul.mubr.f32.gmra.mrb[0].mxu0 %v3644
        %v3731 = vpop.f32.mrb[0].mxu0
        %v3732 = vadd.f32 %v3663, %v3731
        %v3733 = vpop.f32.mrb[0].mxu0
        %3734 = vdwg.mxu0
        %v3735 = vxor.u32 %v3732, 2147483648
        %v3736 = vmul.f32 %v3735, 1.442695
        %v3737 = vpow.pop %v3736
        %v3738 = vadd.f32 %v3737, 1.0
        %v3739 = vrcp.pop %v3738
        %v3740 = vmul.f32 1.0, %v3739
        %v3741 = vmul.f32 %v3732, %v3740
        %s3742 = scalar_lea.vmem %s7, 128
        %v3743 = vld [vmem:[%s3742] sm:$0xff]
        %v3744 = vld [vmem:[%s3742 + $0x8] sm:$0xff]
        %v3745 = vld [vmem:[%s3742 + $0x10] sm:$0xff]
        %v3746 = vld [vmem:[%s3742 + $0x18] sm:$0xff]
        %v3747 = vld [vmem:[%s3742 + $0x20] sm:$0xff]
        %v3748 = vld [vmem:[%s3742 + $0x28] sm:$0xff]
        %v3749 = vld [vmem:[%s3742 + $0x30] sm:$0xff]
        %v3750 = vld [vmem:[%s3742 + $0x38] sm:$0xff]
        %v3751 = vld [vmem:[%s3742 + $0x40] sm:$0xff]
        %v3752 = vld [vmem:[%s3742 + $0x48] sm:$0xff]
        %v3753 = vld [vmem:[%s3742 + $0x50] sm:$0xff]
        %v3754 = vld [vmem:[%s3742 + $0x58] sm:$0xff]
        %v3755 = vld [vmem:[%s3742 + $0x60] sm:$0xff]
        %v3756 = vld [vmem:[%s3742 + $0x68] sm:$0xff]
        %v3757 = vld [vmem:[%s3742 + $0x70] sm:$0xff]
        %v3758 = vld [vmem:[%s3742 + $0x78] sm:$0xff]
        %v3759 = vrot.slane %v2822, 7
        %3761 = vmatprep.subr.mxu0 0.0
        %3762 = vmatpush1.msra.mxu0 %v3743
        %3763 = vmatprep.subr.mxu0 0.0
        %3764 = vmatpush1.msra.mxu0 %v3744
        %3765 = vmatprep.subr.mxu0 0.0
        %3766 = vmatpush1.msra.mxu0 %v3745
        %3767 = vmatprep.subr.mxu0 0.0
        %3768 = vmatpush1.msra.mxu0 %v3746
        %3769 = vmatprep.subr.mxu0 0.0
        %3770 = vmatpush1.msra.mxu0 %v3747
        %3771 = vmatprep.subr.mxu0 0.0
        %3772 = vmatpush1.msra.mxu0 %v3748
        %3773 = vmatprep.subr.mxu0 0.0
        %3774 = vmatpush1.msra.mxu0 %v3749
        %3775 = vmatprep.subr.mxu0 0.0
        %3776 = vmatpush1.msra.mxu0 %v3750
        %3777 = vmatprep.subr.mxu0 0.0
        %3778 = vmatpush1.msra.mxu0 %v3751
        %3779 = vmatprep.subr.mxu0 0.0
        %3780 = vmatpush1.msra.mxu0 %v3752
        %3781 = vmatprep.subr.mxu0 0.0
        %3782 = vmatpush1.msra.mxu0 %v3753
        %3783 = vmatprep.subr.mxu0 0.0
        %3784 = vmatpush1.msra.mxu0 %v3754
        %3785 = vmatprep.subr.mxu0 0.0
        %3786 = vmatpush1.msra.mxu0 %v3755
        %3787 = vmatprep.subr.mxu0 0.0
        %3788 = vmatpush1.msra.mxu0 %v3756
        %3789 = vmatprep.subr.mxu0 0.0
        %3790 = vmatpush1.msra.mxu0 %v3757
        %3791 = vmatprep.subr.mxu0 0.0
        %3792 = vmatpush1.msra.mxu0 %v3758
        %3793 = vmatprep.subr.mxu0 0.0
        %3794 = vmatpush1.msra.mxu0 0.0
        %3795 = vmatprep.subr.mxu0 0.0
        %3796 = vmatpush1.msra.mxu0 0.0
        %3797 = vmatprep.subr.mxu0 0.0
        %3798 = vmatpush1.msra.mxu0 0.0
        %3799 = vmatprep.subr.mxu0 0.0
        %3800 = vmatpush1.msra.mxu0 0.0
        %3801 = vmatprep.subr.mxu0 0.0
        %3802 = vmatpush1.msra.mxu0 0.0
        %3803 = vmatprep.subr.mxu0 0.0
        %3804 = vmatpush1.msra.mxu0 0.0
        %3805 = vmatprep.subr.mxu0 0.0
        %3806 = vmatpush1.msra.mxu0 0.0
        %3807 = vmatprep.subr.mxu0 0.0
        %3808 = vmatpush1.msra.mxu0 0.0
        %3809 = vmatprep.subr.mxu0 0.0
        %3810 = vmatpush1.msra.mxu0 0.0
        %3811 = vmatprep.subr.mxu0 0.0
        %3812 = vmatpush1.msra.mxu0 0.0
        %3813 = vmatprep.subr.mxu0 0.0
        %3814 = vmatpush1.msra.mxu0 0.0
        %3815 = vmatprep.subr.mxu0 0.0
        %3816 = vmatpush1.msra.mxu0 0.0
        %3817 = vmatprep.subr.mxu0 0.0
        %3818 = vmatpush1.msra.mxu0 0.0
        %3819 = vmatprep.subr.mxu0 0.0
        %3820 = vmatpush1.msra.mxu0 0.0
        %3821 = vmatprep.subr.mxu0 0.0
        %3822 = vmatpush1.msra.mxu0 0.0
        %3823 = vmatprep.subr.mxu0 0.0
        %3824 = vmatpush1.msra.mxu0 0.0
        %3825 = vmatprep.mubr.f32.mxu0 0.0
        %3826 = vmatmul.mubr.f32.gmra.mrb[0].mxu0 %v3741
        %v3827 = vpop.f32.mrb[0].mxu0
        %v3828 = vadd.f32 %v3759, %v3827
        %v3829 = vpop.f32.mrb[0].mxu0
        %3830 = vdwg.mxu0
        %v3831 = vxor.u32 %v3828, 2147483648
        %v3832 = vmul.f32 %v3831, 1.442695
        %v3833 = vpow.pop %v3832
        %v3834 = vadd.f32 %v3833, 1.0
        %v3835 = vrcp.pop %v3834
        %v3836 = vmul.f32 1.0, %v3835
        %3837 = vmatprep.subr.mxu0 0.0
        %3838 = vmatpush1.msra.mxu0 %v2926
        %3839 = vmatprep.subr.mxu0 0.0
        %3840 = vmatpush1.msra.mxu0 %v2932
        %3841 = vmatprep.subr.mxu0 0.0
        %3842 = vmatpush1.msra.mxu0 %v2938
        %3843 = vmatprep.subr.mxu0 0.0
        %3844 = vmatpush1.msra.mxu0 %v2944
        %3845 = vmatprep.subr.mxu0 0.0
        %3846 = vmatpush1.msra.mxu0 0.0
        %3847 = vmatprep.subr.mxu0 0.0
        %3848 = vmatpush1.msra.mxu0 0.0
        %3849 = vmatprep.subr.mxu0 0.0
        %3850 = vmatpush1.msra.mxu0 0.0
        %3851 = vmatprep.subr.mxu0 0.0
        %3852 = vmatpush1.msra.mxu0 0.0
        %3853 = vmatprep.subr.mxu0 0.0
        %3854 = vmatpush1.msra.mxu0 0.0
        %3855 = vmatprep.subr.mxu0 0.0
        %3856 = vmatpush1.msra.mxu0 0.0
        %3857 = vmatprep.subr.mxu0 0.0
        %3858 = vmatpush1.msra.mxu0 0.0
        %3859 = vmatprep.subr.mxu0 0.0
        %3860 = vmatpush1.msra.mxu0 0.0
        %3861 = vmatprep.subr.mxu0 0.0
        %3862 = vmatpush1.msra.mxu0 0.0
        %3863 = vmatprep.subr.mxu0 0.0
        %3864 = vmatpush1.msra.mxu0 0.0
        %3865 = vmatprep.subr.mxu0 0.0
        %3866 = vmatpush1.msra.mxu0 0.0
        %3867 = vmatprep.subr.mxu0 0.0
        %3868 = vmatpush1.msra.mxu0 0.0
        %3869 = vmatprep.subr.mxu0 0.0
        %3870 = vmatpush1.msra.mxu0 0.0
        %3871 = vmatprep.subr.mxu0 0.0
        %3872 = vmatpush1.msra.mxu0 0.0
        %3873 = vmatprep.subr.mxu0 0.0
        %3874 = vmatpush1.msra.mxu0 0.0
        %3875 = vmatprep.subr.mxu0 0.0
        %3876 = vmatpush1.msra.mxu0 0.0
        %3877 = vmatprep.subr.mxu0 0.0
        %3878 = vmatpush1.msra.mxu0 0.0
        %3879 = vmatprep.subr.mxu0 0.0
        %3880 = vmatpush1.msra.mxu0 0.0
        %3881 = vmatprep.subr.mxu0 0.0
        %3882 = vmatpush1.msra.mxu0 0.0
        %3883 = vmatprep.subr.mxu0 0.0
        %3884 = vmatpush1.msra.mxu0 0.0
        %3885 = vmatprep.subr.mxu0 0.0
        %3886 = vmatpush1.msra.mxu0 0.0
        %3887 = vmatprep.subr.mxu0 0.0
        %3888 = vmatpush1.msra.mxu0 0.0
        %3889 = vmatprep.subr.mxu0 0.0
        %3890 = vmatpush1.msra.mxu0 0.0
        %3891 = vmatprep.subr.mxu0 0.0
        %3892 = vmatpush1.msra.mxu0 0.0
        %3893 = vmatprep.subr.mxu0 0.0
        %3894 = vmatpush1.msra.mxu0 0.0
        %3895 = vmatprep.subr.mxu0 0.0
        %3896 = vmatpush1.msra.mxu0 0.0
        %3897 = vmatprep.subr.mxu0 0.0
        %3898 = vmatpush1.msra.mxu0 0.0
        %3899 = vmatprep.subr.mxu0 0.0
        %3900 = vmatpush1.msra.mxu0 0.0
        %3901 = vmatprep.mubr.f32.mxu0 0.0
        %3902 = vmatmul.mubr.f32.gmra.mrb[0].mxu0 %v3087
        %v3903 = vpop.f32.mrb[0].mxu0
        %v3904 = vadd.f32 0.0, %v3903
        %v3905 = vpop.f32.mrb[0].mxu0
        %3906 = vmatprep.mubr.f32.mxu0 0.0
        %3907 = vmatmul.mubr.f32.gmra.mrb[0].mxu0 %v3089
        %v3908 = vpop.f32.mrb[0].mxu0
        %v3909 = vadd.f32 0.0, %v3908
        %v3910 = vpop.f32.mrb[0].mxu0
        %3911 = vdwg.mxu0
        %v3912 = vlaneseq
        %v3913 = vshrl.u32 %v3912, 7
        %v3914 = vsub.s32 0, %v3913
        %v3915 = vrot.slane %v2823, %v3914
        %v3916 = vmul.f32 %v3904, %v3915
        %v3917 = vmul.f32 %v3909, %v3915
        %v3918 = vlaneseq
        %v3919 = vshrl.u32 %v3918, 7
        %v3920 = vsub.s32 1, %v3919
        %v3921 = vrot.slane %v2823, %v3920
        %v3922 = vadd.f32 %v3916, %v3921
        %v3923 = vadd.f32 %v3917, %v3921
        %v3924 = vlaneseq
        %v3925 = vshrl.u32 %v3924, 7
        %v3926 = vsub.s32 0, %v3925
        %v3927 = vrot.slane %v3836, %v3926
        %v3928 = vmul.f32 %v3634, %v3927
        %v3929 = vmul.f32 %v3635, %v3927
        %v3930 = vadd.f32 %v3928, %v3922
        %v3931 = vadd.f32 %v3929, %v3923
        %v3932 = vxor.u32 %v3930, 2147483648
        %v3933 = vxor.u32 %v3931, 2147483648
        %v3934 = vmul.f32 %v3932, 1.442695
        %v3935 = vpow.pop %v3934
        %v3936 = vmul.f32 %v3933, 1.442695
        %v3937 = vpow.pop %v3936
        %v3938 = vadd.f32 %v3935, 1.0
        %v3939 = vadd.f32 %v3937, 1.0
        %v3940 = vrcp.pop %v3938
        %v3941 = vmul.f32 1.0, %v3940
        %v3942 = vrcp.pop %v3939
        %v3943 = vmul.f32 1.0, %v3942
        %v3944 = vmul.f32 %v3930, %v3941
        %v3945 = vmul.f32 %v3931, %v3943
        %s3946 = scalar_lea.vmem [#allocation13], 32
        %v3947 = vld [vmem:[%s3946] sm:$0xff]
        %v3948 = vld [vmem:[%s3946 + $0x8] sm:$0xff]
        %s3949 = scalar_lea.vmem [#allocation7], 512
        %v3950 = vld [vmem:[%s3949] sm:$0xff]
        %v3951 = vld [vmem:[%s3949 + $0x8] sm:$0xff]
        %v3952 = vld [vmem:[%s3949 + $0x10] sm:$0xff]
        %v3953 = vld [vmem:[%s3949 + $0x18] sm:$0xff]
        %v3954 = vld [vmem:[%s3949 + $0x20] sm:$0xff]
        %v3955 = vld [vmem:[%s3949 + $0x28] sm:$0xff]
        %v3956 = vld [vmem:[%s3949 + $0x30] sm:$0xff]
        %v3957 = vld [vmem:[%s3949 + $0x38] sm:$0xff]
        %v3958 = vld [vmem:[%s3949 + $0x40] sm:$0xff]
        %v3959 = vld [vmem:[%s3949 + $0x48] sm:$0xff]
        %v3960 = vld [vmem:[%s3949 + $0x50] sm:$0xff]
        %v3961 = vld [vmem:[%s3949 + $0x58] sm:$0xff]
        %v3962 = vld [vmem:[%s3949 + $0x60] sm:$0xff]
        %v3963 = vld [vmem:[%s3949 + $0x68] sm:$0xff]
        %v3964 = vld [vmem:[%s3949 + $0x70] sm:$0xff]
        %v3965 = vld [vmem:[%s3949 + $0x78] sm:$0xff]
        %v3966 = vld [vmem:[%s3949 + $0x80] sm:$0xff]
        %v3967 = vld [vmem:[%s3949 + $0x88] sm:$0xff]
        %v3968 = vld [vmem:[%s3949 + $0x90] sm:$0xff]
        %v3969 = vld [vmem:[%s3949 + $0x98] sm:$0xff]
        %v3970 = vld [vmem:[%s3949 + $0xa0] sm:$0xff]
        %v3971 = vld [vmem:[%s3949 + $0xa8] sm:$0xff]
        %v3972 = vld [vmem:[%s3949 + $0xb0] sm:$0xff]
        %v3973 = vld [vmem:[%s3949 + $0xb8] sm:$0xff]
        %v3974 = vld [vmem:[%s3949 + $0xc0] sm:$0xff]
        %v3975 = vld [vmem:[%s3949 + $0xc8] sm:$0xff]
        %v3976 = vld [vmem:[%s3949 + $0xd0] sm:$0xff]
        %v3977 = vld [vmem:[%s3949 + $0xd8] sm:$0xff]
        %v3978 = vld [vmem:[%s3949 + $0xe0] sm:$0xff]
        %v3979 = vld [vmem:[%s3949 + $0xe8] sm:$0xff]
        %v3980 = vld [vmem:[%s3949 + $0xf0] sm:$0xff]
        %v3981 = vld [vmem:[%s3949 + $0xf8] sm:$0xff]
        %3982 = vmatprep.subr.mxu0 %v3951
        %3983 = vmatpush1.msra.mxu0 %v3950
        %3984 = vmatprep.subr.mxu0 %v3953
        %3985 = vmatpush1.msra.mxu0 %v3952
        %3986 = vmatprep.subr.mxu0 %v3955
        %3987 = vmatpush1.msra.mxu0 %v3954
        %3988 = vmatprep.subr.mxu0 %v3957
        %3989 = vmatpush1.msra.mxu0 %v3956
        %3990 = vmatprep.subr.mxu0 %v3959
        %3991 = vmatpush1.msra.mxu0 %v3958
        %3992 = vmatprep.subr.mxu0 %v3961
        %3993 = vmatpush1.msra.mxu0 %v3960
        %3994 = vmatprep.subr.mxu0 %v3963
        %3995 = vmatpush1.msra.mxu0 %v3962
        %3996 = vmatprep.subr.mxu0 %v3965
        %3997 = vmatpush1.msra.mxu0 %v3964
        %3998 = vmatprep.subr.mxu0 %v3967
        %3999 = vmatpush1.msra.mxu0 %v3966
        %4000 = vmatprep.subr.mxu0 %v3969
        %4001 = vmatpush1.msra.mxu0 %v3968
        %4002 = vmatprep.subr.mxu0 %v3971
        %4003 = vmatpush1.msra.mxu0 %v3970
        %4004 = vmatprep.subr.mxu0 %v3973
        %4005 = vmatpush1.msra.mxu0 %v3972
        %4006 = vmatprep.subr.mxu0 %v3975
        %4007 = vmatpush1.msra.mxu0 %v3974
        %4008 = vmatprep.subr.mxu0 %v3977
        %4009 = vmatpush1.msra.mxu0 %v3976
        %4010 = vmatprep.subr.mxu0 %v3979
        %4011 = vmatpush1.msra.mxu0 %v3978
        %4012 = vmatprep.subr.mxu0 %v3981
        %4013 = vmatpush1.msra.mxu0 %v3980
        %4014 = vmatprep.subr.mxu0 0.0
        %4015 = vmatpush1.msra.mxu0 0.0
        %4016 = vmatprep.subr.mxu0 0.0
        %4017 = vmatpush1.msra.mxu0 0.0
        %4018 = vmatprep.subr.mxu0 0.0
        %4019 = vmatpush1.msra.mxu0 0.0
        %4020 = vmatprep.subr.mxu0 0.0
        %4021 = vmatpush1.msra.mxu0 0.0
        %4022 = vmatprep.subr.mxu0 0.0
        %4023 = vmatpush1.msra.mxu0 0.0
        %4024 = vmatprep.subr.mxu0 0.0
        %4025 = vmatpush1.msra.mxu0 0.0
        %4026 = vmatprep.subr.mxu0 0.0
        %4027 = vmatpush1.msra.mxu0 0.0
        %4028 = vmatprep.subr.mxu0 0.0
        %4029 = vmatpush1.msra.mxu0 0.0
        %4030 = vmatprep.subr.mxu0 0.0
        %4031 = vmatpush1.msra.mxu0 0.0
        %4032 = vmatprep.subr.mxu0 0.0
        %4033 = vmatpush1.msra.mxu0 0.0
        %4034 = vmatprep.subr.mxu0 0.0
        %4035 = vmatpush1.msra.mxu0 0.0
        %4036 = vmatprep.subr.mxu0 0.0
        %4037 = vmatpush1.msra.mxu0 0.0
        %4038 = vmatprep.subr.mxu0 0.0
        %4039 = vmatpush1.msra.mxu0 0.0
        %4040 = vmatprep.subr.mxu0 0.0
        %4041 = vmatpush1.msra.mxu0 0.0
        %4042 = vmatprep.subr.mxu0 0.0
        %4043 = vmatpush1.msra.mxu0 0.0
        %4044 = vmatprep.subr.mxu0 0.0
        %4045 = vmatpush1.msra.mxu0 0.0
        %4046 = vmatprep.mubr.f32.mxu0 0.0
        %4047 = vmatmul.mubr.f32.gmra.mrb[0].mxu0 %v3944
        %v4048 = vpop.f32.mrb[0].mxu0
        %v4049 = vadd.f32 0.0, %v4048
        %v4050 = vpop.f32.mrb[0].mxu0
        %v4051 = vadd.f32 0.0, %v4050
        %4052 = vmatprep.mubr.f32.mxu0 0.0
        %4053 = vmatmul.mubr.f32.gmra.mrb[0].mxu0 %v3945
        %v4054 = vpop.f32.mrb[0].mxu0
        %v4055 = vadd.f32 0.0, %v4054
        %v4056 = vpop.f32.mrb[0].mxu0
        %v4057 = vadd.f32 0.0, %v4056
        %4058 = vdwg.mxu0
        %v4059 = vlaneseq
        %v4060 = vshrl.u32 %v4059, 7
        %v4061 = vsub.s32 0, %v4060
        %v4062 = vrot.slane %v3947, %v4061
        %v4063 = vmul.f32 %v4049, %v4062
        %v4064 = vmul.f32 %v4055, %v4062
        %v4065 = vlaneseq
        %v4066 = vshrl.u32 %v4065, 7
        %v4067 = vsub.s32 1, %v4066
        %v4068 = vrot.slane %v3947, %v4067
        %v4069 = vadd.f32 %v4063, %v4068
        %v4070 = vadd.f32 %v4064, %v4068
        %v4071 = vxor.u32 %v4069, 2147483648
        %v4072 = vxor.u32 %v4070, 2147483648
        %v4073 = vmul.f32 %v4071, 1.442695
        %v4074 = vpow.pop %v4073
        %v4075 = vmul.f32 %v4072, 1.442695
        %v4076 = vpow.pop %v4075
        %v4077 = vadd.f32 %v4074, 1.0
        %v4078 = vadd.f32 %v4076, 1.0
        %v4079 = vrcp.pop %v4077
        %v4080 = vmul.f32 1.0, %v4079
        %v4081 = vrcp.pop %v4078
        %v4082 = vmul.f32 1.0, %v4081
        %v4083 = vmul.f32 %v4069, %v4080
        %v4084 = vmul.f32 %v4070, %v4082
        %vm4085 = vcmask 130048
        %v4086 = vsel %vm4085, %v999, 0
        %4088 = vmatprep.subr.mxu0 0.0
        %4089 = vmatpush1.msra.mxu0 %v4083
        %4090 = vmatprep.subr.mxu0 0.0
        %4091 = vmatpush1.msra.mxu0 %v4084
        %4092 = vmatprep.subr.mxu0 0.0
        %4093 = vmatpush1.msra.mxu0 0.0
        %4094 = vmatprep.subr.mxu0 0.0
        %4095 = vmatpush1.msra.mxu0 0.0
        %4096 = vmatprep.subr.mxu0 0.0
        %4097 = vmatpush1.msra.mxu0 0.0
        %4098 = vmatprep.subr.mxu0 0.0
        %4099 = vmatpush1.msra.mxu0 0.0
        %4100 = vmatprep.subr.mxu0 0.0
        %4101 = vmatpush1.msra.mxu0 0.0
        %4102 = vmatprep.subr.mxu0 0.0
        %4103 = vmatpush1.msra.mxu0 0.0
        %4104 = vmatprep.subr.mxu0 0.0
        %4105 = vmatpush1.msra.mxu0 0.0
        %4106 = vmatprep.subr.mxu0 0.0
        %4107 = vmatpush1.msra.mxu0 0.0
        %4108 = vmatprep.subr.mxu0 0.0
        %4109 = vmatpush1.msra.mxu0 0.0
        %4110 = vmatprep.subr.mxu0 0.0
        %4111 = vmatpush1.msra.mxu0 0.0
        %4112 = vmatprep.subr.mxu0 0.0
        %4113 = vmatpush1.msra.mxu0 0.0
        %4114 = vmatprep.subr.mxu0 0.0
        %4115 = vmatpush1.msra.mxu0 0.0
        %4116 = vmatprep.subr.mxu0 0.0
        %4117 = vmatpush1.msra.mxu0 0.0
        %4118 = vmatprep.subr.mxu0 0.0
        %4119 = vmatpush1.msra.mxu0 0.0
        %4120 = vmatprep.subr.mxu0 0.0
        %4121 = vmatpush1.msra.mxu0 0.0
        %4122 = vmatprep.subr.mxu0 0.0
        %4123 = vmatpush1.msra.mxu0 0.0
        %4124 = vmatprep.subr.mxu0 0.0
        %4125 = vmatpush1.msra.mxu0 0.0
        %4126 = vmatprep.subr.mxu0 0.0
        %4127 = vmatpush1.msra.mxu0 0.0
        %4128 = vmatprep.subr.mxu0 0.0
        %4129 = vmatpush1.msra.mxu0 0.0
        %4130 = vmatprep.subr.mxu0 0.0
        %4131 = vmatpush1.msra.mxu0 0.0
        %4132 = vmatprep.subr.mxu0 0.0
        %4133 = vmatpush1.msra.mxu0 0.0
        %4134 = vmatprep.subr.mxu0 0.0
        %4135 = vmatpush1.msra.mxu0 0.0
        %4136 = vmatprep.subr.mxu0 0.0
        %4137 = vmatpush1.msra.mxu0 0.0
        %4138 = vmatprep.subr.mxu0 0.0
        %4139 = vmatpush1.msra.mxu0 0.0
        %4140 = vmatprep.subr.mxu0 0.0
        %4141 = vmatpush1.msra.mxu0 0.0
        %4142 = vmatprep.subr.mxu0 0.0
        %4143 = vmatpush1.msra.mxu0 0.0
        %4144 = vmatprep.subr.mxu0 0.0
        %4145 = vmatpush1.msra.mxu0 0.0
        %4146 = vmatprep.subr.mxu0 0.0
        %4147 = vmatpush1.msra.mxu0 0.0
        %4148 = vmatprep.subr.mxu0 0.0
        %4149 = vmatpush1.msra.mxu0 0.0
        %4150 = vmatprep.subr.mxu0 0.0
        %4151 = vmatpush1.msra.mxu0 0.0
        %4152 = vmatprep.mubr.f32.mxu0 0.0
        %4153 = vmatmul.mubr.f32.gmra.mrb[0].mxu0 %v4086
        %v4154 = vpop.f32.mrb[0].mxu0
        %v4155 = vadd.f32 0.0, %v4154
        %v4156 = vpop.f32.mrb[0].mxu0
        %4157 = vdwg.mxu0
        %s4158 = scalar_lea.vmem [#allocation8], 768
        %v4159 = vld [vmem:[%s4158] sm:$0xff]
        %v4160 = vld [vmem:[%s4158 + $0x8] sm:$0xff]
        %v4161 = vld [vmem:[%s4158 + $0x10] sm:$0xff]
        %v4162 = vld [vmem:[%s4158 + $0x18] sm:$0xff]
        %v4163 = vld [vmem:[%s4158 + $0x20] sm:$0xff]
        %v4164 = vld [vmem:[%s4158 + $0x28] sm:$0xff]
        %v4165 = vld [vmem:[%s4158 + $0x30] sm:$0xff]
        %v4166 = vld [vmem:[%s4158 + $0x38] sm:$0xff]
        %v4167 = vld [vmem:[%s4158 + $0x40] sm:$0xff]
        %v4168 = vld [vmem:[%s4158 + $0x48] sm:$0xff]
        %v4169 = vld [vmem:[%s4158 + $0x50] sm:$0xff]
        %v4170 = vld [vmem:[%s4158 + $0x58] sm:$0xff]
        %v4171 = vld [vmem:[%s4158 + $0x60] sm:$0xff]
        %v4172 = vld [vmem:[%s4158 + $0x68] sm:$0xff]
        %v4173 = vld [vmem:[%s4158 + $0x70] sm:$0xff]
        %v4174 = vld [vmem:[%s4158 + $0x78] sm:$0xff]
        %v4175 = vsel %vm4085, %v1160, 0
        %4177 = vmatprep.subr.mxu0 0.0
        %4178 = vmatpush1.msra.mxu0 %v4083
        %4179 = vmatprep.subr.mxu0 0.0
        %4180 = vmatpush1.msra.mxu0 %v4084
        %4181 = vmatprep.subr.mxu0 0.0
        %4182 = vmatpush1.msra.mxu0 0.0
        %4183 = vmatprep.subr.mxu0 0.0
        %4184 = vmatpush1.msra.mxu0 0.0
        %4185 = vmatprep.subr.mxu0 0.0
        %4186 = vmatpush1.msra.mxu0 0.0
        %4187 = vmatprep.subr.mxu0 0.0
        %4188 = vmatpush1.msra.mxu0 0.0
        %4189 = vmatprep.subr.mxu0 0.0
        %4190 = vmatpush1.msra.mxu0 0.0
        %4191 = vmatprep.subr.mxu0 0.0
        %4192 = vmatpush1.msra.mxu0 0.0
        %4193 = vmatprep.subr.mxu0 0.0
        %4194 = vmatpush1.msra.mxu0 0.0
        %4195 = vmatprep.subr.mxu0 0.0
        %4196 = vmatpush1.msra.mxu0 0.0
        %4197 = vmatprep.subr.mxu0 0.0
        %4198 = vmatpush1.msra.mxu0 0.0
        %4199 = vmatprep.subr.mxu0 0.0
        %4200 = vmatpush1.msra.mxu0 0.0
        %4201 = vmatprep.subr.mxu0 0.0
        %4202 = vmatpush1.msra.mxu0 0.0
        %4203 = vmatprep.subr.mxu0 0.0
        %4204 = vmatpush1.msra.mxu0 0.0
        %4205 = vmatprep.subr.mxu0 0.0
        %4206 = vmatpush1.msra.mxu0 0.0
        %4207 = vmatprep.subr.mxu0 0.0
        %4208 = vmatpush1.msra.mxu0 0.0
        %4209 = vmatprep.subr.mxu0 0.0
        %4210 = vmatpush1.msra.mxu0 0.0
        %4211 = vmatprep.subr.mxu0 0.0
        %4212 = vmatpush1.msra.mxu0 0.0
        %4213 = vmatprep.subr.mxu0 0.0
        %4214 = vmatpush1.msra.mxu0 0.0
        %4215 = vmatprep.subr.mxu0 0.0
        %4216 = vmatpush1.msra.mxu0 0.0
        %4217 = vmatprep.subr.mxu0 0.0
        %4218 = vmatpush1.msra.mxu0 0.0
        %4219 = vmatprep.subr.mxu0 0.0
        %4220 = vmatpush1.msra.mxu0 0.0
        %4221 = vmatprep.subr.mxu0 0.0
        %4222 = vmatpush1.msra.mxu0 0.0
        %4223 = vmatprep.subr.mxu0 0.0
        %4224 = vmatpush1.msra.mxu0 0.0
        %4225 = vmatprep.subr.mxu0 0.0
        %4226 = vmatpush1.msra.mxu0 0.0
        %4227 = vmatprep.subr.mxu0 0.0
        %4228 = vmatpush1.msra.mxu0 0.0
        %4229 = vmatprep.subr.mxu0 0.0
        %4230 = vmatpush1.msra.mxu0 0.0
        %4231 = vmatprep.subr.mxu0 0.0
        %4232 = vmatpush1.msra.mxu0 0.0
        %4233 = vmatprep.subr.mxu0 0.0
        %4234 = vmatpush1.msra.mxu0 0.0
        %4235 = vmatprep.subr.mxu0 0.0
        %4236 = vmatpush1.msra.mxu0 0.0
        %4237 = vmatprep.subr.mxu0 0.0
        %4238 = vmatpush1.msra.mxu0 0.0
        %4239 = vmatprep.subr.mxu0 0.0
        %4240 = vmatpush1.msra.mxu0 0.0
        %4241 = vmatprep.mubr.f32.mxu0 0.0
        %4242 = vmatmul.mubr.f32.gmra.mrb[0].mxu0 %v4175
        %v4243 = vpop.f32.mrb[0].mxu0
        %v4244 = vadd.f32 0.0, %v4243
        %v4245 = vpop.f32.mrb[0].mxu0
        %4246 = vdwg.mxu0
        %s4247 = scalar_lea.vmem [#allocation8], 896
        %v4248 = vld [vmem:[%s4247] sm:$0xff]
        %v4249 = vld [vmem:[%s4247 + $0x8] sm:$0xff]
        %v4250 = vld [vmem:[%s4247 + $0x10] sm:$0xff]
        %v4251 = vld [vmem:[%s4247 + $0x18] sm:$0xff]
        %v4252 = vld [vmem:[%s4247 + $0x20] sm:$0xff]
        %v4253 = vld [vmem:[%s4247 + $0x28] sm:$0xff]
        %v4254 = vld [vmem:[%s4247 + $0x30] sm:$0xff]
        %v4255 = vld [vmem:[%s4247 + $0x38] sm:$0xff]
        %v4256 = vld [vmem:[%s4247 + $0x40] sm:$0xff]
        %v4257 = vld [vmem:[%s4247 + $0x48] sm:$0xff]
        %v4258 = vld [vmem:[%s4247 + $0x50] sm:$0xff]
        %v4259 = vld [vmem:[%s4247 + $0x58] sm:$0xff]
        %v4260 = vld [vmem:[%s4247 + $0x60] sm:$0xff]
        %v4261 = vld [vmem:[%s4247 + $0x68] sm:$0xff]
        %v4262 = vld [vmem:[%s4247 + $0x70] sm:$0xff]
        %v4263 = vld [vmem:[%s4247 + $0x78] sm:$0xff]
        %4264 = vmatprep.subr.mxu0 0.0
        %4265 = vmatpush1.msra.mxu0 %v4248
        %4266 = vmatprep.subr.mxu0 0.0
        %4267 = vmatpush1.msra.mxu0 %v4249
        %4268 = vmatprep.subr.mxu0 0.0
        %4269 = vmatpush1.msra.mxu0 %v4250
        %4270 = vmatprep.subr.mxu0 0.0
        %4271 = vmatpush1.msra.mxu0 %v4251
        %4272 = vmatprep.subr.mxu0 0.0
        %4273 = vmatpush1.msra.mxu0 %v4252
        %4274 = vmatprep.subr.mxu0 0.0
        %4275 = vmatpush1.msra.mxu0 %v4253
        %4276 = vmatprep.subr.mxu0 0.0
        %4277 = vmatpush1.msra.mxu0 %v4254
        %4278 = vmatprep.subr.mxu0 0.0
        %4279 = vmatpush1.msra.mxu0 %v4255
        %4280 = vmatprep.subr.mxu0 0.0
        %4281 = vmatpush1.msra.mxu0 %v4256
        %4282 = vmatprep.subr.mxu0 0.0
        %4283 = vmatpush1.msra.mxu0 %v4257
        %4284 = vmatprep.subr.mxu0 0.0
        %4285 = vmatpush1.msra.mxu0 %v4258
        %4286 = vmatprep.subr.mxu0 0.0
        %4287 = vmatpush1.msra.mxu0 %v4259
        %4288 = vmatprep.subr.mxu0 0.0
        %4289 = vmatpush1.msra.mxu0 %v4260
        %4290 = vmatprep.subr.mxu0 0.0
        %4291 = vmatpush1.msra.mxu0 %v4261
        %4292 = vmatprep.subr.mxu0 0.0
        %4293 = vmatpush1.msra.mxu0 %v4262
        %4294 = vmatprep.subr.mxu0 0.0
        %4295 = vmatpush1.msra.mxu0 %v4263
        %4296 = vmatprep.subr.mxu0 0.0
        %4297 = vmatpush1.msra.mxu0 0.0
        %4298 = vmatprep.subr.mxu0 0.0
        %4299 = vmatpush1.msra.mxu0 0.0
        %4300 = vmatprep.subr.mxu0 0.0
        %4301 = vmatpush1.msra.mxu0 0.0
        %4302 = vmatprep.subr.mxu0 0.0
        %4303 = vmatpush1.msra.mxu0 0.0
        %4304 = vmatprep.subr.mxu0 0.0
        %4305 = vmatpush1.msra.mxu0 0.0
        %4306 = vmatprep.subr.mxu0 0.0
        %4307 = vmatpush1.msra.mxu0 0.0
        %4308 = vmatprep.subr.mxu0 0.0
        %4309 = vmatpush1.msra.mxu0 0.0
        %4310 = vmatprep.subr.mxu0 0.0
        %4311 = vmatpush1.msra.mxu0 0.0
        %4312 = vmatprep.subr.mxu0 0.0
        %4313 = vmatpush1.msra.mxu0 0.0
        %4314 = vmatprep.subr.mxu0 0.0
        %4315 = vmatpush1.msra.mxu0 0.0
        %4316 = vmatprep.subr.mxu0 0.0
        %4317 = vmatpush1.msra.mxu0 0.0
        %4318 = vmatprep.subr.mxu0 0.0
        %4319 = vmatpush1.msra.mxu0 0.0
        %4320 = vmatprep.subr.mxu0 0.0
        %4321 = vmatpush1.msra.mxu0 0.0
        %4322 = vmatprep.subr.mxu0 0.0
        %4323 = vmatpush1.msra.mxu0 0.0
        %4324 = vmatprep.subr.mxu0 0.0
        %4325 = vmatpush1.msra.mxu0 0.0
        %4326 = vmatprep.subr.mxu0 0.0
        %4327 = vmatpush1.msra.mxu0 0.0
        %4328 = vmatprep.mubr.f32.mxu0 0.0
        %4329 = vmatmul.mubr.f32.gmra.mrb[0].mxu0 %v4244
        %v4330 = vpop.f32.mrb[0].mxu0
        %v4331 = vadd.f32 0.0, %v4330
        %v4332 = vpop.f32.mrb[0].mxu0
        %4333 = vdwg.mxu0
        %4334 = vmatprep.subr.mxu0 0.0
        %4335 = vmatpush1.msra.mxu0 %v4159
        %4336 = vmatprep.subr.mxu0 0.0
        %4337 = vmatpush1.msra.mxu0 %v4160
        %4338 = vmatprep.subr.mxu0 0.0
        %4339 = vmatpush1.msra.mxu0 %v4161
        %4340 = vmatprep.subr.mxu0 0.0
        %4341 = vmatpush1.msra.mxu0 %v4162
        %4342 = vmatprep.subr.mxu0 0.0
        %4343 = vmatpush1.msra.mxu0 %v4163
        %4344 = vmatprep.subr.mxu0 0.0
        %4345 = vmatpush1.msra.mxu0 %v4164
        %4346 = vmatprep.subr.mxu0 0.0
        %4347 = vmatpush1.msra.mxu0 %v4165
        %4348 = vmatprep.subr.mxu0 0.0
        %4349 = vmatpush1.msra.mxu0 %v4166
        %4350 = vmatprep.subr.mxu0 0.0
        %4351 = vmatpush1.msra.mxu0 %v4167
        %4352 = vmatprep.subr.mxu0 0.0
        %4353 = vmatpush1.msra.mxu0 %v4168
        %4354 = vmatprep.subr.mxu0 0.0
        %4355 = vmatpush1.msra.mxu0 %v4169
        %4356 = vmatprep.subr.mxu0 0.0
        %4357 = vmatpush1.msra.mxu0 %v4170
        %4358 = vmatprep.subr.mxu0 0.0
        %4359 = vmatpush1.msra.mxu0 %v4171
        %4360 = vmatprep.subr.mxu0 0.0
        %4361 = vmatpush1.msra.mxu0 %v4172
        %4362 = vmatprep.subr.mxu0 0.0
        %4363 = vmatpush1.msra.mxu0 %v4173
        %4364 = vmatprep.subr.mxu0 0.0
        %4365 = vmatpush1.msra.mxu0 %v4174
        %4366 = vmatprep.subr.mxu0 0.0
        %4367 = vmatpush1.msra.mxu0 0.0
        %4368 = vmatprep.subr.mxu0 0.0
        %4369 = vmatpush1.msra.mxu0 0.0
        %4370 = vmatprep.subr.mxu0 0.0
        %4371 = vmatpush1.msra.mxu0 0.0
        %4372 = vmatprep.subr.mxu0 0.0
        %4373 = vmatpush1.msra.mxu0 0.0
        %4374 = vmatprep.subr.mxu0 0.0
        %4375 = vmatpush1.msra.mxu0 0.0
        %4376 = vmatprep.subr.mxu0 0.0
        %4377 = vmatpush1.msra.mxu0 0.0
        %4378 = vmatprep.subr.mxu0 0.0
        %4379 = vmatpush1.msra.mxu0 0.0
        %4380 = vmatprep.subr.mxu0 0.0
        %4381 = vmatpush1.msra.mxu0 0.0
        %4382 = vmatprep.subr.mxu0 0.0
        %4383 = vmatpush1.msra.mxu0 0.0
        %4384 = vmatprep.subr.mxu0 0.0
        %4385 = vmatpush1.msra.mxu0 0.0
        %4386 = vmatprep.subr.mxu0 0.0
        %4387 = vmatpush1.msra.mxu0 0.0
        %4388 = vmatprep.subr.mxu0 0.0
        %4389 = vmatpush1.msra.mxu0 0.0
        %4390 = vmatprep.subr.mxu0 0.0
        %4391 = vmatpush1.msra.mxu0 0.0
        %4392 = vmatprep.subr.mxu0 0.0
        %4393 = vmatpush1.msra.mxu0 0.0
        %4394 = vmatprep.subr.mxu0 0.0
        %4395 = vmatpush1.msra.mxu0 0.0
        %4396 = vmatprep.subr.mxu0 0.0
        %4397 = vmatpush1.msra.mxu0 0.0
        %4398 = vmatprep.mubr.f32.mxu0 0.0
        %4399 = vmatmul.mubr.f32.gmra.mrb[0].mxu0 %v4155
        %v4400 = vpop.f32.mrb[0].mxu0
        %v4401 = vadd.f32 %v4331, %v4400
        %v4402 = vpop.f32.mrb[0].mxu0
        %4403 = vdwg.mxu0
        %v4404 = vsel %vm4085, %v1337, 0
        %4406 = vmatprep.subr.mxu0 0.0
        %4407 = vmatpush1.msra.mxu0 %v4083
        %4408 = vmatprep.subr.mxu0 0.0
        %4409 = vmatpush1.msra.mxu0 %v4084
        %4410 = vmatprep.subr.mxu0 0.0
        %4411 = vmatpush1.msra.mxu0 0.0
        %4412 = vmatprep.subr.mxu0 0.0
        %4413 = vmatpush1.msra.mxu0 0.0
        %4414 = vmatprep.subr.mxu0 0.0
        %4415 = vmatpush1.msra.mxu0 0.0
        %4416 = vmatprep.subr.mxu0 0.0
        %4417 = vmatpush1.msra.mxu0 0.0
        %4418 = vmatprep.subr.mxu0 0.0
        %4419 = vmatpush1.msra.mxu0 0.0
        %4420 = vmatprep.subr.mxu0 0.0
        %4421 = vmatpush1.msra.mxu0 0.0
        %4422 = vmatprep.subr.mxu0 0.0
        %4423 = vmatpush1.msra.mxu0 0.0
        %4424 = vmatprep.subr.mxu0 0.0
        %4425 = vmatpush1.msra.mxu0 0.0
        %4426 = vmatprep.subr.mxu0 0.0
        %4427 = vmatpush1.msra.mxu0 0.0
        %4428 = vmatprep.subr.mxu0 0.0
        %4429 = vmatpush1.msra.mxu0 0.0
        %4430 = vmatprep.subr.mxu0 0.0
        %4431 = vmatpush1.msra.mxu0 0.0
        %4432 = vmatprep.subr.mxu0 0.0
        %4433 = vmatpush1.msra.mxu0 0.0
        %4434 = vmatprep.subr.mxu0 0.0
        %4435 = vmatpush1.msra.mxu0 0.0
        %4436 = vmatprep.subr.mxu0 0.0
        %4437 = vmatpush1.msra.mxu0 0.0
        %4438 = vmatprep.subr.mxu0 0.0
        %4439 = vmatpush1.msra.mxu0 0.0
        %4440 = vmatprep.subr.mxu0 0.0
        %4441 = vmatpush1.msra.mxu0 0.0
        %4442 = vmatprep.subr.mxu0 0.0
        %4443 = vmatpush1.msra.mxu0 0.0
        %4444 = vmatprep.subr.mxu0 0.0
        %4445 = vmatpush1.msra.mxu0 0.0
        %4446 = vmatprep.subr.mxu0 0.0
        %4447 = vmatpush1.msra.mxu0 0.0
        %4448 = vmatprep.subr.mxu0 0.0
        %4449 = vmatpush1.msra.mxu0 0.0
        %4450 = vmatprep.subr.mxu0 0.0
        %4451 = vmatpush1.msra.mxu0 0.0
        %4452 = vmatprep.subr.mxu0 0.0
        %4453 = vmatpush1.msra.mxu0 0.0
        %4454 = vmatprep.subr.mxu0 0.0
        %4455 = vmatpush1.msra.mxu0 0.0
        %4456 = vmatprep.subr.mxu0 0.0
        %4457 = vmatpush1.msra.mxu0 0.0
        %4458 = vmatprep.subr.mxu0 0.0
        %4459 = vmatpush1.msra.mxu0 0.0
        %4460 = vmatprep.subr.mxu0 0.0
        %4461 = vmatpush1.msra.mxu0 0.0
        %4462 = vmatprep.subr.mxu0 0.0
        %4463 = vmatpush1.msra.mxu0 0.0
        %4464 = vmatprep.subr.mxu0 0.0
        %4465 = vmatpush1.msra.mxu0 0.0
        %4466 = vmatprep.subr.mxu0 0.0
        %4467 = vmatpush1.msra.mxu0 0.0
        %4468 = vmatprep.subr.mxu0 0.0
        %4469 = vmatpush1.msra.mxu0 0.0
        %4470 = vmatprep.mubr.f32.mxu0 0.0
        %4471 = vmatmul.mubr.f32.gmra.mrb[0].mxu0 %v4404
        %v4472 = vpop.f32.mrb[0].mxu0
        %v4473 = vadd.f32 0.0, %v4472
        %v4474 = vpop.f32.mrb[0].mxu0
        %4475 = vdwg.mxu0
        %s4476 = scalar_lea.vmem [#allocation8], 1024
        %v4477 = vld [vmem:[%s4476] sm:$0xff]
        %v4478 = vld [vmem:[%s4476 + $0x8] sm:$0xff]
        %v4479 = vld [vmem:[%s4476 + $0x10] sm:$0xff]
        %v4480 = vld [vmem:[%s4476 + $0x18] sm:$0xff]
        %v4481 = vld [vmem:[%s4476 + $0x20] sm:$0xff]
        %v4482 = vld [vmem:[%s4476 + $0x28] sm:$0xff]
        %v4483 = vld [vmem:[%s4476 + $0x30] sm:$0xff]
        %v4484 = vld [vmem:[%s4476 + $0x38] sm:$0xff]
        %v4485 = vld [vmem:[%s4476 + $0x40] sm:$0xff]
        %v4486 = vld [vmem:[%s4476 + $0x48] sm:$0xff]
        %v4487 = vld [vmem:[%s4476 + $0x50] sm:$0xff]
        %v4488 = vld [vmem:[%s4476 + $0x58] sm:$0xff]
        %v4489 = vld [vmem:[%s4476 + $0x60] sm:$0xff]
        %v4490 = vld [vmem:[%s4476 + $0x68] sm:$0xff]
        %v4491 = vld [vmem:[%s4476 + $0x70] sm:$0xff]
        %v4492 = vld [vmem:[%s4476 + $0x78] sm:$0xff]
        %4493 = vmatprep.subr.mxu0 0.0
        %4494 = vmatpush1.msra.mxu0 %v4477
        %4495 = vmatprep.subr.mxu0 0.0
        %4496 = vmatpush1.msra.mxu0 %v4478
        %4497 = vmatprep.subr.mxu0 0.0
        %4498 = vmatpush1.msra.mxu0 %v4479
        %4499 = vmatprep.subr.mxu0 0.0
        %4500 = vmatpush1.msra.mxu0 %v4480
        %4501 = vmatprep.subr.mxu0 0.0
        %4502 = vmatpush1.msra.mxu0 %v4481
        %4503 = vmatprep.subr.mxu0 0.0
        %4504 = vmatpush1.msra.mxu0 %v4482
        %4505 = vmatprep.subr.mxu0 0.0
        %4506 = vmatpush1.msra.mxu0 %v4483
        %4507 = vmatprep.subr.mxu0 0.0
        %4508 = vmatpush1.msra.mxu0 %v4484
        %4509 = vmatprep.subr.mxu0 0.0
        %4510 = vmatpush1.msra.mxu0 %v4485
        %4511 = vmatprep.subr.mxu0 0.0
        %4512 = vmatpush1.msra.mxu0 %v4486
        %4513 = vmatprep.subr.mxu0 0.0
        %4514 = vmatpush1.msra.mxu0 %v4487
        %4515 = vmatprep.subr.mxu0 0.0
        %4516 = vmatpush1.msra.mxu0 %v4488
        %4517 = vmatprep.subr.mxu0 0.0
        %4518 = vmatpush1.msra.mxu0 %v4489
        %4519 = vmatprep.subr.mxu0 0.0
        %4520 = vmatpush1.msra.mxu0 %v4490
        %4521 = vmatprep.subr.mxu0 0.0
        %4522 = vmatpush1.msra.mxu0 %v4491
        %4523 = vmatprep.subr.mxu0 0.0
        %4524 = vmatpush1.msra.mxu0 %v4492
        %4525 = vmatprep.subr.mxu0 0.0
        %4526 = vmatpush1.msra.mxu0 0.0
        %4527 = vmatprep.subr.mxu0 0.0
        %4528 = vmatpush1.msra.mxu0 0.0
        %4529 = vmatprep.subr.mxu0 0.0
        %4530 = vmatpush1.msra.mxu0 0.0
        %4531 = vmatprep.subr.mxu0 0.0
        %4532 = vmatpush1.msra.mxu0 0.0
        %4533 = vmatprep.subr.mxu0 0.0
        %4534 = vmatpush1.msra.mxu0 0.0
        %4535 = vmatprep.subr.mxu0 0.0
        %4536 = vmatpush1.msra.mxu0 0.0
        %4537 = vmatprep.subr.mxu0 0.0
        %4538 = vmatpush1.msra.mxu0 0.0
        %4539 = vmatprep.subr.mxu0 0.0
        %4540 = vmatpush1.msra.mxu0 0.0
        %4541 = vmatprep.subr.mxu0 0.0
        %4542 = vmatpush1.msra.mxu0 0.0
        %4543 = vmatprep.subr.mxu0 0.0
        %4544 = vmatpush1.msra.mxu0 0.0
        %4545 = vmatprep.subr.mxu0 0.0
        %4546 = vmatpush1.msra.mxu0 0.0
        %4547 = vmatprep.subr.mxu0 0.0
        %4548 = vmatpush1.msra.mxu0 0.0
        %4549 = vmatprep.subr.mxu0 0.0
        %4550 = vmatpush1.msra.mxu0 0.0
        %4551 = vmatprep.subr.mxu0 0.0
        %4552 = vmatpush1.msra.mxu0 0.0
        %4553 = vmatprep.subr.mxu0 0.0
        %4554 = vmatpush1.msra.mxu0 0.0
        %4555 = vmatprep.subr.mxu0 0.0
        %4556 = vmatpush1.msra.mxu0 0.0
        %4557 = vmatprep.mubr.f32.mxu0 0.0
        %4558 = vmatmul.mubr.f32.gmra.mrb[0].mxu0 %v4473
        %v4559 = vpop.f32.mrb[0].mxu0
        %v4560 = vadd.f32 0.0, %v4559
        %v4561 = vpop.f32.mrb[0].mxu0
        %4562 = vdwg.mxu0
        %v4563 = vadd.f32 %v4401, %v4560
        %v4564 = vlaneseq
        %v4565 = vshrl.u32 %v4564, 7
        %v4566 = vsub.s32 2, %v4565
        %v4567 = vrot.slane %v3947, %v4566
        %v4568 = vmul.f32 %v4563, %v4567
        %v4569 = vlaneseq
        %v4570 = vshrl.u32 %v4569, 7
        %v4571 = vsub.s32 3, %v4570
        %v4572 = vrot.slane %v3947, %v4571
        %v4573 = vadd.f32 %v4568, %v4572
        %v4574 = vxor.u32 %v4573, 2147483648
        %v4575 = vmul.f32 %v4574, 1.442695
        %v4576 = vpow.pop %v4575
        %v4577 = vadd.f32 %v4576, 1.0
        %v4578 = vrcp.pop %v4577
        %v4579 = vmul.f32 1.0, %v4578
        %v4580 = vmul.f32 %v4573, %v4579
        %s4581 = scalar_lea.vmem [#allocation10], 256
        %v4582 = vld [vmem:[%s4581] sm:$0xff]
        %v4583 = vld [vmem:[%s4581 + $0x8] sm:$0xff]
        %v4584 = vld [vmem:[%s4581 + $0x10] sm:$0xff]
        %v4585 = vld [vmem:[%s4581 + $0x18] sm:$0xff]
        %v4586 = vld [vmem:[%s4581 + $0x20] sm:$0xff]
        %v4587 = vld [vmem:[%s4581 + $0x28] sm:$0xff]
        %v4588 = vld [vmem:[%s4581 + $0x30] sm:$0xff]
        %v4589 = vld [vmem:[%s4581 + $0x38] sm:$0xff]
        %v4590 = vld [vmem:[%s4581 + $0x40] sm:$0xff]
        %v4591 = vld [vmem:[%s4581 + $0x48] sm:$0xff]
        %v4592 = vld [vmem:[%s4581 + $0x50] sm:$0xff]
        %v4593 = vld [vmem:[%s4581 + $0x58] sm:$0xff]
        %v4594 = vld [vmem:[%s4581 + $0x60] sm:$0xff]
        %v4595 = vld [vmem:[%s4581 + $0x68] sm:$0xff]
        %v4596 = vld [vmem:[%s4581 + $0x70] sm:$0xff]
        %v4597 = vld [vmem:[%s4581 + $0x78] sm:$0xff]
        %4598 = vmatprep.subr.mxu0 0.0
        %4599 = vmatpush1.msra.mxu0 %v4582
        %4600 = vmatprep.subr.mxu0 0.0
        %4601 = vmatpush1.msra.mxu0 %v4583
        %4602 = vmatprep.subr.mxu0 0.0
        %4603 = vmatpush1.msra.mxu0 %v4584
        %4604 = vmatprep.subr.mxu0 0.0
        %4605 = vmatpush1.msra.mxu0 %v4585
        %4606 = vmatprep.subr.mxu0 0.0
        %4607 = vmatpush1.msra.mxu0 %v4586
        %4608 = vmatprep.subr.mxu0 0.0
        %4609 = vmatpush1.msra.mxu0 %v4587
        %4610 = vmatprep.subr.mxu0 0.0
        %4611 = vmatpush1.msra.mxu0 %v4588
        %4612 = vmatprep.subr.mxu0 0.0
        %4613 = vmatpush1.msra.mxu0 %v4589
        %4614 = vmatprep.subr.mxu0 0.0
        %4615 = vmatpush1.msra.mxu0 %v4590
        %4616 = vmatprep.subr.mxu0 0.0
        %4617 = vmatpush1.msra.mxu0 %v4591
        %4618 = vmatprep.subr.mxu0 0.0
        %4619 = vmatpush1.msra.mxu0 %v4592
        %4620 = vmatprep.subr.mxu0 0.0
        %4621 = vmatpush1.msra.mxu0 %v4593
        %4622 = vmatprep.subr.mxu0 0.0
        %4623 = vmatpush1.msra.mxu0 %v4594
        %4624 = vmatprep.subr.mxu0 0.0
        %4625 = vmatpush1.msra.mxu0 %v4595
        %4626 = vmatprep.subr.mxu0 0.0
        %4627 = vmatpush1.msra.mxu0 %v4596
        %4628 = vmatprep.subr.mxu0 0.0
        %4629 = vmatpush1.msra.mxu0 %v4597
        %4630 = vmatprep.subr.mxu0 0.0
        %4631 = vmatpush1.msra.mxu0 0.0
        %4632 = vmatprep.subr.mxu0 0.0
        %4633 = vmatpush1.msra.mxu0 0.0
        %4634 = vmatprep.subr.mxu0 0.0
        %4635 = vmatpush1.msra.mxu0 0.0
        %4636 = vmatprep.subr.mxu0 0.0
        %4637 = vmatpush1.msra.mxu0 0.0
        %4638 = vmatprep.subr.mxu0 0.0
        %4639 = vmatpush1.msra.mxu0 0.0
        %4640 = vmatprep.subr.mxu0 0.0
        %4641 = vmatpush1.msra.mxu0 0.0
        %4642 = vmatprep.subr.mxu0 0.0
        %4643 = vmatpush1.msra.mxu0 0.0
        %4644 = vmatprep.subr.mxu0 0.0
        %4645 = vmatpush1.msra.mxu0 0.0
        %4646 = vmatprep.subr.mxu0 0.0
        %4647 = vmatpush1.msra.mxu0 0.0
        %4648 = vmatprep.subr.mxu0 0.0
        %4649 = vmatpush1.msra.mxu0 0.0
        %4650 = vmatprep.subr.mxu0 0.0
        %4651 = vmatpush1.msra.mxu0 0.0
        %4652 = vmatprep.subr.mxu0 0.0
        %4653 = vmatpush1.msra.mxu0 0.0
        %4654 = vmatprep.subr.mxu0 0.0
        %4655 = vmatpush1.msra.mxu0 0.0
        %4656 = vmatprep.subr.mxu0 0.0
        %4657 = vmatpush1.msra.mxu0 0.0
        %4658 = vmatprep.subr.mxu0 0.0
        %4659 = vmatpush1.msra.mxu0 0.0
        %4660 = vmatprep.subr.mxu0 0.0
        %4661 = vmatpush1.msra.mxu0 0.0
        %4662 = vmatprep.mubr.f32.mxu0 0.0
        %4663 = vmatmul.mubr.f32.gmra.mrb[0].mxu0 %v4580
        %v4664 = vpop.f32.mrb[0].mxu0
        %v4665 = vadd.f32 0.0, %v4664
        %v4666 = vpop.f32.mrb[0].mxu0
        %4667 = vdwg.mxu0
        %v4668 = vlaneseq
        %v4669 = vshrl.u32 %v4668, 7
        %v4670 = vsub.s32 4, %v4669
        %v4671 = vrot.slane %v3947, %v4670
        %v4672 = vmul.f32 %v4665, %v4671
        %v4673 = vlaneseq
        %v4674 = vshrl.u32 %v4673, 7
        %v4675 = vsub.s32 5, %v4674
        %v4676 = vrot.slane %v3947, %v4675
        %v4677 = vadd.f32 %v4672, %v4676
        %v4678 = vrot.slane %v4677, 4
        %v4679 = vadd.f32 %v4677, %v4678
        %v4680 = vrot.slane %v4679, 2
        %v4681 = vadd.f32 %v4679, %v4680
        %v4682 = vrot.slane %v4681, 1
        %v4683 = vadd.f32 %v4681, %v4682
        %v4684 = vrcp.pop 8.0
        %v4685 = vmul.f32 %v4683, %v4684
        %s4686 = scalar_lea.vmem [#allocation11], 256
        %v4687 = vld [vmem:[%s4686] sm:$0xff]
        %v4688 = vld [vmem:[%s4686 + $0x8] sm:$0xff]
        %v4689 = vld [vmem:[%s4686 + $0x10] sm:$0xff]
        %v4690 = vld [vmem:[%s4686 + $0x18] sm:$0xff]
        %v4691 = vld [vmem:[%s4686 + $0x20] sm:$0xff]
        %v4692 = vld [vmem:[%s4686 + $0x28] sm:$0xff]
        %v4693 = vld [vmem:[%s4686 + $0x30] sm:$0xff]
        %v4694 = vld [vmem:[%s4686 + $0x38] sm:$0xff]
        %v4695 = vld [vmem:[%s4686 + $0x40] sm:$0xff]
        %v4696 = vld [vmem:[%s4686 + $0x48] sm:$0xff]
        %v4697 = vld [vmem:[%s4686 + $0x50] sm:$0xff]
        %v4698 = vld [vmem:[%s4686 + $0x58] sm:$0xff]
        %v4699 = vld [vmem:[%s4686 + $0x60] sm:$0xff]
        %v4700 = vld [vmem:[%s4686 + $0x68] sm:$0xff]
        %v4701 = vld [vmem:[%s4686 + $0x70] sm:$0xff]
        %v4702 = vld [vmem:[%s4686 + $0x78] sm:$0xff]
        %v4704 = vrot.slane %v3947, 6
        %4706 = vmatprep.subr.mxu0 0.0
        %4707 = vmatpush1.msra.mxu0 %v4687
        %4708 = vmatprep.subr.mxu0 0.0
        %4709 = vmatpush1.msra.mxu0 %v4688
        %4710 = vmatprep.subr.mxu0 0.0
        %4711 = vmatpush1.msra.mxu0 %v4689
        %4712 = vmatprep.subr.mxu0 0.0
        %4713 = vmatpush1.msra.mxu0 %v4690
        %4714 = vmatprep.subr.mxu0 0.0
        %4715 = vmatpush1.msra.mxu0 %v4691
        %4716 = vmatprep.subr.mxu0 0.0
        %4717 = vmatpush1.msra.mxu0 %v4692
        %4718 = vmatprep.subr.mxu0 0.0
        %4719 = vmatpush1.msra.mxu0 %v4693
        %4720 = vmatprep.subr.mxu0 0.0
        %4721 = vmatpush1.msra.mxu0 %v4694
        %4722 = vmatprep.subr.mxu0 0.0
        %4723 = vmatpush1.msra.mxu0 %v4695
        %4724 = vmatprep.subr.mxu0 0.0
        %4725 = vmatpush1.msra.mxu0 %v4696
        %4726 = vmatprep.subr.mxu0 0.0
        %4727 = vmatpush1.msra.mxu0 %v4697
        %4728 = vmatprep.subr.mxu0 0.0
        %4729 = vmatpush1.msra.mxu0 %v4698
        %4730 = vmatprep.subr.mxu0 0.0
        %4731 = vmatpush1.msra.mxu0 %v4699
        %4732 = vmatprep.subr.mxu0 0.0
        %4733 = vmatpush1.msra.mxu0 %v4700
        %4734 = vmatprep.subr.mxu0 0.0
        %4735 = vmatpush1.msra.mxu0 %v4701
        %4736 = vmatprep.subr.mxu0 0.0
        %4737 = vmatpush1.msra.mxu0 %v4702
        %4738 = vmatprep.subr.mxu0 0.0
        %4739 = vmatpush1.msra.mxu0 0.0
        %4740 = vmatprep.subr.mxu0 0.0
        %4741 = vmatpush1.msra.mxu0 0.0
        %4742 = vmatprep.subr.mxu0 0.0
        %4743 = vmatpush1.msra.mxu0 0.0
        %4744 = vmatprep.subr.mxu0 0.0
        %4745 = vmatpush1.msra.mxu0 0.0
        %4746 = vmatprep.subr.mxu0 0.0
        %4747 = vmatpush1.msra.mxu0 0.0
        %4748 = vmatprep.subr.mxu0 0.0
        %4749 = vmatpush1.msra.mxu0 0.0
        %4750 = vmatprep.subr.mxu0 0.0
        %4751 = vmatpush1.msra.mxu0 0.0
        %4752 = vmatprep.subr.mxu0 0.0
        %4753 = vmatpush1.msra.mxu0 0.0
        %4754 = vmatprep.subr.mxu0 0.0
        %4755 = vmatpush1.msra.mxu0 0.0
        %4756 = vmatprep.subr.mxu0 0.0
        %4757 = vmatpush1.msra.mxu0 0.0
        %4758 = vmatprep.subr.mxu0 0.0
        %4759 = vmatpush1.msra.mxu0 0.0
        %4760 = vmatprep.subr.mxu0 0.0
        %4761 = vmatpush1.msra.mxu0 0.0
        %4762 = vmatprep.subr.mxu0 0.0
        %4763 = vmatpush1.msra.mxu0 0.0
        %4764 = vmatprep.subr.mxu0 0.0
        %4765 = vmatpush1.msra.mxu0 0.0
        %4766 = vmatprep.subr.mxu0 0.0
        %4767 = vmatpush1.msra.mxu0 0.0
        %4768 = vmatprep.subr.mxu0 0.0
        %4769 = vmatpush1.msra.mxu0 0.0
        %4770 = vmatprep.mubr.f32.mxu0 0.0
        %4771 = vmatmul.mubr.f32.gmra.mrb[0].mxu0 %v4685
        %v4772 = vpop.f32.mrb[0].mxu0
        %v4773 = vadd.f32 %v4704, %v4772
        %v4774 = vpop.f32.mrb[0].mxu0
        %4775 = vdwg.mxu0
        %v4776 = vxor.u32 %v4773, 2147483648
        %v4777 = vmul.f32 %v4776, 1.442695
        %v4778 = vpow.pop %v4777
        %v4779 = vadd.f32 %v4778, 1.0
        %v4780 = vrcp.pop %v4779
        %v4781 = vmul.f32 1.0, %v4780
        %v4782 = vmul.f32 %v4773, %v4781
        %s4783 = scalar_lea.vmem %s7, 256
        %v4784 = vld [vmem:[%s4783] sm:$0xff]
        %v4785 = vld [vmem:[%s4783 + $0x8] sm:$0xff]
        %v4786 = vld [vmem:[%s4783 + $0x10] sm:$0xff]
        %v4787 = vld [vmem:[%s4783 + $0x18] sm:$0xff]
        %v4788 = vld [vmem:[%s4783 + $0x20] sm:$0xff]
        %v4789 = vld [vmem:[%s4783 + $0x28] sm:$0xff]
        %v4790 = vld [vmem:[%s4783 + $0x30] sm:$0xff]
        %v4791 = vld [vmem:[%s4783 + $0x38] sm:$0xff]
        %v4792 = vld [vmem:[%s4783 + $0x40] sm:$0xff]
        %v4793 = vld [vmem:[%s4783 + $0x48] sm:$0xff]
        %v4794 = vld [vmem:[%s4783 + $0x50] sm:$0xff]
        %v4795 = vld [vmem:[%s4783 + $0x58] sm:$0xff]
        %v4796 = vld [vmem:[%s4783 + $0x60] sm:$0xff]
        %v4797 = vld [vmem:[%s4783 + $0x68] sm:$0xff]
        %v4798 = vld [vmem:[%s4783 + $0x70] sm:$0xff]
        %v4799 = vld [vmem:[%s4783 + $0x78] sm:$0xff]
        %v4800 = vrot.slane %v3947, 7
        %4802 = vmatprep.subr.mxu0 0.0
        %4803 = vmatpush1.msra.mxu0 %v4784
        %4804 = vmatprep.subr.mxu0 0.0
        %4805 = vmatpush1.msra.mxu0 %v4785
        %4806 = vmatprep.subr.mxu0 0.0
        %4807 = vmatpush1.msra.mxu0 %v4786
        %4808 = vmatprep.subr.mxu0 0.0
        %4809 = vmatpush1.msra.mxu0 %v4787
        %4810 = vmatprep.subr.mxu0 0.0
        %4811 = vmatpush1.msra.mxu0 %v4788
        %4812 = vmatprep.subr.mxu0 0.0
        %4813 = vmatpush1.msra.mxu0 %v4789
        %4814 = vmatprep.subr.mxu0 0.0
        %4815 = vmatpush1.msra.mxu0 %v4790
        %4816 = vmatprep.subr.mxu0 0.0
        %4817 = vmatpush1.msra.mxu0 %v4791
        %4818 = vmatprep.subr.mxu0 0.0
        %4819 = vmatpush1.msra.mxu0 %v4792
        %4820 = vmatprep.subr.mxu0 0.0
        %4821 = vmatpush1.msra.mxu0 %v4793
        %4822 = vmatprep.subr.mxu0 0.0
        %4823 = vmatpush1.msra.mxu0 %v4794
        %4824 = vmatprep.subr.mxu0 0.0
        %4825 = vmatpush1.msra.mxu0 %v4795
        %4826 = vmatprep.subr.mxu0 0.0
        %4827 = vmatpush1.msra.mxu0 %v4796
        %4828 = vmatprep.subr.mxu0 0.0
        %4829 = vmatpush1.msra.mxu0 %v4797
        %4830 = vmatprep.subr.mxu0 0.0
        %4831 = vmatpush1.msra.mxu0 %v4798
        %4832 = vmatprep.subr.mxu0 0.0
        %4833 = vmatpush1.msra.mxu0 %v4799
        %4834 = vmatprep.subr.mxu0 0.0
        %4835 = vmatpush1.msra.mxu0 0.0
        %4836 = vmatprep.subr.mxu0 0.0
        %4837 = vmatpush1.msra.mxu0 0.0
        %4838 = vmatprep.subr.mxu0 0.0
        %4839 = vmatpush1.msra.mxu0 0.0
        %4840 = vmatprep.subr.mxu0 0.0
        %4841 = vmatpush1.msra.mxu0 0.0
        %4842 = vmatprep.subr.mxu0 0.0
        %4843 = vmatpush1.msra.mxu0 0.0
        %4844 = vmatprep.subr.mxu0 0.0
        %4845 = vmatpush1.msra.mxu0 0.0
        %4846 = vmatprep.subr.mxu0 0.0
        %4847 = vmatpush1.msra.mxu0 0.0
        %4848 = vmatprep.subr.mxu0 0.0
        %4849 = vmatpush1.msra.mxu0 0.0
        %4850 = vmatprep.subr.mxu0 0.0
        %4851 = vmatpush1.msra.mxu0 0.0
        %4852 = vmatprep.subr.mxu0 0.0
        %4853 = vmatpush1.msra.mxu0 0.0
        %4854 = vmatprep.subr.mxu0 0.0
        %4855 = vmatpush1.msra.mxu0 0.0
        %4856 = vmatprep.subr.mxu0 0.0
        %4857 = vmatpush1.msra.mxu0 0.0
        %4858 = vmatprep.subr.mxu0 0.0
        %4859 = vmatpush1.msra.mxu0 0.0
        %4860 = vmatprep.subr.mxu0 0.0
        %4861 = vmatpush1.msra.mxu0 0.0
        %4862 = vmatprep.subr.mxu0 0.0
        %4863 = vmatpush1.msra.mxu0 0.0
        %4864 = vmatprep.subr.mxu0 0.0
        %4865 = vmatpush1.msra.mxu0 0.0
        %4866 = vmatprep.mubr.f32.mxu0 0.0
        %4867 = vmatmul.mubr.f32.gmra.mrb[0].mxu0 %v4782
        %v4868 = vpop.f32.mrb[0].mxu0
        %v4869 = vadd.f32 %v4800, %v4868
        %v4870 = vpop.f32.mrb[0].mxu0
        %4871 = vdwg.mxu0
        %v4872 = vxor.u32 %v4869, 2147483648
        %v4873 = vmul.f32 %v4872, 1.442695
        %v4874 = vpow.pop %v4873
        %v4875 = vadd.f32 %v4874, 1.0
        %v4876 = vrcp.pop %v4875
        %v4877 = vmul.f32 1.0, %v4876
        %4878 = vmatprep.subr.mxu0 0.0
        %4879 = vmatpush1.msra.mxu0 %v4051
        %4880 = vmatprep.subr.mxu0 0.0
        %4881 = vmatpush1.msra.mxu0 %v4057
        %4882 = vmatprep.subr.mxu0 0.0
        %4883 = vmatpush1.msra.mxu0 0.0
        %4884 = vmatprep.subr.mxu0 0.0
        %4885 = vmatpush1.msra.mxu0 0.0
        %4886 = vmatprep.subr.mxu0 0.0
        %4887 = vmatpush1.msra.mxu0 0.0
        %4888 = vmatprep.subr.mxu0 0.0
        %4889 = vmatpush1.msra.mxu0 0.0
        %4890 = vmatprep.subr.mxu0 0.0
        %4891 = vmatpush1.msra.mxu0 0.0
        %4892 = vmatprep.subr.mxu0 0.0
        %4893 = vmatpush1.msra.mxu0 0.0
        %4894 = vmatprep.subr.mxu0 0.0
        %4895 = vmatpush1.msra.mxu0 0.0
        %4896 = vmatprep.subr.mxu0 0.0
        %4897 = vmatpush1.msra.mxu0 0.0
        %4898 = vmatprep.subr.mxu0 0.0
        %4899 = vmatpush1.msra.mxu0 0.0
        %4900 = vmatprep.subr.mxu0 0.0
        %4901 = vmatpush1.msra.mxu0 0.0
        %4902 = vmatprep.subr.mxu0 0.0
        %4903 = vmatpush1.msra.mxu0 0.0
        %4904 = vmatprep.subr.mxu0 0.0
        %4905 = vmatpush1.msra.mxu0 0.0
        %4906 = vmatprep.subr.mxu0 0.0
        %4907 = vmatpush1.msra.mxu0 0.0
        %4908 = vmatprep.subr.mxu0 0.0
        %4909 = vmatpush1.msra.mxu0 0.0
        %4910 = vmatprep.subr.mxu0 0.0
        %4911 = vmatpush1.msra.mxu0 0.0
        %4912 = vmatprep.subr.mxu0 0.0
        %4913 = vmatpush1.msra.mxu0 0.0
        %4914 = vmatprep.subr.mxu0 0.0
        %4915 = vmatpush1.msra.mxu0 0.0
        %4916 = vmatprep.subr.mxu0 0.0
        %4917 = vmatpush1.msra.mxu0 0.0
        %4918 = vmatprep.subr.mxu0 0.0
        %4919 = vmatpush1.msra.mxu0 0.0
        %4920 = vmatprep.subr.mxu0 0.0
        %4921 = vmatpush1.msra.mxu0 0.0
        %4922 = vmatprep.subr.mxu0 0.0
        %4923 = vmatpush1.msra.mxu0 0.0
        %4924 = vmatprep.subr.mxu0 0.0
        %4925 = vmatpush1.msra.mxu0 0.0
        %4926 = vmatprep.subr.mxu0 0.0
        %4927 = vmatpush1.msra.mxu0 0.0
        %4928 = vmatprep.subr.mxu0 0.0
        %4929 = vmatpush1.msra.mxu0 0.0
        %4930 = vmatprep.subr.mxu0 0.0
        %4931 = vmatpush1.msra.mxu0 0.0
        %4932 = vmatprep.subr.mxu0 0.0
        %4933 = vmatpush1.msra.mxu0 0.0
        %4934 = vmatprep.subr.mxu0 0.0
        %4935 = vmatpush1.msra.mxu0 0.0
        %4936 = vmatprep.subr.mxu0 0.0
        %4937 = vmatpush1.msra.mxu0 0.0
        %4938 = vmatprep.subr.mxu0 0.0
        %4939 = vmatpush1.msra.mxu0 0.0
        %4940 = vmatprep.subr.mxu0 0.0
        %4941 = vmatpush1.msra.mxu0 0.0
        %4942 = vmatprep.mubr.f32.mxu0 0.0
        %4943 = vmatmul.mubr.f32.gmra.mrb[0].mxu0 %v4175
        %v4944 = vpop.f32.mrb[0].mxu0
        %v4945 = vadd.f32 0.0, %v4944
        %v4946 = vpop.f32.mrb[0].mxu0
        %4947 = vdwg.mxu0
        %v4948 = vlaneseq
        %v4949 = vshrl.u32 %v4948, 7
        %v4950 = vsub.s32 0, %v4949
        %v4951 = vrot.slane %v3948, %v4950
        %v4952 = vmul.f32 %v4945, %v4951
        %v4953 = vlaneseq
        %v4954 = vshrl.u32 %v4953, 7
        %v4955 = vsub.s32 1, %v4954
        %v4956 = vrot.slane %v3948, %v4955
        %v4957 = vadd.f32 %v4952, %v4956
        %v4958 = vlaneseq
        %v4959 = vshrl.u32 %v4958, 7
        %v4960 = vsub.s32 0, %v4959
        %v4961 = vrot.slane %v4877, %v4960
        %v4962 = vmul.f32 %v4677, %v4961
        %v4963 = vadd.f32 %v4962, %v4957
        %v4964 = vxor.u32 %v4963, 2147483648
        %v4965 = vmul.f32 %v4964, 1.442695
        %v4966 = vpow.pop %v4965
        %v4967 = vadd.f32 %v4966, 1.0
        %v4968 = vrcp.pop %v4967
        %v4969 = vmul.f32 1.0, %v4968
        %v4970 = vmul.f32 %v4963, %v4969
        %s4971 = scalar_lea.vmem [#allocation13], 48
        %v4972 = vld [vmem:[%s4971] sm:$0xff]
        %v4973 = vld [vmem:[%s4971 + $0x8] sm:$0xff]
        %s4974 = scalar_lea.vmem [#allocation7], 768
        %v4975 = vld [vmem:[%s4974] sm:$0xff]
        %v4976 = vld [vmem:[%s4974 + $0x8] sm:$0xff]
        %v4977 = vld [vmem:[%s4974 + $0x10] sm:$0xff]
        %v4978 = vld [vmem:[%s4974 + $0x18] sm:$0xff]
        %v4979 = vld [vmem:[%s4974 + $0x20] sm:$0xff]
        %v4980 = vld [vmem:[%s4974 + $0x28] sm:$0xff]
        %v4981 = vld [vmem:[%s4974 + $0x30] sm:$0xff]
        %v4982 = vld [vmem:[%s4974 + $0x38] sm:$0xff]
        %v4983 = vld [vmem:[%s4974 + $0x40] sm:$0xff]
        %v4984 = vld [vmem:[%s4974 + $0x48] sm:$0xff]
        %v4985 = vld [vmem:[%s4974 + $0x50] sm:$0xff]
        %v4986 = vld [vmem:[%s4974 + $0x58] sm:$0xff]
        %v4987 = vld [vmem:[%s4974 + $0x60] sm:$0xff]
        %v4988 = vld [vmem:[%s4974 + $0x68] sm:$0xff]
        %v4989 = vld [vmem:[%s4974 + $0x70] sm:$0xff]
        %v4990 = vld [vmem:[%s4974 + $0x78] sm:$0xff]
        %v4991 = vld [vmem:[%s4974 + $0x80] sm:$0xff]
        %v4992 = vld [vmem:[%s4974 + $0x88] sm:$0xff]
        %v4993 = vld [vmem:[%s4974 + $0x90] sm:$0xff]
        %v4994 = vld [vmem:[%s4974 + $0x98] sm:$0xff]
        %v4995 = vld [vmem:[%s4974 + $0xa0] sm:$0xff]
        %v4996 = vld [vmem:[%s4974 + $0xa8] sm:$0xff]
        %v4997 = vld [vmem:[%s4974 + $0xb0] sm:$0xff]
        %v4998 = vld [vmem:[%s4974 + $0xb8] sm:$0xff]
        %v4999 = vld [vmem:[%s4974 + $0xc0] sm:$0xff]
        %v5000 = vld [vmem:[%s4974 + $0xc8] sm:$0xff]
        %v5001 = vld [vmem:[%s4974 + $0xd0] sm:$0xff]
        %v5002 = vld [vmem:[%s4974 + $0xd8] sm:$0xff]
        %v5003 = vld [vmem:[%s4974 + $0xe0] sm:$0xff]
        %v5004 = vld [vmem:[%s4974 + $0xe8] sm:$0xff]
        %v5005 = vld [vmem:[%s4974 + $0xf0] sm:$0xff]
        %v5006 = vld [vmem:[%s4974 + $0xf8] sm:$0xff]
        %5007 = vmatprep.subr.mxu0 %v4976
        %5008 = vmatpush1.msra.mxu0 %v4975
        %5009 = vmatprep.subr.mxu0 %v4978
        %5010 = vmatpush1.msra.mxu0 %v4977
        %5011 = vmatprep.subr.mxu0 %v4980
        %5012 = vmatpush1.msra.mxu0 %v4979
        %5013 = vmatprep.subr.mxu0 %v4982
        %5014 = vmatpush1.msra.mxu0 %v4981
        %5015 = vmatprep.subr.mxu0 %v4984
        %5016 = vmatpush1.msra.mxu0 %v4983
        %5017 = vmatprep.subr.mxu0 %v4986
        %5018 = vmatpush1.msra.mxu0 %v4985
        %5019 = vmatprep.subr.mxu0 %v4988
        %5020 = vmatpush1.msra.mxu0 %v4987
        %5021 = vmatprep.subr.mxu0 %v4990
        %5022 = vmatpush1.msra.mxu0 %v4989
        %5023 = vmatprep.subr.mxu0 %v4992
        %5024 = vmatpush1.msra.mxu0 %v4991
        %5025 = vmatprep.subr.mxu0 %v4994
        %5026 = vmatpush1.msra.mxu0 %v4993
        %5027 = vmatprep.subr.mxu0 %v4996
        %5028 = vmatpush1.msra.mxu0 %v4995
        %5029 = vmatprep.subr.mxu0 %v4998
        %5030 = vmatpush1.msra.mxu0 %v4997
        %5031 = vmatprep.subr.mxu0 %v5000
        %5032 = vmatpush1.msra.mxu0 %v4999
        %5033 = vmatprep.subr.mxu0 %v5002
        %5034 = vmatpush1.msra.mxu0 %v5001
        %5035 = vmatprep.subr.mxu0 %v5004
        %5036 = vmatpush1.msra.mxu0 %v5003
        %5037 = vmatprep.subr.mxu0 %v5006
        %5038 = vmatpush1.msra.mxu0 %v5005
        %5039 = vmatprep.subr.mxu0 0.0
        %5040 = vmatpush1.msra.mxu0 0.0
        %5041 = vmatprep.subr.mxu0 0.0
        %5042 = vmatpush1.msra.mxu0 0.0
        %5043 = vmatprep.subr.mxu0 0.0
        %5044 = vmatpush1.msra.mxu0 0.0
        %5045 = vmatprep.subr.mxu0 0.0
        %5046 = vmatpush1.msra.mxu0 0.0
        %5047 = vmatprep.subr.mxu0 0.0
        %5048 = vmatpush1.msra.mxu0 0.0
        %5049 = vmatprep.subr.mxu0 0.0
        %5050 = vmatpush1.msra.mxu0 0.0
        %5051 = vmatprep.subr.mxu0 0.0
        %5052 = vmatpush1.msra.mxu0 0.0
        %5053 = vmatprep.subr.mxu0 0.0
        %5054 = vmatpush1.msra.mxu0 0.0
        %5055 = vmatprep.subr.mxu0 0.0
        %5056 = vmatpush1.msra.mxu0 0.0
        %5057 = vmatprep.subr.mxu0 0.0
        %5058 = vmatpush1.msra.mxu0 0.0
        %5059 = vmatprep.subr.mxu0 0.0
        %5060 = vmatpush1.msra.mxu0 0.0
        %5061 = vmatprep.subr.mxu0 0.0
        %5062 = vmatpush1.msra.mxu0 0.0
        %5063 = vmatprep.subr.mxu0 0.0
        %5064 = vmatpush1.msra.mxu0 0.0
        %5065 = vmatprep.subr.mxu0 0.0
        %5066 = vmatpush1.msra.mxu0 0.0
        %5067 = vmatprep.subr.mxu0 0.0
        %5068 = vmatpush1.msra.mxu0 0.0
        %5069 = vmatprep.subr.mxu0 0.0
        %5070 = vmatpush1.msra.mxu0 0.0
        %5071 = vmatprep.mubr.f32.mxu0 0.0
        %5072 = vmatmul.mubr.f32.gmra.mrb[0].mxu0 %v4970
        %v5073 = vpop.f32.mrb[0].mxu0
        %v5074 = vadd.f32 0.0, %v5073
        %v5075 = vpop.f32.mrb[0].mxu0
        %v5076 = vadd.f32 0.0, %v5075
        %5077 = vdwg.mxu0
        %v5078 = vlaneseq
        %v5079 = vshrl.u32 %v5078, 7
        %v5080 = vsub.s32 0, %v5079
        %v5081 = vrot.slane %v4972, %v5080
        %v5082 = vmul.f32 %v5074, %v5081
        %v5083 = vlaneseq
        %v5084 = vshrl.u32 %v5083, 7
        %v5085 = vsub.s32 1, %v5084
        %v5086 = vrot.slane %v4972, %v5085
        %v5087 = vadd.f32 %v5082, %v5086
        %v5088 = vxor.u32 %v5087, 2147483648
        %v5089 = vmul.f32 %v5088, 1.442695
        %v5090 = vpow.pop %v5089
        %v5091 = vadd.f32 %v5090, 1.0
        %v5092 = vrcp.pop %v5091
        %v5093 = vmul.f32 1.0, %v5092
        %v5094 = vmul.f32 %v5087, %v5093
        %v5095 = vsel %vm610, %v999, 0
        %5097 = vmatprep.subr.mxu0 0.0
        %5098 = vmatpush1.msra.mxu0 %v5094
        %5099 = vmatprep.subr.mxu0 0.0
        %5100 = vmatpush1.msra.mxu0 0.0
        %5101 = vmatprep.subr.mxu0 0.0
        %5102 = vmatpush1.msra.mxu0 0.0
        %5103 = vmatprep.subr.mxu0 0.0
        %5104 = vmatpush1.msra.mxu0 0.0
        %5105 = vmatprep.subr.mxu0 0.0
        %5106 = vmatpush1.msra.mxu0 0.0
        %5107 = vmatprep.subr.mxu0 0.0
        %5108 = vmatpush1.msra.mxu0 0.0
        %5109 = vmatprep.subr.mxu0 0.0
        %5110 = vmatpush1.msra.mxu0 0.0
        %5111 = vmatprep.subr.mxu0 0.0
        %5112 = vmatpush1.msra.mxu0 0.0
        %5113 = vmatprep.subr.mxu0 0.0
        %5114 = vmatpush1.msra.mxu0 0.0
        %5115 = vmatprep.subr.mxu0 0.0
        %5116 = vmatpush1.msra.mxu0 0.0
        %5117 = vmatprep.subr.mxu0 0.0
        %5118 = vmatpush1.msra.mxu0 0.0
        %5119 = vmatprep.subr.mxu0 0.0
        %5120 = vmatpush1.msra.mxu0 0.0
        %5121 = vmatprep.subr.mxu0 0.0
        %5122 = vmatpush1.msra.mxu0 0.0
        %5123 = vmatprep.subr.mxu0 0.0
        %5124 = vmatpush1.msra.mxu0 0.0
        %5125 = vmatprep.subr.mxu0 0.0
        %5126 = vmatpush1.msra.mxu0 0.0
        %5127 = vmatprep.subr.mxu0 0.0
        %5128 = vmatpush1.msra.mxu0 0.0
        %5129 = vmatprep.subr.mxu0 0.0
        %5130 = vmatpush1.msra.mxu0 0.0
        %5131 = vmatprep.subr.mxu0 0.0
        %5132 = vmatpush1.msra.mxu0 0.0
        %5133 = vmatprep.subr.mxu0 0.0
        %5134 = vmatpush1.msra.mxu0 0.0
        %5135 = vmatprep.subr.mxu0 0.0
        %5136 = vmatpush1.msra.mxu0 0.0
        %5137 = vmatprep.subr.mxu0 0.0
        %5138 = vmatpush1.msra.mxu0 0.0
        %5139 = vmatprep.subr.mxu0 0.0
        %5140 = vmatpush1.msra.mxu0 0.0
        %5141 = vmatprep.subr.mxu0 0.0
        %5142 = vmatpush1.msra.mxu0 0.0
        %5143 = vmatprep.subr.mxu0 0.0
        %5144 = vmatpush1.msra.mxu0 0.0
        %5145 = vmatprep.subr.mxu0 0.0
        %5146 = vmatpush1.msra.mxu0 0.0
        %5147 = vmatprep.subr.mxu0 0.0
        %5148 = vmatpush1.msra.mxu0 0.0
        %5149 = vmatprep.subr.mxu0 0.0
        %5150 = vmatpush1.msra.mxu0 0.0
        %5151 = vmatprep.subr.mxu0 0.0
        %5152 = vmatpush1.msra.mxu0 0.0
        %5153 = vmatprep.subr.mxu0 0.0
        %5154 = vmatpush1.msra.mxu0 0.0
        %5155 = vmatprep.subr.mxu0 0.0
        %5156 = vmatpush1.msra.mxu0 0.0
        %5157 = vmatprep.subr.mxu0 0.0
        %5158 = vmatpush1.msra.mxu0 0.0
        %5159 = vmatprep.subr.mxu0 0.0
        %5160 = vmatpush1.msra.mxu0 0.0
        %5161 = vmatprep.mubr.f32.mxu0 0.0
        %5162 = vmatmul.mubr.f32.gmra.mrb[0].mxu0 %v5095
        %v5163 = vpop.f32.mrb[0].mxu0
        %v5164 = vadd.f32 0.0, %v5163
        %v5165 = vpop.f32.mrb[0].mxu0
        %5166 = vdwg.mxu0
        %s5167 = scalar_lea.vmem [#allocation8], 1152
        %v5168 = vld [vmem:[%s5167] sm:$0xff]
        %v5169 = vld [vmem:[%s5167 + $0x8] sm:$0xff]
        %v5170 = vld [vmem:[%s5167 + $0x10] sm:$0xff]
        %v5171 = vld [vmem:[%s5167 + $0x18] sm:$0xff]
        %v5172 = vld [vmem:[%s5167 + $0x20] sm:$0xff]
        %v5173 = vld [vmem:[%s5167 + $0x28] sm:$0xff]
        %v5174 = vld [vmem:[%s5167 + $0x30] sm:$0xff]
        %v5175 = vld [vmem:[%s5167 + $0x38] sm:$0xff]
        %v5176 = vld [vmem:[%s5167 + $0x40] sm:$0xff]
        %v5177 = vld [vmem:[%s5167 + $0x48] sm:$0xff]
        %v5178 = vld [vmem:[%s5167 + $0x50] sm:$0xff]
        %v5179 = vld [vmem:[%s5167 + $0x58] sm:$0xff]
        %v5180 = vld [vmem:[%s5167 + $0x60] sm:$0xff]
        %v5181 = vld [vmem:[%s5167 + $0x68] sm:$0xff]
        %v5182 = vld [vmem:[%s5167 + $0x70] sm:$0xff]
        %v5183 = vld [vmem:[%s5167 + $0x78] sm:$0xff]
        %v5184 = vsel %vm610, %v1160, 0
        %5186 = vmatprep.subr.mxu0 0.0
        %5187 = vmatpush1.msra.mxu0 %v5094
        %5188 = vmatprep.subr.mxu0 0.0
        %5189 = vmatpush1.msra.mxu0 0.0
        %5190 = vmatprep.subr.mxu0 0.0
        %5191 = vmatpush1.msra.mxu0 0.0
        %5192 = vmatprep.subr.mxu0 0.0
        %5193 = vmatpush1.msra.mxu0 0.0
        %5194 = vmatprep.subr.mxu0 0.0
        %5195 = vmatpush1.msra.mxu0 0.0
        %5196 = vmatprep.subr.mxu0 0.0
        %5197 = vmatpush1.msra.mxu0 0.0
        %5198 = vmatprep.subr.mxu0 0.0
        %5199 = vmatpush1.msra.mxu0 0.0
        %5200 = vmatprep.subr.mxu0 0.0
        %5201 = vmatpush1.msra.mxu0 0.0
        %5202 = vmatprep.subr.mxu0 0.0
        %5203 = vmatpush1.msra.mxu0 0.0
        %5204 = vmatprep.subr.mxu0 0.0
        %5205 = vmatpush1.msra.mxu0 0.0
        %5206 = vmatprep.subr.mxu0 0.0
        %5207 = vmatpush1.msra.mxu0 0.0
        %5208 = vmatprep.subr.mxu0 0.0
        %5209 = vmatpush1.msra.mxu0 0.0
        %5210 = vmatprep.subr.mxu0 0.0
        %5211 = vmatpush1.msra.mxu0 0.0
        %5212 = vmatprep.subr.mxu0 0.0
        %5213 = vmatpush1.msra.mxu0 0.0
        %5214 = vmatprep.subr.mxu0 0.0
        %5215 = vmatpush1.msra.mxu0 0.0
        %5216 = vmatprep.subr.mxu0 0.0
        %5217 = vmatpush1.msra.mxu0 0.0
        %5218 = vmatprep.subr.mxu0 0.0
        %5219 = vmatpush1.msra.mxu0 0.0
        %5220 = vmatprep.subr.mxu0 0.0
        %5221 = vmatpush1.msra.mxu0 0.0
        %5222 = vmatprep.subr.mxu0 0.0
        %5223 = vmatpush1.msra.mxu0 0.0
        %5224 = vmatprep.subr.mxu0 0.0
        %5225 = vmatpush1.msra.mxu0 0.0
        %5226 = vmatprep.subr.mxu0 0.0
        %5227 = vmatpush1.msra.mxu0 0.0
        %5228 = vmatprep.subr.mxu0 0.0
        %5229 = vmatpush1.msra.mxu0 0.0
        %5230 = vmatprep.subr.mxu0 0.0
        %5231 = vmatpush1.msra.mxu0 0.0
        %5232 = vmatprep.subr.mxu0 0.0
        %5233 = vmatpush1.msra.mxu0 0.0
        %5234 = vmatprep.subr.mxu0 0.0
        %5235 = vmatpush1.msra.mxu0 0.0
        %5236 = vmatprep.subr.mxu0 0.0
        %5237 = vmatpush1.msra.mxu0 0.0
        %5238 = vmatprep.subr.mxu0 0.0
        %5239 = vmatpush1.msra.mxu0 0.0
        %5240 = vmatprep.subr.mxu0 0.0
        %5241 = vmatpush1.msra.mxu0 0.0
        %5242 = vmatprep.subr.mxu0 0.0
        %5243 = vmatpush1.msra.mxu0 0.0
        %5244 = vmatprep.subr.mxu0 0.0
        %5245 = vmatpush1.msra.mxu0 0.0
        %5246 = vmatprep.subr.mxu0 0.0
        %5247 = vmatpush1.msra.mxu0 0.0
        %5248 = vmatprep.subr.mxu0 0.0
        %5249 = vmatpush1.msra.mxu0 0.0
        %5250 = vmatprep.mubr.f32.mxu0 0.0
        %5251 = vmatmul.mubr.f32.gmra.mrb[0].mxu0 %v5184
        %v5252 = vpop.f32.mrb[0].mxu0
        %v5253 = vadd.f32 0.0, %v5252
        %v5254 = vpop.f32.mrb[0].mxu0
        %5255 = vdwg.mxu0
        %s5256 = scalar_lea.vmem [#allocation8], 1280
        %v5257 = vld [vmem:[%s5256] sm:$0xff]
        %v5258 = vld [vmem:[%s5256 + $0x8] sm:$0xff]
        %v5259 = vld [vmem:[%s5256 + $0x10] sm:$0xff]
        %v5260 = vld [vmem:[%s5256 + $0x18] sm:$0xff]
        %v5261 = vld [vmem:[%s5256 + $0x20] sm:$0xff]
        %v5262 = vld [vmem:[%s5256 + $0x28] sm:$0xff]
        %v5263 = vld [vmem:[%s5256 + $0x30] sm:$0xff]
        %v5264 = vld [vmem:[%s5256 + $0x38] sm:$0xff]
        %v5265 = vld [vmem:[%s5256 + $0x40] sm:$0xff]
        %v5266 = vld [vmem:[%s5256 + $0x48] sm:$0xff]
        %v5267 = vld [vmem:[%s5256 + $0x50] sm:$0xff]
        %v5268 = vld [vmem:[%s5256 + $0x58] sm:$0xff]
        %v5269 = vld [vmem:[%s5256 + $0x60] sm:$0xff]
        %v5270 = vld [vmem:[%s5256 + $0x68] sm:$0xff]
        %v5271 = vld [vmem:[%s5256 + $0x70] sm:$0xff]
        %v5272 = vld [vmem:[%s5256 + $0x78] sm:$0xff]
        %5273 = vmatprep.subr.mxu0 0.0
        %5274 = vmatpush1.msra.mxu0 %v5257
        %5275 = vmatprep.subr.mxu0 0.0
        %5276 = vmatpush1.msra.mxu0 %v5258
        %5277 = vmatprep.subr.mxu0 0.0
        %5278 = vmatpush1.msra.mxu0 %v5259
        %5279 = vmatprep.subr.mxu0 0.0
        %5280 = vmatpush1.msra.mxu0 %v5260
        %5281 = vmatprep.subr.mxu0 0.0
        %5282 = vmatpush1.msra.mxu0 %v5261
        %5283 = vmatprep.subr.mxu0 0.0
        %5284 = vmatpush1.msra.mxu0 %v5262
        %5285 = vmatprep.subr.mxu0 0.0
        %5286 = vmatpush1.msra.mxu0 %v5263
        %5287 = vmatprep.subr.mxu0 0.0
        %5288 = vmatpush1.msra.mxu0 %v5264
        %5289 = vmatprep.subr.mxu0 0.0
        %5290 = vmatpush1.msra.mxu0 %v5265
        %5291 = vmatprep.subr.mxu0 0.0
        %5292 = vmatpush1.msra.mxu0 %v5266
        %5293 = vmatprep.subr.mxu0 0.0
        %5294 = vmatpush1.msra.mxu0 %v5267
        %5295 = vmatprep.subr.mxu0 0.0
        %5296 = vmatpush1.msra.mxu0 %v5268
        %5297 = vmatprep.subr.mxu0 0.0
        %5298 = vmatpush1.msra.mxu0 %v5269
        %5299 = vmatprep.subr.mxu0 0.0
        %5300 = vmatpush1.msra.mxu0 %v5270
        %5301 = vmatprep.subr.mxu0 0.0
        %5302 = vmatpush1.msra.mxu0 %v5271
        %5303 = vmatprep.subr.mxu0 0.0
        %5304 = vmatpush1.msra.mxu0 %v5272
        %5305 = vmatprep.subr.mxu0 0.0
        %5306 = vmatpush1.msra.mxu0 0.0
        %5307 = vmatprep.subr.mxu0 0.0
        %5308 = vmatpush1.msra.mxu0 0.0
        %5309 = vmatprep.subr.mxu0 0.0
        %5310 = vmatpush1.msra.mxu0 0.0
        %5311 = vmatprep.subr.mxu0 0.0
        %5312 = vmatpush1.msra.mxu0 0.0
        %5313 = vmatprep.subr.mxu0 0.0
        %5314 = vmatpush1.msra.mxu0 0.0
        %5315 = vmatprep.subr.mxu0 0.0
        %5316 = vmatpush1.msra.mxu0 0.0
        %5317 = vmatprep.subr.mxu0 0.0
        %5318 = vmatpush1.msra.mxu0 0.0
        %5319 = vmatprep.subr.mxu0 0.0
        %5320 = vmatpush1.msra.mxu0 0.0
        %5321 = vmatprep.subr.mxu0 0.0
        %5322 = vmatpush1.msra.mxu0 0.0
        %5323 = vmatprep.subr.mxu0 0.0
        %5324 = vmatpush1.msra.mxu0 0.0
        %5325 = vmatprep.subr.mxu0 0.0
        %5326 = vmatpush1.msra.mxu0 0.0
        %5327 = vmatprep.subr.mxu0 0.0
        %5328 = vmatpush1.msra.mxu0 0.0
        %5329 = vmatprep.subr.mxu0 0.0
        %5330 = vmatpush1.msra.mxu0 0.0
        %5331 = vmatprep.subr.mxu0 0.0
        %5332 = vmatpush1.msra.mxu0 0.0
        %5333 = vmatprep.subr.mxu0 0.0
        %5334 = vmatpush1.msra.mxu0 0.0
        %5335 = vmatprep.subr.mxu0 0.0
        %5336 = vmatpush1.msra.mxu0 0.0
        %5337 = vmatprep.mubr.f32.mxu0 0.0
        %5338 = vmatmul.mubr.f32.gmra.mrb[0].mxu0 %v5253
        %v5339 = vpop.f32.mrb[0].mxu0
        %v5340 = vadd.f32 0.0, %v5339
        %v5341 = vpop.f32.mrb[0].mxu0
        %5342 = vdwg.mxu0
        %5343 = vmatprep.subr.mxu0 0.0
        %5344 = vmatpush1.msra.mxu0 %v5168
        %5345 = vmatprep.subr.mxu0 0.0
        %5346 = vmatpush1.msra.mxu0 %v5169
        %5347 = vmatprep.subr.mxu0 0.0
        %5348 = vmatpush1.msra.mxu0 %v5170
        %5349 = vmatprep.subr.mxu0 0.0
        %5350 = vmatpush1.msra.mxu0 %v5171
        %5351 = vmatprep.subr.mxu0 0.0
        %5352 = vmatpush1.msra.mxu0 %v5172
        %5353 = vmatprep.subr.mxu0 0.0
        %5354 = vmatpush1.msra.mxu0 %v5173
        %5355 = vmatprep.subr.mxu0 0.0
        %5356 = vmatpush1.msra.mxu0 %v5174
        %5357 = vmatprep.subr.mxu0 0.0
        %5358 = vmatpush1.msra.mxu0 %v5175
        %5359 = vmatprep.subr.mxu0 0.0
        %5360 = vmatpush1.msra.mxu0 %v5176
        %5361 = vmatprep.subr.mxu0 0.0
        %5362 = vmatpush1.msra.mxu0 %v5177
        %5363 = vmatprep.subr.mxu0 0.0
        %5364 = vmatpush1.msra.mxu0 %v5178
        %5365 = vmatprep.subr.mxu0 0.0
        %5366 = vmatpush1.msra.mxu0 %v5179
        %5367 = vmatprep.subr.mxu0 0.0
        %5368 = vmatpush1.msra.mxu0 %v5180
        %5369 = vmatprep.subr.mxu0 0.0
        %5370 = vmatpush1.msra.mxu0 %v5181
        %5371 = vmatprep.subr.mxu0 0.0
        %5372 = vmatpush1.msra.mxu0 %v5182
        %5373 = vmatprep.subr.mxu0 0.0
        %5374 = vmatpush1.msra.mxu0 %v5183
        %5375 = vmatprep.subr.mxu0 0.0
        %5376 = vmatpush1.msra.mxu0 0.0
        %5377 = vmatprep.subr.mxu0 0.0
        %5378 = vmatpush1.msra.mxu0 0.0
        %5379 = vmatprep.subr.mxu0 0.0
        %5380 = vmatpush1.msra.mxu0 0.0
        %5381 = vmatprep.subr.mxu0 0.0
        %5382 = vmatpush1.msra.mxu0 0.0
        %5383 = vmatprep.subr.mxu0 0.0
        %5384 = vmatpush1.msra.mxu0 0.0
        %5385 = vmatprep.subr.mxu0 0.0
        %5386 = vmatpush1.msra.mxu0 0.0
        %5387 = vmatprep.subr.mxu0 0.0
        %5388 = vmatpush1.msra.mxu0 0.0
        %5389 = vmatprep.subr.mxu0 0.0
        %5390 = vmatpush1.msra.mxu0 0.0
        %5391 = vmatprep.subr.mxu0 0.0
        %5392 = vmatpush1.msra.mxu0 0.0
        %5393 = vmatprep.subr.mxu0 0.0
        %5394 = vmatpush1.msra.mxu0 0.0
        %5395 = vmatprep.subr.mxu0 0.0
        %5396 = vmatpush1.msra.mxu0 0.0
        %5397 = vmatprep.subr.mxu0 0.0
        %5398 = vmatpush1.msra.mxu0 0.0
        %5399 = vmatprep.subr.mxu0 0.0
        %5400 = vmatpush1.msra.mxu0 0.0
        %5401 = vmatprep.subr.mxu0 0.0
        %5402 = vmatpush1.msra.mxu0 0.0
        %5403 = vmatprep.subr.mxu0 0.0
        %5404 = vmatpush1.msra.mxu0 0.0
        %5405 = vmatprep.subr.mxu0 0.0
        %5406 = vmatpush1.msra.mxu0 0.0
        %5407 = vmatprep.mubr.f32.mxu0 0.0
        %5408 = vmatmul.mubr.f32.gmra.mrb[0].mxu0 %v5164
        %v5409 = vpop.f32.mrb[0].mxu0
        %v5410 = vadd.f32 %v5340, %v5409
        %v5411 = vpop.f32.mrb[0].mxu0
        %5412 = vdwg.mxu0
        %v5413 = vsel %vm610, %v1337, 0
        %5415 = vmatprep.subr.mxu0 0.0
        %5416 = vmatpush1.msra.mxu0 %v5094
        %5417 = vmatprep.subr.mxu0 0.0
        %5418 = vmatpush1.msra.mxu0 0.0
        %5419 = vmatprep.subr.mxu0 0.0
        %5420 = vmatpush1.msra.mxu0 0.0
        %5421 = vmatprep.subr.mxu0 0.0
        %5422 = vmatpush1.msra.mxu0 0.0
        %5423 = vmatprep.subr.mxu0 0.0
        %5424 = vmatpush1.msra.mxu0 0.0
        %5425 = vmatprep.subr.mxu0 0.0
        %5426 = vmatpush1.msra.mxu0 0.0
        %5427 = vmatprep.subr.mxu0 0.0
        %5428 = vmatpush1.msra.mxu0 0.0
        %5429 = vmatprep.subr.mxu0 0.0
        %5430 = vmatpush1.msra.mxu0 0.0
        %5431 = vmatprep.subr.mxu0 0.0
        %5432 = vmatpush1.msra.mxu0 0.0
        %5433 = vmatprep.subr.mxu0 0.0
        %5434 = vmatpush1.msra.mxu0 0.0
        %5435 = vmatprep.subr.mxu0 0.0
        %5436 = vmatpush1.msra.mxu0 0.0
        %5437 = vmatprep.subr.mxu0 0.0
        %5438 = vmatpush1.msra.mxu0 0.0
        %5439 = vmatprep.subr.mxu0 0.0
        %5440 = vmatpush1.msra.mxu0 0.0
        %5441 = vmatprep.subr.mxu0 0.0
        %5442 = vmatpush1.msra.mxu0 0.0
        %5443 = vmatprep.subr.mxu0 0.0
        %5444 = vmatpush1.msra.mxu0 0.0
        %5445 = vmatprep.subr.mxu0 0.0
        %5446 = vmatpush1.msra.mxu0 0.0
        %5447 = vmatprep.subr.mxu0 0.0
        %5448 = vmatpush1.msra.mxu0 0.0
        %5449 = vmatprep.subr.mxu0 0.0
        %5450 = vmatpush1.msra.mxu0 0.0
        %5451 = vmatprep.subr.mxu0 0.0
        %5452 = vmatpush1.msra.mxu0 0.0
        %5453 = vmatprep.subr.mxu0 0.0
        %5454 = vmatpush1.msra.mxu0 0.0
        %5455 = vmatprep.subr.mxu0 0.0
        %5456 = vmatpush1.msra.mxu0 0.0
        %5457 = vmatprep.subr.mxu0 0.0
        %5458 = vmatpush1.msra.mxu0 0.0
        %5459 = vmatprep.subr.mxu0 0.0
        %5460 = vmatpush1.msra.mxu0 0.0
        %5461 = vmatprep.subr.mxu0 0.0
        %5462 = vmatpush1.msra.mxu0 0.0
        %5463 = vmatprep.subr.mxu0 0.0
        %5464 = vmatpush1.msra.mxu0 0.0
        %5465 = vmatprep.subr.mxu0 0.0
        %5466 = vmatpush1.msra.mxu0 0.0
        %5467 = vmatprep.subr.mxu0 0.0
        %5468 = vmatpush1.msra.mxu0 0.0
        %5469 = vmatprep.subr.mxu0 0.0
        %5470 = vmatpush1.msra.mxu0 0.0
        %5471 = vmatprep.subr.mxu0 0.0
        %5472 = vmatpush1.msra.mxu0 0.0
        %5473 = vmatprep.subr.mxu0 0.0
        %5474 = vmatpush1.msra.mxu0 0.0
        %5475 = vmatprep.subr.mxu0 0.0
        %5476 = vmatpush1.msra.mxu0 0.0
        %5477 = vmatprep.subr.mxu0 0.0
        %5478 = vmatpush1.msra.mxu0 0.0
        %5479 = vmatprep.mubr.f32.mxu0 0.0
        %5480 = vmatmul.mubr.f32.gmra.mrb[0].mxu0 %v5413
        %v5481 = vpop.f32.mrb[0].mxu0
        %v5482 = vadd.f32 0.0, %v5481
        %v5483 = vpop.f32.mrb[0].mxu0
        %5484 = vdwg.mxu0
        %s5485 = scalar_lea.vmem [#allocation8], 1408
        %v5486 = vld [vmem:[%s5485] sm:$0xff]
        %v5487 = vld [vmem:[%s5485 + $0x8] sm:$0xff]
        %v5488 = vld [vmem:[%s5485 + $0x10] sm:$0xff]
        %v5489 = vld [vmem:[%s5485 + $0x18] sm:$0xff]
        %v5490 = vld [vmem:[%s5485 + $0x20] sm:$0xff]
        %v5491 = vld [vmem:[%s5485 + $0x28] sm:$0xff]
        %v5492 = vld [vmem:[%s5485 + $0x30] sm:$0xff]
        %v5493 = vld [vmem:[%s5485 + $0x38] sm:$0xff]
        %v5494 = vld [vmem:[%s5485 + $0x40] sm:$0xff]
        %v5495 = vld [vmem:[%s5485 + $0x48] sm:$0xff]
        %v5496 = vld [vmem:[%s5485 + $0x50] sm:$0xff]
        %v5497 = vld [vmem:[%s5485 + $0x58] sm:$0xff]
        %v5498 = vld [vmem:[%s5485 + $0x60] sm:$0xff]
        %v5499 = vld [vmem:[%s5485 + $0x68] sm:$0xff]
        %v5500 = vld [vmem:[%s5485 + $0x70] sm:$0xff]
        %v5501 = vld [vmem:[%s5485 + $0x78] sm:$0xff]
        %5502 = vmatprep.subr.mxu0 0.0
        %5503 = vmatpush1.msra.mxu0 %v5486
        %5504 = vmatprep.subr.mxu0 0.0
        %5505 = vmatpush1.msra.mxu0 %v5487
        %5506 = vmatprep.subr.mxu0 0.0
        %5507 = vmatpush1.msra.mxu0 %v5488
        %5508 = vmatprep.subr.mxu0 0.0
        %5509 = vmatpush1.msra.mxu0 %v5489
        %5510 = vmatprep.subr.mxu0 0.0
        %5511 = vmatpush1.msra.mxu0 %v5490
        %5512 = vmatprep.subr.mxu0 0.0
        %5513 = vmatpush1.msra.mxu0 %v5491
        %5514 = vmatprep.subr.mxu0 0.0
        %5515 = vmatpush1.msra.mxu0 %v5492
        %5516 = vmatprep.subr.mxu0 0.0
        %5517 = vmatpush1.msra.mxu0 %v5493
        %5518 = vmatprep.subr.mxu0 0.0
        %5519 = vmatpush1.msra.mxu0 %v5494
        %5520 = vmatprep.subr.mxu0 0.0
        %5521 = vmatpush1.msra.mxu0 %v5495
        %5522 = vmatprep.subr.mxu0 0.0
        %5523 = vmatpush1.msra.mxu0 %v5496
        %5524 = vmatprep.subr.mxu0 0.0
        %5525 = vmatpush1.msra.mxu0 %v5497
        %5526 = vmatprep.subr.mxu0 0.0
        %5527 = vmatpush1.msra.mxu0 %v5498
        %5528 = vmatprep.subr.mxu0 0.0
        %5529 = vmatpush1.msra.mxu0 %v5499
        %5530 = vmatprep.subr.mxu0 0.0
        %5531 = vmatpush1.msra.mxu0 %v5500
        %5532 = vmatprep.subr.mxu0 0.0
        %5533 = vmatpush1.msra.mxu0 %v5501
        %5534 = vmatprep.subr.mxu0 0.0
        %5535 = vmatpush1.msra.mxu0 0.0
        %5536 = vmatprep.subr.mxu0 0.0
        %5537 = vmatpush1.msra.mxu0 0.0
        %5538 = vmatprep.subr.mxu0 0.0
        %5539 = vmatpush1.msra.mxu0 0.0
        %5540 = vmatprep.subr.mxu0 0.0
        %5541 = vmatpush1.msra.mxu0 0.0
        %5542 = vmatprep.subr.mxu0 0.0
        %5543 = vmatpush1.msra.mxu0 0.0
        %5544 = vmatprep.subr.mxu0 0.0
        %5545 = vmatpush1.msra.mxu0 0.0
        %5546 = vmatprep.subr.mxu0 0.0
        %5547 = vmatpush1.msra.mxu0 0.0
        %5548 = vmatprep.subr.mxu0 0.0
        %5549 = vmatpush1.msra.mxu0 0.0
        %5550 = vmatprep.subr.mxu0 0.0
        %5551 = vmatpush1.msra.mxu0 0.0
        %5552 = vmatprep.subr.mxu0 0.0
        %5553 = vmatpush1.msra.mxu0 0.0
        %5554 = vmatprep.subr.mxu0 0.0
        %5555 = vmatpush1.msra.mxu0 0.0
        %5556 = vmatprep.subr.mxu0 0.0
        %5557 = vmatpush1.msra.mxu0 0.0
        %5558 = vmatprep.subr.mxu0 0.0
        %5559 = vmatpush1.msra.mxu0 0.0
        %5560 = vmatprep.subr.mxu0 0.0
        %5561 = vmatpush1.msra.mxu0 0.0
        %5562 = vmatprep.subr.mxu0 0.0
        %5563 = vmatpush1.msra.mxu0 0.0
        %5564 = vmatprep.subr.mxu0 0.0
        %5565 = vmatpush1.msra.mxu0 0.0
        %5566 = vmatprep.mubr.f32.mxu0 0.0
        %5567 = vmatmul.mubr.f32.gmra.mrb[0].mxu0 %v5482
        %v5568 = vpop.f32.mrb[0].mxu0
        %v5569 = vadd.f32 0.0, %v5568
        %v5570 = vpop.f32.mrb[0].mxu0
        %5571 = vdwg.mxu0
        %v5572 = vadd.f32 %v5410, %v5569
        %v5573 = vlaneseq
        %v5574 = vshrl.u32 %v5573, 7
        %v5575 = vsub.s32 2, %v5574
        %v5576 = vrot.slane %v4972, %v5575
        %v5577 = vmul.f32 %v5572, %v5576
        %v5578 = vlaneseq
        %v5579 = vshrl.u32 %v5578, 7
        %v5580 = vsub.s32 3, %v5579
        %v5581 = vrot.slane %v4972, %v5580
        %v5582 = vadd.f32 %v5577, %v5581
        %v5583 = vxor.u32 %v5582, 2147483648
        %v5584 = vmul.f32 %v5583, 1.442695
        %v5585 = vpow.pop %v5584
        %v5586 = vadd.f32 %v5585, 1.0
        %v5587 = vrcp.pop %v5586
        %v5588 = vmul.f32 1.0, %v5587
        %v5589 = vmul.f32 %v5582, %v5588
        %s5590 = scalar_lea.vmem [#allocation10], 384
        %v5591 = vld [vmem:[%s5590] sm:$0xff]
        %v5592 = vld [vmem:[%s5590 + $0x8] sm:$0xff]
        %v5593 = vld [vmem:[%s5590 + $0x10] sm:$0xff]
        %v5594 = vld [vmem:[%s5590 + $0x18] sm:$0xff]
        %v5595 = vld [vmem:[%s5590 + $0x20] sm:$0xff]
        %v5596 = vld [vmem:[%s5590 + $0x28] sm:$0xff]
        %v5597 = vld [vmem:[%s5590 + $0x30] sm:$0xff]
        %v5598 = vld [vmem:[%s5590 + $0x38] sm:$0xff]
        %v5599 = vld [vmem:[%s5590 + $0x40] sm:$0xff]
        %v5600 = vld [vmem:[%s5590 + $0x48] sm:$0xff]
        %v5601 = vld [vmem:[%s5590 + $0x50] sm:$0xff]
        %v5602 = vld [vmem:[%s5590 + $0x58] sm:$0xff]
        %v5603 = vld [vmem:[%s5590 + $0x60] sm:$0xff]
        %v5604 = vld [vmem:[%s5590 + $0x68] sm:$0xff]
        %v5605 = vld [vmem:[%s5590 + $0x70] sm:$0xff]
        %v5606 = vld [vmem:[%s5590 + $0x78] sm:$0xff]
        %5607 = vmatprep.subr.mxu0 0.0
        %5608 = vmatpush1.msra.mxu0 %v5591
        %5609 = vmatprep.subr.mxu0 0.0
        %5610 = vmatpush1.msra.mxu0 %v5592
        %5611 = vmatprep.subr.mxu0 0.0
        %5612 = vmatpush1.msra.mxu0 %v5593
        %5613 = vmatprep.subr.mxu0 0.0
        %5614 = vmatpush1.msra.mxu0 %v5594
        %5615 = vmatprep.subr.mxu0 0.0
        %5616 = vmatpush1.msra.mxu0 %v5595
        %5617 = vmatprep.subr.mxu0 0.0
        %5618 = vmatpush1.msra.mxu0 %v5596
        %5619 = vmatprep.subr.mxu0 0.0
        %5620 = vmatpush1.msra.mxu0 %v5597
        %5621 = vmatprep.subr.mxu0 0.0
        %5622 = vmatpush1.msra.mxu0 %v5598
        %5623 = vmatprep.subr.mxu0 0.0
        %5624 = vmatpush1.msra.mxu0 %v5599
        %5625 = vmatprep.subr.mxu0 0.0
        %5626 = vmatpush1.msra.mxu0 %v5600
        %5627 = vmatprep.subr.mxu0 0.0
        %5628 = vmatpush1.msra.mxu0 %v5601
        %5629 = vmatprep.subr.mxu0 0.0
        %5630 = vmatpush1.msra.mxu0 %v5602
        %5631 = vmatprep.subr.mxu0 0.0
        %5632 = vmatpush1.msra.mxu0 %v5603
        %5633 = vmatprep.subr.mxu0 0.0
        %5634 = vmatpush1.msra.mxu0 %v5604
        %5635 = vmatprep.subr.mxu0 0.0
        %5636 = vmatpush1.msra.mxu0 %v5605
        %5637 = vmatprep.subr.mxu0 0.0
        %5638 = vmatpush1.msra.mxu0 %v5606
        %5639 = vmatprep.subr.mxu0 0.0
        %5640 = vmatpush1.msra.mxu0 0.0
        %5641 = vmatprep.subr.mxu0 0.0
        %5642 = vmatpush1.msra.mxu0 0.0
        %5643 = vmatprep.subr.mxu0 0.0
        %5644 = vmatpush1.msra.mxu0 0.0
        %5645 = vmatprep.subr.mxu0 0.0
        %5646 = vmatpush1.msra.mxu0 0.0
        %5647 = vmatprep.subr.mxu0 0.0
        %5648 = vmatpush1.msra.mxu0 0.0
        %5649 = vmatprep.subr.mxu0 0.0
        %5650 = vmatpush1.msra.mxu0 0.0
        %5651 = vmatprep.subr.mxu0 0.0
        %5652 = vmatpush1.msra.mxu0 0.0
        %5653 = vmatprep.subr.mxu0 0.0
        %5654 = vmatpush1.msra.mxu0 0.0
        %5655 = vmatprep.subr.mxu0 0.0
        %5656 = vmatpush1.msra.mxu0 0.0
        %5657 = vmatprep.subr.mxu0 0.0
        %5658 = vmatpush1.msra.mxu0 0.0
        %5659 = vmatprep.subr.mxu0 0.0
        %5660 = vmatpush1.msra.mxu0 0.0
        %5661 = vmatprep.subr.mxu0 0.0
        %5662 = vmatpush1.msra.mxu0 0.0
        %5663 = vmatprep.subr.mxu0 0.0
        %5664 = vmatpush1.msra.mxu0 0.0
        %5665 = vmatprep.subr.mxu0 0.0
        %5666 = vmatpush1.msra.mxu0 0.0
        %5667 = vmatprep.subr.mxu0 0.0
        %5668 = vmatpush1.msra.mxu0 0.0
        %5669 = vmatprep.subr.mxu0 0.0
        %5670 = vmatpush1.msra.mxu0 0.0
        %5671 = vmatprep.mubr.f32.mxu0 0.0
        %5672 = vmatmul.mubr.f32.gmra.mrb[0].mxu0 %v5589
        %v5673 = vpop.f32.mrb[0].mxu0
        %v5674 = vadd.f32 0.0, %v5673
        %v5675 = vpop.f32.mrb[0].mxu0
        %5676 = vdwg.mxu0
        %v5677 = vlaneseq
        %v5678 = vshrl.u32 %v5677, 7
        %v5679 = vsub.s32 4, %v5678
        %v5680 = vrot.slane %v4972, %v5679
        %v5681 = vmul.f32 %v5674, %v5680
        %v5682 = vlaneseq
        %v5683 = vshrl.u32 %v5682, 7
        %v5684 = vsub.s32 5, %v5683
        %v5685 = vrot.slane %v4972, %v5684
        %v5686 = vadd.f32 %v5681, %v5685
        %vm5687 = vcmask 1043456
        %v5688 = vsel %vm5687, %v5686, 0.0
        %v5689 = vrot.slane %v5688, 4
        %v5690 = vadd.f32 %v5688, %v5689
        %v5691 = vrot.slane %v5690, 2
        %v5692 = vadd.f32 %v5690, %v5691
        %v5693 = vrot.slane %v5692, 1
        %v5694 = vadd.f32 %v5692, %v5693
        %v5695 = vrcp.pop 4.0
        %v5696 = vmul.f32 %v5694, %v5695
        %s5697 = scalar_lea.vmem [#allocation11], 384
        %v5698 = vld [vmem:[%s5697] sm:$0xff]
        %v5699 = vld [vmem:[%s5697 + $0x8] sm:$0xff]
        %v5700 = vld [vmem:[%s5697 + $0x10] sm:$0xff]
        %v5701 = vld [vmem:[%s5697 + $0x18] sm:$0xff]
        %v5702 = vld [vmem:[%s5697 + $0x20] sm:$0xff]
        %v5703 = vld [vmem:[%s5697 + $0x28] sm:$0xff]
        %v5704 = vld [vmem:[%s5697 + $0x30] sm:$0xff]
        %v5705 = vld [vmem:[%s5697 + $0x38] sm:$0xff]
        %v5706 = vld [vmem:[%s5697 + $0x40] sm:$0xff]
        %v5707 = vld [vmem:[%s5697 + $0x48] sm:$0xff]
        %v5708 = vld [vmem:[%s5697 + $0x50] sm:$0xff]
        %v5709 = vld [vmem:[%s5697 + $0x58] sm:$0xff]
        %v5710 = vld [vmem:[%s5697 + $0x60] sm:$0xff]
        %v5711 = vld [vmem:[%s5697 + $0x68] sm:$0xff]
        %v5712 = vld [vmem:[%s5697 + $0x70] sm:$0xff]
        %v5713 = vld [vmem:[%s5697 + $0x78] sm:$0xff]
        %v5715 = vrot.slane %v4972, 6
        %5717 = vmatprep.subr.mxu0 0.0
        %5718 = vmatpush1.msra.mxu0 %v5698
        %5719 = vmatprep.subr.mxu0 0.0
        %5720 = vmatpush1.msra.mxu0 %v5699
        %5721 = vmatprep.subr.mxu0 0.0
        %5722 = vmatpush1.msra.mxu0 %v5700
        %5723 = vmatprep.subr.mxu0 0.0
        %5724 = vmatpush1.msra.mxu0 %v5701
        %5725 = vmatprep.subr.mxu0 0.0
        %5726 = vmatpush1.msra.mxu0 %v5702
        %5727 = vmatprep.subr.mxu0 0.0
        %5728 = vmatpush1.msra.mxu0 %v5703
        %5729 = vmatprep.subr.mxu0 0.0
        %5730 = vmatpush1.msra.mxu0 %v5704
        %5731 = vmatprep.subr.mxu0 0.0
        %5732 = vmatpush1.msra.mxu0 %v5705
        %5733 = vmatprep.subr.mxu0 0.0
        %5734 = vmatpush1.msra.mxu0 %v5706
        %5735 = vmatprep.subr.mxu0 0.0
        %5736 = vmatpush1.msra.mxu0 %v5707
        %5737 = vmatprep.subr.mxu0 0.0
        %5738 = vmatpush1.msra.mxu0 %v5708
        %5739 = vmatprep.subr.mxu0 0.0
        %5740 = vmatpush1.msra.mxu0 %v5709
        %5741 = vmatprep.subr.mxu0 0.0
        %5742 = vmatpush1.msra.mxu0 %v5710
        %5743 = vmatprep.subr.mxu0 0.0
        %5744 = vmatpush1.msra.mxu0 %v5711
        %5745 = vmatprep.subr.mxu0 0.0
        %5746 = vmatpush1.msra.mxu0 %v5712
        %5747 = vmatprep.subr.mxu0 0.0
        %5748 = vmatpush1.msra.mxu0 %v5713
        %5749 = vmatprep.subr.mxu0 0.0
        %5750 = vmatpush1.msra.mxu0 0.0
        %5751 = vmatprep.subr.mxu0 0.0
        %5752 = vmatpush1.msra.mxu0 0.0
        %5753 = vmatprep.subr.mxu0 0.0
        %5754 = vmatpush1.msra.mxu0 0.0
        %5755 = vmatprep.subr.mxu0 0.0
        %5756 = vmatpush1.msra.mxu0 0.0
        %5757 = vmatprep.subr.mxu0 0.0
        %5758 = vmatpush1.msra.mxu0 0.0
        %5759 = vmatprep.subr.mxu0 0.0
        %5760 = vmatpush1.msra.mxu0 0.0
        %5761 = vmatprep.subr.mxu0 0.0
        %5762 = vmatpush1.msra.mxu0 0.0
        %5763 = vmatprep.subr.mxu0 0.0
        %5764 = vmatpush1.msra.mxu0 0.0
        %5765 = vmatprep.subr.mxu0 0.0
        %5766 = vmatpush1.msra.mxu0 0.0
        %5767 = vmatprep.subr.mxu0 0.0
        %5768 = vmatpush1.msra.mxu0 0.0
        %5769 = vmatprep.subr.mxu0 0.0
        %5770 = vmatpush1.msra.mxu0 0.0
        %5771 = vmatprep.subr.mxu0 0.0
        %5772 = vmatpush1.msra.mxu0 0.0
        %5773 = vmatprep.subr.mxu0 0.0
        %5774 = vmatpush1.msra.mxu0 0.0
        %5775 = vmatprep.subr.mxu0 0.0
        %5776 = vmatpush1.msra.mxu0 0.0
        %5777 = vmatprep.subr.mxu0 0.0
        %5778 = vmatpush1.msra.mxu0 0.0
        %5779 = vmatprep.subr.mxu0 0.0
        %5780 = vmatpush1.msra.mxu0 0.0
        %5781 = vmatprep.mubr.f32.mxu0 0.0
        %5782 = vmatmul.mubr.f32.gmra.mrb[0].mxu0 %v5696
        %v5783 = vpop.f32.mrb[0].mxu0
        %v5784 = vadd.f32 %v5715, %v5783
        %v5785 = vpop.f32.mrb[0].mxu0
        %5786 = vdwg.mxu0
        %v5787 = vxor.u32 %v5784, 2147483648
        %v5788 = vmul.f32 %v5787, 1.442695
        %v5789 = vpow.pop %v5788
        %v5790 = vadd.f32 %v5789, 1.0
        %v5791 = vrcp.pop %v5790
        %v5792 = vmul.f32 1.0, %v5791
        %v5793 = vmul.f32 %v5784, %v5792
        %s5794 = scalar_lea.vmem %s7, 384
        %v5795 = vld [vmem:[%s5794] sm:$0xff]
        %v5796 = vld [vmem:[%s5794 + $0x8] sm:$0xff]
        %v5797 = vld [vmem:[%s5794 + $0x10] sm:$0xff]
        %v5798 = vld [vmem:[%s5794 + $0x18] sm:$0xff]
        %v5799 = vld [vmem:[%s5794 + $0x20] sm:$0xff]
        %v5800 = vld [vmem:[%s5794 + $0x28] sm:$0xff]
        %v5801 = vld [vmem:[%s5794 + $0x30] sm:$0xff]
        %v5802 = vld [vmem:[%s5794 + $0x38] sm:$0xff]
        %v5803 = vld [vmem:[%s5794 + $0x40] sm:$0xff]
        %v5804 = vld [vmem:[%s5794 + $0x48] sm:$0xff]
        %v5805 = vld [vmem:[%s5794 + $0x50] sm:$0xff]
        %v5806 = vld [vmem:[%s5794 + $0x58] sm:$0xff]
        %v5807 = vld [vmem:[%s5794 + $0x60] sm:$0xff]
        %v5808 = vld [vmem:[%s5794 + $0x68] sm:$0xff]
        %v5809 = vld [vmem:[%s5794 + $0x70] sm:$0xff]
        %v5810 = vld [vmem:[%s5794 + $0x78] sm:$0xff]
        %v5811 = vrot.slane %v4972, 7
        %5813 = vmatprep.subr.mxu0 0.0
        %5814 = vmatpush1.msra.mxu0 %v5795
        %5815 = vmatprep.subr.mxu0 0.0
        %5816 = vmatpush1.msra.mxu0 %v5796
        %5817 = vmatprep.subr.mxu0 0.0
        %5818 = vmatpush1.msra.mxu0 %v5797
        %5819 = vmatprep.subr.mxu0 0.0
        %5820 = vmatpush1.msra.mxu0 %v5798
        %5821 = vmatprep.subr.mxu0 0.0
        %5822 = vmatpush1.msra.mxu0 %v5799
        %5823 = vmatprep.subr.mxu0 0.0
        %5824 = vmatpush1.msra.mxu0 %v5800
        %5825 = vmatprep.subr.mxu0 0.0
        %5826 = vmatpush1.msra.mxu0 %v5801
        %5827 = vmatprep.subr.mxu0 0.0
        %5828 = vmatpush1.msra.mxu0 %v5802
        %5829 = vmatprep.subr.mxu0 0.0
        %5830 = vmatpush1.msra.mxu0 %v5803
        %5831 = vmatprep.subr.mxu0 0.0
        %5832 = vmatpush1.msra.mxu0 %v5804
        %5833 = vmatprep.subr.mxu0 0.0
        %5834 = vmatpush1.msra.mxu0 %v5805
        %5835 = vmatprep.subr.mxu0 0.0
        %5836 = vmatpush1.msra.mxu0 %v5806
        %5837 = vmatprep.subr.mxu0 0.0
        %5838 = vmatpush1.msra.mxu0 %v5807
        %5839 = vmatprep.subr.mxu0 0.0
        %5840 = vmatpush1.msra.mxu0 %v5808
        %5841 = vmatprep.subr.mxu0 0.0
        %5842 = vmatpush1.msra.mxu0 %v5809
        %5843 = vmatprep.subr.mxu0 0.0
        %5844 = vmatpush1.msra.mxu0 %v5810
        %5845 = vmatprep.subr.mxu0 0.0
        %5846 = vmatpush1.msra.mxu0 0.0
        %5847 = vmatprep.subr.mxu0 0.0
        %5848 = vmatpush1.msra.mxu0 0.0
        %5849 = vmatprep.subr.mxu0 0.0
        %5850 = vmatpush1.msra.mxu0 0.0
        %5851 = vmatprep.subr.mxu0 0.0
        %5852 = vmatpush1.msra.mxu0 0.0
        %5853 = vmatprep.subr.mxu0 0.0
        %5854 = vmatpush1.msra.mxu0 0.0
        %5855 = vmatprep.subr.mxu0 0.0
        %5856 = vmatpush1.msra.mxu0 0.0
        %5857 = vmatprep.subr.mxu0 0.0
        %5858 = vmatpush1.msra.mxu0 0.0
        %5859 = vmatprep.subr.mxu0 0.0
        %5860 = vmatpush1.msra.mxu0 0.0
        %5861 = vmatprep.subr.mxu0 0.0
        %5862 = vmatpush1.msra.mxu0 0.0
        %5863 = vmatprep.subr.mxu0 0.0
        %5864 = vmatpush1.msra.mxu0 0.0
        %5865 = vmatprep.subr.mxu0 0.0
        %5866 = vmatpush1.msra.mxu0 0.0
        %5867 = vmatprep.subr.mxu0 0.0
        %5868 = vmatpush1.msra.mxu0 0.0
        %5869 = vmatprep.subr.mxu0 0.0
        %5870 = vmatpush1.msra.mxu0 0.0
        %5871 = vmatprep.subr.mxu0 0.0
        %5872 = vmatpush1.msra.mxu0 0.0
        %5873 = vmatprep.subr.mxu0 0.0
        %5874 = vmatpush1.msra.mxu0 0.0
        %5875 = vmatprep.subr.mxu0 0.0
        %5876 = vmatpush1.msra.mxu0 0.0
        %5877 = vmatprep.mubr.f32.mxu0 0.0
        %5878 = vmatmul.mubr.f32.gmra.mrb[0].mxu0 %v5793
        %v5879 = vpop.f32.mrb[0].mxu0
        %v5880 = vadd.f32 %v5811, %v5879
        %v5881 = vpop.f32.mrb[0].mxu0
        %5882 = vdwg.mxu0
        %v5883 = vxor.u32 %v5880, 2147483648
        %v5884 = vmul.f32 %v5883, 1.442695
        %v5885 = vpow.pop %v5884
        %v5886 = vadd.f32 %v5885, 1.0
        %v5887 = vrcp.pop %v5886
        %v5888 = vmul.f32 1.0, %v5887
        %5889 = vmatprep.subr.mxu0 0.0
        %5890 = vmatpush1.msra.mxu0 %v5076
        %5891 = vmatprep.subr.mxu0 0.0
        %5892 = vmatpush1.msra.mxu0 0.0
        %5893 = vmatprep.subr.mxu0 0.0
        %5894 = vmatpush1.msra.mxu0 0.0
        %5895 = vmatprep.subr.mxu0 0.0
        %5896 = vmatpush1.msra.mxu0 0.0
        %5897 = vmatprep.subr.mxu0 0.0
        %5898 = vmatpush1.msra.mxu0 0.0
        %5899 = vmatprep.subr.mxu0 0.0
        %5900 = vmatpush1.msra.mxu0 0.0
        %5901 = vmatprep.subr.mxu0 0.0
        %5902 = vmatpush1.msra.mxu0 0.0
        %5903 = vmatprep.subr.mxu0 0.0
        %5904 = vmatpush1.msra.mxu0 0.0
        %5905 = vmatprep.subr.mxu0 0.0
        %5906 = vmatpush1.msra.mxu0 0.0
        %5907 = vmatprep.subr.mxu0 0.0
        %5908 = vmatpush1.msra.mxu0 0.0
        %5909 = vmatprep.subr.mxu0 0.0
        %5910 = vmatpush1.msra.mxu0 0.0
        %5911 = vmatprep.subr.mxu0 0.0
        %5912 = vmatpush1.msra.mxu0 0.0
        %5913 = vmatprep.subr.mxu0 0.0
        %5914 = vmatpush1.msra.mxu0 0.0
        %5915 = vmatprep.subr.mxu0 0.0
        %5916 = vmatpush1.msra.mxu0 0.0
        %5917 = vmatprep.subr.mxu0 0.0
        %5918 = vmatpush1.msra.mxu0 0.0
        %5919 = vmatprep.subr.mxu0 0.0
        %5920 = vmatpush1.msra.mxu0 0.0
        %5921 = vmatprep.subr.mxu0 0.0
        %5922 = vmatpush1.msra.mxu0 0.0
        %5923 = vmatprep.subr.mxu0 0.0
        %5924 = vmatpush1.msra.mxu0 0.0
        %5925 = vmatprep.subr.mxu0 0.0
        %5926 = vmatpush1.msra.mxu0 0.0
        %5927 = vmatprep.subr.mxu0 0.0
        %5928 = vmatpush1.msra.mxu0 0.0
        %5929 = vmatprep.subr.mxu0 0.0
        %5930 = vmatpush1.msra.mxu0 0.0
        %5931 = vmatprep.subr.mxu0 0.0
        %5932 = vmatpush1.msra.mxu0 0.0
        %5933 = vmatprep.subr.mxu0 0.0
        %5934 = vmatpush1.msra.mxu0 0.0
        %5935 = vmatprep.subr.mxu0 0.0
        %5936 = vmatpush1.msra.mxu0 0.0
        %5937 = vmatprep.subr.mxu0 0.0
        %5938 = vmatpush1.msra.mxu0 0.0
        %5939 = vmatprep.subr.mxu0 0.0
        %5940 = vmatpush1.msra.mxu0 0.0
        %5941 = vmatprep.subr.mxu0 0.0
        %5942 = vmatpush1.msra.mxu0 0.0
        %5943 = vmatprep.subr.mxu0 0.0
        %5944 = vmatpush1.msra.mxu0 0.0
        %5945 = vmatprep.subr.mxu0 0.0
        %5946 = vmatpush1.msra.mxu0 0.0
        %5947 = vmatprep.subr.mxu0 0.0
        %5948 = vmatpush1.msra.mxu0 0.0
        %5949 = vmatprep.subr.mxu0 0.0
        %5950 = vmatpush1.msra.mxu0 0.0
        %5951 = vmatprep.subr.mxu0 0.0
        %5952 = vmatpush1.msra.mxu0 0.0
        %5953 = vmatprep.mubr.f32.mxu0 0.0
        %5954 = vmatmul.mubr.f32.gmra.mrb[0].mxu0 %v5184
        %v5955 = vpop.f32.mrb[0].mxu0
        %v5956 = vadd.f32 0.0, %v5955
        %v5957 = vpop.f32.mrb[0].mxu0
        %5958 = vdwg.mxu0
        %v5959 = vlaneseq
        %v5960 = vshrl.u32 %v5959, 7
        %v5961 = vsub.s32 0, %v5960
        %v5962 = vrot.slane %v4973, %v5961
        %v5963 = vmul.f32 %v5956, %v5962
        %v5964 = vlaneseq
        %v5965 = vshrl.u32 %v5964, 7
        %v5966 = vsub.s32 1, %v5965
        %v5967 = vrot.slane %v4973, %v5966
        %v5968 = vadd.f32 %v5963, %v5967
        %v5969 = vlaneseq
        %v5970 = vshrl.u32 %v5969, 7
        %v5971 = vsub.s32 0, %v5970
        %v5972 = vrot.slane %v5888, %v5971
        %v5973 = vmul.f32 %v5686, %v5972
        %v5974 = vadd.f32 %v5973, %v5968
        %v5975 = vxor.u32 %v5974, 2147483648
        %v5976 = vmul.f32 %v5975, 1.442695
        %v5977 = vpow.pop %v5976
        %v5978 = vadd.f32 %v5977, 1.0
        %v5979 = vrcp.pop %v5978
        %v5980 = vmul.f32 1.0, %v5979
        %v5981 = vmul.f32 %v5974, %v5980
        %v5982 = vld [vmem:[%s11] sm:$0xff]
        %v5983 = vld [vmem:[#allocation14] sm:$0xff]
        %v5984 = vld [vmem:[#allocation14 + $0x8] sm:$0xff]
        %v5985 = vld [vmem:[#allocation14 + $0x10] sm:$0xff]
        %v5986 = vld [vmem:[#allocation14 + $0x18] sm:$0xff]
        %v5987 = vld [vmem:[#allocation14 + $0x20] sm:$0xff]
        %v5988 = vld [vmem:[#allocation14 + $0x28] sm:$0xff]
        %v5989 = vld [vmem:[#allocation14 + $0x30] sm:$0xff]
        %v5990 = vld [vmem:[#allocation14 + $0x38] sm:$0xff]
        %v5991 = vld [vmem:[#allocation14 + $0x40] sm:$0xff]
        %v5992 = vld [vmem:[#allocation14 + $0x48] sm:$0xff]
        %v5993 = vld [vmem:[#allocation14 + $0x50] sm:$0xff]
        %v5994 = vld [vmem:[#allocation14 + $0x58] sm:$0xff]
        %v5995 = vld [vmem:[#allocation14 + $0x60] sm:$0xff]
        %v5996 = vld [vmem:[#allocation14 + $0x68] sm:$0xff]
        %v5997 = vld [vmem:[#allocation14 + $0x70] sm:$0xff]
        %v5998 = vld [vmem:[#allocation14 + $0x78] sm:$0xff]
        %v5999 = vld [vmem:[#allocation14 + $0x80] sm:$0xff]
        %v6000 = vld [vmem:[#allocation14 + $0x88] sm:$0xff]
        %v6001 = vld [vmem:[#allocation14 + $0x90] sm:$0xff]
        %v6002 = vld [vmem:[#allocation14 + $0x98] sm:$0xff]
        %v6003 = vld [vmem:[#allocation14 + $0xa0] sm:$0xff]
        %v6004 = vld [vmem:[#allocation14 + $0xa8] sm:$0xff]
        %v6005 = vld [vmem:[#allocation14 + $0xb0] sm:$0xff]
        %v6006 = vld [vmem:[#allocation14 + $0xb8] sm:$0xff]
        %v6007 = vld [vmem:[#allocation14 + $0xc0] sm:$0xff]
        %v6008 = vld [vmem:[#allocation14 + $0xc8] sm:$0xff]
        %v6009 = vld [vmem:[#allocation14 + $0xd0] sm:$0xff]
        %v6010 = vld [vmem:[#allocation14 + $0xd8] sm:$0xff]
        %v6011 = vld [vmem:[#allocation14 + $0xe0] sm:$0xff]
        %v6012 = vld [vmem:[#allocation14 + $0xe8] sm:$0xff]
        %v6013 = vld [vmem:[#allocation14 + $0xf0] sm:$0xff]
        %v6014 = vld [vmem:[#allocation14 + $0xf8] sm:$0xff]
        %v6015 = vld [vmem:[#allocation14 + $0x100] sm:$0xff]
        %v6016 = vld [vmem:[#allocation14 + $0x108] sm:$0xff]
        %v6017 = vld [vmem:[#allocation14 + $0x110] sm:$0xff]
        %v6018 = vld [vmem:[#allocation14 + $0x118] sm:$0xff]
        %v6019 = vld [vmem:[#allocation14 + $0x120] sm:$0xff]
        %v6020 = vld [vmem:[#allocation14 + $0x128] sm:$0xff]
        %v6021 = vld [vmem:[#allocation14 + $0x130] sm:$0xff]
        %v6022 = vld [vmem:[#allocation14 + $0x138] sm:$0xff]
        %v6023 = vld [vmem:[#allocation14 + $0x140] sm:$0xff]
        %v6024 = vld [vmem:[#allocation14 + $0x148] sm:$0xff]
        %v6025 = vld [vmem:[#allocation14 + $0x150] sm:$0xff]
        %v6026 = vld [vmem:[#allocation14 + $0x158] sm:$0xff]
        %v6027 = vld [vmem:[#allocation14 + $0x160] sm:$0xff]
        %v6028 = vld [vmem:[#allocation14 + $0x168] sm:$0xff]
        %v6029 = vld [vmem:[#allocation14 + $0x170] sm:$0xff]
        %v6030 = vld [vmem:[#allocation14 + $0x178] sm:$0xff]
        %6031 = vmatprep.subr.mxu0 %v5984
        %6032 = vmatpush1.msra.mxu0 %v5983
        %6033 = vmatprep.subr.mxu0 %v5987
        %6034 = vmatpush1.msra.mxu0 %v5986
        %6035 = vmatprep.subr.mxu0 %v5990
        %6036 = vmatpush1.msra.mxu0 %v5989
        %6037 = vmatprep.subr.mxu0 %v5993
        %6038 = vmatpush1.msra.mxu0 %v5992
        %6039 = vmatprep.subr.mxu0 %v5996
        %6040 = vmatpush1.msra.mxu0 %v5995
        %6041 = vmatprep.subr.mxu0 %v5999
        %6042 = vmatpush1.msra.mxu0 %v5998
        %6043 = vmatprep.subr.mxu0 %v6002
        %6044 = vmatpush1.msra.mxu0 %v6001
        %6045 = vmatprep.subr.mxu0 %v6005
        %6046 = vmatpush1.msra.mxu0 %v6004
        %6047 = vmatprep.subr.mxu0 %v6008
        %6048 = vmatpush1.msra.mxu0 %v6007
        %6049 = vmatprep.subr.mxu0 %v6011
        %6050 = vmatpush1.msra.mxu0 %v6010
        %6051 = vmatprep.subr.mxu0 %v6014
        %6052 = vmatpush1.msra.mxu0 %v6013
        %6053 = vmatprep.subr.mxu0 %v6017
        %6054 = vmatpush1.msra.mxu0 %v6016
        %6055 = vmatprep.subr.mxu0 %v6020
        %6056 = vmatpush1.msra.mxu0 %v6019
        %6057 = vmatprep.subr.mxu0 %v6023
        %6058 = vmatpush1.msra.mxu0 %v6022
        %6059 = vmatprep.subr.mxu0 %v6026
        %6060 = vmatpush1.msra.mxu0 %v6025
        %6061 = vmatprep.subr.mxu0 %v6029
        %6062 = vmatpush1.msra.mxu0 %v6028
        %6063 = vmatprep.subr.mxu0 0.0
        %6064 = vmatpush1.msra.mxu0 0.0
        %6065 = vmatprep.subr.mxu0 0.0
        %6066 = vmatpush1.msra.mxu0 0.0
        %6067 = vmatprep.subr.mxu0 0.0
        %6068 = vmatpush1.msra.mxu0 0.0
        %6069 = vmatprep.subr.mxu0 0.0
        %6070 = vmatpush1.msra.mxu0 0.0
        %6071 = vmatprep.subr.mxu0 0.0
        %6072 = vmatpush1.msra.mxu0 0.0
        %6073 = vmatprep.subr.mxu0 0.0
        %6074 = vmatpush1.msra.mxu0 0.0
        %6075 = vmatprep.subr.mxu0 0.0
        %6076 = vmatpush1.msra.mxu0 0.0
        %6077 = vmatprep.subr.mxu0 0.0
        %6078 = vmatpush1.msra.mxu0 0.0
        %6079 = vmatprep.subr.mxu0 0.0
        %6080 = vmatpush1.msra.mxu0 0.0
        %6081 = vmatprep.subr.mxu0 0.0
        %6082 = vmatpush1.msra.mxu0 0.0
        %6083 = vmatprep.subr.mxu0 0.0
        %6084 = vmatpush1.msra.mxu0 0.0
        %6085 = vmatprep.subr.mxu0 0.0
        %6086 = vmatpush1.msra.mxu0 0.0
        %6087 = vmatprep.subr.mxu0 0.0
        %6088 = vmatpush1.msra.mxu0 0.0
        %6089 = vmatprep.subr.mxu0 0.0
        %6090 = vmatpush1.msra.mxu0 0.0
        %6091 = vmatprep.subr.mxu0 0.0
        %6092 = vmatpush1.msra.mxu0 0.0
        %6093 = vmatprep.subr.mxu0 0.0
        %6094 = vmatpush1.msra.mxu0 0.0
        %6095 = vmatprep.mubr.f32.mxu0 0.0
        %6096 = vmatmul.mubr.f32.gmra.mrb[0].mxu0 %v5981
        %v6097 = vpop.f32.mrb[0].mxu0
        %v6098 = vadd.f32 0.0, %v6097
        %v6099 = vpop.f32.mrb[0].mxu0
        %v6100 = vadd.f32 0.0, %v6099
        %6101 = vdwg.mxu0
        %6102 = vmatprep.subr.mxu0 0.0
        %6103 = vmatpush1.msra.mxu0 %v5985
        %6104 = vmatprep.subr.mxu0 0.0
        %6105 = vmatpush1.msra.mxu0 %v5988
        %6106 = vmatprep.subr.mxu0 0.0
        %6107 = vmatpush1.msra.mxu0 %v5991
        %6108 = vmatprep.subr.mxu0 0.0
        %6109 = vmatpush1.msra.mxu0 %v5994
        %6110 = vmatprep.subr.mxu0 0.0
        %6111 = vmatpush1.msra.mxu0 %v5997
        %6112 = vmatprep.subr.mxu0 0.0
        %6113 = vmatpush1.msra.mxu0 %v6000
        %6114 = vmatprep.subr.mxu0 0.0
        %6115 = vmatpush1.msra.mxu0 %v6003
        %6116 = vmatprep.subr.mxu0 0.0
        %6117 = vmatpush1.msra.mxu0 %v6006
        %6118 = vmatprep.subr.mxu0 0.0
        %6119 = vmatpush1.msra.mxu0 %v6009
        %6120 = vmatprep.subr.mxu0 0.0
        %6121 = vmatpush1.msra.mxu0 %v6012
        %6122 = vmatprep.subr.mxu0 0.0
        %6123 = vmatpush1.msra.mxu0 %v6015
        %6124 = vmatprep.subr.mxu0 0.0
        %6125 = vmatpush1.msra.mxu0 %v6018
        %6126 = vmatprep.subr.mxu0 0.0
        %6127 = vmatpush1.msra.mxu0 %v6021
        %6128 = vmatprep.subr.mxu0 0.0
        %6129 = vmatpush1.msra.mxu0 %v6024
        %6130 = vmatprep.subr.mxu0 0.0
        %6131 = vmatpush1.msra.mxu0 %v6027
        %6132 = vmatprep.subr.mxu0 0.0
        %6133 = vmatpush1.msra.mxu0 %v6030
        %6134 = vmatprep.subr.mxu0 0.0
        %6135 = vmatpush1.msra.mxu0 0.0
        %6136 = vmatprep.subr.mxu0 0.0
        %6137 = vmatpush1.msra.mxu0 0.0
        %6138 = vmatprep.subr.mxu0 0.0
        %6139 = vmatpush1.msra.mxu0 0.0
        %6140 = vmatprep.subr.mxu0 0.0
        %6141 = vmatpush1.msra.mxu0 0.0
        %6142 = vmatprep.subr.mxu0 0.0
        %6143 = vmatpush1.msra.mxu0 0.0
        %6144 = vmatprep.subr.mxu0 0.0
        %6145 = vmatpush1.msra.mxu0 0.0
        %6146 = vmatprep.subr.mxu0 0.0
        %6147 = vmatpush1.msra.mxu0 0.0
        %6148 = vmatprep.subr.mxu0 0.0
        %6149 = vmatpush1.msra.mxu0 0.0
        %6150 = vmatprep.subr.mxu0 0.0
        %6151 = vmatpush1.msra.mxu0 0.0
        %6152 = vmatprep.subr.mxu0 0.0
        %6153 = vmatpush1.msra.mxu0 0.0
        %6154 = vmatprep.subr.mxu0 0.0
        %6155 = vmatpush1.msra.mxu0 0.0
        %6156 = vmatprep.subr.mxu0 0.0
        %6157 = vmatpush1.msra.mxu0 0.0
        %6158 = vmatprep.subr.mxu0 0.0
        %6159 = vmatpush1.msra.mxu0 0.0
        %6160 = vmatprep.subr.mxu0 0.0
        %6161 = vmatpush1.msra.mxu0 0.0
        %6162 = vmatprep.subr.mxu0 0.0
        %6163 = vmatpush1.msra.mxu0 0.0
        %6164 = vmatprep.subr.mxu0 0.0
        %6165 = vmatpush1.msra.mxu0 0.0
        %6166 = vmatprep.mubr.f32.mxu0 0.0
        %6167 = vmatmul.mubr.f32.gmra.mrb[0].mxu0 %v5981
        %v6168 = vpop.f32.mrb[0].mxu0
        %v6169 = vadd.f32 0.0, %v6168
        %v6170 = vpop.f32.mrb[0].mxu0
        %6171 = vdwg.mxu0
        %v6172 = vlaneseq
        %v6173 = vshrl.u32 %v6172, 7
        %v6174 = vsub.s32 0, %v6173
        %v6175 = vrot.slane %v5982, %v6174
        %v6176 = vadd.f32 %v6098, %v6175
        %v6177 = vlaneseq
        %v6178 = vshrl.u32 %v6177, 7
        %v6179 = vsub.s32 1, %v6178
        %v6180 = vrot.slane %v5982, %v6179
        %v6181 = vadd.f32 %v6100, %v6180
        %v6182 = vlaneseq
        %v6183 = vshrl.u32 %v6182, 7
        %v6184 = vsub.s32 2, %v6183
        %v6185 = vrot.slane %v5982, %v6184
        %v6186 = vadd.f32 %v6169, %v6185
        %6187 = vmatprep.subr.mxu0 0.0
        %6188 = vmatpush1.xpose.msra.mxu0 %v6181
        %6189 = vmatprep.subr.mxu0 0.0
        %6190 = vmatpush1.xpose.msra.mxu0 0.0
        %6191 = vmatprep.subr.mxu0 0.0
        %6192 = vmatpush1.xpose.msra.mxu0 0.0
        %6193 = vmatprep.subr.mxu0 0.0
        %6194 = vmatpush1.xpose.msra.mxu0 0.0
        %6195 = vmatprep.subr.mxu0 0.0
        %6196 = vmatpush1.xpose.msra.mxu0 0.0
        %6197 = vmatprep.subr.mxu0 0.0
        %6198 = vmatpush1.xpose.msra.mxu0 0.0
        %6199 = vmatprep.subr.mxu0 0.0
        %6200 = vmatpush1.xpose.msra.mxu0 0.0
        %6201 = vmatprep.subr.mxu0 0.0
        %6202 = vmatpush1.xpose.msra.mxu0 0.0
        %6203 = vmatprep.subr.mxu0 0.0
        %6204 = vmatpush1.xpose.msra.mxu0 0.0
        %6205 = vmatprep.subr.mxu0 0.0
        %6206 = vmatpush1.xpose.msra.mxu0 0.0
        %6207 = vmatprep.subr.mxu0 0.0
        %6208 = vmatpush1.xpose.msra.mxu0 0.0
        %6209 = vmatprep.subr.mxu0 0.0
        %6210 = vmatpush1.xpose.msra.mxu0 0.0
        %6211 = vmatprep.subr.mxu0 0.0
        %6212 = vmatpush1.xpose.msra.mxu0 0.0
        %6213 = vmatprep.subr.mxu0 0.0
        %6214 = vmatpush1.xpose.msra.mxu0 0.0
        %6215 = vmatprep.subr.mxu0 0.0
        %6216 = vmatpush1.xpose.msra.mxu0 0.0
        %6217 = vmatprep.subr.mxu0 0.0
        %6218 = vmatpush1.xpose.msra.mxu0 0.0
        %6219 = vmatprep.subr.mxu0 0.0
        %6220 = vmatpush1.xpose.msra.mxu0 0.0
        %6221 = vmatprep.subr.mxu0 0.0
        %6222 = vmatpush1.xpose.msra.mxu0 0.0
        %6223 = vmatprep.subr.mxu0 0.0
        %6224 = vmatpush1.xpose.msra.mxu0 0.0
        %6225 = vmatprep.subr.mxu0 0.0
        %6226 = vmatpush1.xpose.msra.mxu0 0.0
        %6227 = vmatprep.subr.mxu0 0.0
        %6228 = vmatpush1.xpose.msra.mxu0 0.0
        %6229 = vmatprep.subr.mxu0 0.0
        %6230 = vmatpush1.xpose.msra.mxu0 0.0
        %6231 = vmatprep.subr.mxu0 0.0
        %6232 = vmatpush1.xpose.msra.mxu0 0.0
        %6233 = vmatprep.subr.mxu0 0.0
        %6234 = vmatpush1.xpose.msra.mxu0 0.0
        %6235 = vmatprep.subr.mxu0 0.0
        %6236 = vmatpush1.xpose.msra.mxu0 0.0
        %6237 = vmatprep.subr.mxu0 0.0
        %6238 = vmatpush1.xpose.msra.mxu0 0.0
        %6239 = vmatprep.subr.mxu0 0.0
        %6240 = vmatpush1.xpose.msra.mxu0 0.0
        %6241 = vmatprep.subr.mxu0 0.0
        %6242 = vmatpush1.xpose.msra.mxu0 0.0
        %6243 = vmatprep.subr.mxu0 0.0
        %6244 = vmatpush1.xpose.msra.mxu0 0.0
        %6245 = vmatprep.subr.mxu0 0.0
        %6246 = vmatpush1.xpose.msra.mxu0 0.0
        %6247 = vmatprep.subr.mxu0 0.0
        %6248 = vmatpush1.xpose.msra.mxu0 0.0
        %6249 = vmatprep.subr.mxu0 0.0
        %6250 = vmatpush1.xpose.msra.mxu0 0.0
        %6251 = vmatprep.mubr.f32.mxu0 0.0
        %6252 = vmatmul.mubr.f32.gmra.mrb[0].mxu0 %v6176
        %v6253 = vpop.f32.mrb[0].mxu0
        %v6254 = vadd.f32 0.0, %v6253
        %v6255 = vpop.f32.mrb[0].mxu0
        %6256 = vdwg.mxu0
        %v6257 = vmul.f32 %v6254, 0.17677669
        %vm6258 = vcmask 27648
        %v6259 = vsel %vm6258, %v6257, -inf
        %6260 = vmax.xlane.f32.xlu0 %v6259
        %v6261 = vpop.xlane.xlu0 %6260
        %v6262 = vsub.f32 %v6257, %v6261
        %v6263 = vmul.f32 %v6262, 1.442695
        %v6264 = vpow.pop %v6263
        %v6265 = vsel %vm6258, %v6264, 0.0
        %6266 = vadd.xlane.f32.xlu0 %v6265
        %v6267 = vpop.xlane.xlu0 %6266
        %v6268 = vrcp.pop %v6267
        %v6269 = vmul.f32 %v6264, %v6268
        %vm6270 = vcmask 31744
        %v6272 = vsel %vm6270, %v6269, 0
        %v6275 = vsel %vm5687, %v6186, 0
        %6277 = vmatprep.subr.mxu0 0.0
        %6278 = vmatpush1.msra.mxu0 %v6275
        %6279 = vmatprep.subr.mxu0 0.0
        %6280 = vmatpush1.msra.mxu0 0.0
        %6281 = vmatprep.subr.mxu0 0.0
        %6282 = vmatpush1.msra.mxu0 0.0
        %6283 = vmatprep.subr.mxu0 0.0
        %6284 = vmatpush1.msra.mxu0 0.0
        %6285 = vmatprep.subr.mxu0 0.0
        %6286 = vmatpush1.msra.mxu0 0.0
        %6287 = vmatprep.subr.mxu0 0.0
        %6288 = vmatpush1.msra.mxu0 0.0
        %6289 = vmatprep.subr.mxu0 0.0
        %6290 = vmatpush1.msra.mxu0 0.0
        %6291 = vmatprep.subr.mxu0 0.0
        %6292 = vmatpush1.msra.mxu0 0.0
        %6293 = vmatprep.subr.mxu0 0.0
        %6294 = vmatpush1.msra.mxu0 0.0
        %6295 = vmatprep.subr.mxu0 0.0
        %6296 = vmatpush1.msra.mxu0 0.0
        %6297 = vmatprep.subr.mxu0 0.0
        %6298 = vmatpush1.msra.mxu0 0.0
        %6299 = vmatprep.subr.mxu0 0.0
        %6300 = vmatpush1.msra.mxu0 0.0
        %6301 = vmatprep.subr.mxu0 0.0
        %6302 = vmatpush1.msra.mxu0 0.0
        %6303 = vmatprep.subr.mxu0 0.0
        %6304 = vmatpush1.msra.mxu0 0.0
        %6305 = vmatprep.subr.mxu0 0.0
        %6306 = vmatpush1.msra.mxu0 0.0
        %6307 = vmatprep.subr.mxu0 0.0
        %6308 = vmatpush1.msra.mxu0 0.0
        %6309 = vmatprep.subr.mxu0 0.0
        %6310 = vmatpush1.msra.mxu0 0.0
        %6311 = vmatprep.subr.mxu0 0.0
        %6312 = vmatpush1.msra.mxu0 0.0
        %6313 = vmatprep.subr.mxu0 0.0
        %6314 = vmatpush1.msra.mxu0 0.0
        %6315 = vmatprep.subr.mxu0 0.0
        %6316 = vmatpush1.msra.mxu0 0.0
        %6317 = vmatprep.subr.mxu0 0.0
        %6318 = vmatpush1.msra.mxu0 0.0
        %6319 = vmatprep.subr.mxu0 0.0
        %6320 = vmatpush1.msra.mxu0 0.0
        %6321 = vmatprep.subr.mxu0 0.0
        %6322 = vmatpush1.msra.mxu0 0.0
        %6323 = vmatprep.subr.mxu0 0.0
        %6324 = vmatpush1.msra.mxu0 0.0
        %6325 = vmatprep.subr.mxu0 0.0
        %6326 = vmatpush1.msra.mxu0 0.0
        %6327 = vmatprep.subr.mxu0 0.0
        %6328 = vmatpush1.msra.mxu0 0.0
        %6329 = vmatprep.subr.mxu0 0.0
        %6330 = vmatpush1.msra.mxu0 0.0
        %6331 = vmatprep.subr.mxu0 0.0
        %6332 = vmatpush1.msra.mxu0 0.0
        %6333 = vmatprep.subr.mxu0 0.0
        %6334 = vmatpush1.msra.mxu0 0.0
        %6335 = vmatprep.subr.mxu0 0.0
        %6336 = vmatpush1.msra.mxu0 0.0
        %6337 = vmatprep.subr.mxu0 0.0
        %6338 = vmatpush1.msra.mxu0 0.0
        %6339 = vmatprep.subr.mxu0 0.0
        %6340 = vmatpush1.msra.mxu0 0.0
        %6341 = vmatprep.mubr.f32.mxu0 0.0
        %6342 = vmatmul.mubr.f32.gmra.mrb[0].mxu0 %v6272
        %v6343 = vpop.f32.mrb[0].mxu0
        %v6344 = vadd.f32 0.0, %v6343
        %v6345 = vpop.f32.mrb[0].mxu0
        %6346 = vdwg.mxu0
        %v6347 = vld [vmem:[#allocation16] sm:$0xff]
        %v6348 = vld [vmem:[#allocation16 + $0x8] sm:$0xff]
        %v6349 = vld [vmem:[#allocation16 + $0x10] sm:$0xff]
        %v6350 = vld [vmem:[#allocation16 + $0x18] sm:$0xff]
        %v6351 = vld [vmem:[#allocation16 + $0x20] sm:$0xff]
        %v6352 = vld [vmem:[#allocation16 + $0x28] sm:$0xff]
        %v6353 = vld [vmem:[#allocation16 + $0x30] sm:$0xff]
        %v6354 = vld [vmem:[#allocation16 + $0x38] sm:$0xff]
        %v6355 = vld [vmem:[#allocation16 + $0x40] sm:$0xff]
        %v6356 = vld [vmem:[#allocation16 + $0x48] sm:$0xff]
        %v6357 = vld [vmem:[#allocation16 + $0x50] sm:$0xff]
        %v6358 = vld [vmem:[#allocation16 + $0x58] sm:$0xff]
        %v6359 = vld [vmem:[#allocation16 + $0x60] sm:$0xff]
        %v6360 = vld [vmem:[#allocation16 + $0x68] sm:$0xff]
        %v6361 = vld [vmem:[#allocation16 + $0x70] sm:$0xff]
        %v6362 = vld [vmem:[#allocation16 + $0x78] sm:$0xff]
        %v6363 = vlaneseq
        %v6364 = vshrl.u32 %v6363, 7
        %v6365 = vsub.s32 3, %v6364
        %v6366 = vrot.slane %v5982, %v6365
        %6367 = vmatprep.subr.mxu0 0.0
        %6368 = vmatpush1.msra.mxu0 %v6347
        %6369 = vmatprep.subr.mxu0 0.0
        %6370 = vmatpush1.msra.mxu0 %v6348
        %6371 = vmatprep.subr.mxu0 0.0
        %6372 = vmatpush1.msra.mxu0 %v6349
        %6373 = vmatprep.subr.mxu0 0.0
        %6374 = vmatpush1.msra.mxu0 %v6350
        %6375 = vmatprep.subr.mxu0 0.0
        %6376 = vmatpush1.msra.mxu0 %v6351
        %6377 = vmatprep.subr.mxu0 0.0
        %6378 = vmatpush1.msra.mxu0 %v6352
        %6379 = vmatprep.subr.mxu0 0.0
        %6380 = vmatpush1.msra.mxu0 %v6353
        %6381 = vmatprep.subr.mxu0 0.0
        %6382 = vmatpush1.msra.mxu0 %v6354
        %6383 = vmatprep.subr.mxu0 0.0
        %6384 = vmatpush1.msra.mxu0 %v6355
        %6385 = vmatprep.subr.mxu0 0.0
        %6386 = vmatpush1.msra.mxu0 %v6356
        %6387 = vmatprep.subr.mxu0 0.0
        %6388 = vmatpush1.msra.mxu0 %v6357
        %6389 = vmatprep.subr.mxu0 0.0
        %6390 = vmatpush1.msra.mxu0 %v6358
        %6391 = vmatprep.subr.mxu0 0.0
        %6392 = vmatpush1.msra.mxu0 %v6359
        %6393 = vmatprep.subr.mxu0 0.0
        %6394 = vmatpush1.msra.mxu0 %v6360
        %6395 = vmatprep.subr.mxu0 0.0
        %6396 = vmatpush1.msra.mxu0 %v6361
        %6397 = vmatprep.subr.mxu0 0.0
        %6398 = vmatpush1.msra.mxu0 %v6362
        %6399 = vmatprep.subr.mxu0 0.0
        %6400 = vmatpush1.msra.mxu0 0.0
        %6401 = vmatprep.subr.mxu0 0.0
        %6402 = vmatpush1.msra.mxu0 0.0
        %6403 = vmatprep.subr.mxu0 0.0
        %6404 = vmatpush1.msra.mxu0 0.0
        %6405 = vmatprep.subr.mxu0 0.0
        %6406 = vmatpush1.msra.mxu0 0.0
        %6407 = vmatprep.subr.mxu0 0.0
        %6408 = vmatpush1.msra.mxu0 0.0
        %6409 = vmatprep.subr.mxu0 0.0
        %6410 = vmatpush1.msra.mxu0 0.0
        %6411 = vmatprep.subr.mxu0 0.0
        %6412 = vmatpush1.msra.mxu0 0.0
        %6413 = vmatprep.subr.mxu0 0.0
        %6414 = vmatpush1.msra.mxu0 0.0
        %6415 = vmatprep.subr.mxu0 0.0
        %6416 = vmatpush1.msra.mxu0 0.0
        %6417 = vmatprep.subr.mxu0 0.0
        %6418 = vmatpush1.msra.mxu0 0.0
        %6419 = vmatprep.subr.mxu0 0.0
        %6420 = vmatpush1.msra.mxu0 0.0
        %6421 = vmatprep.subr.mxu0 0.0
        %6422 = vmatpush1.msra.mxu0 0.0
        %6423 = vmatprep.subr.mxu0 0.0
        %6424 = vmatpush1.msra.mxu0 0.0
        %6425 = vmatprep.subr.mxu0 0.0
        %6426 = vmatpush1.msra.mxu0 0.0
        %6427 = vmatprep.subr.mxu0 0.0
        %6428 = vmatpush1.msra.mxu0 0.0
        %6429 = vmatprep.subr.mxu0 0.0
        %6430 = vmatpush1.msra.mxu0 0.0
        %6431 = vmatprep.mubr.f32.mxu0 0.0
        %6432 = vmatmul.mubr.f32.gmra.mrb[0].mxu0 %v6344
        %v6433 = vpop.f32.mrb[0].mxu0
        %v6434 = vadd.f32 %v6366, %v6433
        %v6435 = vpop.f32.mrb[0].mxu0
        %6436 = vdwg.mxu0
        %v6437 = vadd.f32 %v5981, %v6434
        %vm6438 = vcmp.lt.s32.totalorder %v966, 32
        %v6439 = vsel %vm6438, 1, 0
        %v6440 = vcvt.s32.f32 %v6439
        %v6441 = vmul.f32 %v6437, %v6440
        %v6442 = vsel %vm5687, %v6441, 0.0
        %6443 = vadd.xlane.f32.xlu0 %v6442
        %v6444 = vpop.xlane.xlu0 %6443
        %v6445 = vmul.f32 %v6444, 0.03125
        %v6446 = vsub.f32 %v6437, %v6445
        %v6447 = vmul.f32 %v6446, %v6440
        %v6448 = vmul.f32 %v6447, %v6447
        %v6449 = vsel %vm5687, %v6448, 0.0
        %6450 = vadd.xlane.f32.xlu0 %v6449
        %v6451 = vpop.xlane.xlu0 %6450
        %v6452 = vmul.f32 %v6451, 0.03125
        %v6453 = vadd.f32 %v6452, 1e-05
        %v6454 = vrsqrt.pop %v6453
        %v6455 = vmul.f32 %v6447, %v6454
        %v6456 = vlaneseq
        %v6457 = vshrl.u32 %v6456, 7
        %v6458 = vsub.s32 4, %v6457
        %v6459 = vrot.slane %v5982, %v6458
        %v6460 = vmul.f32 %v6455, %v6459
        %v6461 = vlaneseq
        %v6462 = vshrl.u32 %v6461, 7
        %v6463 = vsub.s32 5, %v6462
        %v6464 = vrot.slane %v5982, %v6463
        %v6465 = vadd.f32 %v6460, %v6464
        %v6466 = vsel %vm5687, %v6465, 0.0
        %v6467 = vrot.slane %v6466, 4
        %v6468 = vadd.f32 %v6466, %v6467
        %v6469 = vrot.slane %v6468, 2
        %v6470 = vadd.f32 %v6468, %v6469
        %v6471 = vrot.slane %v6470, 1
        %v6472 = vadd.f32 %v6470, %v6471
        %v6473 = vmul.f32 %v6472, %v5695
        %v6474 = vld [vmem:[%s13] sm:$0xff]
        %v6475 = vld [vmem:[%s12] sm:$0xff]
        %v6476 = vld [vmem:[%s12 + $0x8] sm:$0xff]
        %v6477 = vld [vmem:[%s12 + $0x10] sm:$0xff]
        %v6478 = vld [vmem:[%s12 + $0x18] sm:$0xff]
        %v6479 = vld [vmem:[%s12 + $0x20] sm:$0xff]
        %v6480 = vld [vmem:[%s12 + $0x28] sm:$0xff]
        %v6481 = vld [vmem:[%s12 + $0x30] sm:$0xff]
        %v6482 = vld [vmem:[%s12 + $0x38] sm:$0xff]
        %v6483 = vld [vmem:[%s12 + $0x40] sm:$0xff]
        %v6484 = vld [vmem:[%s12 + $0x48] sm:$0xff]
        %v6485 = vld [vmem:[%s12 + $0x50] sm:$0xff]
        %v6486 = vld [vmem:[%s12 + $0x58] sm:$0xff]
        %v6487 = vld [vmem:[%s12 + $0x60] sm:$0xff]
        %v6488 = vld [vmem:[%s12 + $0x68] sm:$0xff]
        %v6489 = vld [vmem:[%s12 + $0x70] sm:$0xff]
        %v6490 = vld [vmem:[%s12 + $0x78] sm:$0xff]
        %6491 = vmatprep.subr.mxu0 0.0
        %6492 = vmatpush1.msra.mxu0 %v6475
        %6493 = vmatprep.subr.mxu0 0.0
        %6494 = vmatpush1.msra.mxu0 %v6476
        %6495 = vmatprep.subr.mxu0 0.0
        %6496 = vmatpush1.msra.mxu0 %v6477
        %6497 = vmatprep.subr.mxu0 0.0
        %6498 = vmatpush1.msra.mxu0 %v6478
        %6499 = vmatprep.subr.mxu0 0.0
        %6500 = vmatpush1.msra.mxu0 %v6479
        %6501 = vmatprep.subr.mxu0 0.0
        %6502 = vmatpush1.msra.mxu0 %v6480
        %6503 = vmatprep.subr.mxu0 0.0
        %6504 = vmatpush1.msra.mxu0 %v6481
        %6505 = vmatprep.subr.mxu0 0.0
        %6506 = vmatpush1.msra.mxu0 %v6482
        %6507 = vmatprep.subr.mxu0 0.0
        %6508 = vmatpush1.msra.mxu0 %v6483
        %6509 = vmatprep.subr.mxu0 0.0
        %6510 = vmatpush1.msra.mxu0 %v6484
        %6511 = vmatprep.subr.mxu0 0.0
        %6512 = vmatpush1.msra.mxu0 %v6485
        %6513 = vmatprep.subr.mxu0 0.0
        %6514 = vmatpush1.msra.mxu0 %v6486
        %6515 = vmatprep.subr.mxu0 0.0
        %6516 = vmatpush1.msra.mxu0 %v6487
        %6517 = vmatprep.subr.mxu0 0.0
        %6518 = vmatpush1.msra.mxu0 %v6488
        %6519 = vmatprep.subr.mxu0 0.0
        %6520 = vmatpush1.msra.mxu0 %v6489
        %6521 = vmatprep.subr.mxu0 0.0
        %6522 = vmatpush1.msra.mxu0 %v6490
        %6523 = vmatprep.subr.mxu0 0.0
        %6524 = vmatpush1.msra.mxu0 0.0
        %6525 = vmatprep.subr.mxu0 0.0
        %6526 = vmatpush1.msra.mxu0 0.0
        %6527 = vmatprep.subr.mxu0 0.0
        %6528 = vmatpush1.msra.mxu0 0.0
        %6529 = vmatprep.subr.mxu0 0.0
        %6530 = vmatpush1.msra.mxu0 0.0
        %6531 = vmatprep.subr.mxu0 0.0
        %6532 = vmatpush1.msra.mxu0 0.0
        %6533 = vmatprep.subr.mxu0 0.0
        %6534 = vmatpush1.msra.mxu0 0.0
        %6535 = vmatprep.subr.mxu0 0.0
        %6536 = vmatpush1.msra.mxu0 0.0
        %6537 = vmatprep.subr.mxu0 0.0
        %6538 = vmatpush1.msra.mxu0 0.0
        %6539 = vmatprep.subr.mxu0 0.0
        %6540 = vmatpush1.msra.mxu0 0.0
        %6541 = vmatprep.subr.mxu0 0.0
        %6542 = vmatpush1.msra.mxu0 0.0
        %6543 = vmatprep.subr.mxu0 0.0
        %6544 = vmatpush1.msra.mxu0 0.0
        %6545 = vmatprep.subr.mxu0 0.0
        %6546 = vmatpush1.msra.mxu0 0.0
        %6547 = vmatprep.subr.mxu0 0.0
        %6548 = vmatpush1.msra.mxu0 0.0
        %6549 = vmatprep.subr.mxu0 0.0
        %6550 = vmatpush1.msra.mxu0 0.0
        %6551 = vmatprep.subr.mxu0 0.0
        %6552 = vmatpush1.msra.mxu0 0.0
        %6553 = vmatprep.subr.mxu0 0.0
        %6554 = vmatpush1.msra.mxu0 0.0
        %6555 = vmatprep.mubr.f32.mxu0 0.0
        %6556 = vmatmul.mubr.f32.gmra.mrb[0].mxu0 %v6473
        %v6557 = vpop.f32.mrb[0].mxu0
        %v6558 = vadd.f32 0.0, %v6557
        %v6559 = vpop.f32.mrb[0].mxu0
        %6560 = vdwg.mxu0
        %v6561 = vmul.f32 %v6558, %v6474
        %v6563 = vrot.slane %v6474, 1
        %v6565 = vadd.f32 %v6561, %v6563
        %v6566 = vxor.u32 %v6565, 2147483648
        %v6567 = vmul.f32 %v6566, 1.442695
        %v6568 = vpow.pop %v6567
        %v6569 = vadd.f32 %v6568, 1.0
        %v6570 = vrcp.pop %v6569
        %v6571 = vmul.f32 1.0, %v6570
        %v6572 = vmul.f32 %v6565, %v6571
        %s6573 = scalar_lea.vmem %s12, 128
        %v6574 = vld [vmem:[%s6573] sm:$0xff]
        %v6575 = vld [vmem:[%s6573 + $0x8] sm:$0xff]
        %v6576 = vld [vmem:[%s6573 + $0x10] sm:$0xff]
        %v6577 = vld [vmem:[%s6573 + $0x18] sm:$0xff]
        %v6578 = vld [vmem:[%s6573 + $0x20] sm:$0xff]
        %v6579 = vld [vmem:[%s6573 + $0x28] sm:$0xff]
        %v6580 = vld [vmem:[%s6573 + $0x30] sm:$0xff]
        %v6581 = vld [vmem:[%s6573 + $0x38] sm:$0xff]
        %v6582 = vld [vmem:[%s6573 + $0x40] sm:$0xff]
        %v6583 = vld [vmem:[%s6573 + $0x48] sm:$0xff]
        %v6584 = vld [vmem:[%s6573 + $0x50] sm:$0xff]
        %v6585 = vld [vmem:[%s6573 + $0x58] sm:$0xff]
        %v6586 = vld [vmem:[%s6573 + $0x60] sm:$0xff]
        %v6587 = vld [vmem:[%s6573 + $0x68] sm:$0xff]
        %v6588 = vld [vmem:[%s6573 + $0x70] sm:$0xff]
        %v6589 = vld [vmem:[%s6573 + $0x78] sm:$0xff]
        %6590 = vmatprep.subr.mxu0 0.0
        %6591 = vmatpush1.msra.mxu0 %v6574
        %6592 = vmatprep.subr.mxu0 0.0
        %6593 = vmatpush1.msra.mxu0 %v6575
        %6594 = vmatprep.subr.mxu0 0.0
        %6595 = vmatpush1.msra.mxu0 %v6576
        %6596 = vmatprep.subr.mxu0 0.0
        %6597 = vmatpush1.msra.mxu0 %v6577
        %6598 = vmatprep.subr.mxu0 0.0
        %6599 = vmatpush1.msra.mxu0 %v6578
        %6600 = vmatprep.subr.mxu0 0.0
        %6601 = vmatpush1.msra.mxu0 %v6579
        %6602 = vmatprep.subr.mxu0 0.0
        %6603 = vmatpush1.msra.mxu0 %v6580
        %6604 = vmatprep.subr.mxu0 0.0
        %6605 = vmatpush1.msra.mxu0 %v6581
        %6606 = vmatprep.subr.mxu0 0.0
        %6607 = vmatpush1.msra.mxu0 %v6582
        %6608 = vmatprep.subr.mxu0 0.0
        %6609 = vmatpush1.msra.mxu0 %v6583
        %6610 = vmatprep.subr.mxu0 0.0
        %6611 = vmatpush1.msra.mxu0 %v6584
        %6612 = vmatprep.subr.mxu0 0.0
        %6613 = vmatpush1.msra.mxu0 %v6585
        %6614 = vmatprep.subr.mxu0 0.0
        %6615 = vmatpush1.msra.mxu0 %v6586
        %6616 = vmatprep.subr.mxu0 0.0
        %6617 = vmatpush1.msra.mxu0 %v6587
        %6618 = vmatprep.subr.mxu0 0.0
        %6619 = vmatpush1.msra.mxu0 %v6588
        %6620 = vmatprep.subr.mxu0 0.0
        %6621 = vmatpush1.msra.mxu0 %v6589
        %6622 = vmatprep.subr.mxu0 0.0
        %6623 = vmatpush1.msra.mxu0 0.0
        %6624 = vmatprep.subr.mxu0 0.0
        %6625 = vmatpush1.msra.mxu0 0.0
        %6626 = vmatprep.subr.mxu0 0.0
        %6627 = vmatpush1.msra.mxu0 0.0
        %6628 = vmatprep.subr.mxu0 0.0
        %6629 = vmatpush1.msra.mxu0 0.0
        %6630 = vmatprep.subr.mxu0 0.0
        %6631 = vmatpush1.msra.mxu0 0.0
        %6632 = vmatprep.subr.mxu0 0.0
        %6633 = vmatpush1.msra.mxu0 0.0
        %6634 = vmatprep.subr.mxu0 0.0
        %6635 = vmatpush1.msra.mxu0 0.0
        %6636 = vmatprep.subr.mxu0 0.0
        %6637 = vmatpush1.msra.mxu0 0.0
        %6638 = vmatprep.subr.mxu0 0.0
        %6639 = vmatpush1.msra.mxu0 0.0
        %6640 = vmatprep.subr.mxu0 0.0
        %6641 = vmatpush1.msra.mxu0 0.0
        %6642 = vmatprep.subr.mxu0 0.0
        %6643 = vmatpush1.msra.mxu0 0.0
        %6644 = vmatprep.subr.mxu0 0.0
        %6645 = vmatpush1.msra.mxu0 0.0
        %6646 = vmatprep.subr.mxu0 0.0
        %6647 = vmatpush1.msra.mxu0 0.0
        %6648 = vmatprep.subr.mxu0 0.0
        %6649 = vmatpush1.msra.mxu0 0.0
        %6650 = vmatprep.subr.mxu0 0.0
        %6651 = vmatpush1.msra.mxu0 0.0
        %6652 = vmatprep.subr.mxu0 0.0
        %6653 = vmatpush1.msra.mxu0 0.0
        %6654 = vmatprep.mubr.f32.mxu0 0.0
        %6655 = vmatmul.mubr.f32.gmra.mrb[0].mxu0 %v6572
        %v6656 = vpop.f32.mrb[0].mxu0
        %v6657 = vadd.f32 0.0, %v6656
        %v6658 = vpop.f32.mrb[0].mxu0
        %6659 = vdwg.mxu0
        %v6660 = vrot.slane %v6474, 2
        %v6662 = vmul.f32 %v6657, %v6660
        %v6663 = vrot.slane %v6474, 3
        %v6665 = vadd.f32 %v6662, %v6663
        %v6666 = vxor.u32 %v6665, 2147483648
        %v6667 = vmul.f32 %v6666, 1.442695
        %v6668 = vpow.pop %v6667
        %v6669 = vadd.f32 %v6668, 1.0
        %v6670 = vrcp.pop %v6669
        %v6671 = vmul.f32 1.0, %v6670
        %v6672 = vmul.f32 %v6665, %v6671
        %s6673 = scalar_lea.vmem %s12, 256
        %v6674 = vld [vmem:[%s6673] sm:$0xff]
        %v6675 = vld [vmem:[%s6673 + $0x8] sm:$0xff]
        %v6676 = vld [vmem:[%s6673 + $0x10] sm:$0xff]
        %v6677 = vld [vmem:[%s6673 + $0x18] sm:$0xff]
        %v6678 = vld [vmem:[%s6673 + $0x20] sm:$0xff]
        %v6679 = vld [vmem:[%s6673 + $0x28] sm:$0xff]
        %v6680 = vld [vmem:[%s6673 + $0x30] sm:$0xff]
        %v6681 = vld [vmem:[%s6673 + $0x38] sm:$0xff]
        %v6682 = vld [vmem:[%s6673 + $0x40] sm:$0xff]
        %v6683 = vld [vmem:[%s6673 + $0x48] sm:$0xff]
        %v6684 = vld [vmem:[%s6673 + $0x50] sm:$0xff]
        %v6685 = vld [vmem:[%s6673 + $0x58] sm:$0xff]
        %v6686 = vld [vmem:[%s6673 + $0x60] sm:$0xff]
        %v6687 = vld [vmem:[%s6673 + $0x68] sm:$0xff]
        %v6688 = vld [vmem:[%s6673 + $0x70] sm:$0xff]
        %v6689 = vld [vmem:[%s6673 + $0x78] sm:$0xff]
        %6690 = vmatprep.subr.mxu0 0.0
        %6691 = vmatpush1.msra.mxu0 %v6674
        %6692 = vmatprep.subr.mxu0 0.0
        %6693 = vmatpush1.msra.mxu0 %v6675
        %6694 = vmatprep.subr.mxu0 0.0
        %6695 = vmatpush1.msra.mxu0 %v6676
        %6696 = vmatprep.subr.mxu0 0.0
        %6697 = vmatpush1.msra.mxu0 %v6677
        %6698 = vmatprep.subr.mxu0 0.0
        %6699 = vmatpush1.msra.mxu0 %v6678
        %6700 = vmatprep.subr.mxu0 0.0
        %6701 = vmatpush1.msra.mxu0 %v6679
        %6702 = vmatprep.subr.mxu0 0.0
        %6703 = vmatpush1.msra.mxu0 %v6680
        %6704 = vmatprep.subr.mxu0 0.0
        %6705 = vmatpush1.msra.mxu0 %v6681
        %6706 = vmatprep.subr.mxu0 0.0
        %6707 = vmatpush1.msra.mxu0 %v6682
        %6708 = vmatprep.subr.mxu0 0.0
        %6709 = vmatpush1.msra.mxu0 %v6683
        %6710 = vmatprep.subr.mxu0 0.0
        %6711 = vmatpush1.msra.mxu0 %v6684
        %6712 = vmatprep.subr.mxu0 0.0
        %6713 = vmatpush1.msra.mxu0 %v6685
        %6714 = vmatprep.subr.mxu0 0.0
        %6715 = vmatpush1.msra.mxu0 %v6686
        %6716 = vmatprep.subr.mxu0 0.0
        %6717 = vmatpush1.msra.mxu0 %v6687
        %6718 = vmatprep.subr.mxu0 0.0
        %6719 = vmatpush1.msra.mxu0 %v6688
        %6720 = vmatprep.subr.mxu0 0.0
        %6721 = vmatpush1.msra.mxu0 %v6689
        %6722 = vmatprep.subr.mxu0 0.0
        %6723 = vmatpush1.msra.mxu0 0.0
        %6724 = vmatprep.subr.mxu0 0.0
        %6725 = vmatpush1.msra.mxu0 0.0
        %6726 = vmatprep.subr.mxu0 0.0
        %6727 = vmatpush1.msra.mxu0 0.0
        %6728 = vmatprep.subr.mxu0 0.0
        %6729 = vmatpush1.msra.mxu0 0.0
        %6730 = vmatprep.subr.mxu0 0.0
        %6731 = vmatpush1.msra.mxu0 0.0
        %6732 = vmatprep.subr.mxu0 0.0
        %6733 = vmatpush1.msra.mxu0 0.0
        %6734 = vmatprep.subr.mxu0 0.0
        %6735 = vmatpush1.msra.mxu0 0.0
        %6736 = vmatprep.subr.mxu0 0.0
        %6737 = vmatpush1.msra.mxu0 0.0
        %6738 = vmatprep.subr.mxu0 0.0
        %6739 = vmatpush1.msra.mxu0 0.0
        %6740 = vmatprep.subr.mxu0 0.0
        %6741 = vmatpush1.msra.mxu0 0.0
        %6742 = vmatprep.subr.mxu0 0.0
        %6743 = vmatpush1.msra.mxu0 0.0
        %6744 = vmatprep.subr.mxu0 0.0
        %6745 = vmatpush1.msra.mxu0 0.0
        %6746 = vmatprep.subr.mxu0 0.0
        %6747 = vmatpush1.msra.mxu0 0.0
        %6748 = vmatprep.subr.mxu0 0.0
        %6749 = vmatpush1.msra.mxu0 0.0
        %6750 = vmatprep.subr.mxu0 0.0
        %6751 = vmatpush1.msra.mxu0 0.0
        %6752 = vmatprep.subr.mxu0 0.0
        %6753 = vmatpush1.msra.mxu0 0.0
        %6754 = vmatprep.mubr.f32.mxu0 0.0
        %6755 = vmatmul.mubr.f32.gmra.mrb[0].mxu0 %v6672
        %v6756 = vpop.f32.mrb[0].mxu0
        %v6757 = vadd.f32 0.0, %v6756
        %v6758 = vpop.f32.mrb[0].mxu0
        %6759 = vdwg.mxu0
        %v6760 = vrot.slane %v6474, 4
        %v6762 = vmul.f32 %v6757, %v6760
        %v6763 = vrot.slane %v6474, 5
        %v6765 = vadd.f32 %v6762, %v6763
        %v6766 = vxor.u32 %v6765, 2147483648
        %v6767 = vmul.f32 %v6766, 1.442695
        %v6768 = vpow.pop %v6767
        %v6769 = vadd.f32 %v6768, 1.0
        %v6770 = vrcp.pop %v6769
        %v6771 = vmul.f32 1.0, %v6770
        %6772 = vst [vmem:[%s586] sm:$0x1] %v6771
        %s6773 = sand.u32 %s340, 1
        %s6774 = scalar_lea.sflag [#allocation4], %s6773
        %s6775 = sand.u32 %s340, 1
        %s6776 = scalar_lea.vmem [#allocation17], %s6775
        // Predicated region
        $region113: #{_lambda_.1} parent=75 // pred_check
          %p6777 = pneg %p350
        $region114: #{_lambda_.1} parent=75 // pred_check_branch
          %6779 = sbr.rel (%p6777) target = $region116
        $region115: #{_lambda_.1} parent=75 // pred_region
          %s6781 = ssub.s32 16, 16
          %6782 = vsyncadd %s6774, %s6781
          %s6783 = smul.addr %s33, 16
          %s6784 = scalar_lea.hbm %s14, %s6783
          %s6786 = sshll.u32 %s6776, 4
          %s6787 = int_to_ptr.vmem [resolvable:$true] %s6786
          %6789 = dma.vmem_to_hbm [thread:$0]  %s6787, 16, %s6784, %s6774
        $region116: #{_lambda_.1} parent=75 // pred_fallthru
          _
      $region76: #{_lambda_.1} parent=5 // pred_fallthru
        _
      %p6790 = scmp.le.s32.totalorder 2, %s28
      // Predicated region
      $region117: #{_lambda_.1} parent=5 // pred_check
        %p6791 = pneg %p6790
      $region118: #{_lambda_.1} parent=5 // pred_check_branch
        %6793 = sbr.rel (%p6791) target = $region120
      $region119: #{_lambda_.1} parent=5 // pred_region
        %s6794 = ssub.s32 %s28, 2
        // Predicated region
        $region121: #{_lambda_.1} parent=119 // pred_check
          %p6795 = pneg %p356
        $region122: #{_lambda_.1} parent=119 // pred_check_branch
          %6797 = sbr.rel (%p6795) target = $region124
        $region123: #{_lambda_.1} parent=119 // pred_region
          %s6798 = sand.u32 %s341, 1
          %s6799 = scalar_lea.sflag [#allocation4], %s6798
          %s6800 = sand.u32 %s341, 1
          %s6801 = scalar_lea.vmem [#allocation17], %s6800
          %6802 = dma.done %s6799, 16
        $region124: #{_lambda_.1} parent=119 // pred_fallthru
          _
      $region120: #{_lambda_.1} parent=5 // pred_fallthru
        _
    $region6: #{_lambda_.1} parent=1 // loop_footer
      %s32 = sadd.s32 1, %s28
    $region7: #{_lambda_.1} parent=1 // loop_footer_branch
      %27 = sbr.rel target = $region3
    $region8: #{_lambda_.1} parent=1 // loop_exit
      _
    %6803 = vsyncpa [#allocation3], 1
    %s6804 = scalar_lea.sflag [#allocation3], 1
    %6805 = vsyncpa %s6804, 1
    %6806 = vsyncpa [#allocation6], 1
    %6807 = vsyncpa [#allocation9], 1
    %6808 = vsyncpa [#allocation12], 1
    %6809 = vsyncpa [#allocation15], 1
    %6810 = vsyncpa [#allocation4], 1
    %s6811 = scalar_lea.sflag [#allocation4], 1
    %6812 = vsyncpa %s6811, 1

</llo_original>
